<compile_context>
chip_gen: v5e
topology: v5e:2x2
jax: 0.10.0
libtpu: 0.0.40
codegen_flags: <defaults>
</compile_context>

<pallas_src>
import jax
import jax.numpy as jnp
from jax.experimental import pallas as pl
from jax.experimental.pallas import tpu as pltpu

_EPS = 1e-5
_NEG_SLOPE = 0.1
# Set to jnp.bfloat16 on v6e/v7x to halve matmul-operand bytes and double MXU
# rate (kept f32 by default to preserve exact parity with the PyTorch module).
_MM_DTYPE = jnp.float32
_VMEM_LIMIT = 48 * 1024 * 1024


# ----------------------------- Pallas kernels ------------------------------

def _upsample_stats_kernel(x_ref, sk_ref, wup_ref, bup_ref,
                           y_ref, yst_ref, sst_ref):
    """ConvTranspose2d(k=2, s=2) as one matmul + BN1 partial statistics."""
    _, H, W, Cin = x_ref.shape
    C4 = wup_ref.shape[1]                       # 4 * Cup, columns = (i, j, c)

    x2 = x_ref[0].reshape(H * W, Cin)
    y = jnp.dot(x2.astype(wup_ref.dtype), wup_ref[...],
                preferred_element_type=jnp.float32) + bup_ref[...]
    y_ref[0] = y.reshape(H, W, C4)

    # Partial BN1 stats for the upsampled channels (the (i, j) fold to per-
    # channel sums happens in tiny JAX glue outside).
    yst_ref[0, 0:1, :] = jnp.sum(y, axis=0, keepdims=True)
    yst_ref[0, 1:2, :] = jnp.sum(y * y, axis=0, keepdims=True)

    # Partial BN1 stats for the skip channels.
    _, H2, W2, Cs = sk_ref.shape
    sk2 = sk_ref[0].reshape(H2 * W2, Cs)
    sst_ref[0, 0:1, :] = jnp.sum(sk2, axis=0, keepdims=True)
    sst_ref[0, 1:2, :] = jnp.sum(sk2 * sk2, axis=0, keepdims=True)


def _conv3x3_acc(pad_ref, w_ref, H, W):
    """3x3 'same' conv over a zero-padded VMEM image via 9 shifted matmuls."""
    Cin = pad_ref.shape[2]
    Cout = w_ref.shape[3]
    acc = jnp.zeros((H * W, Cout), jnp.float32)
    for di in range(3):
        for dj in range(3):
            patch = pad_ref[di:di + H, dj:dj + W, :].reshape(H * W, Cin)
            acc = acc + jnp.dot(patch.astype(w_ref.dtype), w_ref[di, dj],
                                preferred_element_type=jnp.float32)
    return acc


def _bn1_conv1_shortcut_kernel(y_ref, sk_ref, sc_y_ref, sh_y_ref,
                               sc_s_ref, sh_s_ref, w1_ref, b1_ref,
                               wsy_ref, wss_ref, bs_ref,
                               z1_ref, s_ref, st_ref, xpad_ref):
    _, H2, W2, Cup = y_ref.shape
    Cs = sk_ref.shape[3]

    y = y_ref[0]                                # (H2, W2, Cup) raw upsampled
    sk = sk_ref[0]                              # (H2, W2, Cs)  raw skip

    # ---- 1x1 shortcut on the RAW concatenated input (split over the two
    #      channel groups so the concat is never materialized) ----
    y2 = y.reshape(H2 * W2, Cup)
    k2 = sk.reshape(H2 * W2, Cs)
    s_val = (jnp.dot(y2.astype(wsy_ref.dtype), wsy_ref[...],
                     preferred_element_type=jnp.float32)
             + jnp.dot(k2.astype(wss_ref.dtype), wss_ref[...],
                       preferred_element_type=jnp.float32)
             + bs_ref[...])
    s_ref[0] = s_val.reshape(H2, W2, s_ref.shape[3])

    # ---- BN1 + LeakyReLU, written into the zero-padded conv scratch
    #      (this store also performs the channel concat) ----
    xpad_ref[...] = jnp.zeros(xpad_ref.shape, xpad_ref.dtype)
    yn = y * sc_y_ref[...] + sh_y_ref[...]
    yn = jnp.where(yn >= 0, yn, _NEG_SLOPE * yn)
    kn = sk * sc_s_ref[...] + sh_s_ref[...]
    kn = jnp.where(kn >= 0, kn, _NEG_SLOPE * kn)
    xpad_ref[1:H2 + 1, 1:W2 + 1, 0:Cup] = yn
    xpad_ref[1:H2 + 1, 1:W2 + 1, Cup:Cup + Cs] = kn

    # ---- c1: 3x3 conv, 9 shifted MXU matmuls with the halo held in VMEM ----
    z1 = _conv3x3_acc(xpad_ref, w1_ref, H2, W2) + b1_ref[...]
    z1_ref[0] = z1.reshape(H2, W2, z1_ref.shape[3])

    # ---- BN2 partial statistics on the raw conv output ----
    st_ref[0, 0:1, :] = jnp.sum(z1, axis=0, keepdims=True)
    st_ref[0, 1:2, :] = jnp.sum(z1 * z1, axis=0, keepdims=True)


def _bn2_conv2_residual_kernel(z_ref, s_ref, sc2_ref, sh2_ref, w2_ref, b2_ref,
                               out_ref, zpad_ref):
    _, H2, W2, Cout = z_ref.shape

    zn = z_ref[0] * sc2_ref[...] + sh2_ref[...]
    zn = jnp.where(zn >= 0, zn, _NEG_SLOPE * zn)
    zpad_ref[...] = jnp.zeros(zpad_ref.shape, zpad_ref.dtype)
    zpad_ref[1:H2 + 1, 1:W2 + 1, :] = zn

    acc = _conv3x3_acc(zpad_ref, w2_ref, H2, W2) + b2_ref[...]
    out = acc + s_ref[0].reshape(H2 * W2, Cout)     # residual add
    out_ref[0] = out.reshape(H2, W2, Cout)


# ----------------------------- forward pass --------------------------------

def _decoder_block_forward(inputs_nchw, skip_nchw, params):
    x = jnp.transpose(inputs_nchw, (0, 2, 3, 1)).astype(jnp.float32)
    sk = jnp.transpose(skip_nchw, (0, 2, 3, 1)).astype(jnp.float32)
    N, H, W, Cin = x.shape
    _, H2, W2, Cs = sk.shape
    Cup = params["up_w"].shape[1]
    Cc = Cup + Cs
    Cout = params["c1_w"].shape[0]
    n_pix = N * H2 * W2

    # ---- weight / bias preparation (tiny, one-time XLA work) ----
    wup = (jnp.transpose(params["up_w"], (0, 2, 3, 1))
           .reshape(Cin, 4 * Cup).astype(_MM_DTYPE))            # cols = (i, j, c)
    bup = jnp.broadcast_to(params["up_b"], (4, Cup)).reshape(1, 4 * Cup)
    w1 = jnp.transpose(params["c1_w"], (2, 3, 1, 0)).astype(_MM_DTYPE)   # (3,3,Cc,Cout)
    w2 = jnp.transpose(params["c2_w"], (2, 3, 1, 0)).astype(_MM_DTYPE)   # (3,3,Cout,Cout)
    ws = jnp.transpose(params["s_w"].reshape(Cout, Cc), (1, 0))          # (Cc, Cout)
    wsy = ws[:Cup].astype(_MM_DTYPE)
    wss = ws[Cup:].astype(_MM_DTYPE)
    b1 = params["c1_b"].reshape(1, Cout).astype(jnp.float32)
    b2 = params["c2_b"].reshape(1, Cout).astype(jnp.float32)
    bs = params["s_b"].reshape(1, Cout).astype(jnp.float32)

    # ---- Kernel A: upsample + BN1 partial stats ----
    y4, yst, sst = pl.pallas_call(
        _upsample_stats_kernel,
        out_shape=(jax.ShapeDtypeStruct((N, H, W, 4 * Cup), jnp.float32),
                   jax.ShapeDtypeStruct((N, 2, 4 * Cup), jnp.float32),
                   jax.ShapeDtypeStruct((N, 2, Cs), jnp.float32)),
        grid=(N,),
        in_specs=[pl.BlockSpec((1, H, W, Cin), lambda n: (n, 0, 0, 0)),
                  pl.BlockSpec((1, H2, W2, Cs), lambda n: (n, 0, 0, 0)),
                  pl.BlockSpec((Cin, 4 * Cup), lambda n: (0, 0)),
                  pl.BlockSpec((1, 4 * Cup), lambda n: (0, 0))],
        out_specs=(pl.BlockSpec((1, H, W, 4 * Cup), lambda n: (n, 0, 0, 0)),
                   pl.BlockSpec((1, 2, 4 * Cup), lambda n: (n, 0, 0)),
                   pl.BlockSpec((1, 2, Cs), lambda n: (n, 0, 0))),
        compiler_params=pltpu.CompilerParams(
            dimension_semantics=("parallel",),
            vmem_limit_bytes=_VMEM_LIMIT),
    )(x, sk, wup, bup)

    # ---- fold BN1 statistics (tiny JAX glue) ----
    up_sum = yst[:, 0, :].sum(0).reshape(4, Cup).sum(0)
    up_sq = yst[:, 1, :].sum(0).reshape(4, Cup).sum(0)
    mean1 = jnp.concatenate([up_sum, sst[:, 0, :].sum(0)]) / n_pix
    ex2 = jnp.concatenate([up_sq, sst[:, 1, :].sum(0)]) / n_pix
    var1 = jnp.maximum(ex2 - mean1 * mean1, 0.0)     # biased var, clamped >= 0
    inv1 = params["bn1_g"] / jnp.sqrt(var1 + _EPS)
    shift1 = params["bn1_b"] - mean1 * inv1
    sc1y, sc1s = inv1[:Cup].reshape(1, Cup), inv1[Cup:].reshape(1, Cs)
    sh1y, sh1s = shift1[:Cup].reshape(1, Cup), shift1[Cup:].reshape(1, Cs)

    # TODO(synk): the 2x2 sub-pixel interleave below is left to XLA (a single
    # small pass over the Cup-wide tensor); doing it inside the kernel needs a
    # sublane-repacking relayout that Mosaic does not lower reliably.
    y_img = (y4.reshape(N, H, W, 2, 2, Cup)
             .transpose(0, 1, 3, 2, 4, 5)
             .reshape(N, H2, W2, Cup))

    # ---- Kernel B: concat + BN1 apply + LReLU + c1 (3x3) + shortcut + BN2 stats ----
    z1, s_out, st2 = pl.pallas_call(
        _bn1_conv1_shortcut_kernel,
        out_shape=(jax.ShapeDtypeStruct((N, H2, W2, Cout), jnp.float32),
                   jax.ShapeDtypeStruct((N, H2, W2, Cout), jnp.float32),
                   jax.ShapeDtypeStruct((N, 2, Cout), jnp.float32)),
        grid=(N,),
        in_specs=[pl.BlockSpec((1, H2, W2, Cup), lambda n: (n, 0, 0, 0)),
                  pl.BlockSpec((1, H2, W2, Cs), lambda n: (n, 0, 0, 0)),
                  pl.BlockSpec((1, Cup), lambda n: (0, 0)),
                  pl.BlockSpec((1, Cup), lambda n: (0, 0)),
                  pl.BlockSpec((1, Cs), lambda n: (0, 0)),
                  pl.BlockSpec((1, Cs), lambda n: (0, 0)),
                  pl.BlockSpec((3, 3, Cc, Cout), lambda n: (0, 0, 0, 0)),
                  pl.BlockSpec((1, Cout), lambda n: (0, 0)),
                  pl.BlockSpec((Cup, Cout), lambda n: (0, 0)),
                  pl.BlockSpec((Cs, Cout), lambda n: (0, 0)),
                  pl.BlockSpec((1, Cout), lambda n: (0, 0))],
        out_specs=(pl.BlockSpec((1, H2, W2, Cout), lambda n: (n, 0, 0, 0)),
                   pl.BlockSpec((1, H2, W2, Cout), lambda n: (n, 0, 0, 0)),
                   pl.BlockSpec((1, 2, Cout), lambda n: (n, 0, 0))),
        scratch_shapes=[pltpu.VMEM((H2 + 2, W2 + 2, Cc), jnp.float32)],
        compiler_params=pltpu.CompilerParams(
            dimension_semantics=("parallel",),
            vmem_limit_bytes=_VMEM_LIMIT),
    )(y_img, sk, sc1y, sh1y, sc1s, sh1s, w1, b1, wsy, wss, bs)

    # ---- fold BN2 statistics ----
    st = st2.sum(0)
    mean2 = st[0] / n_pix
    var2 = jnp.maximum(st[1] / n_pix - mean2 * mean2, 0.0)
    inv2 = params["bn2_g"] / jnp.sqrt(var2 + _EPS)
    sc2 = inv2.reshape(1, Cout)
    sh2 = (params["bn2_b"] - mean2 * inv2).reshape(1, Cout)

    # ---- Kernel C: BN2 apply + LReLU + c2 (3x3) + residual add ----
    out_nhwc = pl.pallas_call(
        _bn2_conv2_residual_kernel,
        out_shape=jax.ShapeDtypeStruct((N, H2, W2, Cout), jnp.float32),
        grid=(N,),
        in_specs=[pl.BlockSpec((1, H2, W2, Cout), lambda n: (n, 0, 0, 0)),
                  pl.BlockSpec((1, H2, W2, Cout), lambda n: (n, 0, 0, 0)),
                  pl.BlockSpec((1, Cout), lambda n: (0, 0)),
                  pl.BlockSpec((1, Cout), lambda n: (0, 0)),
                  pl.BlockSpec((3, 3, Cout, Cout), lambda n: (0, 0, 0, 0)),
                  pl.BlockSpec((1, Cout), lambda n: (0, 0))],
        out_specs=pl.BlockSpec((1, H2, W2, Cout), lambda n: (n, 0, 0, 0)),
        scratch_shapes=[pltpu.VMEM((H2 + 2, W2 + 2, Cout), jnp.float32)],
        compiler_params=pltpu.CompilerParams(
            dimension_semantics=("parallel",),
            vmem_limit_bytes=_VMEM_LIMIT),
    )(z1, s_out, sc2, sh2, w2, b2)

    return jnp.transpose(out_nhwc, (0, 3, 1, 2))      # back to NCHW


decoder_block_forward = jax.jit(_decoder_block_forward)


# ----------------------------- params init ---------------------------------

def init_params(key, in_ch, out_ch):
    cat = in_ch + out_ch
    ks = jax.random.split(key, 8)

    def rnd(k, shape, fan_in):
        bound = 1.0 / (fan_in ** 0.5)
        return jax.random.uniform(k, shape, jnp.float32, -bound, bound)

    return {
        # ConvTranspose2d(in_ch, in_ch, k=2, s=2): weight (Cin, Cout, 2, 2)
        "up_w": rnd(ks[0], (in_ch, in_ch, 2, 2), in_ch * 4),
        "up_b": rnd(ks[1], (in_ch,), in_ch * 4),
        # residual_block convs
        "c1_w": rnd(ks[2], (out_ch, cat, 3, 3), cat * 9),
        "c1_b": rnd(ks[3], (out_ch,), cat * 9),
        "c2_w": rnd(ks[4], (out_ch, out_ch, 3, 3), out_ch * 9),
        "c2_b": rnd(ks[5], (out_ch,), out_ch * 9),
        "s_w": rnd(ks[6], (out_ch, cat, 1, 1), cat),
        "s_b": rnd(ks[7], (out_ch,), cat),
        # BatchNorm affine params (PyTorch default init)
        "bn1_g": jnp.ones((cat,), jnp.float32),
        "bn1_b": jnp.zeros((cat,), jnp.float32),
        "bn2_g": jnp.ones((out_ch,), jnp.float32),
        "bn2_b": jnp.zeros((out_ch,), jnp.float32),
    }


if __name__ == "__main__":
    in_ch, out_ch = 8, 4
    N, H, W = 2, 8, 8

    key = jax.random.PRNGKey(0)
    k_in, k_skip = jax.random.split(key)
    inputs = jax.random.normal(k_in, (N, in_ch, H, W), jnp.float32)          # NCHW
    skip = jax.random.normal(k_skip, (N, out_ch, 2 * H, 2 * W), jnp.float32)

    params = init_params(jax.random.PRNGKey(42), in_ch, out_ch)

    out = decoder_block_forward(inputs, skip, params)
    jax.block_until_ready(out)

    assert out.shape == (N, out_ch, 2 * H, 2 * W), out.shape
    assert out.dtype == jnp.float32
    print("KERNEL_OK")
</pallas_src>

<mosaic_0001>
module attributes {stable_mosaic.version = 11 : i64} {
  func.func @_upsample_stats_kernel(%arg0: i32, %arg1: memref<1x8x8x8xf32, #tpu.memory_space<vmem>>, %arg2: memref<1x16x16x4xf32, #tpu.memory_space<vmem>>, %arg3: memref<8x32xf32, #tpu.memory_space<vmem>>, %arg4: memref<1x32xf32, #tpu.memory_space<vmem>>, %arg5: memref<1x8x8x32xf32, #tpu.memory_space<vmem>>, %arg6: memref<1x2x32xf32, #tpu.memory_space<vmem>>, %arg7: memref<1x2x4xf32, #tpu.memory_space<vmem>>) attributes {dimension_semantics = [#tpu.dimension_semantics<parallel>], iteration_bounds = array<i64: 2>, scalar_prefetch = 0 : i64, scratch_operands = 0 : i64, tpu.core_type = #tpu.core_type<tc>, window_params = [{transform_indices = @transform_0, window_bounds = array<i64: 1, 8, 8, 8>}, {transform_indices = @transform_1, window_bounds = array<i64: 1, 16, 16, 4>}, {pipeline_mode = #tpu.pipeline_mode<synchronous>, transform_indices = @transform_2, window_bounds = array<i64: 8, 32>}, {pipeline_mode = #tpu.pipeline_mode<synchronous>, transform_indices = @transform_3, window_bounds = array<i64: 1, 32>}, {transform_indices = @transform_4, window_bounds = array<i64: 1, 8, 8, 32>}, {transform_indices = @transform_5, window_bounds = array<i64: 1, 2, 32>}, {transform_indices = @transform_6, window_bounds = array<i64: 1, 2, 4>}]} {
    %c0 = arith.constant 0 : index
    %c0_0 = arith.constant 0 : index
    %c0_1 = arith.constant 0 : index
    %c0_2 = arith.constant 0 : index
    %0 = vector.load %arg1[%c0, %c0_0, %c0_1, %c0_2] : memref<1x8x8x8xf32, #tpu.memory_space<vmem>>, vector<1x8x8x8xf32>
    %1 = vector.shape_cast %0 : vector<1x8x8x8xf32> to vector<8x8x8xf32>
    %2 = vector.shape_cast %1 : vector<8x8x8xf32> to vector<64x8xf32>
    %c0_3 = arith.constant 0 : index
    %c0_4 = arith.constant 0 : index
    %3 = vector.load %arg3[%c0_3, %c0_4] : memref<8x32xf32, #tpu.memory_space<vmem>>, vector<8x32xf32>
    %cst = arith.constant dense<0.000000e+00> : vector<64x32xf32>
    %4 = tpu.matmul %2, %3, %cst {dimension_numbers = #tpu.dot_dimension_numbers<[1], [0], [0], [1], [0, 0, 1, 1], [], []>} : vector<64x8xf32>, vector<8x32xf32>, vector<64x32xf32> -> vector<64x32xf32>
    %c0_5 = arith.constant 0 : index
    %c0_6 = arith.constant 0 : index
    %5 = vector.load %arg4[%c0_5, %c0_6] : memref<1x32xf32, #tpu.memory_space<vmem>>, vector<1x32xf32>
    %6 = vector.broadcast %5 : vector<1x32xf32> to vector<64x32xf32>
    %7 = arith.addf %4, %6 : vector<64x32xf32>
    %8 = vector.shape_cast %7 : vector<64x32xf32> to vector<8x8x32xf32>
    %c0_7 = arith.constant 0 : index
    %c0_8 = arith.constant 0 : index
    %c0_9 = arith.constant 0 : index
    %c0_10 = arith.constant 0 : index
    %9 = vector.load %arg5[%c0_7, %c0_8, %c0_9, %c0_10] : memref<1x8x8x32xf32, #tpu.memory_space<vmem>>, vector<1x8x8x32xf32>
    %10 = vector.shape_cast %9 : vector<1x8x8x32xf32> to vector<8x8x32xf32>
    %11 = vector.shape_cast %8 : vector<8x8x32xf32> to vector<1x8x8x32xf32>
    tpu.vector_store %arg5[%c0_7, %c0_8, %c0_9, %c0_10], %11 {strides = array<i32>} : memref<1x8x8x32xf32, #tpu.memory_space<vmem>>, vector<1x8x8x32xf32>,
    %cst_11 = arith.constant dense<0.000000e+00> : vector<32xf32>
    %12 = vector.multi_reduction <add>, %7, %cst_11 [0] : vector<64x32xf32> to vector<32xf32>
    %13 = vector.shape_cast %12 : vector<32xf32> to vector<1x32xf32>
    %c0_12 = arith.constant 0 : index
    %c0_13 = arith.constant 0 : index
    %c0_14 = arith.constant 0 : index
    %14 = vector.load %arg6[%c0_12, %c0_13, %c0_14] : memref<1x2x32xf32, #tpu.memory_space<vmem>>, vector<1x1x32xf32>
    %15 = vector.shape_cast %14 : vector<1x1x32xf32> to vector<1x32xf32>
    %16 = vector.shape_cast %13 : vector<1x32xf32> to vector<1x1x32xf32>
    tpu.vector_store %arg6[%c0_12, %c0_13, %c0_14], %16 {strides = array<i32>} : memref<1x2x32xf32, #tpu.memory_space<vmem>>, vector<1x1x32xf32>,
    %17 = arith.mulf %7, %7 : vector<64x32xf32>
    %cst_15 = arith.constant dense<0.000000e+00> : vector<32xf32>
    %18 = vector.multi_reduction <add>, %17, %cst_15 [0] : vector<64x32xf32> to vector<32xf32>
    %19 = vector.shape_cast %18 : vector<32xf32> to vector<1x32xf32>
    %c0_16 = arith.constant 0 : index
    %c1 = arith.constant 1 : index
    %c0_17 = arith.constant 0 : index
    %20 = vector.load %arg6[%c0_16, %c1, %c0_17] : memref<1x2x32xf32, #tpu.memory_space<vmem>>, vector<1x1x32xf32>
    %21 = vector.shape_cast %20 : vector<1x1x32xf32> to vector<1x32xf32>
    %22 = vector.shape_cast %19 : vector<1x32xf32> to vector<1x1x32xf32>
    tpu.vector_store %arg6[%c0_16, %c1, %c0_17], %22 {strides = array<i32>} : memref<1x2x32xf32, #tpu.memory_space<vmem>>, vector<1x1x32xf32>,
    %c0_18 = arith.constant 0 : index
    %c0_19 = arith.constant 0 : index
    %c0_20 = arith.constant 0 : index
    %c0_21 = arith.constant 0 : index
    %23 = vector.load %arg2[%c0_18, %c0_19, %c0_20, %c0_21] : memref<1x16x16x4xf32, #tpu.memory_space<vmem>>, vector<1x16x16x4xf32>
    %24 = vector.shape_cast %23 : vector<1x16x16x4xf32> to vector<16x16x4xf32>
    %25 = vector.shape_cast %24 : vector<16x16x4xf32> to vector<256x4xf32>
    %cst_22 = arith.constant dense<0.000000e+00> : vector<4xf32>
    %26 = vector.multi_reduction <add>, %25, %cst_22 [0] : vector<256x4xf32> to vector<4xf32>
    %27 = vector.shape_cast %26 : vector<4xf32> to vector<1x4xf32>
    %c0_23 = arith.constant 0 : index
    %c0_24 = arith.constant 0 : index
    %c0_25 = arith.constant 0 : index
    %28 = vector.load %arg7[%c0_23, %c0_24, %c0_25] : memref<1x2x4xf32, #tpu.memory_space<vmem>>, vector<1x1x4xf32>
    %29 = vector.shape_cast %28 : vector<1x1x4xf32> to vector<1x4xf32>
    %30 = vector.shape_cast %27 : vector<1x4xf32> to vector<1x1x4xf32>
    tpu.vector_store %arg7[%c0_23, %c0_24, %c0_25], %30 {strides = array<i32>} : memref<1x2x4xf32, #tpu.memory_space<vmem>>, vector<1x1x4xf32>,
    %31 = arith.mulf %25, %25 : vector<256x4xf32>
    %cst_26 = arith.constant dense<0.000000e+00> : vector<4xf32>
    %32 = vector.multi_reduction <add>, %31, %cst_26 [0] : vector<256x4xf32> to vector<4xf32>
    %33 = vector.shape_cast %32 : vector<4xf32> to vector<1x4xf32>
    %c0_27 = arith.constant 0 : index
    %c1_28 = arith.constant 1 : index
    %c0_29 = arith.constant 0 : index
    %34 = vector.load %arg7[%c0_27, %c1_28, %c0_29] : memref<1x2x4xf32, #tpu.memory_space<vmem>>, vector<1x1x4xf32>
    %35 = vector.shape_cast %34 : vector<1x1x4xf32> to vector<1x4xf32>
    %36 = vector.shape_cast %33 : vector<1x4xf32> to vector<1x1x4xf32>
    tpu.vector_store %arg7[%c0_27, %c1_28, %c0_29], %36 {strides = array<i32>} : memref<1x2x4xf32, #tpu.memory_space<vmem>>, vector<1x1x4xf32>,
    return
  }
  func.func @transform_0(%arg0: i32) -> (i32, i32, i32, i32) {
    %c0_i32 = arith.constant 0 : i32
    %c0_i32_0 = arith.constant 0 : i32
    %c0_i32_1 = arith.constant 0 : i32
    %c0_i32_2 = arith.constant 0 : i32
    return %arg0, %c0_i32, %c0_i32_0, %c0_i32_1 : i32, i32, i32, i32
  }
  func.func @transform_1(%arg0: i32) -> (i32, i32, i32, i32) {
    %c0_i32 = arith.constant 0 : i32
    %c0_i32_0 = arith.constant 0 : i32
    %c0_i32_1 = arith.constant 0 : i32
    %c0_i32_2 = arith.constant 0 : i32
    return %arg0, %c0_i32, %c0_i32_0, %c0_i32_1 : i32, i32, i32, i32
  }
  func.func @transform_2(%arg0: i32) -> (i32, i32) {
    %c0_i32 = arith.constant 0 : i32
    %c0_i32_0 = arith.constant 0 : i32
    %c0_i32_1 = arith.constant 0 : i32
    return %c0_i32, %c0_i32_0 : i32, i32
  }
  func.func @transform_3(%arg0: i32) -> (i32, i32) {
    %c0_i32 = arith.constant 0 : i32
    %c0_i32_0 = arith.constant 0 : i32
    %c0_i32_1 = arith.constant 0 : i32
    return %c0_i32, %c0_i32_0 : i32, i32
  }
  func.func @transform_4(%arg0: i32) -> (i32, i32, i32, i32) {
    %c0_i32 = arith.constant 0 : i32
    %c0_i32_0 = arith.constant 0 : i32
    %c0_i32_1 = arith.constant 0 : i32
    %c0_i32_2 = arith.constant 0 : i32
    return %arg0, %c0_i32, %c0_i32_0, %c0_i32_1 : i32, i32, i32, i32
  }
  func.func @transform_5(%arg0: i32) -> (i32, i32, i32) {
    %c0_i32 = arith.constant 0 : i32
    %c0_i32_0 = arith.constant 0 : i32
    %c0_i32_1 = arith.constant 0 : i32
    return %arg0, %c0_i32, %c0_i32_0 : i32, i32, i32
  }
  func.func @transform_6(%arg0: i32) -> (i32, i32, i32) {
    %c0_i32 = arith.constant 0 : i32
    %c0_i32_0 = arith.constant 0 : i32
    %c0_i32_1 = arith.constant 0 : i32
    return %arg0, %c0_i32, %c0_i32_0 : i32, i32, i32
  }
}

module attributes {stable_mosaic.version = 11 : i64} {
  func.func @_bn1_conv1_shortcut_kernel(%arg0: i32, %arg1: memref<1x16x16x8xf32, #tpu.memory_space<vmem>>, %arg2: memref<1x16x16x4xf32, #tpu.memory_space<vmem>>, %arg3: memref<1x8xf32, #tpu.memory_space<vmem>>, %arg4: memref<1x8xf32, #tpu.memory_space<vmem>>, %arg5: memref<1x4xf32, #tpu.memory_space<vmem>>, %arg6: memref<1x4xf32, #tpu.memory_space<vmem>>, %arg7: memref<3x3x12x4xf32, #tpu.memory_space<vmem>>, %arg8: memref<1x4xf32, #tpu.memory_space<vmem>>, %arg9: memref<8x4xf32, #tpu.memory_space<vmem>>, %arg10: memref<4x4xf32, #tpu.memory_space<vmem>>, %arg11: memref<1x4xf32, #tpu.memory_space<vmem>>, %arg12: memref<1x16x16x4xf32, #tpu.memory_space<vmem>>, %arg13: memref<1x16x16x4xf32, #tpu.memory_space<vmem>>, %arg14: memref<1x2x4xf32, #tpu.memory_space<vmem>>, %arg15: memref<18x18x12xf32, #tpu.memory_space<vmem>>) attributes {dimension_semantics = [#tpu.dimension_semantics<parallel>], iteration_bounds = array<i64: 2>, scalar_prefetch = 0 : i64, scratch_operands = 1 : i64, tpu.core_type = #tpu.core_type<tc>, window_params = [{transform_indices = @transform_0, window_bounds = array<i64: 1, 16, 16, 8>}, {transform_indices = @transform_1, window_bounds = array<i64: 1, 16, 16, 4>}, {pipeline_mode = #tpu.pipeline_mode<synchronous>, transform_indices = @transform_2, window_bounds = array<i64: 1, 8>}, {pipeline_mode = #tpu.pipeline_mode<synchronous>, transform_indices = @transform_3, window_bounds = array<i64: 1, 8>}, {pipeline_mode = #tpu.pipeline_mode<synchronous>, transform_indices = @transform_4, window_bounds = array<i64: 1, 4>}, {pipeline_mode = #tpu.pipeline_mode<synchronous>, transform_indices = @transform_5, window_bounds = array<i64: 1, 4>}, {pipeline_mode = #tpu.pipeline_mode<synchronous>, transform_indices = @transform_6, window_bounds = array<i64: 3, 3, 12, 4>}, {pipeline_mode = #tpu.pipeline_mode<synchronous>, transform_indices = @transform_7, window_bounds = array<i64: 1, 4>}, {pipeline_mode = #tpu.pipeline_mode<synchronous>, transform_indices = @transform_8, window_bounds = array<i64: 8, 4>}, {pipeline_mode = #tpu.pipeline_mode<synchronous>, transform_indices = @transform_9, window_bounds = array<i64: 4, 4>}, {pipeline_mode = #tpu.pipeline_mode<synchronous>, transform_indices = @transform_10, window_bounds = array<i64: 1, 4>}, {transform_indices = @transform_11, window_bounds = array<i64: 1, 16, 16, 4>}, {transform_indices = @transform_12, window_bounds = array<i64: 1, 16, 16, 4>}, {transform_indices = @transform_13, window_bounds = array<i64: 1, 2, 4>}]} {
    %c0 = arith.constant 0 : index
    %c0_0 = arith.constant 0 : index
    %c0_1 = arith.constant 0 : index
    %c0_2 = arith.constant 0 : index
    %0 = vector.load %arg1[%c0, %c0_0, %c0_1, %c0_2] : memref<1x16x16x8xf32, #tpu.memory_space<vmem>>, vector<1x16x16x8xf32>
    %1 = vector.shape_cast %0 : vector<1x16x16x8xf32> to vector<16x16x8xf32>
    %c0_3 = arith.constant 0 : index
    %c0_4 = arith.constant 0 : index
    %c0_5 = arith.constant 0 : index
    %c0_6 = arith.constant 0 : index
    %2 = vector.load %arg2[%c0_3, %c0_4, %c0_5, %c0_6] : memref<1x16x16x4xf32, #tpu.memory_space<vmem>>, vector<1x16x16x4xf32>
    %3 = vector.shape_cast %2 : vector<1x16x16x4xf32> to vector<16x16x4xf32>
    %4 = vector.shape_cast %1 : vector<16x16x8xf32> to vector<256x8xf32>
    %5 = vector.shape_cast %3 : vector<16x16x4xf32> to vector<256x4xf32>
    %c0_7 = arith.constant 0 : index
    %c0_8 = arith.constant 0 : index
    %6 = vector.load %arg9[%c0_7, %c0_8] : memref<8x4xf32, #tpu.memory_space<vmem>>, vector<8x4xf32>
    %cst = arith.constant dense<0.000000e+00> : vector<256x4xf32>
    %7 = tpu.matmul %4, %6, %cst {dimension_numbers = #tpu.dot_dimension_numbers<[1], [0], [0], [1], [0, 0, 1, 1], [], []>} : vector<256x8xf32>, vector<8x4xf32>, vector<256x4xf32> -> vector<256x4xf32>
    %c0_9 = arith.constant 0 : index
    %c0_10 = arith.constant 0 : index
    %8 = vector.load %arg10[%c0_9, %c0_10] : memref<4x4xf32, #tpu.memory_space<vmem>>, vector<4x4xf32>
    %cst_11 = arith.constant dense<0.000000e+00> : vector<256x4xf32>
    %9 = tpu.matmul %5, %8, %cst_11 {dimension_numbers = #tpu.dot_dimension_numbers<[1], [0], [0], [1], [0, 0, 1, 1], [], []>} : vector<256x4xf32>, vector<4x4xf32>, vector<256x4xf32> -> vector<256x4xf32>
    %10 = arith.addf %7, %9 : vector<256x4xf32>
    %c0_12 = arith.constant 0 : index
    %c0_13 = arith.constant 0 : index
    %11 = vector.load %arg11[%c0_12, %c0_13] : memref<1x4xf32, #tpu.memory_space<vmem>>, vector<1x4xf32>
    %12 = vector.broadcast %11 : vector<1x4xf32> to vector<256x4xf32>
    %13 = arith.addf %10, %12 : vector<256x4xf32>
    %14 = vector.shape_cast %13 : vector<256x4xf32> to vector<16x16x4xf32>
    %c0_14 = arith.constant 0 : index
    %c0_15 = arith.constant 0 : index
    %c0_16 = arith.constant 0 : index
    %c0_17 = arith.constant 0 : index
    %15 = vector.load %arg13[%c0_14, %c0_15, %c0_16, %c0_17] : memref<1x16x16x4xf32, #tpu.memory_space<vmem>>, vector<1x16x16x4xf32>
    %16 = vector.shape_cast %15 : vector<1x16x16x4xf32> to vector<16x16x4xf32>
    %17 = vector.shape_cast %14 : vector<16x16x4xf32> to vector<1x16x16x4xf32>
    tpu.vector_store %arg13[%c0_14, %c0_15, %c0_16, %c0_17], %17 {strides = array<i32>} : memref<1x16x16x4xf32, #tpu.memory_space<vmem>>, vector<1x16x16x4xf32>,
    %cst_18 = arith.constant 0.000000e+00 : f32
    %18 = vector.broadcast %cst_18 : f32 to vector<18x18x12xf32>
    %c0_19 = arith.constant 0 : index
    %c0_20 = arith.constant 0 : index
    %c0_21 = arith.constant 0 : index
    %19 = vector.load %arg15[%c0_19, %c0_20, %c0_21] : memref<18x18x12xf32, #tpu.memory_space<vmem>>, vector<18x18x12xf32>
    tpu.vector_store %arg15[%c0_19, %c0_20, %c0_21], %18 {strides = array<i32>} : memref<18x18x12xf32, #tpu.memory_space<vmem>>, vector<18x18x12xf32>,
    %c0_22 = arith.constant 0 : index
    %c0_23 = arith.constant 0 : index
    %20 = vector.load %arg3[%c0_22, %c0_23] : memref<1x8xf32, #tpu.memory_space<vmem>>, vector<1x8xf32>
    %21 = vector.shape_cast %20 : vector<1x8xf32> to vector<1x1x8xf32>
    %22 = vector.broadcast %21 : vector<1x1x8xf32> to vector<16x16x8xf32>
    %23 = arith.mulf %1, %22 : vector<16x16x8xf32>
    %c0_24 = arith.constant 0 : index
    %c0_25 = arith.constant 0 : index
    %24 = vector.load %arg4[%c0_24, %c0_25] : memref<1x8xf32, #tpu.memory_space<vmem>>, vector<1x8xf32>
    %25 = vector.shape_cast %24 : vector<1x8xf32> to vector<1x1x8xf32>
    %26 = vector.broadcast %25 : vector<1x1x8xf32> to vector<16x16x8xf32>
    %27 = arith.addf %23, %26 : vector<16x16x8xf32>
    %cst_26 = arith.constant 0.000000e+00 : f32
    %28 = vector.broadcast %cst_26 : f32 to vector<16x16x8xf32>
    %29 = arith.cmpf oge, %27, %28 : vector<16x16x8xf32>
    %cst_27 = arith.constant 1.000000e-01 : f32
    %30 = vector.broadcast %cst_27 : f32 to vector<16x16x8xf32>
    %31 = arith.mulf %30, %27 : vector<16x16x8xf32>
    %32 = arith.select %29, %27, %31 : vector<16x16x8xi1>, vector<16x16x8xf32>
    %c0_28 = arith.constant 0 : index
    %c0_29 = arith.constant 0 : index
    %33 = vector.load %arg5[%c0_28, %c0_29] : memref<1x4xf32, #tpu.memory_space<vmem>>, vector<1x4xf32>
    %34 = vector.shape_cast %33 : vector<1x4xf32> to vector<1x1x4xf32>
    %35 = vector.broadcast %34 : vector<1x1x4xf32> to vector<16x16x4xf32>
    %36 = arith.mulf %3, %35 : vector<16x16x4xf32>
    %c0_30 = arith.constant 0 : index
    %c0_31 = arith.constant 0 : index
    %37 = vector.load %arg6[%c0_30, %c0_31] : memref<1x4xf32, #tpu.memory_space<vmem>>, vector<1x4xf32>
    %38 = vector.shape_cast %37 : vector<1x4xf32> to vector<1x1x4xf32>
    %39 = vector.broadcast %38 : vector<1x1x4xf32> to vector<16x16x4xf32>
    %40 = arith.addf %36, %39 : vector<16x16x4xf32>
    %cst_32 = arith.constant 0.000000e+00 : f32
    %41 = vector.broadcast %cst_32 : f32 to vector<16x16x4xf32>
    %42 = arith.cmpf oge, %40, %41 : vector<16x16x4xf32>
    %cst_33 = arith.constant 1.000000e-01 : f32
    %43 = vector.broadcast %cst_33 : f32 to vector<16x16x4xf32>
    %44 = arith.mulf %43, %40 : vector<16x16x4xf32>
    %45 = arith.select %42, %40, %44 : vector<16x16x4xi1>, vector<16x16x4xf32>
    %c1 = arith.constant 1 : index
    %c1_34 = arith.constant 1 : index
    %c0_35 = arith.constant 0 : index
    %46 = vector.load %arg15[%c1, %c1_34, %c0_35] : memref<18x18x12xf32, #tpu.memory_space<vmem>>, vector<16x16x8xf32>
    tpu.vector_store %arg15[%c1, %c1_34, %c0_35], %32 {strides = array<i32>} : memref<18x18x12xf32, #tpu.memory_space<vmem>>, vector<16x16x8xf32>,
    %c1_36 = arith.constant 1 : index
    %c1_37 = arith.constant 1 : index
    %c8 = arith.constant 8 : index
    %47 = vector.load %arg15[%c1_36, %c1_37, %c8] : memref<18x18x12xf32, #tpu.memory_space<vmem>>, vector<16x16x4xf32>
    tpu.vector_store %arg15[%c1_36, %c1_37, %c8], %45 {strides = array<i32>} : memref<18x18x12xf32, #tpu.memory_space<vmem>>, vector<16x16x4xf32>,
    %cst_38 = arith.constant 0.000000e+00 : f32
    %48 = vector.broadcast %cst_38 : f32 to vector<256x4xf32>
    %c0_39 = arith.constant 0 : index
    %c0_40 = arith.constant 0 : index
    %c0_41 = arith.constant 0 : index
    %49 = vector.load %arg15[%c0_39, %c0_40, %c0_41] : memref<18x18x12xf32, #tpu.memory_space<vmem>>, vector<16x16x12xf32>
    %50 = vector.shape_cast %49 : vector<16x16x12xf32> to vector<256x12xf32>
    %c0_42 = arith.constant 0 : index
    %c0_43 = arith.constant 0 : index
    %c0_44 = arith.constant 0 : index
    %c0_45 = arith.constant 0 : index
    %51 = vector.load %arg7[%c0_42, %c0_43, %c0_44, %c0_45] : memref<3x3x12x4xf32, #tpu.memory_space<vmem>>, vector<1x1x12x4xf32>
    %52 = vector.shape_cast %51 : vector<1x1x12x4xf32> to vector<12x4xf32>
    %cst_46 = arith.constant dense<0.000000e+00> : vector<256x4xf32>
    %53 = tpu.matmul %50, %52, %cst_46 {dimension_numbers = #tpu.dot_dimension_numbers<[1], [0], [0], [1], [0, 0, 1, 1], [], []>} : vector<256x12xf32>, vector<12x4xf32>, vector<256x4xf32> -> vector<256x4xf32>
    %54 = arith.addf %48, %53 : vector<256x4xf32>
    %c0_47 = arith.constant 0 : index
    %c1_48 = arith.constant 1 : index
    %c0_49 = arith.constant 0 : index
    %55 = vector.load %arg15[%c0_47, %c1_48, %c0_49] : memref<18x18x12xf32, #tpu.memory_space<vmem>>, vector<16x16x12xf32>
    %56 = vector.shape_cast %55 : vector<16x16x12xf32> to vector<256x12xf32>
    %c0_50 = arith.constant 0 : index
    %c1_51 = arith.constant 1 : index
    %c0_52 = arith.constant 0 : index
    %c0_53 = arith.constant 0 : index
    %57 = vector.load %arg7[%c0_50, %c1_51, %c0_52, %c0_53] : memref<3x3x12x4xf32, #tpu.memory_space<vmem>>, vector<1x1x12x4xf32>
    %58 = vector.shape_cast %57 : vector<1x1x12x4xf32> to vector<12x4xf32>
    %cst_54 = arith.constant dense<0.000000e+00> : vector<256x4xf32>
    %59 = tpu.matmul %56, %58, %cst_54 {dimension_numbers = #tpu.dot_dimension_numbers<[1], [0], [0], [1], [0, 0, 1, 1], [], []>} : vector<256x12xf32>, vector<12x4xf32>, vector<256x4xf32> -> vector<256x4xf32>
    %60 = arith.addf %54, %59 : vector<256x4xf32>
    %c0_55 = arith.constant 0 : index
    %c2 = arith.constant 2 : index
    %c0_56 = arith.constant 0 : index
    %61 = vector.load %arg15[%c0_55, %c2, %c0_56] : memref<18x18x12xf32, #tpu.memory_space<vmem>>, vector<16x16x12xf32>
    %62 = vector.shape_cast %61 : vector<16x16x12xf32> to vector<256x12xf32>
    %c0_57 = arith.constant 0 : index
    %c2_58 = arith.constant 2 : index
    %c0_59 = arith.constant 0 : index
    %c0_60 = arith.constant 0 : index
    %63 = vector.load %arg7[%c0_57, %c2_58, %c0_59, %c0_60] : memref<3x3x12x4xf32, #tpu.memory_space<vmem>>, vector<1x1x12x4xf32>
    %64 = vector.shape_cast %63 : vector<1x1x12x4xf32> to vector<12x4xf32>
    %cst_61 = arith.constant dense<0.000000e+00> : vector<256x4xf32>
    %65 = tpu.matmul %62, %64, %cst_61 {dimension_numbers = #tpu.dot_dimension_numbers<[1], [0], [0], [1], [0, 0, 1, 1], [], []>} : vector<256x12xf32>, vector<12x4xf32>, vector<256x4xf32> -> vector<256x4xf32>
    %66 = arith.addf %60, %65 : vector<256x4xf32>
    %c1_62 = arith.constant 1 : index
    %c0_63 = arith.constant 0 : index
    %c0_64 = arith.constant 0 : index
    %67 = vector.load %arg15[%c1_62, %c0_63, %c0_64] : memref<18x18x12xf32, #tpu.memory_space<vmem>>, vector<16x16x12xf32>
    %68 = vector.shape_cast %67 : vector<16x16x12xf32> to vector<256x12xf32>
    %c1_65 = arith.constant 1 : index
    %c0_66 = arith.constant 0 : index
    %c0_67 = arith.constant 0 : index
    %c0_68 = arith.constant 0 : index
    %69 = vector.load %arg7[%c1_65, %c0_66, %c0_67, %c0_68] : memref<3x3x12x4xf32, #tpu.memory_space<vmem>>, vector<1x1x12x4xf32>
    %70 = vector.shape_cast %69 : vector<1x1x12x4xf32> to vector<12x4xf32>
    %cst_69 = arith.constant dense<0.000000e+00> : vector<256x4xf32>
    %71 = tpu.matmul %68, %70, %cst_69 {dimension_numbers = #tpu.dot_dimension_numbers<[1], [0], [0], [1], [0, 0, 1, 1], [], []>} : vector<256x12xf32>, vector<12x4xf32>, vector<256x4xf32> -> vector<256x4xf32>
    %72 = arith.addf %66, %71 : vector<256x4xf32>
    %c1_70 = arith.constant 1 : index
    %c1_71 = arith.constant 1 : index
    %c0_72 = arith.constant 0 : index
    %73 = vector.load %arg15[%c1_70, %c1_71, %c0_72] : memref<18x18x12xf32, #tpu.memory_space<vmem>>, vector<16x16x12xf32>
    %74 = vector.shape_cast %73 : vector<16x16x12xf32> to vector<256x12xf32>
    %c1_73 = arith.constant 1 : index
    %c1_74 = arith.constant 1 : index
    %c0_75 = arith.constant 0 : index
    %c0_76 = arith.constant 0 : index
    %75 = vector.load %arg7[%c1_73, %c1_74, %c0_75, %c0_76] : memref<3x3x12x4xf32, #tpu.memory_space<vmem>>, vector<1x1x12x4xf32>
    %76 = vector.shape_cast %75 : vector<1x1x12x4xf32> to vector<12x4xf32>
    %cst_77 = arith.constant dense<0.000000e+00> : vector<256x4xf32>
    %77 = tpu.matmul %74, %76, %cst_77 {dimension_numbers = #tpu.dot_dimension_numbers<[1], [0], [0], [1], [0, 0, 1, 1], [], []>} : vector<256x12xf32>, vector<12x4xf32>, vector<256x4xf32> -> vector<256x4xf32>
    %78 = arith.addf %72, %77 : vector<256x4xf32>
    %c1_78 = arith.constant 1 : index
    %c2_79 = arith.constant 2 : index
    %c0_80 = arith.constant 0 : index
    %79 = vector.load %arg15[%c1_78, %c2_79, %c0_80] : memref<18x18x12xf32, #tpu.memory_space<vmem>>, vector<16x16x12xf32>
    %80 = vector.shape_cast %79 : vector<16x16x12xf32> to vector<256x12xf32>
    %c1_81 = arith.constant 1 : index
    %c2_82 = arith.constant 2 : index
    %c0_83 = arith.constant 0 : index
    %c0_84 = arith.constant 0 : index
    %81 = vector.load %arg7[%c1_81, %c2_82, %c0_83, %c0_84] : memref<3x3x12x4xf32, #tpu.memory_space<vmem>>, vector<1x1x12x4xf32>
    %82 = vector.shape_cast %81 : vector<1x1x12x4xf32> to vector<12x4xf32>
    %cst_85 = arith.constant dense<0.000000e+00> : vector<256x4xf32>
    %83 = tpu.matmul %80, %82, %cst_85 {dimension_numbers = #tpu.dot_dimension_numbers<[1], [0], [0], [1], [0, 0, 1, 1], [], []>} : vector<256x12xf32>, vector<12x4xf32>, vector<256x4xf32> -> vector<256x4xf32>
    %84 = arith.addf %78, %83 : vector<256x4xf32>
    %c2_86 = arith.constant 2 : index
    %c0_87 = arith.constant 0 : index
    %c0_88 = arith.constant 0 : index
    %85 = vector.load %arg15[%c2_86, %c0_87, %c0_88] : memref<18x18x12xf32, #tpu.memory_space<vmem>>, vector<16x16x12xf32>
    %86 = vector.shape_cast %85 : vector<16x16x12xf32> to vector<256x12xf32>
    %c2_89 = arith.constant 2 : index
    %c0_90 = arith.constant 0 : index
    %c0_91 = arith.constant 0 : index
    %c0_92 = arith.constant 0 : index
    %87 = vector.load %arg7[%c2_89, %c0_90, %c0_91, %c0_92] : memref<3x3x12x4xf32, #tpu.memory_space<vmem>>, vector<1x1x12x4xf32>
    %88 = vector.shape_cast %87 : vector<1x1x12x4xf32> to vector<12x4xf32>
    %cst_93 = arith.constant dense<0.000000e+00> : vector<256x4xf32>
    %89 = tpu.matmul %86, %88, %cst_93 {dimension_numbers = #tpu.dot_dimension_numbers<[1], [0], [0], [1], [0, 0, 1, 1], [], []>} : vector<256x12xf32>, vector<12x4xf32>, vector<256x4xf32> -> vector<256x4xf32>
    %90 = arith.addf %84, %89 : vector<256x4xf32>
    %c2_94 = arith.constant 2 : index
    %c1_95 = arith.constant 1 : index
    %c0_96 = arith.constant 0 : index
    %91 = vector.load %arg15[%c2_94, %c1_95, %c0_96] : memref<18x18x12xf32, #tpu.memory_space<vmem>>, vector<16x16x12xf32>
    %92 = vector.shape_cast %91 : vector<16x16x12xf32> to vector<256x12xf32>
    %c2_97 = arith.constant 2 : index
    %c1_98 = arith.constant 1 : index
    %c0_99 = arith.constant 0 : index
    %c0_100 = arith.constant 0 : index
    %93 = vector.load %arg7[%c2_97, %c1_98, %c0_99, %c0_100] : memref<3x3x12x4xf32, #tpu.memory_space<vmem>>, vector<1x1x12x4xf32>
    %94 = vector.shape_cast %93 : vector<1x1x12x4xf32> to vector<12x4xf32>
    %cst_101 = arith.constant dense<0.000000e+00> : vector<256x4xf32>
    %95 = tpu.matmul %92, %94, %cst_101 {dimension_numbers = #tpu.dot_dimension_numbers<[1], [0], [0], [1], [0, 0, 1, 1], [], []>} : vector<256x12xf32>, vector<12x4xf32>, vector<256x4xf32> -> vector<256x4xf32>
    %96 = arith.addf %90, %95 : vector<256x4xf32>
    %c2_102 = arith.constant 2 : index
    %c2_103 = arith.constant 2 : index
    %c0_104 = arith.constant 0 : index
    %97 = vector.load %arg15[%c2_102, %c2_103, %c0_104] : memref<18x18x12xf32, #tpu.memory_space<vmem>>, vector<16x16x12xf32>
    %98 = vector.shape_cast %97 : vector<16x16x12xf32> to vector<256x12xf32>
    %c2_105 = arith.constant 2 : index
    %c2_106 = arith.constant 2 : index
    %c0_107 = arith.constant 0 : index
    %c0_108 = arith.constant 0 : index
    %99 = vector.load %arg7[%c2_105, %c2_106, %c0_107, %c0_108] : memref<3x3x12x4xf32, #tpu.memory_space<vmem>>, vector<1x1x12x4xf32>
    %100 = vector.shape_cast %99 : vector<1x1x12x4xf32> to vector<12x4xf32>
    %cst_109 = arith.constant dense<0.000000e+00> : vector<256x4xf32>
    %101 = tpu.matmul %98, %100, %cst_109 {dimension_numbers = #tpu.dot_dimension_numbers<[1], [0], [0], [1], [0, 0, 1, 1], [], []>} : vector<256x12xf32>, vector<12x4xf32>, vector<256x4xf32> -> vector<256x4xf32>
    %102 = arith.addf %96, %101 : vector<256x4xf32>
    %c0_110 = arith.constant 0 : index
    %c0_111 = arith.constant 0 : index
    %103 = vector.load %arg8[%c0_110, %c0_111] : memref<1x4xf32, #tpu.memory_space<vmem>>, vector<1x4xf32>
    %104 = vector.broadcast %103 : vector<1x4xf32> to vector<256x4xf32>
    %105 = arith.addf %102, %104 : vector<256x4xf32>
    %106 = vector.shape_cast %105 : vector<256x4xf32> to vector<16x16x4xf32>
    %c0_112 = arith.constant 0 : index
    %c0_113 = arith.constant 0 : index
    %c0_114 = arith.constant 0 : index
    %c0_115 = arith.constant 0 : index
    %107 = vector.load %arg12[%c0_112, %c0_113, %c0_114, %c0_115] : memref<1x16x16x4xf32, #tpu.memory_space<vmem>>, vector<1x16x16x4xf32>
    %108 = vector.shape_cast %107 : vector<1x16x16x4xf32> to vector<16x16x4xf32>
    %109 = vector.shape_cast %106 : vector<16x16x4xf32> to vector<1x16x16x4xf32>
    tpu.vector_store %arg12[%c0_112, %c0_113, %c0_114, %c0_115], %109 {strides = array<i32>} : memref<1x16x16x4xf32, #tpu.memory_space<vmem>>, vector<1x16x16x4xf32>,
    %cst_116 = arith.constant dense<0.000000e+00> : vector<4xf32>
    %110 = vector.multi_reduction <add>, %105, %cst_116 [0] : vector<256x4xf32> to vector<4xf32>
    %111 = vector.shape_cast %110 : vector<4xf32> to vector<1x4xf32>
    %c0_117 = arith.constant 0 : index
    %c0_118 = arith.constant 0 : index
    %c0_119 = arith.constant 0 : index
    %112 = vector.load %arg14[%c0_117, %c0_118, %c0_119] : memref<1x2x4xf32, #tpu.memory_space<vmem>>, vector<1x1x4xf32>
    %113 = vector.shape_cast %112 : vector<1x1x4xf32> to vector<1x4xf32>
    %114 = vector.shape_cast %111 : vector<1x4xf32> to vector<1x1x4xf32>
    tpu.vector_store %arg14[%c0_117, %c0_118, %c0_119], %114 {strides = array<i32>} : memref<1x2x4xf32, #tpu.memory_space<vmem>>, vector<1x1x4xf32>,
    %115 = arith.mulf %105, %105 : vector<256x4xf32>
    %cst_120 = arith.constant dense<0.000000e+00> : vector<4xf32>
    %116 = vector.multi_reduction <add>, %115, %cst_120 [0] : vector<256x4xf32> to vector<4xf32>
    %117 = vector.shape_cast %116 : vector<4xf32> to vector<1x4xf32>
    %c0_121 = arith.constant 0 : index
    %c1_122 = arith.constant 1 : index
    %c0_123 = arith.constant 0 : index
    %118 = vector.load %arg14[%c0_121, %c1_122, %c0_123] : memref<1x2x4xf32, #tpu.memory_space<vmem>>, vector<1x1x4xf32>
    %119 = vector.shape_cast %118 : vector<1x1x4xf32> to vector<1x4xf32>
    %120 = vector.shape_cast %117 : vector<1x4xf32> to vector<1x1x4xf32>
    tpu.vector_store %arg14[%c0_121, %c1_122, %c0_123], %120 {strides = array<i32>} : memref<1x2x4xf32, #tpu.memory_space<vmem>>, vector<1x1x4xf32>,
    return
  }
  func.func @transform_0(%arg0: i32) -> (i32, i32, i32, i32) {
    %c0_i32 = arith.constant 0 : i32
    %c0_i32_0 = arith.constant 0 : i32
    %c0_i32_1 = arith.constant 0 : i32
    %c0_i32_2 = arith.constant 0 : i32
    return %arg0, %c0_i32, %c0_i32_0, %c0_i32_1 : i32, i32, i32, i32
  }
  func.func @transform_1(%arg0: i32) -> (i32, i32, i32, i32) {
    %c0_i32 = arith.constant 0 : i32
    %c0_i32_0 = arith.constant 0 : i32
    %c0_i32_1 = arith.constant 0 : i32
    %c0_i32_2 = arith.constant 0 : i32
    return %arg0, %c0_i32, %c0_i32_0, %c0_i32_1 : i32, i32, i32, i32
  }
  func.func @transform_2(%arg0: i32) -> (i32, i32) {
    %c0_i32 = arith.constant 0 : i32
    %c0_i32_0 = arith.constant 0 : i32
    %c0_i32_1 = arith.constant 0 : i32
    return %c0_i32, %c0_i32_0 : i32, i32
  }
  func.func @transform_3(%arg0: i32) -> (i32, i32) {
    %c0_i32 = arith.constant 0 : i32
    %c0_i32_0 = arith.constant 0 : i32
    %c0_i32_1 = arith.constant 0 : i32
    return %c0_i32, %c0_i32_0 : i32, i32
  }
  func.func @transform_4(%arg0: i32) -> (i32, i32) {
    %c0_i32 = arith.constant 0 : i32
    %c0_i32_0 = arith.constant 0 : i32
    %c0_i32_1 = arith.constant 0 : i32
    return %c0_i32, %c0_i32_0 : i32, i32
  }
  func.func @transform_5(%arg0: i32) -> (i32, i32) {
    %c0_i32 = arith.constant 0 : i32
    %c0_i32_0 = arith.constant 0 : i32
    %c0_i32_1 = arith.constant 0 : i32
    return %c0_i32, %c0_i32_0 : i32, i32
  }
  func.func @transform_6(%arg0: i32) -> (i32, i32, i32, i32) {
    %c0_i32 = arith.constant 0 : i32
    %c0_i32_0 = arith.constant 0 : i32
    %c0_i32_1 = arith.constant 0 : i32
    %c0_i32_2 = arith.constant 0 : i32
    %c0_i32_3 = arith.constant 0 : i32
    return %c0_i32, %c0_i32_0, %c0_i32_1, %c0_i32_2 : i32, i32, i32, i32
  }
  func.func @transform_7(%arg0: i32) -> (i32, i32) {
    %c0_i32 = arith.constant 0 : i32
    %c0_i32_0 = arith.constant 0 : i32
    %c0_i32_1 = arith.constant 0 : i32
    return %c0_i32, %c0_i32_0 : i32, i32
  }
  func.func @transform_8(%arg0: i32) -> (i32, i32) {
    %c0_i32 = arith.constant 0 : i32
    %c0_i32_0 = arith.constant 0 : i32
    %c0_i32_1 = arith.constant 0 : i32
    return %c0_i32, %c0_i32_0 : i32, i32
  }
  func.func @transform_9(%arg0: i32) -> (i32, i32) {
    %c0_i32 = arith.constant 0 : i32
    %c0_i32_0 = arith.constant 0 : i32
    %c0_i32_1 = arith.constant 0 : i32
    return %c0_i32, %c0_i32_0 : i32, i32
  }
  func.func @transform_10(%arg0: i32) -> (i32, i32) {
    %c0_i32 = arith.constant 0 : i32
    %c0_i32_0 = arith.constant 0 : i32
    %c0_i32_1 = arith.constant 0 : i32
    return %c0_i32, %c0_i32_0 : i32, i32
  }
  func.func @transform_11(%arg0: i32) -> (i32, i32, i32, i32) {
    %c0_i32 = arith.constant 0 : i32
    %c0_i32_0 = arith.constant 0 : i32
    %c0_i32_1 = arith.constant 0 : i32
    %c0_i32_2 = arith.constant 0 : i32
    return %arg0, %c0_i32, %c0_i32_0, %c0_i32_1 : i32, i32, i32, i32
  }
  func.func @transform_12(%arg0: i32) -> (i32, i32, i32, i32) {
    %c0_i32 = arith.constant 0 : i32
    %c0_i32_0 = arith.constant 0 : i32
    %c0_i32_1 = arith.constant 0 : i32
    %c0_i32_2 = arith.constant 0 : i32
    return %arg0, %c0_i32, %c0_i32_0, %c0_i32_1 : i32, i32, i32, i32
  }
  func.func @transform_13(%arg0: i32) -> (i32, i32, i32) {
    %c0_i32 = arith.constant 0 : i32
    %c0_i32_0 = arith.constant 0 : i32
    %c0_i32_1 = arith.constant 0 : i32
    return %arg0, %c0_i32, %c0_i32_0 : i32, i32, i32
  }
}

module attributes {stable_mosaic.version = 11 : i64} {
  func.func @_bn2_conv2_residual_kernel(%arg0: i32, %arg1: memref<1x16x16x4xf32, #tpu.memory_space<vmem>>, %arg2: memref<1x16x16x4xf32, #tpu.memory_space<vmem>>, %arg3: memref<1x4xf32, #tpu.memory_space<vmem>>, %arg4: memref<1x4xf32, #tpu.memory_space<vmem>>, %arg5: memref<3x3x4x4xf32, #tpu.memory_space<vmem>>, %arg6: memref<1x4xf32, #tpu.memory_space<vmem>>, %arg7: memref<1x16x16x4xf32, #tpu.memory_space<vmem>>, %arg8: memref<18x18x4xf32, #tpu.memory_space<vmem>>) attributes {dimension_semantics = [#tpu.dimension_semantics<parallel>], iteration_bounds = array<i64: 2>, scalar_prefetch = 0 : i64, scratch_operands = 1 : i64, tpu.core_type = #tpu.core_type<tc>, window_params = [{transform_indices = @transform_0, window_bounds = array<i64: 1, 16, 16, 4>}, {transform_indices = @transform_1, window_bounds = array<i64: 1, 16, 16, 4>}, {pipeline_mode = #tpu.pipeline_mode<synchronous>, transform_indices = @transform_2, window_bounds = array<i64: 1, 4>}, {pipeline_mode = #tpu.pipeline_mode<synchronous>, transform_indices = @transform_3, window_bounds = array<i64: 1, 4>}, {pipeline_mode = #tpu.pipeline_mode<synchronous>, transform_indices = @transform_4, window_bounds = array<i64: 3, 3, 4, 4>}, {pipeline_mode = #tpu.pipeline_mode<synchronous>, transform_indices = @transform_5, window_bounds = array<i64: 1, 4>}, {transform_indices = @transform_6, window_bounds = array<i64: 1, 16, 16, 4>}]} {
    %c0 = arith.constant 0 : index
    %c0_0 = arith.constant 0 : index
    %c0_1 = arith.constant 0 : index
    %c0_2 = arith.constant 0 : index
    %0 = vector.load %arg1[%c0, %c0_0, %c0_1, %c0_2] : memref<1x16x16x4xf32, #tpu.memory_space<vmem>>, vector<1x16x16x4xf32>
    %1 = vector.shape_cast %0 : vector<1x16x16x4xf32> to vector<16x16x4xf32>
    %c0_3 = arith.constant 0 : index
    %c0_4 = arith.constant 0 : index
    %2 = vector.load %arg3[%c0_3, %c0_4] : memref<1x4xf32, #tpu.memory_space<vmem>>, vector<1x4xf32>
    %3 = vector.shape_cast %2 : vector<1x4xf32> to vector<1x1x4xf32>
    %4 = vector.broadcast %3 : vector<1x1x4xf32> to vector<16x16x4xf32>
    %5 = arith.mulf %1, %4 : vector<16x16x4xf32>
    %c0_5 = arith.constant 0 : index
    %c0_6 = arith.constant 0 : index
    %6 = vector.load %arg4[%c0_5, %c0_6] : memref<1x4xf32, #tpu.memory_space<vmem>>, vector<1x4xf32>
    %7 = vector.shape_cast %6 : vector<1x4xf32> to vector<1x1x4xf32>
    %8 = vector.broadcast %7 : vector<1x1x4xf32> to vector<16x16x4xf32>
    %9 = arith.addf %5, %8 : vector<16x16x4xf32>
    %cst = arith.constant 0.000000e+00 : f32
    %10 = vector.broadcast %cst : f32 to vector<16x16x4xf32>
    %11 = arith.cmpf oge, %9, %10 : vector<16x16x4xf32>
    %cst_7 = arith.constant 1.000000e-01 : f32
    %12 = vector.broadcast %cst_7 : f32 to vector<16x16x4xf32>
    %13 = arith.mulf %12, %9 : vector<16x16x4xf32>
    %14 = arith.select %11, %9, %13 : vector<16x16x4xi1>, vector<16x16x4xf32>
    %cst_8 = arith.constant 0.000000e+00 : f32
    %15 = vector.broadcast %cst_8 : f32 to vector<18x18x4xf32>
    %c0_9 = arith.constant 0 : index
    %c0_10 = arith.constant 0 : index
    %c0_11 = arith.constant 0 : index
    %16 = vector.load %arg8[%c0_9, %c0_10, %c0_11] : memref<18x18x4xf32, #tpu.memory_space<vmem>>, vector<18x18x4xf32>
    tpu.vector_store %arg8[%c0_9, %c0_10, %c0_11], %15 {strides = array<i32>} : memref<18x18x4xf32, #tpu.memory_space<vmem>>, vector<18x18x4xf32>,
    %c1 = arith.constant 1 : index
    %c1_12 = arith.constant 1 : index
    %c0_13 = arith.constant 0 : index
    %17 = vector.load %arg8[%c1, %c1_12, %c0_13] : memref<18x18x4xf32, #tpu.memory_space<vmem>>, vector<16x16x4xf32>
    tpu.vector_store %arg8[%c1, %c1_12, %c0_13], %14 {strides = array<i32>} : memref<18x18x4xf32, #tpu.memory_space<vmem>>, vector<16x16x4xf32>,
    %cst_14 = arith.constant 0.000000e+00 : f32
    %18 = vector.broadcast %cst_14 : f32 to vector<256x4xf32>
    %c0_15 = arith.constant 0 : index
    %c0_16 = arith.constant 0 : index
    %c0_17 = arith.constant 0 : index
    %19 = vector.load %arg8[%c0_15, %c0_16, %c0_17] : memref<18x18x4xf32, #tpu.memory_space<vmem>>, vector<16x16x4xf32>
    %20 = vector.shape_cast %19 : vector<16x16x4xf32> to vector<256x4xf32>
    %c0_18 = arith.constant 0 : index
    %c0_19 = arith.constant 0 : index
    %c0_20 = arith.constant 0 : index
    %c0_21 = arith.constant 0 : index
    %21 = vector.load %arg5[%c0_18, %c0_19, %c0_20, %c0_21] : memref<3x3x4x4xf32, #tpu.memory_space<vmem>>, vector<1x1x4x4xf32>
    %22 = vector.shape_cast %21 : vector<1x1x4x4xf32> to vector<4x4xf32>
    %cst_22 = arith.constant dense<0.000000e+00> : vector<256x4xf32>
    %23 = tpu.matmul %20, %22, %cst_22 {dimension_numbers = #tpu.dot_dimension_numbers<[1], [0], [0], [1], [0, 0, 1, 1], [], []>} : vector<256x4xf32>, vector<4x4xf32>, vector<256x4xf32> -> vector<256x4xf32>
    %24 = arith.addf %18, %23 : vector<256x4xf32>
    %c0_23 = arith.constant 0 : index
    %c1_24 = arith.constant 1 : index
    %c0_25 = arith.constant 0 : index
    %25 = vector.load %arg8[%c0_23, %c1_24, %c0_25] : memref<18x18x4xf32, #tpu.memory_space<vmem>>, vector<16x16x4xf32>
    %26 = vector.shape_cast %25 : vector<16x16x4xf32> to vector<256x4xf32>
    %c0_26 = arith.constant 0 : index
    %c1_27 = arith.constant 1 : index
    %c0_28 = arith.constant 0 : index
    %c0_29 = arith.constant 0 : index
    %27 = vector.load %arg5[%c0_26, %c1_27, %c0_28, %c0_29] : memref<3x3x4x4xf32, #tpu.memory_space<vmem>>, vector<1x1x4x4xf32>
    %28 = vector.shape_cast %27 : vector<1x1x4x4xf32> to vector<4x4xf32>
    %cst_30 = arith.constant dense<0.000000e+00> : vector<256x4xf32>
    %29 = tpu.matmul %26, %28, %cst_30 {dimension_numbers = #tpu.dot_dimension_numbers<[1], [0], [0], [1], [0, 0, 1, 1], [], []>} : vector<256x4xf32>, vector<4x4xf32>, vector<256x4xf32> -> vector<256x4xf32>
    %30 = arith.addf %24, %29 : vector<256x4xf32>
    %c0_31 = arith.constant 0 : index
    %c2 = arith.constant 2 : index
    %c0_32 = arith.constant 0 : index
    %31 = vector.load %arg8[%c0_31, %c2, %c0_32] : memref<18x18x4xf32, #tpu.memory_space<vmem>>, vector<16x16x4xf32>
    %32 = vector.shape_cast %31 : vector<16x16x4xf32> to vector<256x4xf32>
    %c0_33 = arith.constant 0 : index
    %c2_34 = arith.constant 2 : index
    %c0_35 = arith.constant 0 : index
    %c0_36 = arith.constant 0 : index
    %33 = vector.load %arg5[%c0_33, %c2_34, %c0_35, %c0_36] : memref<3x3x4x4xf32, #tpu.memory_space<vmem>>, vector<1x1x4x4xf32>
    %34 = vector.shape_cast %33 : vector<1x1x4x4xf32> to vector<4x4xf32>
    %cst_37 = arith.constant dense<0.000000e+00> : vector<256x4xf32>
    %35 = tpu.matmul %32, %34, %cst_37 {dimension_numbers = #tpu.dot_dimension_numbers<[1], [0], [0], [1], [0, 0, 1, 1], [], []>} : vector<256x4xf32>, vector<4x4xf32>, vector<256x4xf32> -> vector<256x4xf32>
    %36 = arith.addf %30, %35 : vector<256x4xf32>
    %c1_38 = arith.constant 1 : index
    %c0_39 = arith.constant 0 : index
    %c0_40 = arith.constant 0 : index
    %37 = vector.load %arg8[%c1_38, %c0_39, %c0_40] : memref<18x18x4xf32, #tpu.memory_space<vmem>>, vector<16x16x4xf32>
    %38 = vector.shape_cast %37 : vector<16x16x4xf32> to vector<256x4xf32>
    %c1_41 = arith.constant 1 : index
    %c0_42 = arith.constant 0 : index
    %c0_43 = arith.constant 0 : index
    %c0_44 = arith.constant 0 : index
    %39 = vector.load %arg5[%c1_41, %c0_42, %c0_43, %c0_44] : memref<3x3x4x4xf32, #tpu.memory_space<vmem>>, vector<1x1x4x4xf32>
    %40 = vector.shape_cast %39 : vector<1x1x4x4xf32> to vector<4x4xf32>
    %cst_45 = arith.constant dense<0.000000e+00> : vector<256x4xf32>
    %41 = tpu.matmul %38, %40, %cst_45 {dimension_numbers = #tpu.dot_dimension_numbers<[1], [0], [0], [1], [0, 0, 1, 1], [], []>} : vector<256x4xf32>, vector<4x4xf32>, vector<256x4xf32> -> vector<256x4xf32>
    %42 = arith.addf %36, %41 : vector<256x4xf32>
    %c1_46 = arith.constant 1 : index
    %c1_47 = arith.constant 1 : index
    %c0_48 = arith.constant 0 : index
    %43 = vector.load %arg8[%c1_46, %c1_47, %c0_48] : memref<18x18x4xf32, #tpu.memory_space<vmem>>, vector<16x16x4xf32>
    %44 = vector.shape_cast %43 : vector<16x16x4xf32> to vector<256x4xf32>
    %c1_49 = arith.constant 1 : index
    %c1_50 = arith.constant 1 : index
    %c0_51 = arith.constant 0 : index
    %c0_52 = arith.constant 0 : index
    %45 = vector.load %arg5[%c1_49, %c1_50, %c0_51, %c0_52] : memref<3x3x4x4xf32, #tpu.memory_space<vmem>>, vector<1x1x4x4xf32>
    %46 = vector.shape_cast %45 : vector<1x1x4x4xf32> to vector<4x4xf32>
    %cst_53 = arith.constant dense<0.000000e+00> : vector<256x4xf32>
    %47 = tpu.matmul %44, %46, %cst_53 {dimension_numbers = #tpu.dot_dimension_numbers<[1], [0], [0], [1], [0, 0, 1, 1], [], []>} : vector<256x4xf32>, vector<4x4xf32>, vector<256x4xf32> -> vector<256x4xf32>
    %48 = arith.addf %42, %47 : vector<256x4xf32>
    %c1_54 = arith.constant 1 : index
    %c2_55 = arith.constant 2 : index
    %c0_56 = arith.constant 0 : index
    %49 = vector.load %arg8[%c1_54, %c2_55, %c0_56] : memref<18x18x4xf32, #tpu.memory_space<vmem>>, vector<16x16x4xf32>
    %50 = vector.shape_cast %49 : vector<16x16x4xf32> to vector<256x4xf32>
    %c1_57 = arith.constant 1 : index
    %c2_58 = arith.constant 2 : index
    %c0_59 = arith.constant 0 : index
    %c0_60 = arith.constant 0 : index
    %51 = vector.load %arg5[%c1_57, %c2_58, %c0_59, %c0_60] : memref<3x3x4x4xf32, #tpu.memory_space<vmem>>, vector<1x1x4x4xf32>
    %52 = vector.shape_cast %51 : vector<1x1x4x4xf32> to vector<4x4xf32>
    %cst_61 = arith.constant dense<0.000000e+00> : vector<256x4xf32>
    %53 = tpu.matmul %50, %52, %cst_61 {dimension_numbers = #tpu.dot_dimension_numbers<[1], [0], [0], [1], [0, 0, 1, 1], [], []>} : vector<256x4xf32>, vector<4x4xf32>, vector<256x4xf32> -> vector<256x4xf32>
    %54 = arith.addf %48, %53 : vector<256x4xf32>
    %c2_62 = arith.constant 2 : index
    %c0_63 = arith.constant 0 : index
    %c0_64 = arith.constant 0 : index
    %55 = vector.load %arg8[%c2_62, %c0_63, %c0_64] : memref<18x18x4xf32, #tpu.memory_space<vmem>>, vector<16x16x4xf32>
    %56 = vector.shape_cast %55 : vector<16x16x4xf32> to vector<256x4xf32>
    %c2_65 = arith.constant 2 : index
    %c0_66 = arith.constant 0 : index
    %c0_67 = arith.constant 0 : index
    %c0_68 = arith.constant 0 : index
    %57 = vector.load %arg5[%c2_65, %c0_66, %c0_67, %c0_68] : memref<3x3x4x4xf32, #tpu.memory_space<vmem>>, vector<1x1x4x4xf32>
    %58 = vector.shape_cast %57 : vector<1x1x4x4xf32> to vector<4x4xf32>
    %cst_69 = arith.constant dense<0.000000e+00> : vector<256x4xf32>
    %59 = tpu.matmul %56, %58, %cst_69 {dimension_numbers = #tpu.dot_dimension_numbers<[1], [0], [0], [1], [0, 0, 1, 1], [], []>} : vector<256x4xf32>, vector<4x4xf32>, vector<256x4xf32> -> vector<256x4xf32>
    %60 = arith.addf %54, %59 : vector<256x4xf32>
    %c2_70 = arith.constant 2 : index
    %c1_71 = arith.constant 1 : index
    %c0_72 = arith.constant 0 : index
    %61 = vector.load %arg8[%c2_70, %c1_71, %c0_72] : memref<18x18x4xf32, #tpu.memory_space<vmem>>, vector<16x16x4xf32>
    %62 = vector.shape_cast %61 : vector<16x16x4xf32> to vector<256x4xf32>
    %c2_73 = arith.constant 2 : index
    %c1_74 = arith.constant 1 : index
    %c0_75 = arith.constant 0 : index
    %c0_76 = arith.constant 0 : index
    %63 = vector.load %arg5[%c2_73, %c1_74, %c0_75, %c0_76] : memref<3x3x4x4xf32, #tpu.memory_space<vmem>>, vector<1x1x4x4xf32>
    %64 = vector.shape_cast %63 : vector<1x1x4x4xf32> to vector<4x4xf32>
    %cst_77 = arith.constant dense<0.000000e+00> : vector<256x4xf32>
    %65 = tpu.matmul %62, %64, %cst_77 {dimension_numbers = #tpu.dot_dimension_numbers<[1], [0], [0], [1], [0, 0, 1, 1], [], []>} : vector<256x4xf32>, vector<4x4xf32>, vector<256x4xf32> -> vector<256x4xf32>
    %66 = arith.addf %60, %65 : vector<256x4xf32>
    %c2_78 = arith.constant 2 : index
    %c2_79 = arith.constant 2 : index
    %c0_80 = arith.constant 0 : index
    %67 = vector.load %arg8[%c2_78, %c2_79, %c0_80] : memref<18x18x4xf32, #tpu.memory_space<vmem>>, vector<16x16x4xf32>
    %68 = vector.shape_cast %67 : vector<16x16x4xf32> to vector<256x4xf32>
    %c2_81 = arith.constant 2 : index
    %c2_82 = arith.constant 2 : index
    %c0_83 = arith.constant 0 : index
    %c0_84 = arith.constant 0 : index
    %69 = vector.load %arg5[%c2_81, %c2_82, %c0_83, %c0_84] : memref<3x3x4x4xf32, #tpu.memory_space<vmem>>, vector<1x1x4x4xf32>
    %70 = vector.shape_cast %69 : vector<1x1x4x4xf32> to vector<4x4xf32>
    %cst_85 = arith.constant dense<0.000000e+00> : vector<256x4xf32>
    %71 = tpu.matmul %68, %70, %cst_85 {dimension_numbers = #tpu.dot_dimension_numbers<[1], [0], [0], [1], [0, 0, 1, 1], [], []>} : vector<256x4xf32>, vector<4x4xf32>, vector<256x4xf32> -> vector<256x4xf32>
    %72 = arith.addf %66, %71 : vector<256x4xf32>
    %c0_86 = arith.constant 0 : index
    %c0_87 = arith.constant 0 : index
    %73 = vector.load %arg6[%c0_86, %c0_87] : memref<1x4xf32, #tpu.memory_space<vmem>>, vector<1x4xf32>
    %74 = vector.broadcast %73 : vector<1x4xf32> to vector<256x4xf32>
    %75 = arith.addf %72, %74 : vector<256x4xf32>
    %c0_88 = arith.constant 0 : index
    %c0_89 = arith.constant 0 : index
    %c0_90 = arith.constant 0 : index
    %c0_91 = arith.constant 0 : index
    %76 = vector.load %arg2[%c0_88, %c0_89, %c0_90, %c0_91] : memref<1x16x16x4xf32, #tpu.memory_space<vmem>>, vector<1x16x16x4xf32>
    %77 = vector.shape_cast %76 : vector<1x16x16x4xf32> to vector<16x16x4xf32>
    %78 = vector.shape_cast %77 : vector<16x16x4xf32> to vector<256x4xf32>
    %79 = arith.addf %75, %78 : vector<256x4xf32>
    %80 = vector.shape_cast %79 : vector<256x4xf32> to vector<16x16x4xf32>
    %c0_92 = arith.constant 0 : index
    %c0_93 = arith.constant 0 : index
    %c0_94 = arith.constant 0 : index
    %c0_95 = arith.constant 0 : index
    %81 = vector.load %arg7[%c0_92, %c0_93, %c0_94, %c0_95] : memref<1x16x16x4xf32, #tpu.memory_space<vmem>>, vector<1x16x16x4xf32>
    %82 = vector.shape_cast %81 : vector<1x16x16x4xf32> to vector<16x16x4xf32>
    %83 = vector.shape_cast %80 : vector<16x16x4xf32> to vector<1x16x16x4xf32>
    tpu.vector_store %arg7[%c0_92, %c0_93, %c0_94, %c0_95], %83 {strides = array<i32>} : memref<1x16x16x4xf32, #tpu.memory_space<vmem>>, vector<1x16x16x4xf32>,
    return
  }
  func.func @transform_0(%arg0: i32) -> (i32, i32, i32, i32) {
    %c0_i32 = arith.constant 0 : i32
    %c0_i32_0 = arith.constant 0 : i32
    %c0_i32_1 = arith.constant 0 : i32
    %c0_i32_2 = arith.constant 0 : i32
    return %arg0, %c0_i32, %c0_i32_0, %c0_i32_1 : i32, i32, i32, i32
  }
  func.func @transform_1(%arg0: i32) -> (i32, i32, i32, i32) {
    %c0_i32 = arith.constant 0 : i32
    %c0_i32_0 = arith.constant 0 : i32
    %c0_i32_1 = arith.constant 0 : i32
    %c0_i32_2 = arith.constant 0 : i32
    return %arg0, %c0_i32, %c0_i32_0, %c0_i32_1 : i32, i32, i32, i32
  }
  func.func @transform_2(%arg0: i32) -> (i32, i32) {
    %c0_i32 = arith.constant 0 : i32
    %c0_i32_0 = arith.constant 0 : i32
    %c0_i32_1 = arith.constant 0 : i32
    return %c0_i32, %c0_i32_0 : i32, i32
  }
  func.func @transform_3(%arg0: i32) -> (i32, i32) {
    %c0_i32 = arith.constant 0 : i32
    %c0_i32_0 = arith.constant 0 : i32
    %c0_i32_1 = arith.constant 0 : i32
    return %c0_i32, %c0_i32_0 : i32, i32
  }
  func.func @transform_4(%arg0: i32) -> (i32, i32, i32, i32) {
    %c0_i32 = arith.constant 0 : i32
    %c0_i32_0 = arith.constant 0 : i32
    %c0_i32_1 = arith.constant 0 : i32
    %c0_i32_2 = arith.constant 0 : i32
    %c0_i32_3 = arith.constant 0 : i32
    return %c0_i32, %c0_i32_0, %c0_i32_1, %c0_i32_2 : i32, i32, i32, i32
  }
  func.func @transform_5(%arg0: i32) -> (i32, i32) {
    %c0_i32 = arith.constant 0 : i32
    %c0_i32_0 = arith.constant 0 : i32
    %c0_i32_1 = arith.constant 0 : i32
    return %c0_i32, %c0_i32_0 : i32, i32
  }
  func.func @transform_6(%arg0: i32) -> (i32, i32, i32, i32) {
    %c0_i32 = arith.constant 0 : i32
    %c0_i32_0 = arith.constant 0 : i32
    %c0_i32_1 = arith.constant 0 : i32
    %c0_i32_2 = arith.constant 0 : i32
    return %arg0, %c0_i32, %c0_i32_0, %c0_i32_1 : i32, i32, i32, i32
  }
}

</mosaic_0001>

<llo_original>
// kernel: _decoder_block_forward.3
$region0: #{_decoder_block_forward.3}
  #allocation0 [shape = 'u32[]', space=smem, size = 0x4, offset = 0x4, fixed_abs, tag = 'smem constant byte address 0x4 - core index']
  #allocation1 [shape = 'u32[72,128]{1,0:T(1,128)}', space=vmem, size = 0x9000, scoped, tag = 'internal scratch']
  %s0 = inlined_call_operand.vmem [shape: f32[2,8,8,8], index: 0, kind: input, shape index: {}]
  %s1 = inlined_call_operand.vmem [shape: f32[2,16,16,4], index: 1, kind: input, shape index: {}]
  %s2 = inlined_call_operand.vmem [shape: f32[8,32], index: 2, kind: input, shape index: {}]
  %s3 = inlined_call_operand.vmem [shape: f32[1,32], index: 3, kind: input, shape index: {}]
  %s4 = inlined_call_operand.vmem [shape: f32[2,8,8,32], index: 4, kind: output, shape index: {0}]
  %s5 = inlined_call_operand.vmem [shape: f32[2,2,32], index: 5, kind: output, shape index: {1}]
  %s6 = inlined_call_operand.vmem [shape: f32[2,2,4], index: 6, kind: output, shape index: {2}]
  %7 = xla_tuple %s4, %s5, %s6
  %s8 = sld [smem:[#allocation0]]
  $region65: #{_decoder_block_forward.3} parent=0
    _
  %s10 = ssub.s32 1, %s8
  %s11 = scalar_select 0, %s10, %s8
  loop: start=0, step=1, limit=4
  $region2: #{_decoder_block_forward.3} parent=0 // loop_pre_header
    _
  $region3: #{_decoder_block_forward.3} parent=0 // loop_header
    %s13 = sphi 0, %s17
    %p14 = scmp.ge.s32.totalorder %s13, 4
    %s23 = sphi 0, %s25
    %s26 = sphi 0, %s23
    %s27 = sphi 0, %s26
    %s43 = sphi 0, %s27
    %s49 = sphi 0, %s51
    %s52 = sphi 0, %s49
    %s53 = sphi 0, %s52
    %s69 = sphi 0, %s53
    %s73 = sphi 0, %s73
    %s75 = sphi 0, %s73
    %s76 = sphi 0, %s75
    %s90 = sphi 0, %s76
    %s94 = sphi 0, %s94
    %s96 = sphi 0, %s94
    %s97 = sphi 0, %s96
    %s111 = sphi 0, %s97
    %s117 = sphi 0, %s119
    %s120 = sphi 0, %s117
    %s121 = sphi 0, %s120
    %s137 = sphi 0, %s121
    %s143 = sphi 0, %s145
    %s146 = sphi 0, %s143
    %s147 = sphi 0, %s146
    %s163 = sphi 0, %s147
    %s169 = sphi 0, %s171
    %s172 = sphi 0, %s169
    %s173 = sphi 0, %s172
    %s189 = sphi 0, %s173
  $region4: #{_decoder_block_forward.3} parent=0 // loop_header_branch
    %16 = sbr.rel (%p14) target = $region8
  $region5: #{_decoder_block_forward.3} parent=0 // loop_body
    %s18 = ssub.s32 %s13, 1
    %s19 = ssub.s32 %s13, 2
    %s20 = sadd.s32 %s13, 1
    %s21 = ssub.s32 %s13, %s20
    %p22 = scmp.eq.s32.totalorder %s21, 0
    %s24 = sadd.s32 %s23, 1
    %s25 = scalar_select %p22, %s23, %s24
    %p28 = pneg %p22
    %p29 = scmp.eq.s32.totalorder %s13, 1
    %p30 = por %p28, %p29
    %p31 = scmp.ne.s32.totalorder %s23, %s26
    %p32 = scmp.eq.s32.totalorder %s13, 0
    %p33 = por %p31, %p32
    %p34 = scmp.ne.s32.totalorder %s23, %s26
    %p35 = scmp.eq.s32.totalorder %s18, 1
    %p36 = por %p34, %p35
    %p37 = scmp.ne.s32.totalorder %s26, %s27
    %p38 = scmp.eq.s32.totalorder %s18, 0
    %p39 = por %p37, %p38
    %p40 = scmp.ne.s32.totalorder %s26, %s27
    %p41 = scmp.eq.s32.totalorder %s19, 1
    %p42 = por %p40, %p41
    %p44 = scmp.ne.s32.totalorder %s27, %s43
    %p45 = scmp.eq.s32.totalorder %s19, 0
    %p46 = por %p44, %p45
    %s47 = ssub.s32 %s13, %s20
    %p48 = scmp.eq.s32.totalorder %s47, 0
    %s50 = sadd.s32 %s49, 1
    %s51 = scalar_select %p48, %s49, %s50
    %p54 = pneg %p48
    %p55 = scmp.eq.s32.totalorder %s13, 1
    %p56 = por %p54, %p55
    %p57 = scmp.ne.s32.totalorder %s49, %s52
    %p58 = scmp.eq.s32.totalorder %s13, 0
    %p59 = por %p57, %p58
    %p60 = scmp.ne.s32.totalorder %s49, %s52
    %p61 = scmp.eq.s32.totalorder %s18, 1
    %p62 = por %p60, %p61
    %p63 = scmp.ne.s32.totalorder %s52, %s53
    %p64 = scmp.eq.s32.totalorder %s18, 0
    %p65 = por %p63, %p64
    %p66 = scmp.ne.s32.totalorder %s52, %s53
    %p67 = scmp.eq.s32.totalorder %s19, 1
    %p68 = por %p66, %p67
    %p70 = scmp.ne.s32.totalorder %s53, %s69
    %p71 = scmp.eq.s32.totalorder %s19, 0
    %p72 = por %p70, %p71
    %s74 = sadd.s32 %s73, 1
    %p77 = scmp.eq.s32.totalorder %s13, 1
    %p78 = scmp.ne.s32.totalorder %s73, %s75
    %p79 = scmp.eq.s32.totalorder %s13, 0
    %p80 = por %p78, %p79
    %p81 = scmp.ne.s32.totalorder %s73, %s75
    %p82 = scmp.eq.s32.totalorder %s18, 1
    %p83 = por %p81, %p82
    %p84 = scmp.ne.s32.totalorder %s75, %s76
    %p85 = scmp.eq.s32.totalorder %s18, 0
    %p86 = por %p84, %p85
    %p87 = scmp.ne.s32.totalorder %s75, %s76
    %p88 = scmp.eq.s32.totalorder %s19, 1
    %p89 = por %p87, %p88
    %p91 = scmp.ne.s32.totalorder %s76, %s90
    %p92 = scmp.eq.s32.totalorder %s19, 0
    %p93 = por %p91, %p92
    %s95 = sadd.s32 %s94, 1
    %p98 = scmp.eq.s32.totalorder %s13, 1
    %p99 = scmp.ne.s32.totalorder %s94, %s96
    %p100 = scmp.eq.s32.totalorder %s13, 0
    %p101 = por %p99, %p100
    %p102 = scmp.ne.s32.totalorder %s94, %s96
    %p103 = scmp.eq.s32.totalorder %s18, 1
    %p104 = por %p102, %p103
    %p105 = scmp.ne.s32.totalorder %s96, %s97
    %p106 = scmp.eq.s32.totalorder %s18, 0
    %p107 = por %p105, %p106
    %p108 = scmp.ne.s32.totalorder %s96, %s97
    %p109 = scmp.eq.s32.totalorder %s19, 1
    %p110 = por %p108, %p109
    %p112 = scmp.ne.s32.totalorder %s97, %s111
    %p113 = scmp.eq.s32.totalorder %s19, 0
    %p114 = por %p112, %p113
    %s115 = ssub.s32 %s13, %s20
    %p116 = scmp.eq.s32.totalorder %s115, 0
    %s118 = sadd.s32 %s117, 1
    %s119 = scalar_select %p116, %s117, %s118
    %p122 = pneg %p116
    %p123 = scmp.eq.s32.totalorder %s13, 1
    %p124 = por %p122, %p123
    %p125 = scmp.ne.s32.totalorder %s117, %s120
    %p126 = scmp.eq.s32.totalorder %s13, 0
    %p127 = por %p125, %p126
    %p128 = scmp.ne.s32.totalorder %s117, %s120
    %p129 = scmp.eq.s32.totalorder %s18, 1
    %p130 = por %p128, %p129
    %p131 = scmp.ne.s32.totalorder %s120, %s121
    %p132 = scmp.eq.s32.totalorder %s18, 0
    %p133 = por %p131, %p132
    %p134 = scmp.ne.s32.totalorder %s120, %s121
    %p135 = scmp.eq.s32.totalorder %s19, 1
    %p136 = por %p134, %p135
    %p138 = scmp.ne.s32.totalorder %s121, %s137
    %p139 = scmp.eq.s32.totalorder %s19, 0
    %p140 = por %p138, %p139
    %s141 = ssub.s32 %s13, %s20
    %p142 = scmp.eq.s32.totalorder %s141, 0
    %s144 = sadd.s32 %s143, 1
    %s145 = scalar_select %p142, %s143, %s144
    %p148 = pneg %p142
    %p149 = scmp.eq.s32.totalorder %s13, 1
    %p150 = por %p148, %p149
    %p151 = scmp.ne.s32.totalorder %s143, %s146
    %p152 = scmp.eq.s32.totalorder %s13, 0
    %p153 = por %p151, %p152
    %p154 = scmp.ne.s32.totalorder %s143, %s146
    %p155 = scmp.eq.s32.totalorder %s18, 1
    %p156 = por %p154, %p155
    %p157 = scmp.ne.s32.totalorder %s146, %s147
    %p158 = scmp.eq.s32.totalorder %s18, 0
    %p159 = por %p157, %p158
    %p160 = scmp.ne.s32.totalorder %s146, %s147
    %p161 = scmp.eq.s32.totalorder %s19, 1
    %p162 = por %p160, %p161
    %p164 = scmp.ne.s32.totalorder %s147, %s163
    %p165 = scmp.eq.s32.totalorder %s19, 0
    %p166 = por %p164, %p165
    %s167 = ssub.s32 %s13, %s20
    %p168 = scmp.eq.s32.totalorder %s167, 0
    %s170 = sadd.s32 %s169, 1
    %s171 = scalar_select %p168, %s169, %s170
    %p174 = pneg %p168
    %p175 = scmp.eq.s32.totalorder %s13, 1
    %p176 = por %p174, %p175
    %p177 = scmp.ne.s32.totalorder %s169, %s172
    %p178 = scmp.eq.s32.totalorder %s13, 0
    %p179 = por %p177, %p178
    %p180 = scmp.ne.s32.totalorder %s169, %s172
    %p181 = scmp.eq.s32.totalorder %s18, 1
    %p182 = por %p180, %p181
    %p183 = scmp.ne.s32.totalorder %s172, %s173
    %p184 = scmp.eq.s32.totalorder %s18, 0
    %p185 = por %p183, %p184
    %p186 = scmp.ne.s32.totalorder %s172, %s173
    %p187 = scmp.eq.s32.totalorder %s19, 1
    %p188 = por %p186, %p187
    %p190 = scmp.ne.s32.totalorder %s173, %s189
    %p191 = scmp.eq.s32.totalorder %s19, 0
    %p192 = por %p190, %p191
    %p193 = scmp.le.s32.totalorder 1, %s13
    %p194 = scmp.lt.s32.totalorder %s13, 3
    %p195 = pnand %p193, %p194
    %p196 = pneg %p195
    // Predicated region
    $region9: #{_decoder_block_forward.3} parent=5 // pred_check
      _
    $region10: #{_decoder_block_forward.3} parent=5 // pred_check_branch
      %198 = sbr.rel (%p195) target = $region12
    $region11: #{_decoder_block_forward.3} parent=5 // pred_region
      %s199 = ssub.s32 %s13, 1
      // Predicated region
      $region13: #{_decoder_block_forward.3} parent=11 // pred_check
        %p200 = pneg %p86
      $region14: #{_decoder_block_forward.3} parent=11 // pred_check_branch
        %202 = sbr.rel (%p200) target = $region16
      $region15: #{_decoder_block_forward.3} parent=11 // pred_region
        _
      $region16: #{_decoder_block_forward.3} parent=11 // pred_fallthru
        _
      // Predicated region
      $region17: #{_decoder_block_forward.3} parent=11 // pred_check
        %p203 = pneg %p107
      $region18: #{_decoder_block_forward.3} parent=11 // pred_check_branch
        %205 = sbr.rel (%p203) target = $region20
      $region19: #{_decoder_block_forward.3} parent=11 // pred_region
        _
      $region20: #{_decoder_block_forward.3} parent=11 // pred_fallthru
        _
    $region12: #{_decoder_block_forward.3} parent=5 // pred_fallthru
      _
    %p206 = scmp.lt.s32.totalorder %s13, 2
    // Predicated region
    $region21: #{_decoder_block_forward.3} parent=5 // pred_check
      %p207 = pneg %p206
    $region22: #{_decoder_block_forward.3} parent=5 // pred_check_branch
      %209 = sbr.rel (%p207) target = $region24
    $region23: #{_decoder_block_forward.3} parent=5 // pred_region
      // Predicated region
      $region25: #{_decoder_block_forward.3} parent=23 // pred_check
        %p210 = pneg %p33
      $region26: #{_decoder_block_forward.3} parent=23 // pred_check_branch
        %212 = sbr.rel (%p210) target = $region28
      $region27: #{_decoder_block_forward.3} parent=23 // pred_region
        %p213 = scmp.lt.s32.totalorder %s13, 1
        %s214 = scalar_select %p213, %s13, 1
        %s215 = smul.addr %s214, 8
        %s216 = smul.addr %s215, 8
        %s217 = scalar_lea.vmem %s0, %s216
      $region28: #{_decoder_block_forward.3} parent=23 // pred_fallthru
        _
      // Predicated region
      $region29: #{_decoder_block_forward.3} parent=23 // pred_check
        %p218 = pneg %p59
      $region30: #{_decoder_block_forward.3} parent=23 // pred_check_branch
        %220 = sbr.rel (%p218) target = $region32
      $region31: #{_decoder_block_forward.3} parent=23 // pred_region
        %p221 = scmp.lt.s32.totalorder %s13, 1
        %s222 = scalar_select %p221, %s13, 1
        %s223 = smul.addr %s222, 32
        %s224 = smul.addr %s223, 8
        %s225 = scalar_lea.vmem %s1, %s224
      $region32: #{_decoder_block_forward.3} parent=23 // pred_fallthru
        _
    $region24: #{_decoder_block_forward.3} parent=5 // pred_fallthru
      _
    %p226 = scmp.le.s32.totalorder 1, %s13
    %p227 = scmp.lt.s32.totalorder %s13, 3
    %p228 = pnand %p226, %p227
    %p229 = pneg %p228
    // Predicated region
    $region33: #{_decoder_block_forward.3} parent=5 // pred_check
      _
    $region34: #{_decoder_block_forward.3} parent=5 // pred_check_branch
      %231 = sbr.rel (%p228) target = $region36
    $region35: #{_decoder_block_forward.3} parent=5 // pred_region
      %s232 = ssub.s32 %s13, 1
      %p233 = scmp.lt.s32.totalorder %s18, 1
      %s234 = scalar_select %p233, %s18, 1
      %s235 = smul.addr %s234, 8
      %s236 = smul.addr %s235, 8
      %s237 = scalar_lea.vmem %s0, %s236
      %p238 = pneg %p39
      %p239 = pneg %p36
      %p240 = scmp.lt.s32.totalorder %s18, 1
      %s241 = scalar_select %p240, %s18, 1
      %s242 = smul.addr %s241, 32
      %s243 = smul.addr %s242, 8
      %s244 = scalar_lea.vmem %s1, %s243
      %p245 = pneg %p65
      %p246 = pneg %p62
      %p247 = pneg %p86
      %p248 = pneg %p83
      %p249 = pneg %p107
      %p250 = pneg %p104
      %p251 = pneg %p133
      %p252 = pneg %p130
      %p253 = scmp.lt.s32.totalorder %s18, 1
      %s254 = scalar_select %p253, %s18, 1
      %s255 = smul.addr %s254, 8
      %s256 = smul.addr %s255, 8
      %s257 = scalar_lea.vmem %s4, %s256
      %p258 = pneg %p159
      %p259 = pneg %p156
      %p260 = scmp.lt.s32.totalorder %s18, 1
      %s261 = scalar_select %p260, %s18, 1
      %s262 = smul.addr %s261, 2
      %s263 = scalar_lea.vmem %s5, %s262
      %p264 = pneg %p185
      %p265 = pneg %p182
      %p266 = scmp.lt.s32.totalorder %s18, 1
      %s267 = scalar_select %p266, %s18, 1
      %s268 = smul.addr %s267, 2
      %s269 = scalar_lea.vmem %s6, %s268
      %p270 = scmp.lt.s32.totalorder %s18, 1
      %s271 = scalar_select %p270, %s18, 1
      %s272 = smul.addr %s271, 8
      %s273 = smul.addr %s272, 8
      %s274 = scalar_lea.vmem %s0, %s273
      %p275 = scmp.lt.s32.totalorder %s18, 1
      %s276 = scalar_select %p275, %s18, 1
      %s277 = smul.addr %s276, 32
      %s278 = smul.addr %s277, 8
      %s279 = scalar_lea.vmem %s1, %s278
      %p280 = scmp.lt.s32.totalorder %s18, 1
      %s281 = scalar_select %p280, %s18, 1
      %s282 = smul.addr %s281, 8
      %s283 = smul.addr %s282, 8
      %s284 = scalar_lea.vmem %s4, %s283
      %p285 = scmp.lt.s32.totalorder %s18, 1
      %s286 = scalar_select %p285, %s18, 1
      %s287 = smul.addr %s286, 2
      %s288 = scalar_lea.vmem %s5, %s287
      %p289 = scmp.lt.s32.totalorder %s18, 1
      %s290 = scalar_select %p289, %s18, 1
      %s291 = smul.addr %s290, 2
      %s292 = scalar_lea.vmem %s6, %s291
      %v293 = vld [vmem:[%s274] sm:$0xff]
      %v294 = vld [vmem:[%s274 + $0x8] sm:$0xff]
      %v295 = vld [vmem:[%s274 + $0x10] sm:$0xff]
      %v296 = vld [vmem:[%s274 + $0x18] sm:$0xff]
      %v297 = vld [vmem:[%s274 + $0x20] sm:$0xff]
      %v298 = vld [vmem:[%s274 + $0x28] sm:$0xff]
      %v299 = vld [vmem:[%s274 + $0x30] sm:$0xff]
      %v300 = vld [vmem:[%s274 + $0x38] sm:$0xff]
      %v301 = vld [vmem:[%s2] sm:$0xff]
      %v302 = vld [vmem:[%s3] sm:$0x1]
      %v304 = vperm.slane %v302, 0
      %vm306 = vcmask 64512
      %v308 = vsel %vm306, %v293, 0
      %v311 = vsel %vm306, %v294, 0
      %v314 = vsel %vm306, %v295, 0
      %v317 = vsel %vm306, %v296, 0
      %v320 = vsel %vm306, %v297, 0
      %v323 = vsel %vm306, %v298, 0
      %v326 = vsel %vm306, %v299, 0
      %v329 = vsel %vm306, %v300, 0
      %331 = vmatpush.msra.mxu0 0.0
      %332 = vmatpush.msra.mxu0 0.0
      %333 = vmatpush.msra.mxu0 0.0
      %334 = vmatpush.msra.mxu0 0.0
      %335 = vmatpush.msra.mxu0 0.0
      %336 = vmatpush.msra.mxu0 0.0
      %337 = vmatpush.msra.mxu0 0.0
      %338 = vmatpush.msra.mxu0 0.0
      %339 = vmatpush.msra.mxu0 0.0
      %340 = vmatpush.msra.mxu0 0.0
      %341 = vmatpush.msra.mxu0 0.0
      %342 = vmatpush.msra.mxu0 0.0
      %343 = vmatpush.msra.mxu0 0.0
      %344 = vmatpush.msra.mxu0 0.0
      %345 = vmatpush.msra.mxu0 0.0
      %346 = vmatpush.msra.mxu0 %v301
      %347 = vmatmul.f32.gmra.mxu0 %v308
      %v348 = vpop.f32.mrf.mxu0
      %v349 = vadd.f32 %v304, %v348
      %350 = vmatmul.f32.gmra.mxu0 %v311
      %v351 = vpop.f32.mrf.mxu0
      %v352 = vadd.f32 %v304, %v351
      %353 = vmatmul.f32.gmra.mxu0 %v314
      %v354 = vpop.f32.mrf.mxu0
      %v355 = vadd.f32 %v304, %v354
      %356 = vmatmul.f32.gmra.mxu0 %v317
      %v357 = vpop.f32.mrf.mxu0
      %v358 = vadd.f32 %v304, %v357
      %359 = vmatmul.f32.gmra.mxu0 %v320
      %v360 = vpop.f32.mrf.mxu0
      %v361 = vadd.f32 %v304, %v360
      %362 = vmatmul.f32.gmra.mxu0 %v323
      %v363 = vpop.f32.mrf.mxu0
      %v364 = vadd.f32 %v304, %v363
      %365 = vmatmul.f32.gmra.mxu0 %v326
      %v366 = vpop.f32.mrf.mxu0
      %v367 = vadd.f32 %v304, %v366
      %368 = vmatmul.f32.gmra.mxu0 %v329
      %v369 = vpop.f32.mrf.mxu0
      %v370 = vadd.f32 %v304, %v369
      %371 = vdwg.mxu0
      %vm372 = vcmask 261120
      %373 = vst.msk [vmem:[%s284] sm:$0xff] %vm372, %v349
      %374 = vst.msk [vmem:[%s284 + $0x8] sm:$0xff] %vm372, %v352
      %375 = vst.msk [vmem:[%s284 + $0x10] sm:$0xff] %vm372, %v355
      %376 = vst.msk [vmem:[%s284 + $0x18] sm:$0xff] %vm372, %v358
      %377 = vst.msk [vmem:[%s284 + $0x20] sm:$0xff] %vm372, %v361
      %378 = vst.msk [vmem:[%s284 + $0x28] sm:$0xff] %vm372, %v364
      %379 = vst.msk [vmem:[%s284 + $0x30] sm:$0xff] %vm372, %v367
      %380 = vst.msk [vmem:[%s284 + $0x38] sm:$0xff] %vm372, %v370
      %v381 = vsel %vm372, %v349, 0.0
      %v382 = vsel %vm372, %v352, 0.0
      %v383 = vadd.f32 %v381, %v382
      %v384 = vsel %vm372, %v355, 0.0
      %v385 = vadd.f32 %v383, %v384
      %v386 = vsel %vm372, %v358, 0.0
      %v387 = vadd.f32 %v385, %v386
      %v388 = vsel %vm372, %v361, 0.0
      %v389 = vadd.f32 %v387, %v388
      %v390 = vsel %vm372, %v364, 0.0
      %v391 = vadd.f32 %v389, %v390
      %v392 = vsel %vm372, %v367, 0.0
      %v393 = vadd.f32 %v391, %v392
      %v394 = vsel %vm372, %v370, 0.0
      %v395 = vadd.f32 %v393, %v394
      %v396 = vrot.slane %v395, 4
      %v397 = vadd.f32 %v395, %v396
      %v398 = vrot.slane %v397, 2
      %v399 = vadd.f32 %v397, %v398
      %v400 = vrot.slane %v399, 1
      %v401 = vadd.f32 %v399, %v400
      %vm402 = vcmask 253952
      %403 = vst.msk [vmem:[%s288] sm:$0x1] %vm402, %v401
      %v404 = vmul.f32 %v349, %v349
      %v405 = vmul.f32 %v352, %v352
      %v406 = vmul.f32 %v355, %v355
      %v407 = vmul.f32 %v358, %v358
      %v408 = vmul.f32 %v361, %v361
      %v409 = vmul.f32 %v364, %v364
      %v410 = vmul.f32 %v367, %v367
      %v411 = vmul.f32 %v370, %v370
      %v412 = vsel %vm372, %v404, 0.0
      %v413 = vsel %vm372, %v405, 0.0
      %v414 = vadd.f32 %v412, %v413
      %v415 = vsel %vm372, %v406, 0.0
      %v416 = vadd.f32 %v414, %v415
      %v417 = vsel %vm372, %v407, 0.0
      %v418 = vadd.f32 %v416, %v417
      %v419 = vsel %vm372, %v408, 0.0
      %v420 = vadd.f32 %v418, %v419
      %v421 = vsel %vm372, %v409, 0.0
      %v422 = vadd.f32 %v420, %v421
      %v423 = vsel %vm372, %v410, 0.0
      %v424 = vadd.f32 %v422, %v423
      %v425 = vsel %vm372, %v411, 0.0
      %v426 = vadd.f32 %v424, %v425
      %v427 = vrot.slane %v426, 4
      %v428 = vadd.f32 %v426, %v427
      %v429 = vrot.slane %v428, 2
      %v430 = vadd.f32 %v428, %v429
      %v431 = vrot.slane %v430, 1
      %v432 = vadd.f32 %v430, %v431
      %433 = vst.msk [vmem:[%s288 + $0x1] sm:$0x1] %vm402, %v432
      %v434 = vld [vmem:[%s279] sm:$0xff]
      %v435 = vld [vmem:[%s279 + $0x8] sm:$0xff]
      %v436 = vld [vmem:[%s279 + $0x10] sm:$0xff]
      %v437 = vld [vmem:[%s279 + $0x18] sm:$0xff]
      %v438 = vld [vmem:[%s279 + $0x20] sm:$0xff]
      %v439 = vld [vmem:[%s279 + $0x28] sm:$0xff]
      %v440 = vld [vmem:[%s279 + $0x30] sm:$0xff]
      %v441 = vld [vmem:[%s279 + $0x38] sm:$0xff]
      %v442 = vld [vmem:[%s279 + $0x40] sm:$0xff]
      %v443 = vld [vmem:[%s279 + $0x48] sm:$0xff]
      %v444 = vld [vmem:[%s279 + $0x50] sm:$0xff]
      %v445 = vld [vmem:[%s279 + $0x58] sm:$0xff]
      %v446 = vld [vmem:[%s279 + $0x60] sm:$0xff]
      %v447 = vld [vmem:[%s279 + $0x68] sm:$0xff]
      %v448 = vld [vmem:[%s279 + $0x70] sm:$0xff]
      %v449 = vld [vmem:[%s279 + $0x78] sm:$0xff]
      %v450 = vld [vmem:[%s279 + $0x80] sm:$0xff]
      %v451 = vld [vmem:[%s279 + $0x88] sm:$0xff]
      %v452 = vld [vmem:[%s279 + $0x90] sm:$0xff]
      %v453 = vld [vmem:[%s279 + $0x98] sm:$0xff]
      %v454 = vld [vmem:[%s279 + $0xa0] sm:$0xff]
      %v455 = vld [vmem:[%s279 + $0xa8] sm:$0xff]
      %v456 = vld [vmem:[%s279 + $0xb0] sm:$0xff]
      %v457 = vld [vmem:[%s279 + $0xb8] sm:$0xff]
      %v458 = vld [vmem:[%s279 + $0xc0] sm:$0xff]
      %v459 = vld [vmem:[%s279 + $0xc8] sm:$0xff]
      %v460 = vld [vmem:[%s279 + $0xd0] sm:$0xff]
      %v461 = vld [vmem:[%s279 + $0xd8] sm:$0xff]
      %v462 = vld [vmem:[%s279 + $0xe0] sm:$0xff]
      %v463 = vld [vmem:[%s279 + $0xe8] sm:$0xff]
      %v464 = vld [vmem:[%s279 + $0xf0] sm:$0xff]
      %v465 = vld [vmem:[%s279 + $0xf8] sm:$0xff]
      %vm466 = vcmask 31744
      %v467 = vsel %vm466, %v434, 0.0
      %v468 = vsel %vm466, %v435, 0.0
      %v469 = vadd.f32 %v467, %v468
      %v470 = vsel %vm466, %v436, 0.0
      %v471 = vadd.f32 %v469, %v470
      %v472 = vsel %vm466, %v437, 0.0
      %v473 = vadd.f32 %v471, %v472
      %v474 = vsel %vm466, %v438, 0.0
      %v475 = vadd.f32 %v473, %v474
      %v476 = vsel %vm466, %v439, 0.0
      %v477 = vadd.f32 %v475, %v476
      %v478 = vsel %vm466, %v440, 0.0
      %v479 = vadd.f32 %v477, %v478
      %v480 = vsel %vm466, %v441, 0.0
      %v481 = vadd.f32 %v479, %v480
      %v482 = vsel %vm466, %v442, 0.0
      %v483 = vadd.f32 %v481, %v482
      %v484 = vsel %vm466, %v443, 0.0
      %v485 = vadd.f32 %v483, %v484
      %v486 = vsel %vm466, %v444, 0.0
      %v487 = vadd.f32 %v485, %v486
      %v488 = vsel %vm466, %v445, 0.0
      %v489 = vadd.f32 %v487, %v488
      %v490 = vsel %vm466, %v446, 0.0
      %v491 = vadd.f32 %v489, %v490
      %v492 = vsel %vm466, %v447, 0.0
      %v493 = vadd.f32 %v491, %v492
      %v494 = vsel %vm466, %v448, 0.0
      %v495 = vadd.f32 %v493, %v494
      %v496 = vsel %vm466, %v449, 0.0
      %v497 = vadd.f32 %v495, %v496
      %v498 = vsel %vm466, %v450, 0.0
      %v499 = vadd.f32 %v497, %v498
      %v500 = vsel %vm466, %v451, 0.0
      %v501 = vadd.f32 %v499, %v500
      %v502 = vsel %vm466, %v452, 0.0
      %v503 = vadd.f32 %v501, %v502
      %v504 = vsel %vm466, %v453, 0.0
      %v505 = vadd.f32 %v503, %v504
      %v506 = vsel %vm466, %v454, 0.0
      %v507 = vadd.f32 %v505, %v506
      %v508 = vsel %vm466, %v455, 0.0
      %v509 = vadd.f32 %v507, %v508
      %v510 = vsel %vm466, %v456, 0.0
      %v511 = vadd.f32 %v509, %v510
      %v512 = vsel %vm466, %v457, 0.0
      %v513 = vadd.f32 %v511, %v512
      %v514 = vsel %vm466, %v458, 0.0
      %v515 = vadd.f32 %v513, %v514
      %v516 = vsel %vm466, %v459, 0.0
      %v517 = vadd.f32 %v515, %v516
      %v518 = vsel %vm466, %v460, 0.0
      %v519 = vadd.f32 %v517, %v518
      %v520 = vsel %vm466, %v461, 0.0
      %v521 = vadd.f32 %v519, %v520
      %v522 = vsel %vm466, %v462, 0.0
      %v523 = vadd.f32 %v521, %v522
      %v524 = vsel %vm466, %v463, 0.0
      %v525 = vadd.f32 %v523, %v524
      %v526 = vsel %vm466, %v464, 0.0
      %v527 = vadd.f32 %v525, %v526
      %v528 = vsel %vm466, %v465, 0.0
      %v529 = vadd.f32 %v527, %v528
      %v530 = vrot.slane %v529, 4
      %v531 = vadd.f32 %v529, %v530
      %v532 = vrot.slane %v531, 2
      %v533 = vadd.f32 %v531, %v532
      %v534 = vrot.slane %v533, 1
      %v535 = vadd.f32 %v533, %v534
      %vm536 = vcmask 24576
      %537 = vst.msk [vmem:[%s292] sm:$0x1] %vm536, %v535
      %v538 = vmul.f32 %v434, %v434
      %v539 = vmul.f32 %v435, %v435
      %v540 = vmul.f32 %v436, %v436
      %v541 = vmul.f32 %v437, %v437
      %v542 = vmul.f32 %v438, %v438
      %v543 = vmul.f32 %v439, %v439
      %v544 = vmul.f32 %v440, %v440
      %v545 = vmul.f32 %v441, %v441
      %v546 = vmul.f32 %v442, %v442
      %v547 = vmul.f32 %v443, %v443
      %v548 = vmul.f32 %v444, %v444
      %v549 = vmul.f32 %v445, %v445
      %v550 = vmul.f32 %v446, %v446
      %v551 = vmul.f32 %v447, %v447
      %v552 = vmul.f32 %v448, %v448
      %v553 = vmul.f32 %v449, %v449
      %v554 = vmul.f32 %v450, %v450
      %v555 = vmul.f32 %v451, %v451
      %v556 = vmul.f32 %v452, %v452
      %v557 = vmul.f32 %v453, %v453
      %v558 = vmul.f32 %v454, %v454
      %v559 = vmul.f32 %v455, %v455
      %v560 = vmul.f32 %v456, %v456
      %v561 = vmul.f32 %v457, %v457
      %v562 = vmul.f32 %v458, %v458
      %v563 = vmul.f32 %v459, %v459
      %v564 = vmul.f32 %v460, %v460
      %v565 = vmul.f32 %v461, %v461
      %v566 = vmul.f32 %v462, %v462
      %v567 = vmul.f32 %v463, %v463
      %v568 = vmul.f32 %v464, %v464
      %v569 = vmul.f32 %v465, %v465
      %v570 = vsel %vm466, %v538, 0.0
      %v571 = vsel %vm466, %v539, 0.0
      %v572 = vadd.f32 %v570, %v571
      %v573 = vsel %vm466, %v540, 0.0
      %v574 = vadd.f32 %v572, %v573
      %v575 = vsel %vm466, %v541, 0.0
      %v576 = vadd.f32 %v574, %v575
      %v577 = vsel %vm466, %v542, 0.0
      %v578 = vadd.f32 %v576, %v577
      %v579 = vsel %vm466, %v543, 0.0
      %v580 = vadd.f32 %v578, %v579
      %v581 = vsel %vm466, %v544, 0.0
      %v582 = vadd.f32 %v580, %v581
      %v583 = vsel %vm466, %v545, 0.0
      %v584 = vadd.f32 %v582, %v583
      %v585 = vsel %vm466, %v546, 0.0
      %v586 = vadd.f32 %v584, %v585
      %v587 = vsel %vm466, %v547, 0.0
      %v588 = vadd.f32 %v586, %v587
      %v589 = vsel %vm466, %v548, 0.0
      %v590 = vadd.f32 %v588, %v589
      %v591 = vsel %vm466, %v549, 0.0
      %v592 = vadd.f32 %v590, %v591
      %v593 = vsel %vm466, %v550, 0.0
      %v594 = vadd.f32 %v592, %v593
      %v595 = vsel %vm466, %v551, 0.0
      %v596 = vadd.f32 %v594, %v595
      %v597 = vsel %vm466, %v552, 0.0
      %v598 = vadd.f32 %v596, %v597
      %v599 = vsel %vm466, %v553, 0.0
      %v600 = vadd.f32 %v598, %v599
      %v601 = vsel %vm466, %v554, 0.0
      %v602 = vadd.f32 %v600, %v601
      %v603 = vsel %vm466, %v555, 0.0
      %v604 = vadd.f32 %v602, %v603
      %v605 = vsel %vm466, %v556, 0.0
      %v606 = vadd.f32 %v604, %v605
      %v607 = vsel %vm466, %v557, 0.0
      %v608 = vadd.f32 %v606, %v607
      %v609 = vsel %vm466, %v558, 0.0
      %v610 = vadd.f32 %v608, %v609
      %v611 = vsel %vm466, %v559, 0.0
      %v612 = vadd.f32 %v610, %v611
      %v613 = vsel %vm466, %v560, 0.0
      %v614 = vadd.f32 %v612, %v613
      %v615 = vsel %vm466, %v561, 0.0
      %v616 = vadd.f32 %v614, %v615
      %v617 = vsel %vm466, %v562, 0.0
      %v618 = vadd.f32 %v616, %v617
      %v619 = vsel %vm466, %v563, 0.0
      %v620 = vadd.f32 %v618, %v619
      %v621 = vsel %vm466, %v564, 0.0
      %v622 = vadd.f32 %v620, %v621
      %v623 = vsel %vm466, %v565, 0.0
      %v624 = vadd.f32 %v622, %v623
      %v625 = vsel %vm466, %v566, 0.0
      %v626 = vadd.f32 %v624, %v625
      %v627 = vsel %vm466, %v567, 0.0
      %v628 = vadd.f32 %v626, %v627
      %v629 = vsel %vm466, %v568, 0.0
      %v630 = vadd.f32 %v628, %v629
      %v631 = vsel %vm466, %v569, 0.0
      %v632 = vadd.f32 %v630, %v631
      %v633 = vrot.slane %v632, 4
      %v634 = vadd.f32 %v632, %v633
      %v635 = vrot.slane %v634, 2
      %v636 = vadd.f32 %v634, %v635
      %v637 = vrot.slane %v636, 1
      %v638 = vadd.f32 %v636, %v637
      %639 = vst.msk [vmem:[%s292 + $0x1] sm:$0x1] %vm536, %v638
      %p640 = scmp.lt.s32.totalorder %s18, 1
      %s641 = scalar_select %p640, %s18, 1
      %s642 = smul.addr %s641, 8
      %s643 = smul.addr %s642, 8
      %s644 = scalar_lea.vmem %s4, %s643
      %p645 = scmp.lt.s32.totalorder %s18, 1
      %s646 = scalar_select %p645, %s18, 1
      %s647 = smul.addr %s646, 2
      %s648 = scalar_lea.vmem %s5, %s647
      %p649 = scmp.lt.s32.totalorder %s18, 1
      %s650 = scalar_select %p649, %s18, 1
      %s651 = smul.addr %s650, 2
      %s652 = scalar_lea.vmem %s6, %s651
      // Predicated region
      $region37: #{_decoder_block_forward.3} parent=35 // pred_check
        %p653 = pneg %p130
      $region38: #{_decoder_block_forward.3} parent=35 // pred_check_branch
        %655 = sbr.rel (%p653) target = $region40
      $region39: #{_decoder_block_forward.3} parent=35 // pred_region
        _
      $region40: #{_decoder_block_forward.3} parent=35 // pred_fallthru
        _
      // Predicated region
      $region41: #{_decoder_block_forward.3} parent=35 // pred_check
        %p656 = pneg %p156
      $region42: #{_decoder_block_forward.3} parent=35 // pred_check_branch
        %658 = sbr.rel (%p656) target = $region44
      $region43: #{_decoder_block_forward.3} parent=35 // pred_region
        _
      $region44: #{_decoder_block_forward.3} parent=35 // pred_fallthru
        _
      // Predicated region
      $region45: #{_decoder_block_forward.3} parent=35 // pred_check
        %p659 = pneg %p182
      $region46: #{_decoder_block_forward.3} parent=35 // pred_check_branch
        %661 = sbr.rel (%p659) target = $region48
      $region47: #{_decoder_block_forward.3} parent=35 // pred_region
        _
      $region48: #{_decoder_block_forward.3} parent=35 // pred_fallthru
        _
    $region36: #{_decoder_block_forward.3} parent=5 // pred_fallthru
      _
    %p662 = scmp.le.s32.totalorder 2, %s13
    // Predicated region
    $region49: #{_decoder_block_forward.3} parent=5 // pred_check
      %p663 = pneg %p662
    $region50: #{_decoder_block_forward.3} parent=5 // pred_check_branch
      %665 = sbr.rel (%p663) target = $region52
    $region51: #{_decoder_block_forward.3} parent=5 // pred_region
      %s666 = ssub.s32 %s13, 2
      // Predicated region
      $region53: #{_decoder_block_forward.3} parent=51 // pred_check
        %p667 = pneg %p136
      $region54: #{_decoder_block_forward.3} parent=51 // pred_check_branch
        %669 = sbr.rel (%p667) target = $region56
      $region55: #{_decoder_block_forward.3} parent=51 // pred_region
        %p670 = scmp.lt.s32.totalorder %s19, 1
        %s671 = scalar_select %p670, %s19, 1
        %s672 = smul.addr %s671, 8
        %s673 = smul.addr %s672, 8
        %s674 = scalar_lea.vmem %s4, %s673
      $region56: #{_decoder_block_forward.3} parent=51 // pred_fallthru
        _
      // Predicated region
      $region57: #{_decoder_block_forward.3} parent=51 // pred_check
        %p675 = pneg %p162
      $region58: #{_decoder_block_forward.3} parent=51 // pred_check_branch
        %677 = sbr.rel (%p675) target = $region60
      $region59: #{_decoder_block_forward.3} parent=51 // pred_region
        %p678 = scmp.lt.s32.totalorder %s19, 1
        %s679 = scalar_select %p678, %s19, 1
        %s680 = smul.addr %s679, 2
        %s681 = scalar_lea.vmem %s5, %s680
      $region60: #{_decoder_block_forward.3} parent=51 // pred_fallthru
        _
      // Predicated region
      $region61: #{_decoder_block_forward.3} parent=51 // pred_check
        %p682 = pneg %p188
      $region62: #{_decoder_block_forward.3} parent=51 // pred_check_branch
        %684 = sbr.rel (%p682) target = $region64
      $region63: #{_decoder_block_forward.3} parent=51 // pred_region
        %p685 = scmp.lt.s32.totalorder %s19, 1
        %s686 = scalar_select %p685, %s19, 1
        %s687 = smul.addr %s686, 2
        %s688 = scalar_lea.vmem %s6, %s687
      $region64: #{_decoder_block_forward.3} parent=51 // pred_fallthru
        _
    $region52: #{_decoder_block_forward.3} parent=5 // pred_fallthru
      _
  $region6: #{_decoder_block_forward.3} parent=0 // loop_footer
    %s17 = sadd.s32 1, %s13
  $region7: #{_decoder_block_forward.3} parent=0 // loop_footer_branch
    %12 = sbr.rel target = $region3
  $region8: #{_decoder_block_forward.3} parent=0 // loop_exit
    _

// kernel: _decoder_block_forward.5
$region0: #{_decoder_block_forward.5}
  #allocation0 [shape = 'u32[]', space=smem, size = 0x4, offset = 0x4, fixed_abs, tag = 'smem constant byte address 0x4 - core index']
  #allocation1 [shape = 'u32[72,128]{1,0:T(1,128)}', space=vmem, size = 0x9000, scoped, tag = 'internal scratch']
  #allocation2 [shape = 'f32[18,18,4]{2,1,0:T(8,128)}', space=vmem, size = 0x36000, scoped, tag = 'scratch operand']
  %s0 = inlined_call_operand.vmem [shape: f32[2,16,16,4], index: 0, kind: input, shape index: {}]
  %s1 = inlined_call_operand.vmem [shape: f32[2,16,16,4], index: 1, kind: input, shape index: {}]
  %s2 = inlined_call_operand.vmem [shape: f32[1,4], index: 2, kind: input, shape index: {}]
  %s3 = inlined_call_operand.vmem [shape: f32[1,4], index: 3, kind: input, shape index: {}]
  %s4 = inlined_call_operand.vmem [shape: f32[3,3,4,4], index: 4, kind: input, shape index: {}]
  %s5 = inlined_call_operand.vmem [shape: f32[1,4], index: 5, kind: input, shape index: {}]
  %s6 = inlined_call_operand.vmem [shape: f32[2,16,16,4], index: 6, kind: output, shape index: {}]
  %s7 = sld [smem:[#allocation0]]
  $region57: #{_decoder_block_forward.5} parent=0
    _
  %s9 = ssub.s32 1, %s7
  %s10 = scalar_select 0, %s9, %s7
  loop: start=0, step=1, limit=4
  $region2: #{_decoder_block_forward.5} parent=0 // loop_pre_header
    _
  $region3: #{_decoder_block_forward.5} parent=0 // loop_header
    %s12 = sphi 0, %s16
    %p13 = scmp.ge.s32.totalorder %s12, 4
    %s22 = sphi 0, %s24
    %s25 = sphi 0, %s22
    %s26 = sphi 0, %s25
    %s42 = sphi 0, %s26
    %s48 = sphi 0, %s50
    %s51 = sphi 0, %s48
    %s52 = sphi 0, %s51
    %s68 = sphi 0, %s52
    %s72 = sphi 0, %s72
    %s74 = sphi 0, %s72
    %s75 = sphi 0, %s74
    %s89 = sphi 0, %s75
    %s93 = sphi 0, %s93
    %s95 = sphi 0, %s93
    %s96 = sphi 0, %s95
    %s110 = sphi 0, %s96
    %s114 = sphi 0, %s114
    %s116 = sphi 0, %s114
    %s117 = sphi 0, %s116
    %s131 = sphi 0, %s117
    %s135 = sphi 0, %s135
    %s137 = sphi 0, %s135
    %s138 = sphi 0, %s137
    %s152 = sphi 0, %s138
    %s158 = sphi 0, %s160
    %s161 = sphi 0, %s158
    %s162 = sphi 0, %s161
    %s178 = sphi 0, %s162
  $region4: #{_decoder_block_forward.5} parent=0 // loop_header_branch
    %15 = sbr.rel (%p13) target = $region8
  $region5: #{_decoder_block_forward.5} parent=0 // loop_body
    %s17 = ssub.s32 %s12, 1
    %s18 = ssub.s32 %s12, 2
    %s19 = sadd.s32 %s12, 1
    %s20 = ssub.s32 %s12, %s19
    %p21 = scmp.eq.s32.totalorder %s20, 0
    %s23 = sadd.s32 %s22, 1
    %s24 = scalar_select %p21, %s22, %s23
    %p27 = pneg %p21
    %p28 = scmp.eq.s32.totalorder %s12, 1
    %p29 = por %p27, %p28
    %p30 = scmp.ne.s32.totalorder %s22, %s25
    %p31 = scmp.eq.s32.totalorder %s12, 0
    %p32 = por %p30, %p31
    %p33 = scmp.ne.s32.totalorder %s22, %s25
    %p34 = scmp.eq.s32.totalorder %s17, 1
    %p35 = por %p33, %p34
    %p36 = scmp.ne.s32.totalorder %s25, %s26
    %p37 = scmp.eq.s32.totalorder %s17, 0
    %p38 = por %p36, %p37
    %p39 = scmp.ne.s32.totalorder %s25, %s26
    %p40 = scmp.eq.s32.totalorder %s18, 1
    %p41 = por %p39, %p40
    %p43 = scmp.ne.s32.totalorder %s26, %s42
    %p44 = scmp.eq.s32.totalorder %s18, 0
    %p45 = por %p43, %p44
    %s46 = ssub.s32 %s12, %s19
    %p47 = scmp.eq.s32.totalorder %s46, 0
    %s49 = sadd.s32 %s48, 1
    %s50 = scalar_select %p47, %s48, %s49
    %p53 = pneg %p47
    %p54 = scmp.eq.s32.totalorder %s12, 1
    %p55 = por %p53, %p54
    %p56 = scmp.ne.s32.totalorder %s48, %s51
    %p57 = scmp.eq.s32.totalorder %s12, 0
    %p58 = por %p56, %p57
    %p59 = scmp.ne.s32.totalorder %s48, %s51
    %p60 = scmp.eq.s32.totalorder %s17, 1
    %p61 = por %p59, %p60
    %p62 = scmp.ne.s32.totalorder %s51, %s52
    %p63 = scmp.eq.s32.totalorder %s17, 0
    %p64 = por %p62, %p63
    %p65 = scmp.ne.s32.totalorder %s51, %s52
    %p66 = scmp.eq.s32.totalorder %s18, 1
    %p67 = por %p65, %p66
    %p69 = scmp.ne.s32.totalorder %s52, %s68
    %p70 = scmp.eq.s32.totalorder %s18, 0
    %p71 = por %p69, %p70
    %s73 = sadd.s32 %s72, 1
    %p76 = scmp.eq.s32.totalorder %s12, 1
    %p77 = scmp.ne.s32.totalorder %s72, %s74
    %p78 = scmp.eq.s32.totalorder %s12, 0
    %p79 = por %p77, %p78
    %p80 = scmp.ne.s32.totalorder %s72, %s74
    %p81 = scmp.eq.s32.totalorder %s17, 1
    %p82 = por %p80, %p81
    %p83 = scmp.ne.s32.totalorder %s74, %s75
    %p84 = scmp.eq.s32.totalorder %s17, 0
    %p85 = por %p83, %p84
    %p86 = scmp.ne.s32.totalorder %s74, %s75
    %p87 = scmp.eq.s32.totalorder %s18, 1
    %p88 = por %p86, %p87
    %p90 = scmp.ne.s32.totalorder %s75, %s89
    %p91 = scmp.eq.s32.totalorder %s18, 0
    %p92 = por %p90, %p91
    %s94 = sadd.s32 %s93, 1
    %p97 = scmp.eq.s32.totalorder %s12, 1
    %p98 = scmp.ne.s32.totalorder %s93, %s95
    %p99 = scmp.eq.s32.totalorder %s12, 0
    %p100 = por %p98, %p99
    %p101 = scmp.ne.s32.totalorder %s93, %s95
    %p102 = scmp.eq.s32.totalorder %s17, 1
    %p103 = por %p101, %p102
    %p104 = scmp.ne.s32.totalorder %s95, %s96
    %p105 = scmp.eq.s32.totalorder %s17, 0
    %p106 = por %p104, %p105
    %p107 = scmp.ne.s32.totalorder %s95, %s96
    %p108 = scmp.eq.s32.totalorder %s18, 1
    %p109 = por %p107, %p108
    %p111 = scmp.ne.s32.totalorder %s96, %s110
    %p112 = scmp.eq.s32.totalorder %s18, 0
    %p113 = por %p111, %p112
    %s115 = sadd.s32 %s114, 1
    %p118 = scmp.eq.s32.totalorder %s12, 1
    %p119 = scmp.ne.s32.totalorder %s114, %s116
    %p120 = scmp.eq.s32.totalorder %s12, 0
    %p121 = por %p119, %p120
    %p122 = scmp.ne.s32.totalorder %s114, %s116
    %p123 = scmp.eq.s32.totalorder %s17, 1
    %p124 = por %p122, %p123
    %p125 = scmp.ne.s32.totalorder %s116, %s117
    %p126 = scmp.eq.s32.totalorder %s17, 0
    %p127 = por %p125, %p126
    %p128 = scmp.ne.s32.totalorder %s116, %s117
    %p129 = scmp.eq.s32.totalorder %s18, 1
    %p130 = por %p128, %p129
    %p132 = scmp.ne.s32.totalorder %s117, %s131
    %p133 = scmp.eq.s32.totalorder %s18, 0
    %p134 = por %p132, %p133
    %s136 = sadd.s32 %s135, 1
    %p139 = scmp.eq.s32.totalorder %s12, 1
    %p140 = scmp.ne.s32.totalorder %s135, %s137
    %p141 = scmp.eq.s32.totalorder %s12, 0
    %p142 = por %p140, %p141
    %p143 = scmp.ne.s32.totalorder %s135, %s137
    %p144 = scmp.eq.s32.totalorder %s17, 1
    %p145 = por %p143, %p144
    %p146 = scmp.ne.s32.totalorder %s137, %s138
    %p147 = scmp.eq.s32.totalorder %s17, 0
    %p148 = por %p146, %p147
    %p149 = scmp.ne.s32.totalorder %s137, %s138
    %p150 = scmp.eq.s32.totalorder %s18, 1
    %p151 = por %p149, %p150
    %p153 = scmp.ne.s32.totalorder %s138, %s152
    %p154 = scmp.eq.s32.totalorder %s18, 0
    %p155 = por %p153, %p154
    %s156 = ssub.s32 %s12, %s19
    %p157 = scmp.eq.s32.totalorder %s156, 0
    %s159 = sadd.s32 %s158, 1
    %s160 = scalar_select %p157, %s158, %s159
    %p163 = pneg %p157
    %p164 = scmp.eq.s32.totalorder %s12, 1
    %p165 = por %p163, %p164
    %p166 = scmp.ne.s32.totalorder %s158, %s161
    %p167 = scmp.eq.s32.totalorder %s12, 0
    %p168 = por %p166, %p167
    %p169 = scmp.ne.s32.totalorder %s158, %s161
    %p170 = scmp.eq.s32.totalorder %s17, 1
    %p171 = por %p169, %p170
    %p172 = scmp.ne.s32.totalorder %s161, %s162
    %p173 = scmp.eq.s32.totalorder %s17, 0
    %p174 = por %p172, %p173
    %p175 = scmp.ne.s32.totalorder %s161, %s162
    %p176 = scmp.eq.s32.totalorder %s18, 1
    %p177 = por %p175, %p176
    %p179 = scmp.ne.s32.totalorder %s162, %s178
    %p180 = scmp.eq.s32.totalorder %s18, 0
    %p181 = por %p179, %p180
    %p182 = scmp.le.s32.totalorder 1, %s12
    %p183 = scmp.lt.s32.totalorder %s12, 3
    %p184 = pnand %p182, %p183
    %p185 = pneg %p184
    // Predicated region
    $region9: #{_decoder_block_forward.5} parent=5 // pred_check
      _
    $region10: #{_decoder_block_forward.5} parent=5 // pred_check_branch
      %187 = sbr.rel (%p184) target = $region12
    $region11: #{_decoder_block_forward.5} parent=5 // pred_region
      %s188 = ssub.s32 %s12, 1
      // Predicated region
      $region13: #{_decoder_block_forward.5} parent=11 // pred_check
        %p189 = pneg %p85
      $region14: #{_decoder_block_forward.5} parent=11 // pred_check_branch
        %191 = sbr.rel (%p189) target = $region16
      $region15: #{_decoder_block_forward.5} parent=11 // pred_region
        _
      $region16: #{_decoder_block_forward.5} parent=11 // pred_fallthru
        _
      // Predicated region
      $region17: #{_decoder_block_forward.5} parent=11 // pred_check
        %p192 = pneg %p106
      $region18: #{_decoder_block_forward.5} parent=11 // pred_check_branch
        %194 = sbr.rel (%p192) target = $region20
      $region19: #{_decoder_block_forward.5} parent=11 // pred_region
        _
      $region20: #{_decoder_block_forward.5} parent=11 // pred_fallthru
        _
      // Predicated region
      $region21: #{_decoder_block_forward.5} parent=11 // pred_check
        %p195 = pneg %p127
      $region22: #{_decoder_block_forward.5} parent=11 // pred_check_branch
        %197 = sbr.rel (%p195) target = $region24
      $region23: #{_decoder_block_forward.5} parent=11 // pred_region
        _
      $region24: #{_decoder_block_forward.5} parent=11 // pred_fallthru
        _
      // Predicated region
      $region25: #{_decoder_block_forward.5} parent=11 // pred_check
        %p198 = pneg %p148
      $region26: #{_decoder_block_forward.5} parent=11 // pred_check_branch
        %200 = sbr.rel (%p198) target = $region28
      $region27: #{_decoder_block_forward.5} parent=11 // pred_region
        _
      $region28: #{_decoder_block_forward.5} parent=11 // pred_fallthru
        _
    $region12: #{_decoder_block_forward.5} parent=5 // pred_fallthru
      _
    %p201 = scmp.lt.s32.totalorder %s12, 2
    // Predicated region
    $region29: #{_decoder_block_forward.5} parent=5 // pred_check
      %p202 = pneg %p201
    $region30: #{_decoder_block_forward.5} parent=5 // pred_check_branch
      %204 = sbr.rel (%p202) target = $region32
    $region31: #{_decoder_block_forward.5} parent=5 // pred_region
      // Predicated region
      $region33: #{_decoder_block_forward.5} parent=31 // pred_check
        %p205 = pneg %p32
      $region34: #{_decoder_block_forward.5} parent=31 // pred_check_branch
        %207 = sbr.rel (%p205) target = $region36
      $region35: #{_decoder_block_forward.5} parent=31 // pred_region
        %p208 = scmp.lt.s32.totalorder %s12, 1
        %s209 = scalar_select %p208, %s12, 1
        %s210 = smul.addr %s209, 32
        %s211 = smul.addr %s210, 8
        %s212 = scalar_lea.vmem %s0, %s211
      $region36: #{_decoder_block_forward.5} parent=31 // pred_fallthru
        _
      // Predicated region
      $region37: #{_decoder_block_forward.5} parent=31 // pred_check
        %p213 = pneg %p58
      $region38: #{_decoder_block_forward.5} parent=31 // pred_check_branch
        %215 = sbr.rel (%p213) target = $region40
      $region39: #{_decoder_block_forward.5} parent=31 // pred_region
        %p216 = scmp.lt.s32.totalorder %s12, 1
        %s217 = scalar_select %p216, %s12, 1
        %s218 = smul.addr %s217, 32
        %s219 = smul.addr %s218, 8
        %s220 = scalar_lea.vmem %s1, %s219
      $region40: #{_decoder_block_forward.5} parent=31 // pred_fallthru
        _
    $region32: #{_decoder_block_forward.5} parent=5 // pred_fallthru
      _
    %p221 = scmp.le.s32.totalorder 1, %s12
    %p222 = scmp.lt.s32.totalorder %s12, 3
    %p223 = pnand %p221, %p222
    %p224 = pneg %p223
    // Predicated region
    $region41: #{_decoder_block_forward.5} parent=5 // pred_check
      _
    $region42: #{_decoder_block_forward.5} parent=5 // pred_check_branch
      %226 = sbr.rel (%p223) target = $region44
    $region43: #{_decoder_block_forward.5} parent=5 // pred_region
      %s227 = ssub.s32 %s12, 1
      %p228 = scmp.lt.s32.totalorder %s17, 1
      %s229 = scalar_select %p228, %s17, 1
      %s230 = smul.addr %s229, 32
      %s231 = smul.addr %s230, 8
      %s232 = scalar_lea.vmem %s0, %s231
      %p233 = pneg %p38
      %p234 = pneg %p35
      %p235 = scmp.lt.s32.totalorder %s17, 1
      %s236 = scalar_select %p235, %s17, 1
      %s237 = smul.addr %s236, 32
      %s238 = smul.addr %s237, 8
      %s239 = scalar_lea.vmem %s1, %s238
      %p240 = pneg %p64
      %p241 = pneg %p61
      %p242 = pneg %p85
      %p243 = pneg %p82
      %p244 = pneg %p106
      %p245 = pneg %p103
      %p246 = pneg %p127
      %p247 = pneg %p124
      %p248 = pneg %p148
      %p249 = pneg %p145
      %p250 = pneg %p174
      %p251 = pneg %p171
      %p252 = scmp.lt.s32.totalorder %s17, 1
      %s253 = scalar_select %p252, %s17, 1
      %s254 = smul.addr %s253, 32
      %s255 = smul.addr %s254, 8
      %s256 = scalar_lea.vmem %s6, %s255
      %p257 = scmp.lt.s32.totalorder %s17, 1
      %s258 = scalar_select %p257, %s17, 1
      %s259 = smul.addr %s258, 32
      %s260 = smul.addr %s259, 8
      %s261 = scalar_lea.vmem %s0, %s260
      %p262 = scmp.lt.s32.totalorder %s17, 1
      %s263 = scalar_select %p262, %s17, 1
      %s264 = smul.addr %s263, 32
      %s265 = smul.addr %s264, 8
      %s266 = scalar_lea.vmem %s1, %s265
      %p267 = scmp.lt.s32.totalorder %s17, 1
      %s268 = scalar_select %p267, %s17, 1
      %s269 = smul.addr %s268, 32
      %s270 = smul.addr %s269, 8
      %s271 = scalar_lea.vmem %s6, %s270
      %v272 = vld [vmem:[%s261] sm:$0xff]
      %v273 = vld [vmem:[%s261 + $0x8] sm:$0xff]
      %v274 = vld [vmem:[%s261 + $0x10] sm:$0xff]
      %v275 = vld [vmem:[%s261 + $0x18] sm:$0xff]
      %v276 = vld [vmem:[%s261 + $0x20] sm:$0xff]
      %v277 = vld [vmem:[%s261 + $0x28] sm:$0xff]
      %v278 = vld [vmem:[%s261 + $0x30] sm:$0xff]
      %v279 = vld [vmem:[%s261 + $0x38] sm:$0xff]
      %v280 = vld [vmem:[%s261 + $0x40] sm:$0xff]
      %v281 = vld [vmem:[%s261 + $0x48] sm:$0xff]
      %v282 = vld [vmem:[%s261 + $0x50] sm:$0xff]
      %v283 = vld [vmem:[%s261 + $0x58] sm:$0xff]
      %v284 = vld [vmem:[%s261 + $0x60] sm:$0xff]
      %v285 = vld [vmem:[%s261 + $0x68] sm:$0xff]
      %v286 = vld [vmem:[%s261 + $0x70] sm:$0xff]
      %v287 = vld [vmem:[%s261 + $0x78] sm:$0xff]
      %v288 = vld [vmem:[%s261 + $0x80] sm:$0xff]
      %v289 = vld [vmem:[%s261 + $0x88] sm:$0xff]
      %v290 = vld [vmem:[%s261 + $0x90] sm:$0xff]
      %v291 = vld [vmem:[%s261 + $0x98] sm:$0xff]
      %v292 = vld [vmem:[%s261 + $0xa0] sm:$0xff]
      %v293 = vld [vmem:[%s261 + $0xa8] sm:$0xff]
      %v294 = vld [vmem:[%s261 + $0xb0] sm:$0xff]
      %v295 = vld [vmem:[%s261 + $0xb8] sm:$0xff]
      %v296 = vld [vmem:[%s261 + $0xc0] sm:$0xff]
      %v297 = vld [vmem:[%s261 + $0xc8] sm:$0xff]
      %v298 = vld [vmem:[%s261 + $0xd0] sm:$0xff]
      %v299 = vld [vmem:[%s261 + $0xd8] sm:$0xff]
      %v300 = vld [vmem:[%s261 + $0xe0] sm:$0xff]
      %v301 = vld [vmem:[%s261 + $0xe8] sm:$0xff]
      %v302 = vld [vmem:[%s261 + $0xf0] sm:$0xff]
      %v303 = vld [vmem:[%s261 + $0xf8] sm:$0xff]
      %v304 = vld [vmem:[%s2] sm:$0x1]
      %v306 = vperm.slane %v304, 0
      %v308 = vmul.f32 %v272, %v306
      %v309 = vmul.f32 %v273, %v306
      %v310 = vmul.f32 %v274, %v306
      %v311 = vmul.f32 %v275, %v306
      %v312 = vmul.f32 %v276, %v306
      %v313 = vmul.f32 %v277, %v306
      %v314 = vmul.f32 %v278, %v306
      %v315 = vmul.f32 %v279, %v306
      %v316 = vmul.f32 %v280, %v306
      %v317 = vmul.f32 %v281, %v306
      %v318 = vmul.f32 %v282, %v306
      %v319 = vmul.f32 %v283, %v306
      %v320 = vmul.f32 %v284, %v306
      %v321 = vmul.f32 %v285, %v306
      %v322 = vmul.f32 %v286, %v306
      %v323 = vmul.f32 %v287, %v306
      %v324 = vmul.f32 %v288, %v306
      %v325 = vmul.f32 %v289, %v306
      %v326 = vmul.f32 %v290, %v306
      %v327 = vmul.f32 %v291, %v306
      %v328 = vmul.f32 %v292, %v306
      %v329 = vmul.f32 %v293, %v306
      %v330 = vmul.f32 %v294, %v306
      %v331 = vmul.f32 %v295, %v306
      %v332 = vmul.f32 %v296, %v306
      %v333 = vmul.f32 %v297, %v306
      %v334 = vmul.f32 %v298, %v306
      %v335 = vmul.f32 %v299, %v306
      %v336 = vmul.f32 %v300, %v306
      %v337 = vmul.f32 %v301, %v306
      %v338 = vmul.f32 %v302, %v306
      %v339 = vmul.f32 %v303, %v306
      %v340 = vld [vmem:[%s3] sm:$0x1]
      %v342 = vperm.slane %v340, 0
      %v344 = vadd.f32 %v308, %v342
      %v345 = vadd.f32 %v309, %v342
      %v346 = vadd.f32 %v310, %v342
      %v347 = vadd.f32 %v311, %v342
      %v348 = vadd.f32 %v312, %v342
      %v349 = vadd.f32 %v313, %v342
      %v350 = vadd.f32 %v314, %v342
      %v351 = vadd.f32 %v315, %v342
      %v352 = vadd.f32 %v316, %v342
      %v353 = vadd.f32 %v317, %v342
      %v354 = vadd.f32 %v318, %v342
      %v355 = vadd.f32 %v319, %v342
      %v356 = vadd.f32 %v320, %v342
      %v357 = vadd.f32 %v321, %v342
      %v358 = vadd.f32 %v322, %v342
      %v359 = vadd.f32 %v323, %v342
      %v360 = vadd.f32 %v324, %v342
      %v361 = vadd.f32 %v325, %v342
      %v362 = vadd.f32 %v326, %v342
      %v363 = vadd.f32 %v327, %v342
      %v364 = vadd.f32 %v328, %v342
      %v365 = vadd.f32 %v329, %v342
      %v366 = vadd.f32 %v330, %v342
      %v367 = vadd.f32 %v331, %v342
      %v368 = vadd.f32 %v332, %v342
      %v369 = vadd.f32 %v333, %v342
      %v370 = vadd.f32 %v334, %v342
      %v371 = vadd.f32 %v335, %v342
      %v372 = vadd.f32 %v336, %v342
      %v373 = vadd.f32 %v337, %v342
      %v374 = vadd.f32 %v338, %v342
      %v375 = vadd.f32 %v339, %v342
      %vm376 = vcmp.ge.f32.partialorder %v344, 0.0
      %vm377 = vcmp.ge.f32.partialorder %v345, 0.0
      %vm378 = vcmp.ge.f32.partialorder %v346, 0.0
      %vm379 = vcmp.ge.f32.partialorder %v347, 0.0
      %vm380 = vcmp.ge.f32.partialorder %v348, 0.0
      %vm381 = vcmp.ge.f32.partialorder %v349, 0.0
      %vm382 = vcmp.ge.f32.partialorder %v350, 0.0
      %vm383 = vcmp.ge.f32.partialorder %v351, 0.0
      %vm384 = vcmp.ge.f32.partialorder %v352, 0.0
      %vm385 = vcmp.ge.f32.partialorder %v353, 0.0
      %vm386 = vcmp.ge.f32.partialorder %v354, 0.0
      %vm387 = vcmp.ge.f32.partialorder %v355, 0.0
      %vm388 = vcmp.ge.f32.partialorder %v356, 0.0
      %vm389 = vcmp.ge.f32.partialorder %v357, 0.0
      %vm390 = vcmp.ge.f32.partialorder %v358, 0.0
      %vm391 = vcmp.ge.f32.partialorder %v359, 0.0
      %vm392 = vcmp.ge.f32.partialorder %v360, 0.0
      %vm393 = vcmp.ge.f32.partialorder %v361, 0.0
      %vm394 = vcmp.ge.f32.partialorder %v362, 0.0
      %vm395 = vcmp.ge.f32.partialorder %v363, 0.0
      %vm396 = vcmp.ge.f32.partialorder %v364, 0.0
      %vm397 = vcmp.ge.f32.partialorder %v365, 0.0
      %vm398 = vcmp.ge.f32.partialorder %v366, 0.0
      %vm399 = vcmp.ge.f32.partialorder %v367, 0.0
      %vm400 = vcmp.ge.f32.partialorder %v368, 0.0
      %vm401 = vcmp.ge.f32.partialorder %v369, 0.0
      %vm402 = vcmp.ge.f32.partialorder %v370, 0.0
      %vm403 = vcmp.ge.f32.partialorder %v371, 0.0
      %vm404 = vcmp.ge.f32.partialorder %v372, 0.0
      %vm405 = vcmp.ge.f32.partialorder %v373, 0.0
      %vm406 = vcmp.ge.f32.partialorder %v374, 0.0
      %vm407 = vcmp.ge.f32.partialorder %v375, 0.0
      %v408 = vmul.f32 %v344, 0.1
      %v409 = vmul.f32 %v345, 0.1
      %v410 = vmul.f32 %v346, 0.1
      %v411 = vmul.f32 %v347, 0.1
      %v412 = vmul.f32 %v348, 0.1
      %v413 = vmul.f32 %v349, 0.1
      %v414 = vmul.f32 %v350, 0.1
      %v415 = vmul.f32 %v351, 0.1
      %v416 = vmul.f32 %v352, 0.1
      %v417 = vmul.f32 %v353, 0.1
      %v418 = vmul.f32 %v354, 0.1
      %v419 = vmul.f32 %v355, 0.1
      %v420 = vmul.f32 %v356, 0.1
      %v421 = vmul.f32 %v357, 0.1
      %v422 = vmul.f32 %v358, 0.1
      %v423 = vmul.f32 %v359, 0.1
      %v424 = vmul.f32 %v360, 0.1
      %v425 = vmul.f32 %v361, 0.1
      %v426 = vmul.f32 %v362, 0.1
      %v427 = vmul.f32 %v363, 0.1
      %v428 = vmul.f32 %v364, 0.1
      %v429 = vmul.f32 %v365, 0.1
      %v430 = vmul.f32 %v366, 0.1
      %v431 = vmul.f32 %v367, 0.1
      %v432 = vmul.f32 %v368, 0.1
      %v433 = vmul.f32 %v369, 0.1
      %v434 = vmul.f32 %v370, 0.1
      %v435 = vmul.f32 %v371, 0.1
      %v436 = vmul.f32 %v372, 0.1
      %v437 = vmul.f32 %v373, 0.1
      %v438 = vmul.f32 %v374, 0.1
      %v439 = vmul.f32 %v375, 0.1
      %v440 = vsel %vm376, %v344, %v408
      %v441 = vsel %vm377, %v345, %v409
      %v442 = vsel %vm378, %v346, %v410
      %v443 = vsel %vm379, %v347, %v411
      %v444 = vsel %vm380, %v348, %v412
      %v445 = vsel %vm381, %v349, %v413
      %v446 = vsel %vm382, %v350, %v414
      %v447 = vsel %vm383, %v351, %v415
      %v448 = vsel %vm384, %v352, %v416
      %v449 = vsel %vm385, %v353, %v417
      %v450 = vsel %vm386, %v354, %v418
      %v451 = vsel %vm387, %v355, %v419
      %v452 = vsel %vm388, %v356, %v420
      %v453 = vsel %vm389, %v357, %v421
      %v454 = vsel %vm390, %v358, %v422
      %v455 = vsel %vm391, %v359, %v423
      %v456 = vsel %vm392, %v360, %v424
      %v457 = vsel %vm393, %v361, %v425
      %v458 = vsel %vm394, %v362, %v426
      %v459 = vsel %vm395, %v363, %v427
      %v460 = vsel %vm396, %v364, %v428
      %v461 = vsel %vm397, %v365, %v429
      %v462 = vsel %vm398, %v366, %v430
      %v463 = vsel %vm399, %v367, %v431
      %v464 = vsel %vm400, %v368, %v432
      %v465 = vsel %vm401, %v369, %v433
      %v466 = vsel %vm402, %v370, %v434
      %v467 = vsel %vm403, %v371, %v435
      %v468 = vsel %vm404, %v372, %v436
      %v469 = vsel %vm405, %v373, %v437
      %v470 = vsel %vm406, %v374, %v438
      %v471 = vsel %vm407, %v375, %v439
      %vm472 = vcmask 31744
      %473 = vst.msk [vmem:[#allocation2] sm:$0xff] %vm472, 0.0
      %474 = vst.msk [vmem:[#allocation2 + $0x8] sm:$0xff] %vm472, 0.0
      %vm475 = vcmask 25600
      %476 = vst.msk [vmem:[#allocation2 + $0x10] sm:$0x3] %vm475, 0.0
      %477 = vst.msk [vmem:[#allocation2 + $0x18] sm:$0xff] %vm472, 0.0
      %478 = vst.msk [vmem:[#allocation2 + $0x20] sm:$0xff] %vm472, 0.0
      %479 = vst.msk [vmem:[#allocation2 + $0x28] sm:$0x3] %vm475, 0.0
      %480 = vst.msk [vmem:[#allocation2 + $0x30] sm:$0xff] %vm472, 0.0
      %481 = vst.msk [vmem:[#allocation2 + $0x38] sm:$0xff] %vm472, 0.0
      %482 = vst.msk [vmem:[#allocation2 + $0x40] sm:$0x3] %vm475, 0.0
      %483 = vst.msk [vmem:[#allocation2 + $0x48] sm:$0xff] %vm472, 0.0
      %484 = vst.msk [vmem:[#allocation2 + $0x50] sm:$0xff] %vm472, 0.0
      %485 = vst.msk [vmem:[#allocation2 + $0x58] sm:$0x3] %vm475, 0.0
      %486 = vst.msk [vmem:[#allocation2 + $0x60] sm:$0xff] %vm472, 0.0
      %487 = vst.msk [vmem:[#allocation2 + $0x68] sm:$0xff] %vm472, 0.0
      %488 = vst.msk [vmem:[#allocation2 + $0x70] sm:$0x3] %vm475, 0.0
      %489 = vst.msk [vmem:[#allocation2 + $0x78] sm:$0xff] %vm472, 0.0
      %490 = vst.msk [vmem:[#allocation2 + $0x80] sm:$0xff] %vm472, 0.0
      %491 = vst.msk [vmem:[#allocation2 + $0x88] sm:$0x3] %vm475, 0.0
      %492 = vst.msk [vmem:[#allocation2 + $0x90] sm:$0xff] %vm472, 0.0
      %493 = vst.msk [vmem:[#allocation2 + $0x98] sm:$0xff] %vm472, 0.0
      %494 = vst.msk [vmem:[#allocation2 + $0xa0] sm:$0x3] %vm475, 0.0
      %495 = vst.msk [vmem:[#allocation2 + $0xa8] sm:$0xff] %vm472, 0.0
      %496 = vst.msk [vmem:[#allocation2 + $0xb0] sm:$0xff] %vm472, 0.0
      %497 = vst.msk [vmem:[#allocation2 + $0xb8] sm:$0x3] %vm475, 0.0
      %498 = vst.msk [vmem:[#allocation2 + $0xc0] sm:$0xff] %vm472, 0.0
      %499 = vst.msk [vmem:[#allocation2 + $0xc8] sm:$0xff] %vm472, 0.0
      %500 = vst.msk [vmem:[#allocation2 + $0xd0] sm:$0x3] %vm475, 0.0
      %501 = vst.msk [vmem:[#allocation2 + $0xd8] sm:$0xff] %vm472, 0.0
      %502 = vst.msk [vmem:[#allocation2 + $0xe0] sm:$0xff] %vm472, 0.0
      %503 = vst.msk [vmem:[#allocation2 + $0xe8] sm:$0x3] %vm475, 0.0
      %504 = vst.msk [vmem:[#allocation2 + $0xf0] sm:$0xff] %vm472, 0.0
      %505 = vst.msk [vmem:[#allocation2 + $0xf8] sm:$0xff] %vm472, 0.0
      %506 = vst.msk [vmem:[#allocation2 + $0x100] sm:$0x3] %vm475, 0.0
      %507 = vst.msk [vmem:[#allocation2 + $0x108] sm:$0xff] %vm472, 0.0
      %508 = vst.msk [vmem:[#allocation2 + $0x110] sm:$0xff] %vm472, 0.0
      %509 = vst.msk [vmem:[#allocation2 + $0x118] sm:$0x3] %vm475, 0.0
      %510 = vst.msk [vmem:[#allocation2 + $0x120] sm:$0xff] %vm472, 0.0
      %511 = vst.msk [vmem:[#allocation2 + $0x128] sm:$0xff] %vm472, 0.0
      %512 = vst.msk [vmem:[#allocation2 + $0x130] sm:$0x3] %vm475, 0.0
      %513 = vst.msk [vmem:[#allocation2 + $0x138] sm:$0xff] %vm472, 0.0
      %514 = vst.msk [vmem:[#allocation2 + $0x140] sm:$0xff] %vm472, 0.0
      %515 = vst.msk [vmem:[#allocation2 + $0x148] sm:$0x3] %vm475, 0.0
      %516 = vst.msk [vmem:[#allocation2 + $0x150] sm:$0xff] %vm472, 0.0
      %517 = vst.msk [vmem:[#allocation2 + $0x158] sm:$0xff] %vm472, 0.0
      %518 = vst.msk [vmem:[#allocation2 + $0x160] sm:$0x3] %vm475, 0.0
      %519 = vst.msk [vmem:[#allocation2 + $0x168] sm:$0xff] %vm472, 0.0
      %520 = vst.msk [vmem:[#allocation2 + $0x170] sm:$0xff] %vm472, 0.0
      %521 = vst.msk [vmem:[#allocation2 + $0x178] sm:$0x3] %vm475, 0.0
      %522 = vst.msk [vmem:[#allocation2 + $0x180] sm:$0xff] %vm472, 0.0
      %523 = vst.msk [vmem:[#allocation2 + $0x188] sm:$0xff] %vm472, 0.0
      %524 = vst.msk [vmem:[#allocation2 + $0x190] sm:$0x3] %vm475, 0.0
      %525 = vst.msk [vmem:[#allocation2 + $0x198] sm:$0xff] %vm472, 0.0
      %526 = vst.msk [vmem:[#allocation2 + $0x1a0] sm:$0xff] %vm472, 0.0
      %527 = vst.msk [vmem:[#allocation2 + $0x1a8] sm:$0x3] %vm475, 0.0
      %s528 = scalar_lea.vmem [#allocation2], 24
      %529 = vst.msk [vmem:[%s528 + $0x1] sm:$0xff] %vm472, %v440
      %530 = vst.msk [vmem:[%s528 + $0x9] sm:$0xff] %vm472, %v441
      %531 = vst.msk [vmem:[%s528 + $0x19] sm:$0xff] %vm472, %v442
      %532 = vst.msk [vmem:[%s528 + $0x21] sm:$0xff] %vm472, %v443
      %533 = vst.msk [vmem:[%s528 + $0x31] sm:$0xff] %vm472, %v444
      %534 = vst.msk [vmem:[%s528 + $0x39] sm:$0xff] %vm472, %v445
      %535 = vst.msk [vmem:[%s528 + $0x49] sm:$0xff] %vm472, %v446
      %536 = vst.msk [vmem:[%s528 + $0x51] sm:$0xff] %vm472, %v447
      %537 = vst.msk [vmem:[%s528 + $0x61] sm:$0xff] %vm472, %v448
      %538 = vst.msk [vmem:[%s528 + $0x69] sm:$0xff] %vm472, %v449
      %539 = vst.msk [vmem:[%s528 + $0x79] sm:$0xff] %vm472, %v450
      %540 = vst.msk [vmem:[%s528 + $0x81] sm:$0xff] %vm472, %v451
      %541 = vst.msk [vmem:[%s528 + $0x91] sm:$0xff] %vm472, %v452
      %542 = vst.msk [vmem:[%s528 + $0x99] sm:$0xff] %vm472, %v453
      %543 = vst.msk [vmem:[%s528 + $0xa9] sm:$0xff] %vm472, %v454
      %544 = vst.msk [vmem:[%s528 + $0xb1] sm:$0xff] %vm472, %v455
      %545 = vst.msk [vmem:[%s528 + $0xc1] sm:$0xff] %vm472, %v456
      %546 = vst.msk [vmem:[%s528 + $0xc9] sm:$0xff] %vm472, %v457
      %547 = vst.msk [vmem:[%s528 + $0xd9] sm:$0xff] %vm472, %v458
      %548 = vst.msk [vmem:[%s528 + $0xe1] sm:$0xff] %vm472, %v459
      %549 = vst.msk [vmem:[%s528 + $0xf1] sm:$0xff] %vm472, %v460
      %550 = vst.msk [vmem:[%s528 + $0xf9] sm:$0xff] %vm472, %v461
      %551 = vst.msk [vmem:[%s528 + $0x109] sm:$0xff] %vm472, %v462
      %552 = vst.msk [vmem:[%s528 + $0x111] sm:$0xff] %vm472, %v463
      %553 = vst.msk [vmem:[%s528 + $0x121] sm:$0xff] %vm472, %v464
      %554 = vst.msk [vmem:[%s528 + $0x129] sm:$0xff] %vm472, %v465
      %555 = vst.msk [vmem:[%s528 + $0x139] sm:$0xff] %vm472, %v466
      %556 = vst.msk [vmem:[%s528 + $0x141] sm:$0xff] %vm472, %v467
      %557 = vst.msk [vmem:[%s528 + $0x151] sm:$0xff] %vm472, %v468
      %558 = vst.msk [vmem:[%s528 + $0x159] sm:$0xff] %vm472, %v469
      %559 = vst.msk [vmem:[%s528 + $0x169] sm:$0xff] %vm472, %v470
      %560 = vst.msk [vmem:[%s528 + $0x171] sm:$0xff] %vm472, %v471
      %v561 = vld [vmem:[#allocation2] sm:$0xff]
      %v562 = vld [vmem:[#allocation2 + $0x8] sm:$0xff]
      %v563 = vld [vmem:[#allocation2 + $0x18] sm:$0xff]
      %v564 = vld [vmem:[#allocation2 + $0x20] sm:$0xff]
      %v565 = vld [vmem:[#allocation2 + $0x30] sm:$0xff]
      %v566 = vld [vmem:[#allocation2 + $0x38] sm:$0xff]
      %v567 = vld [vmem:[#allocation2 + $0x48] sm:$0xff]
      %v568 = vld [vmem:[#allocation2 + $0x50] sm:$0xff]
      %v569 = vld [vmem:[#allocation2 + $0x60] sm:$0xff]
      %v570 = vld [vmem:[#allocation2 + $0x68] sm:$0xff]
      %v571 = vld [vmem:[#allocation2 + $0x78] sm:$0xff]
      %v572 = vld [vmem:[#allocation2 + $0x80] sm:$0xff]
      %v573 = vld [vmem:[#allocation2 + $0x90] sm:$0xff]
      %v574 = vld [vmem:[#allocation2 + $0x98] sm:$0xff]
      %v575 = vld [vmem:[#allocation2 + $0xa8] sm:$0xff]
      %v576 = vld [vmem:[#allocation2 + $0xb0] sm:$0xff]
      %v577 = vld [vmem:[#allocation2 + $0xc0] sm:$0xff]
      %v578 = vld [vmem:[#allocation2 + $0xc8] sm:$0xff]
      %v579 = vld [vmem:[#allocation2 + $0xd8] sm:$0xff]
      %v580 = vld [vmem:[#allocation2 + $0xe0] sm:$0xff]
      %v581 = vld [vmem:[#allocation2 + $0xf0] sm:$0xff]
      %v582 = vld [vmem:[#allocation2 + $0xf8] sm:$0xff]
      %v583 = vld [vmem:[#allocation2 + $0x108] sm:$0xff]
      %v584 = vld [vmem:[#allocation2 + $0x110] sm:$0xff]
      %v585 = vld [vmem:[#allocation2 + $0x120] sm:$0xff]
      %v586 = vld [vmem:[#allocation2 + $0x128] sm:$0xff]
      %v587 = vld [vmem:[#allocation2 + $0x138] sm:$0xff]
      %v588 = vld [vmem:[#allocation2 + $0x140] sm:$0xff]
      %v589 = vld [vmem:[#allocation2 + $0x150] sm:$0xff]
      %v590 = vld [vmem:[#allocation2 + $0x158] sm:$0xff]
      %v591 = vld [vmem:[#allocation2 + $0x168] sm:$0xff]
      %v592 = vld [vmem:[#allocation2 + $0x170] sm:$0xff]
      %v593 = vld [vmem:[%s4] sm:$0xf]
      %v594 = vld [vmem:[#allocation2 + $0x1] sm:$0xff]
      %v595 = vld [vmem:[#allocation2 + $0x9] sm:$0xff]
      %v596 = vld [vmem:[#allocation2 + $0x19] sm:$0xff]
      %v597 = vld [vmem:[#allocation2 + $0x21] sm:$0xff]
      %v598 = vld [vmem:[#allocation2 + $0x31] sm:$0xff]
      %v599 = vld [vmem:[#allocation2 + $0x39] sm:$0xff]
      %v600 = vld [vmem:[#allocation2 + $0x49] sm:$0xff]
      %v601 = vld [vmem:[#allocation2 + $0x51] sm:$0xff]
      %v602 = vld [vmem:[#allocation2 + $0x61] sm:$0xff]
      %v603 = vld [vmem:[#allocation2 + $0x69] sm:$0xff]
      %v604 = vld [vmem:[#allocation2 + $0x79] sm:$0xff]
      %v605 = vld [vmem:[#allocation2 + $0x81] sm:$0xff]
      %v606 = vld [vmem:[#allocation2 + $0x91] sm:$0xff]
      %v607 = vld [vmem:[#allocation2 + $0x99] sm:$0xff]
      %v608 = vld [vmem:[#allocation2 + $0xa9] sm:$0xff]
      %v609 = vld [vmem:[#allocation2 + $0xb1] sm:$0xff]
      %v610 = vld [vmem:[#allocation2 + $0xc1] sm:$0xff]
      %v611 = vld [vmem:[#allocation2 + $0xc9] sm:$0xff]
      %v612 = vld [vmem:[#allocation2 + $0xd9] sm:$0xff]
      %v613 = vld [vmem:[#allocation2 + $0xe1] sm:$0xff]
      %v614 = vld [vmem:[#allocation2 + $0xf1] sm:$0xff]
      %v615 = vld [vmem:[#allocation2 + $0xf9] sm:$0xff]
      %v616 = vld [vmem:[#allocation2 + $0x109] sm:$0xff]
      %v617 = vld [vmem:[#allocation2 + $0x111] sm:$0xff]
      %v618 = vld [vmem:[#allocation2 + $0x121] sm:$0xff]
      %v619 = vld [vmem:[#allocation2 + $0x129] sm:$0xff]
      %v620 = vld [vmem:[#allocation2 + $0x139] sm:$0xff]
      %v621 = vld [vmem:[#allocation2 + $0x141] sm:$0xff]
      %v622 = vld [vmem:[#allocation2 + $0x151] sm:$0xff]
      %v623 = vld [vmem:[#allocation2 + $0x159] sm:$0xff]
      %v624 = vld [vmem:[#allocation2 + $0x169] sm:$0xff]
      %v625 = vld [vmem:[#allocation2 + $0x171] sm:$0xff]
      %s626 = scalar_lea.vmem %s4, 4
      %v627 = vld [vmem:[%s626] sm:$0xf]
      %v629 = vsel %vm472, %v594, 0
      %v632 = vsel %vm472, %v595, 0
      %v635 = vsel %vm472, %v596, 0
      %v638 = vsel %vm472, %v597, 0
      %v641 = vsel %vm472, %v598, 0
      %v644 = vsel %vm472, %v599, 0
      %v647 = vsel %vm472, %v600, 0
      %v650 = vsel %vm472, %v601, 0
      %v653 = vsel %vm472, %v602, 0
      %v656 = vsel %vm472, %v603, 0
      %v659 = vsel %vm472, %v604, 0
      %v662 = vsel %vm472, %v605, 0
      %v665 = vsel %vm472, %v606, 0
      %v668 = vsel %vm472, %v607, 0
      %v671 = vsel %vm472, %v608, 0
      %v674 = vsel %vm472, %v609, 0
      %v677 = vsel %vm472, %v610, 0
      %v680 = vsel %vm472, %v611, 0
      %v683 = vsel %vm472, %v612, 0
      %v686 = vsel %vm472, %v613, 0
      %v689 = vsel %vm472, %v614, 0
      %v692 = vsel %vm472, %v615, 0
      %v695 = vsel %vm472, %v616, 0
      %v698 = vsel %vm472, %v617, 0
      %v701 = vsel %vm472, %v618, 0
      %v704 = vsel %vm472, %v619, 0
      %v707 = vsel %vm472, %v620, 0
      %v710 = vsel %vm472, %v621, 0
      %v713 = vsel %vm472, %v622, 0
      %v716 = vsel %vm472, %v623, 0
      %v719 = vsel %vm472, %v624, 0
      %v722 = vsel %vm472, %v625, 0
      %vm724 = vcmask 1043456
      %v726 = vsel %vm724, %v627, 0
      %728 = vmatpush.msra.mxu0 0.0
      %729 = vmatpush.msra.mxu0 0.0
      %730 = vmatpush.msra.mxu0 0.0
      %731 = vmatpush.msra.mxu0 0.0
      %732 = vmatpush.msra.mxu0 0.0
      %733 = vmatpush.msra.mxu0 0.0
      %734 = vmatpush.msra.mxu0 0.0
      %735 = vmatpush.msra.mxu0 0.0
      %736 = vmatpush.msra.mxu0 0.0
      %737 = vmatpush.msra.mxu0 0.0
      %738 = vmatpush.msra.mxu0 0.0
      %739 = vmatpush.msra.mxu0 0.0
      %740 = vmatpush.msra.mxu0 0.0
      %741 = vmatpush.msra.mxu0 0.0
      %742 = vmatpush.msra.mxu0 0.0
      %743 = vmatpush.msra.mxu0 %v726
      %744 = vmatmul.f32.gmra.mxu0 %v629
      %v745 = vpop.f32.mrf.mxu0
      %v746 = vadd.f32 0.0, %v745
      %747 = vmatmul.f32.gmra.mxu0 %v632
      %v748 = vpop.f32.mrf.mxu0
      %v749 = vadd.f32 0.0, %v748
      %750 = vmatmul.f32.gmra.mxu0 %v635
      %v751 = vpop.f32.mrf.mxu0
      %v752 = vadd.f32 0.0, %v751
      %753 = vmatmul.f32.gmra.mxu0 %v638
      %v754 = vpop.f32.mrf.mxu0
      %v755 = vadd.f32 0.0, %v754
      %756 = vmatmul.f32.gmra.mxu0 %v641
      %v757 = vpop.f32.mrf.mxu0
      %v758 = vadd.f32 0.0, %v757
      %759 = vmatmul.f32.gmra.mxu0 %v644
      %v760 = vpop.f32.mrf.mxu0
      %v761 = vadd.f32 0.0, %v760
      %762 = vmatmul.f32.gmra.mxu0 %v647
      %v763 = vpop.f32.mrf.mxu0
      %v764 = vadd.f32 0.0, %v763
      %765 = vmatmul.f32.gmra.mxu0 %v650
      %v766 = vpop.f32.mrf.mxu0
      %v767 = vadd.f32 0.0, %v766
      %768 = vmatmul.f32.gmra.mxu0 %v653
      %v769 = vpop.f32.mrf.mxu0
      %v770 = vadd.f32 0.0, %v769
      %771 = vmatmul.f32.gmra.mxu0 %v656
      %v772 = vpop.f32.mrf.mxu0
      %v773 = vadd.f32 0.0, %v772
      %774 = vmatmul.f32.gmra.mxu0 %v659
      %v775 = vpop.f32.mrf.mxu0
      %v776 = vadd.f32 0.0, %v775
      %777 = vmatmul.f32.gmra.mxu0 %v662
      %v778 = vpop.f32.mrf.mxu0
      %v779 = vadd.f32 0.0, %v778
      %780 = vmatmul.f32.gmra.mxu0 %v665
      %v781 = vpop.f32.mrf.mxu0
      %v782 = vadd.f32 0.0, %v781
      %783 = vmatmul.f32.gmra.mxu0 %v668
      %v784 = vpop.f32.mrf.mxu0
      %v785 = vadd.f32 0.0, %v784
      %786 = vmatmul.f32.gmra.mxu0 %v671
      %v787 = vpop.f32.mrf.mxu0
      %v788 = vadd.f32 0.0, %v787
      %789 = vmatmul.f32.gmra.mxu0 %v674
      %v790 = vpop.f32.mrf.mxu0
      %v791 = vadd.f32 0.0, %v790
      %792 = vmatmul.f32.gmra.mxu0 %v677
      %v793 = vpop.f32.mrf.mxu0
      %v794 = vadd.f32 0.0, %v793
      %795 = vmatmul.f32.gmra.mxu0 %v680
      %v796 = vpop.f32.mrf.mxu0
      %v797 = vadd.f32 0.0, %v796
      %798 = vmatmul.f32.gmra.mxu0 %v683
      %v799 = vpop.f32.mrf.mxu0
      %v800 = vadd.f32 0.0, %v799
      %801 = vmatmul.f32.gmra.mxu0 %v686
      %v802 = vpop.f32.mrf.mxu0
      %v803 = vadd.f32 0.0, %v802
      %804 = vmatmul.f32.gmra.mxu0 %v689
      %v805 = vpop.f32.mrf.mxu0
      %v806 = vadd.f32 0.0, %v805
      %807 = vmatmul.f32.gmra.mxu0 %v692
      %v808 = vpop.f32.mrf.mxu0
      %v809 = vadd.f32 0.0, %v808
      %810 = vmatmul.f32.gmra.mxu0 %v695
      %v811 = vpop.f32.mrf.mxu0
      %v812 = vadd.f32 0.0, %v811
      %813 = vmatmul.f32.gmra.mxu0 %v698
      %v814 = vpop.f32.mrf.mxu0
      %v815 = vadd.f32 0.0, %v814
      %816 = vmatmul.f32.gmra.mxu0 %v701
      %v817 = vpop.f32.mrf.mxu0
      %v818 = vadd.f32 0.0, %v817
      %819 = vmatmul.f32.gmra.mxu0 %v704
      %v820 = vpop.f32.mrf.mxu0
      %v821 = vadd.f32 0.0, %v820
      %822 = vmatmul.f32.gmra.mxu0 %v707
      %v823 = vpop.f32.mrf.mxu0
      %v824 = vadd.f32 0.0, %v823
      %825 = vmatmul.f32.gmra.mxu0 %v710
      %v826 = vpop.f32.mrf.mxu0
      %v827 = vadd.f32 0.0, %v826
      %828 = vmatmul.f32.gmra.mxu0 %v713
      %v829 = vpop.f32.mrf.mxu0
      %v830 = vadd.f32 0.0, %v829
      %831 = vmatmul.f32.gmra.mxu0 %v716
      %v832 = vpop.f32.mrf.mxu0
      %v833 = vadd.f32 0.0, %v832
      %834 = vmatmul.f32.gmra.mxu0 %v719
      %v835 = vpop.f32.mrf.mxu0
      %v836 = vadd.f32 0.0, %v835
      %837 = vmatmul.f32.gmra.mxu0 %v722
      %v838 = vpop.f32.mrf.mxu0
      %v839 = vadd.f32 0.0, %v838
      %840 = vdwg.mxu0
      %v842 = vsel %vm472, %v561, 0
      %v845 = vsel %vm472, %v562, 0
      %v848 = vsel %vm472, %v563, 0
      %v851 = vsel %vm472, %v564, 0
      %v854 = vsel %vm472, %v565, 0
      %v857 = vsel %vm472, %v566, 0
      %v860 = vsel %vm472, %v567, 0
      %v863 = vsel %vm472, %v568, 0
      %v866 = vsel %vm472, %v569, 0
      %v869 = vsel %vm472, %v570, 0
      %v872 = vsel %vm472, %v571, 0
      %v875 = vsel %vm472, %v572, 0
      %v878 = vsel %vm472, %v573, 0
      %v881 = vsel %vm472, %v574, 0
      %v884 = vsel %vm472, %v575, 0
      %v887 = vsel %vm472, %v576, 0
      %v890 = vsel %vm472, %v577, 0
      %v893 = vsel %vm472, %v578, 0
      %v896 = vsel %vm472, %v579, 0
      %v899 = vsel %vm472, %v580, 0
      %v902 = vsel %vm472, %v581, 0
      %v905 = vsel %vm472, %v582, 0
      %v908 = vsel %vm472, %v583, 0
      %v911 = vsel %vm472, %v584, 0
      %v914 = vsel %vm472, %v585, 0
      %v917 = vsel %vm472, %v586, 0
      %v920 = vsel %vm472, %v587, 0
      %v923 = vsel %vm472, %v588, 0
      %v926 = vsel %vm472, %v589, 0
      %v929 = vsel %vm472, %v590, 0
      %v932 = vsel %vm472, %v591, 0
      %v935 = vsel %vm472, %v592, 0
      %v938 = vsel %vm724, %v593, 0
      %940 = vmatpush.msra.mxu0 0.0
      %941 = vmatpush.msra.mxu0 0.0
      %942 = vmatpush.msra.mxu0 0.0
      %943 = vmatpush.msra.mxu0 0.0
      %944 = vmatpush.msra.mxu0 0.0
      %945 = vmatpush.msra.mxu0 0.0
      %946 = vmatpush.msra.mxu0 0.0
      %947 = vmatpush.msra.mxu0 0.0
      %948 = vmatpush.msra.mxu0 0.0
      %949 = vmatpush.msra.mxu0 0.0
      %950 = vmatpush.msra.mxu0 0.0
      %951 = vmatpush.msra.mxu0 0.0
      %952 = vmatpush.msra.mxu0 0.0
      %953 = vmatpush.msra.mxu0 0.0
      %954 = vmatpush.msra.mxu0 0.0
      %955 = vmatpush.msra.mxu0 %v938
      %956 = vmatmul.f32.gmra.mxu0 %v842
      %v957 = vpop.f32.mrf.mxu0
      %v958 = vadd.f32 %v746, %v957
      %959 = vmatmul.f32.gmra.mxu0 %v845
      %v960 = vpop.f32.mrf.mxu0
      %v961 = vadd.f32 %v749, %v960
      %962 = vmatmul.f32.gmra.mxu0 %v848
      %v963 = vpop.f32.mrf.mxu0
      %v964 = vadd.f32 %v752, %v963
      %965 = vmatmul.f32.gmra.mxu0 %v851
      %v966 = vpop.f32.mrf.mxu0
      %v967 = vadd.f32 %v755, %v966
      %968 = vmatmul.f32.gmra.mxu0 %v854
      %v969 = vpop.f32.mrf.mxu0
      %v970 = vadd.f32 %v758, %v969
      %971 = vmatmul.f32.gmra.mxu0 %v857
      %v972 = vpop.f32.mrf.mxu0
      %v973 = vadd.f32 %v761, %v972
      %974 = vmatmul.f32.gmra.mxu0 %v860
      %v975 = vpop.f32.mrf.mxu0
      %v976 = vadd.f32 %v764, %v975
      %977 = vmatmul.f32.gmra.mxu0 %v863
      %v978 = vpop.f32.mrf.mxu0
      %v979 = vadd.f32 %v767, %v978
      %980 = vmatmul.f32.gmra.mxu0 %v866
      %v981 = vpop.f32.mrf.mxu0
      %v982 = vadd.f32 %v770, %v981
      %983 = vmatmul.f32.gmra.mxu0 %v869
      %v984 = vpop.f32.mrf.mxu0
      %v985 = vadd.f32 %v773, %v984
      %986 = vmatmul.f32.gmra.mxu0 %v872
      %v987 = vpop.f32.mrf.mxu0
      %v988 = vadd.f32 %v776, %v987
      %989 = vmatmul.f32.gmra.mxu0 %v875
      %v990 = vpop.f32.mrf.mxu0
      %v991 = vadd.f32 %v779, %v990
      %992 = vmatmul.f32.gmra.mxu0 %v878
      %v993 = vpop.f32.mrf.mxu0
      %v994 = vadd.f32 %v782, %v993
      %995 = vmatmul.f32.gmra.mxu0 %v881
      %v996 = vpop.f32.mrf.mxu0
      %v997 = vadd.f32 %v785, %v996
      %998 = vmatmul.f32.gmra.mxu0 %v884
      %v999 = vpop.f32.mrf.mxu0
      %v1000 = vadd.f32 %v788, %v999
      %1001 = vmatmul.f32.gmra.mxu0 %v887
      %v1002 = vpop.f32.mrf.mxu0
      %v1003 = vadd.f32 %v791, %v1002
      %1004 = vmatmul.f32.gmra.mxu0 %v890
      %v1005 = vpop.f32.mrf.mxu0
      %v1006 = vadd.f32 %v794, %v1005
      %1007 = vmatmul.f32.gmra.mxu0 %v893
      %v1008 = vpop.f32.mrf.mxu0
      %v1009 = vadd.f32 %v797, %v1008
      %1010 = vmatmul.f32.gmra.mxu0 %v896
      %v1011 = vpop.f32.mrf.mxu0
      %v1012 = vadd.f32 %v800, %v1011
      %1013 = vmatmul.f32.gmra.mxu0 %v899
      %v1014 = vpop.f32.mrf.mxu0
      %v1015 = vadd.f32 %v803, %v1014
      %1016 = vmatmul.f32.gmra.mxu0 %v902
      %v1017 = vpop.f32.mrf.mxu0
      %v1018 = vadd.f32 %v806, %v1017
      %1019 = vmatmul.f32.gmra.mxu0 %v905
      %v1020 = vpop.f32.mrf.mxu0
      %v1021 = vadd.f32 %v809, %v1020
      %1022 = vmatmul.f32.gmra.mxu0 %v908
      %v1023 = vpop.f32.mrf.mxu0
      %v1024 = vadd.f32 %v812, %v1023
      %1025 = vmatmul.f32.gmra.mxu0 %v911
      %v1026 = vpop.f32.mrf.mxu0
      %v1027 = vadd.f32 %v815, %v1026
      %1028 = vmatmul.f32.gmra.mxu0 %v914
      %v1029 = vpop.f32.mrf.mxu0
      %v1030 = vadd.f32 %v818, %v1029
      %1031 = vmatmul.f32.gmra.mxu0 %v917
      %v1032 = vpop.f32.mrf.mxu0
      %v1033 = vadd.f32 %v821, %v1032
      %1034 = vmatmul.f32.gmra.mxu0 %v920
      %v1035 = vpop.f32.mrf.mxu0
      %v1036 = vadd.f32 %v824, %v1035
      %1037 = vmatmul.f32.gmra.mxu0 %v923
      %v1038 = vpop.f32.mrf.mxu0
      %v1039 = vadd.f32 %v827, %v1038
      %1040 = vmatmul.f32.gmra.mxu0 %v926
      %v1041 = vpop.f32.mrf.mxu0
      %v1042 = vadd.f32 %v830, %v1041
      %1043 = vmatmul.f32.gmra.mxu0 %v929
      %v1044 = vpop.f32.mrf.mxu0
      %v1045 = vadd.f32 %v833, %v1044
      %1046 = vmatmul.f32.gmra.mxu0 %v932
      %v1047 = vpop.f32.mrf.mxu0
      %v1048 = vadd.f32 %v836, %v1047
      %1049 = vmatmul.f32.gmra.mxu0 %v935
      %v1050 = vpop.f32.mrf.mxu0
      %v1051 = vadd.f32 %v839, %v1050
      %1052 = vdwg.mxu0
      %v1053 = vld [vmem:[#allocation2 + $0x2] sm:$0xff]
      %v1054 = vld [vmem:[#allocation2 + $0xa] sm:$0xff]
      %v1055 = vld [vmem:[#allocation2 + $0x1a] sm:$0xff]
      %v1056 = vld [vmem:[#allocation2 + $0x22] sm:$0xff]
      %v1057 = vld [vmem:[#allocation2 + $0x32] sm:$0xff]
      %v1058 = vld [vmem:[#allocation2 + $0x3a] sm:$0xff]
      %v1059 = vld [vmem:[#allocation2 + $0x4a] sm:$0xff]
      %v1060 = vld [vmem:[#allocation2 + $0x52] sm:$0xff]
      %v1061 = vld [vmem:[#allocation2 + $0x62] sm:$0xff]
      %v1062 = vld [vmem:[#allocation2 + $0x6a] sm:$0xff]
      %v1063 = vld [vmem:[#allocation2 + $0x7a] sm:$0xff]
      %v1064 = vld [vmem:[#allocation2 + $0x82] sm:$0xff]
      %v1065 = vld [vmem:[#allocation2 + $0x92] sm:$0xff]
      %v1066 = vld [vmem:[#allocation2 + $0x9a] sm:$0xff]
      %v1067 = vld [vmem:[#allocation2 + $0xaa] sm:$0xff]
      %v1068 = vld [vmem:[#allocation2 + $0xb2] sm:$0xff]
      %v1069 = vld [vmem:[#allocation2 + $0xc2] sm:$0xff]
      %v1070 = vld [vmem:[#allocation2 + $0xca] sm:$0xff]
      %v1071 = vld [vmem:[#allocation2 + $0xda] sm:$0xff]
      %v1072 = vld [vmem:[#allocation2 + $0xe2] sm:$0xff]
      %v1073 = vld [vmem:[#allocation2 + $0xf2] sm:$0xff]
      %v1074 = vld [vmem:[#allocation2 + $0xfa] sm:$0xff]
      %v1075 = vld [vmem:[#allocation2 + $0x10a] sm:$0xff]
      %v1076 = vld [vmem:[#allocation2 + $0x112] sm:$0xff]
      %v1077 = vld [vmem:[#allocation2 + $0x122] sm:$0xff]
      %v1078 = vld [vmem:[#allocation2 + $0x12a] sm:$0xff]
      %v1079 = vld [vmem:[#allocation2 + $0x13a] sm:$0xff]
      %v1080 = vld [vmem:[#allocation2 + $0x142] sm:$0xff]
      %v1081 = vld [vmem:[#allocation2 + $0x152] sm:$0xff]
      %v1082 = vld [vmem:[#allocation2 + $0x15a] sm:$0xff]
      %v1083 = vld [vmem:[#allocation2 + $0x16a] sm:$0xff]
      %v1084 = vld [vmem:[#allocation2 + $0x172] sm:$0xff]
      %s1085 = scalar_lea.vmem %s4, 8
      %v1086 = vld [vmem:[%s1085] sm:$0xf]
      %v1088 = vsel %vm472, %v1053, 0
      %v1091 = vsel %vm472, %v1054, 0
      %v1094 = vsel %vm472, %v1055, 0
      %v1097 = vsel %vm472, %v1056, 0
      %v1100 = vsel %vm472, %v1057, 0
      %v1103 = vsel %vm472, %v1058, 0
      %v1106 = vsel %vm472, %v1059, 0
      %v1109 = vsel %vm472, %v1060, 0
      %v1112 = vsel %vm472, %v1061, 0
      %v1115 = vsel %vm472, %v1062, 0
      %v1118 = vsel %vm472, %v1063, 0
      %v1121 = vsel %vm472, %v1064, 0
      %v1124 = vsel %vm472, %v1065, 0
      %v1127 = vsel %vm472, %v1066, 0
      %v1130 = vsel %vm472, %v1067, 0
      %v1133 = vsel %vm472, %v1068, 0
      %v1136 = vsel %vm472, %v1069, 0
      %v1139 = vsel %vm472, %v1070, 0
      %v1142 = vsel %vm472, %v1071, 0
      %v1145 = vsel %vm472, %v1072, 0
      %v1148 = vsel %vm472, %v1073, 0
      %v1151 = vsel %vm472, %v1074, 0
      %v1154 = vsel %vm472, %v1075, 0
      %v1157 = vsel %vm472, %v1076, 0
      %v1160 = vsel %vm472, %v1077, 0
      %v1163 = vsel %vm472, %v1078, 0
      %v1166 = vsel %vm472, %v1079, 0
      %v1169 = vsel %vm472, %v1080, 0
      %v1172 = vsel %vm472, %v1081, 0
      %v1175 = vsel %vm472, %v1082, 0
      %v1178 = vsel %vm472, %v1083, 0
      %v1181 = vsel %vm472, %v1084, 0
      %v1184 = vsel %vm724, %v1086, 0
      %1186 = vmatpush.msra.mxu0 0.0
      %1187 = vmatpush.msra.mxu0 0.0
      %1188 = vmatpush.msra.mxu0 0.0
      %1189 = vmatpush.msra.mxu0 0.0
      %1190 = vmatpush.msra.mxu0 0.0
      %1191 = vmatpush.msra.mxu0 0.0
      %1192 = vmatpush.msra.mxu0 0.0
      %1193 = vmatpush.msra.mxu0 0.0
      %1194 = vmatpush.msra.mxu0 0.0
      %1195 = vmatpush.msra.mxu0 0.0
      %1196 = vmatpush.msra.mxu0 0.0
      %1197 = vmatpush.msra.mxu0 0.0
      %1198 = vmatpush.msra.mxu0 0.0
      %1199 = vmatpush.msra.mxu0 0.0
      %1200 = vmatpush.msra.mxu0 0.0
      %1201 = vmatpush.msra.mxu0 %v1184
      %1202 = vmatmul.f32.gmra.mxu0 %v1088
      %v1203 = vpop.f32.mrf.mxu0
      %v1204 = vadd.f32 0.0, %v1203
      %1205 = vmatmul.f32.gmra.mxu0 %v1091
      %v1206 = vpop.f32.mrf.mxu0
      %v1207 = vadd.f32 0.0, %v1206
      %1208 = vmatmul.f32.gmra.mxu0 %v1094
      %v1209 = vpop.f32.mrf.mxu0
      %v1210 = vadd.f32 0.0, %v1209
      %1211 = vmatmul.f32.gmra.mxu0 %v1097
      %v1212 = vpop.f32.mrf.mxu0
      %v1213 = vadd.f32 0.0, %v1212
      %1214 = vmatmul.f32.gmra.mxu0 %v1100
      %v1215 = vpop.f32.mrf.mxu0
      %v1216 = vadd.f32 0.0, %v1215
      %1217 = vmatmul.f32.gmra.mxu0 %v1103
      %v1218 = vpop.f32.mrf.mxu0
      %v1219 = vadd.f32 0.0, %v1218
      %1220 = vmatmul.f32.gmra.mxu0 %v1106
      %v1221 = vpop.f32.mrf.mxu0
      %v1222 = vadd.f32 0.0, %v1221
      %1223 = vmatmul.f32.gmra.mxu0 %v1109
      %v1224 = vpop.f32.mrf.mxu0
      %v1225 = vadd.f32 0.0, %v1224
      %1226 = vmatmul.f32.gmra.mxu0 %v1112
      %v1227 = vpop.f32.mrf.mxu0
      %v1228 = vadd.f32 0.0, %v1227
      %1229 = vmatmul.f32.gmra.mxu0 %v1115
      %v1230 = vpop.f32.mrf.mxu0
      %v1231 = vadd.f32 0.0, %v1230
      %1232 = vmatmul.f32.gmra.mxu0 %v1118
      %v1233 = vpop.f32.mrf.mxu0
      %v1234 = vadd.f32 0.0, %v1233
      %1235 = vmatmul.f32.gmra.mxu0 %v1121
      %v1236 = vpop.f32.mrf.mxu0
      %v1237 = vadd.f32 0.0, %v1236
      %1238 = vmatmul.f32.gmra.mxu0 %v1124
      %v1239 = vpop.f32.mrf.mxu0
      %v1240 = vadd.f32 0.0, %v1239
      %1241 = vmatmul.f32.gmra.mxu0 %v1127
      %v1242 = vpop.f32.mrf.mxu0
      %v1243 = vadd.f32 0.0, %v1242
      %1244 = vmatmul.f32.gmra.mxu0 %v1130
      %v1245 = vpop.f32.mrf.mxu0
      %v1246 = vadd.f32 0.0, %v1245
      %1247 = vmatmul.f32.gmra.mxu0 %v1133
      %v1248 = vpop.f32.mrf.mxu0
      %v1249 = vadd.f32 0.0, %v1248
      %1250 = vmatmul.f32.gmra.mxu0 %v1136
      %v1251 = vpop.f32.mrf.mxu0
      %v1252 = vadd.f32 0.0, %v1251
      %1253 = vmatmul.f32.gmra.mxu0 %v1139
      %v1254 = vpop.f32.mrf.mxu0
      %v1255 = vadd.f32 0.0, %v1254
      %1256 = vmatmul.f32.gmra.mxu0 %v1142
      %v1257 = vpop.f32.mrf.mxu0
      %v1258 = vadd.f32 0.0, %v1257
      %1259 = vmatmul.f32.gmra.mxu0 %v1145
      %v1260 = vpop.f32.mrf.mxu0
      %v1261 = vadd.f32 0.0, %v1260
      %1262 = vmatmul.f32.gmra.mxu0 %v1148
      %v1263 = vpop.f32.mrf.mxu0
      %v1264 = vadd.f32 0.0, %v1263
      %1265 = vmatmul.f32.gmra.mxu0 %v1151
      %v1266 = vpop.f32.mrf.mxu0
      %v1267 = vadd.f32 0.0, %v1266
      %1268 = vmatmul.f32.gmra.mxu0 %v1154
      %v1269 = vpop.f32.mrf.mxu0
      %v1270 = vadd.f32 0.0, %v1269
      %1271 = vmatmul.f32.gmra.mxu0 %v1157
      %v1272 = vpop.f32.mrf.mxu0
      %v1273 = vadd.f32 0.0, %v1272
      %1274 = vmatmul.f32.gmra.mxu0 %v1160
      %v1275 = vpop.f32.mrf.mxu0
      %v1276 = vadd.f32 0.0, %v1275
      %1277 = vmatmul.f32.gmra.mxu0 %v1163
      %v1278 = vpop.f32.mrf.mxu0
      %v1279 = vadd.f32 0.0, %v1278
      %1280 = vmatmul.f32.gmra.mxu0 %v1166
      %v1281 = vpop.f32.mrf.mxu0
      %v1282 = vadd.f32 0.0, %v1281
      %1283 = vmatmul.f32.gmra.mxu0 %v1169
      %v1284 = vpop.f32.mrf.mxu0
      %v1285 = vadd.f32 0.0, %v1284
      %1286 = vmatmul.f32.gmra.mxu0 %v1172
      %v1287 = vpop.f32.mrf.mxu0
      %v1288 = vadd.f32 0.0, %v1287
      %1289 = vmatmul.f32.gmra.mxu0 %v1175
      %v1290 = vpop.f32.mrf.mxu0
      %v1291 = vadd.f32 0.0, %v1290
      %1292 = vmatmul.f32.gmra.mxu0 %v1178
      %v1293 = vpop.f32.mrf.mxu0
      %v1294 = vadd.f32 0.0, %v1293
      %1295 = vmatmul.f32.gmra.mxu0 %v1181
      %v1296 = vpop.f32.mrf.mxu0
      %v1297 = vadd.f32 0.0, %v1296
      %1298 = vdwg.mxu0
      %v1299 = vadd.f32 %v958, %v1204
      %v1300 = vadd.f32 %v961, %v1207
      %v1301 = vadd.f32 %v964, %v1210
      %v1302 = vadd.f32 %v967, %v1213
      %v1303 = vadd.f32 %v970, %v1216
      %v1304 = vadd.f32 %v973, %v1219
      %v1305 = vadd.f32 %v976, %v1222
      %v1306 = vadd.f32 %v979, %v1225
      %v1307 = vadd.f32 %v982, %v1228
      %v1308 = vadd.f32 %v985, %v1231
      %v1309 = vadd.f32 %v988, %v1234
      %v1310 = vadd.f32 %v991, %v1237
      %v1311 = vadd.f32 %v994, %v1240
      %v1312 = vadd.f32 %v997, %v1243
      %v1313 = vadd.f32 %v1000, %v1246
      %v1314 = vadd.f32 %v1003, %v1249
      %v1315 = vadd.f32 %v1006, %v1252
      %v1316 = vadd.f32 %v1009, %v1255
      %v1317 = vadd.f32 %v1012, %v1258
      %v1318 = vadd.f32 %v1015, %v1261
      %v1319 = vadd.f32 %v1018, %v1264
      %v1320 = vadd.f32 %v1021, %v1267
      %v1321 = vadd.f32 %v1024, %v1270
      %v1322 = vadd.f32 %v1027, %v1273
      %v1323 = vadd.f32 %v1030, %v1276
      %v1324 = vadd.f32 %v1033, %v1279
      %v1325 = vadd.f32 %v1036, %v1282
      %v1326 = vadd.f32 %v1039, %v1285
      %v1327 = vadd.f32 %v1042, %v1288
      %v1328 = vadd.f32 %v1045, %v1291
      %v1329 = vadd.f32 %v1048, %v1294
      %v1330 = vadd.f32 %v1051, %v1297
      %v1331 = vld [vmem:[%s528] sm:$0xff]
      %v1332 = vld [vmem:[%s528 + $0x8] sm:$0xff]
      %v1333 = vld [vmem:[%s528 + $0x18] sm:$0xff]
      %v1334 = vld [vmem:[%s528 + $0x20] sm:$0xff]
      %v1335 = vld [vmem:[%s528 + $0x30] sm:$0xff]
      %v1336 = vld [vmem:[%s528 + $0x38] sm:$0xff]
      %v1337 = vld [vmem:[%s528 + $0x48] sm:$0xff]
      %v1338 = vld [vmem:[%s528 + $0x50] sm:$0xff]
      %v1339 = vld [vmem:[%s528 + $0x60] sm:$0xff]
      %v1340 = vld [vmem:[%s528 + $0x68] sm:$0xff]
      %v1341 = vld [vmem:[%s528 + $0x78] sm:$0xff]
      %v1342 = vld [vmem:[%s528 + $0x80] sm:$0xff]
      %v1343 = vld [vmem:[%s528 + $0x90] sm:$0xff]
      %v1344 = vld [vmem:[%s528 + $0x98] sm:$0xff]
      %v1345 = vld [vmem:[%s528 + $0xa8] sm:$0xff]
      %v1346 = vld [vmem:[%s528 + $0xb0] sm:$0xff]
      %v1347 = vld [vmem:[%s528 + $0xc0] sm:$0xff]
      %v1348 = vld [vmem:[%s528 + $0xc8] sm:$0xff]
      %v1349 = vld [vmem:[%s528 + $0xd8] sm:$0xff]
      %v1350 = vld [vmem:[%s528 + $0xe0] sm:$0xff]
      %v1351 = vld [vmem:[%s528 + $0xf0] sm:$0xff]
      %v1352 = vld [vmem:[%s528 + $0xf8] sm:$0xff]
      %v1353 = vld [vmem:[%s528 + $0x108] sm:$0xff]
      %v1354 = vld [vmem:[%s528 + $0x110] sm:$0xff]
      %v1355 = vld [vmem:[%s528 + $0x120] sm:$0xff]
      %v1356 = vld [vmem:[%s528 + $0x128] sm:$0xff]
      %v1357 = vld [vmem:[%s528 + $0x138] sm:$0xff]
      %v1358 = vld [vmem:[%s528 + $0x140] sm:$0xff]
      %v1359 = vld [vmem:[%s528 + $0x150] sm:$0xff]
      %v1360 = vld [vmem:[%s528 + $0x158] sm:$0xff]
      %v1361 = vld [vmem:[%s528 + $0x168] sm:$0xff]
      %v1362 = vld [vmem:[%s528 + $0x170] sm:$0xff]
      %s1363 = scalar_lea.vmem %s4, 12
      %v1364 = vld [vmem:[%s1363] sm:$0xf]
      %v1366 = vsel %vm472, %v1331, 0
      %v1369 = vsel %vm472, %v1332, 0
      %v1372 = vsel %vm472, %v1333, 0
      %v1375 = vsel %vm472, %v1334, 0
      %v1378 = vsel %vm472, %v1335, 0
      %v1381 = vsel %vm472, %v1336, 0
      %v1384 = vsel %vm472, %v1337, 0
      %v1387 = vsel %vm472, %v1338, 0
      %v1390 = vsel %vm472, %v1339, 0
      %v1393 = vsel %vm472, %v1340, 0
      %v1396 = vsel %vm472, %v1341, 0
      %v1399 = vsel %vm472, %v1342, 0
      %v1402 = vsel %vm472, %v1343, 0
      %v1405 = vsel %vm472, %v1344, 0
      %v1408 = vsel %vm472, %v1345, 0
      %v1411 = vsel %vm472, %v1346, 0
      %v1414 = vsel %vm472, %v1347, 0
      %v1417 = vsel %vm472, %v1348, 0
      %v1420 = vsel %vm472, %v1349, 0
      %v1423 = vsel %vm472, %v1350, 0
      %v1426 = vsel %vm472, %v1351, 0
      %v1429 = vsel %vm472, %v1352, 0
      %v1432 = vsel %vm472, %v1353, 0
      %v1435 = vsel %vm472, %v1354, 0
      %v1438 = vsel %vm472, %v1355, 0
      %v1441 = vsel %vm472, %v1356, 0
      %v1444 = vsel %vm472, %v1357, 0
      %v1447 = vsel %vm472, %v1358, 0
      %v1450 = vsel %vm472, %v1359, 0
      %v1453 = vsel %vm472, %v1360, 0
      %v1456 = vsel %vm472, %v1361, 0
      %v1459 = vsel %vm472, %v1362, 0
      %v1462 = vsel %vm724, %v1364, 0
      %1464 = vmatpush.msra.mxu0 0.0
      %1465 = vmatpush.msra.mxu0 0.0
      %1466 = vmatpush.msra.mxu0 0.0
      %1467 = vmatpush.msra.mxu0 0.0
      %1468 = vmatpush.msra.mxu0 0.0
      %1469 = vmatpush.msra.mxu0 0.0
      %1470 = vmatpush.msra.mxu0 0.0
      %1471 = vmatpush.msra.mxu0 0.0
      %1472 = vmatpush.msra.mxu0 0.0
      %1473 = vmatpush.msra.mxu0 0.0
      %1474 = vmatpush.msra.mxu0 0.0
      %1475 = vmatpush.msra.mxu0 0.0
      %1476 = vmatpush.msra.mxu0 0.0
      %1477 = vmatpush.msra.mxu0 0.0
      %1478 = vmatpush.msra.mxu0 0.0
      %1479 = vmatpush.msra.mxu0 %v1462
      %1480 = vmatmul.f32.gmra.mxu0 %v1366
      %v1481 = vpop.f32.mrf.mxu0
      %v1482 = vadd.f32 0.0, %v1481
      %1483 = vmatmul.f32.gmra.mxu0 %v1369
      %v1484 = vpop.f32.mrf.mxu0
      %v1485 = vadd.f32 0.0, %v1484
      %1486 = vmatmul.f32.gmra.mxu0 %v1372
      %v1487 = vpop.f32.mrf.mxu0
      %v1488 = vadd.f32 0.0, %v1487
      %1489 = vmatmul.f32.gmra.mxu0 %v1375
      %v1490 = vpop.f32.mrf.mxu0
      %v1491 = vadd.f32 0.0, %v1490
      %1492 = vmatmul.f32.gmra.mxu0 %v1378
      %v1493 = vpop.f32.mrf.mxu0
      %v1494 = vadd.f32 0.0, %v1493
      %1495 = vmatmul.f32.gmra.mxu0 %v1381
      %v1496 = vpop.f32.mrf.mxu0
      %v1497 = vadd.f32 0.0, %v1496
      %1498 = vmatmul.f32.gmra.mxu0 %v1384
      %v1499 = vpop.f32.mrf.mxu0
      %v1500 = vadd.f32 0.0, %v1499
      %1501 = vmatmul.f32.gmra.mxu0 %v1387
      %v1502 = vpop.f32.mrf.mxu0
      %v1503 = vadd.f32 0.0, %v1502
      %1504 = vmatmul.f32.gmra.mxu0 %v1390
      %v1505 = vpop.f32.mrf.mxu0
      %v1506 = vadd.f32 0.0, %v1505
      %1507 = vmatmul.f32.gmra.mxu0 %v1393
      %v1508 = vpop.f32.mrf.mxu0
      %v1509 = vadd.f32 0.0, %v1508
      %1510 = vmatmul.f32.gmra.mxu0 %v1396
      %v1511 = vpop.f32.mrf.mxu0
      %v1512 = vadd.f32 0.0, %v1511
      %1513 = vmatmul.f32.gmra.mxu0 %v1399
      %v1514 = vpop.f32.mrf.mxu0
      %v1515 = vadd.f32 0.0, %v1514
      %1516 = vmatmul.f32.gmra.mxu0 %v1402
      %v1517 = vpop.f32.mrf.mxu0
      %v1518 = vadd.f32 0.0, %v1517
      %1519 = vmatmul.f32.gmra.mxu0 %v1405
      %v1520 = vpop.f32.mrf.mxu0
      %v1521 = vadd.f32 0.0, %v1520
      %1522 = vmatmul.f32.gmra.mxu0 %v1408
      %v1523 = vpop.f32.mrf.mxu0
      %v1524 = vadd.f32 0.0, %v1523
      %1525 = vmatmul.f32.gmra.mxu0 %v1411
      %v1526 = vpop.f32.mrf.mxu0
      %v1527 = vadd.f32 0.0, %v1526
      %1528 = vmatmul.f32.gmra.mxu0 %v1414
      %v1529 = vpop.f32.mrf.mxu0
      %v1530 = vadd.f32 0.0, %v1529
      %1531 = vmatmul.f32.gmra.mxu0 %v1417
      %v1532 = vpop.f32.mrf.mxu0
      %v1533 = vadd.f32 0.0, %v1532
      %1534 = vmatmul.f32.gmra.mxu0 %v1420
      %v1535 = vpop.f32.mrf.mxu0
      %v1536 = vadd.f32 0.0, %v1535
      %1537 = vmatmul.f32.gmra.mxu0 %v1423
      %v1538 = vpop.f32.mrf.mxu0
      %v1539 = vadd.f32 0.0, %v1538
      %1540 = vmatmul.f32.gmra.mxu0 %v1426
      %v1541 = vpop.f32.mrf.mxu0
      %v1542 = vadd.f32 0.0, %v1541
      %1543 = vmatmul.f32.gmra.mxu0 %v1429
      %v1544 = vpop.f32.mrf.mxu0
      %v1545 = vadd.f32 0.0, %v1544
      %1546 = vmatmul.f32.gmra.mxu0 %v1432
      %v1547 = vpop.f32.mrf.mxu0
      %v1548 = vadd.f32 0.0, %v1547
      %1549 = vmatmul.f32.gmra.mxu0 %v1435
      %v1550 = vpop.f32.mrf.mxu0
      %v1551 = vadd.f32 0.0, %v1550
      %1552 = vmatmul.f32.gmra.mxu0 %v1438
      %v1553 = vpop.f32.mrf.mxu0
      %v1554 = vadd.f32 0.0, %v1553
      %1555 = vmatmul.f32.gmra.mxu0 %v1441
      %v1556 = vpop.f32.mrf.mxu0
      %v1557 = vadd.f32 0.0, %v1556
      %1558 = vmatmul.f32.gmra.mxu0 %v1444
      %v1559 = vpop.f32.mrf.mxu0
      %v1560 = vadd.f32 0.0, %v1559
      %1561 = vmatmul.f32.gmra.mxu0 %v1447
      %v1562 = vpop.f32.mrf.mxu0
      %v1563 = vadd.f32 0.0, %v1562
      %1564 = vmatmul.f32.gmra.mxu0 %v1450
      %v1565 = vpop.f32.mrf.mxu0
      %v1566 = vadd.f32 0.0, %v1565
      %1567 = vmatmul.f32.gmra.mxu0 %v1453
      %v1568 = vpop.f32.mrf.mxu0
      %v1569 = vadd.f32 0.0, %v1568
      %1570 = vmatmul.f32.gmra.mxu0 %v1456
      %v1571 = vpop.f32.mrf.mxu0
      %v1572 = vadd.f32 0.0, %v1571
      %1573 = vmatmul.f32.gmra.mxu0 %v1459
      %v1574 = vpop.f32.mrf.mxu0
      %v1575 = vadd.f32 0.0, %v1574
      %1576 = vdwg.mxu0
      %v1577 = vadd.f32 %v1299, %v1482
      %v1578 = vadd.f32 %v1300, %v1485
      %v1579 = vadd.f32 %v1301, %v1488
      %v1580 = vadd.f32 %v1302, %v1491
      %v1581 = vadd.f32 %v1303, %v1494
      %v1582 = vadd.f32 %v1304, %v1497
      %v1583 = vadd.f32 %v1305, %v1500
      %v1584 = vadd.f32 %v1306, %v1503
      %v1585 = vadd.f32 %v1307, %v1506
      %v1586 = vadd.f32 %v1308, %v1509
      %v1587 = vadd.f32 %v1309, %v1512
      %v1588 = vadd.f32 %v1310, %v1515
      %v1589 = vadd.f32 %v1311, %v1518
      %v1590 = vadd.f32 %v1312, %v1521
      %v1591 = vadd.f32 %v1313, %v1524
      %v1592 = vadd.f32 %v1314, %v1527
      %v1593 = vadd.f32 %v1315, %v1530
      %v1594 = vadd.f32 %v1316, %v1533
      %v1595 = vadd.f32 %v1317, %v1536
      %v1596 = vadd.f32 %v1318, %v1539
      %v1597 = vadd.f32 %v1319, %v1542
      %v1598 = vadd.f32 %v1320, %v1545
      %v1599 = vadd.f32 %v1321, %v1548
      %v1600 = vadd.f32 %v1322, %v1551
      %v1601 = vadd.f32 %v1323, %v1554
      %v1602 = vadd.f32 %v1324, %v1557
      %v1603 = vadd.f32 %v1325, %v1560
      %v1604 = vadd.f32 %v1326, %v1563
      %v1605 = vadd.f32 %v1327, %v1566
      %v1606 = vadd.f32 %v1328, %v1569
      %v1607 = vadd.f32 %v1329, %v1572
      %v1608 = vadd.f32 %v1330, %v1575
      %v1609 = vld [vmem:[%s528 + $0x1] sm:$0xff]
      %v1610 = vld [vmem:[%s528 + $0x9] sm:$0xff]
      %v1611 = vld [vmem:[%s528 + $0x19] sm:$0xff]
      %v1612 = vld [vmem:[%s528 + $0x21] sm:$0xff]
      %v1613 = vld [vmem:[%s528 + $0x31] sm:$0xff]
      %v1614 = vld [vmem:[%s528 + $0x39] sm:$0xff]
      %v1615 = vld [vmem:[%s528 + $0x49] sm:$0xff]
      %v1616 = vld [vmem:[%s528 + $0x51] sm:$0xff]
      %v1617 = vld [vmem:[%s528 + $0x61] sm:$0xff]
      %v1618 = vld [vmem:[%s528 + $0x69] sm:$0xff]
      %v1619 = vld [vmem:[%s528 + $0x79] sm:$0xff]
      %v1620 = vld [vmem:[%s528 + $0x81] sm:$0xff]
      %v1621 = vld [vmem:[%s528 + $0x91] sm:$0xff]
      %v1622 = vld [vmem:[%s528 + $0x99] sm:$0xff]
      %v1623 = vld [vmem:[%s528 + $0xa9] sm:$0xff]
      %v1624 = vld [vmem:[%s528 + $0xb1] sm:$0xff]
      %v1625 = vld [vmem:[%s528 + $0xc1] sm:$0xff]
      %v1626 = vld [vmem:[%s528 + $0xc9] sm:$0xff]
      %v1627 = vld [vmem:[%s528 + $0xd9] sm:$0xff]
      %v1628 = vld [vmem:[%s528 + $0xe1] sm:$0xff]
      %v1629 = vld [vmem:[%s528 + $0xf1] sm:$0xff]
      %v1630 = vld [vmem:[%s528 + $0xf9] sm:$0xff]
      %v1631 = vld [vmem:[%s528 + $0x109] sm:$0xff]
      %v1632 = vld [vmem:[%s528 + $0x111] sm:$0xff]
      %v1633 = vld [vmem:[%s528 + $0x121] sm:$0xff]
      %v1634 = vld [vmem:[%s528 + $0x129] sm:$0xff]
      %v1635 = vld [vmem:[%s528 + $0x139] sm:$0xff]
      %v1636 = vld [vmem:[%s528 + $0x141] sm:$0xff]
      %v1637 = vld [vmem:[%s528 + $0x151] sm:$0xff]
      %v1638 = vld [vmem:[%s528 + $0x159] sm:$0xff]
      %v1639 = vld [vmem:[%s528 + $0x169] sm:$0xff]
      %v1640 = vld [vmem:[%s528 + $0x171] sm:$0xff]
      %s1641 = scalar_lea.vmem %s4, 16
      %v1642 = vld [vmem:[%s1641] sm:$0xf]
      %v1644 = vsel %vm472, %v1609, 0
      %v1647 = vsel %vm472, %v1610, 0
      %v1650 = vsel %vm472, %v1611, 0
      %v1653 = vsel %vm472, %v1612, 0
      %v1656 = vsel %vm472, %v1613, 0
      %v1659 = vsel %vm472, %v1614, 0
      %v1662 = vsel %vm472, %v1615, 0
      %v1665 = vsel %vm472, %v1616, 0
      %v1668 = vsel %vm472, %v1617, 0
      %v1671 = vsel %vm472, %v1618, 0
      %v1674 = vsel %vm472, %v1619, 0
      %v1677 = vsel %vm472, %v1620, 0
      %v1680 = vsel %vm472, %v1621, 0
      %v1683 = vsel %vm472, %v1622, 0
      %v1686 = vsel %vm472, %v1623, 0
      %v1689 = vsel %vm472, %v1624, 0
      %v1692 = vsel %vm472, %v1625, 0
      %v1695 = vsel %vm472, %v1626, 0
      %v1698 = vsel %vm472, %v1627, 0
      %v1701 = vsel %vm472, %v1628, 0
      %v1704 = vsel %vm472, %v1629, 0
      %v1707 = vsel %vm472, %v1630, 0
      %v1710 = vsel %vm472, %v1631, 0
      %v1713 = vsel %vm472, %v1632, 0
      %v1716 = vsel %vm472, %v1633, 0
      %v1719 = vsel %vm472, %v1634, 0
      %v1722 = vsel %vm472, %v1635, 0
      %v1725 = vsel %vm472, %v1636, 0
      %v1728 = vsel %vm472, %v1637, 0
      %v1731 = vsel %vm472, %v1638, 0
      %v1734 = vsel %vm472, %v1639, 0
      %v1737 = vsel %vm472, %v1640, 0
      %v1740 = vsel %vm724, %v1642, 0
      %1742 = vmatpush.msra.mxu0 0.0
      %1743 = vmatpush.msra.mxu0 0.0
      %1744 = vmatpush.msra.mxu0 0.0
      %1745 = vmatpush.msra.mxu0 0.0
      %1746 = vmatpush.msra.mxu0 0.0
      %1747 = vmatpush.msra.mxu0 0.0
      %1748 = vmatpush.msra.mxu0 0.0
      %1749 = vmatpush.msra.mxu0 0.0
      %1750 = vmatpush.msra.mxu0 0.0
      %1751 = vmatpush.msra.mxu0 0.0
      %1752 = vmatpush.msra.mxu0 0.0
      %1753 = vmatpush.msra.mxu0 0.0
      %1754 = vmatpush.msra.mxu0 0.0
      %1755 = vmatpush.msra.mxu0 0.0
      %1756 = vmatpush.msra.mxu0 0.0
      %1757 = vmatpush.msra.mxu0 %v1740
      %1758 = vmatmul.f32.gmra.mxu0 %v1644
      %v1759 = vpop.f32.mrf.mxu0
      %v1760 = vadd.f32 0.0, %v1759
      %1761 = vmatmul.f32.gmra.mxu0 %v1647
      %v1762 = vpop.f32.mrf.mxu0
      %v1763 = vadd.f32 0.0, %v1762
      %1764 = vmatmul.f32.gmra.mxu0 %v1650
      %v1765 = vpop.f32.mrf.mxu0
      %v1766 = vadd.f32 0.0, %v1765
      %1767 = vmatmul.f32.gmra.mxu0 %v1653
      %v1768 = vpop.f32.mrf.mxu0
      %v1769 = vadd.f32 0.0, %v1768
      %1770 = vmatmul.f32.gmra.mxu0 %v1656
      %v1771 = vpop.f32.mrf.mxu0
      %v1772 = vadd.f32 0.0, %v1771
      %1773 = vmatmul.f32.gmra.mxu0 %v1659
      %v1774 = vpop.f32.mrf.mxu0
      %v1775 = vadd.f32 0.0, %v1774
      %1776 = vmatmul.f32.gmra.mxu0 %v1662
      %v1777 = vpop.f32.mrf.mxu0
      %v1778 = vadd.f32 0.0, %v1777
      %1779 = vmatmul.f32.gmra.mxu0 %v1665
      %v1780 = vpop.f32.mrf.mxu0
      %v1781 = vadd.f32 0.0, %v1780
      %1782 = vmatmul.f32.gmra.mxu0 %v1668
      %v1783 = vpop.f32.mrf.mxu0
      %v1784 = vadd.f32 0.0, %v1783
      %1785 = vmatmul.f32.gmra.mxu0 %v1671
      %v1786 = vpop.f32.mrf.mxu0
      %v1787 = vadd.f32 0.0, %v1786
      %1788 = vmatmul.f32.gmra.mxu0 %v1674
      %v1789 = vpop.f32.mrf.mxu0
      %v1790 = vadd.f32 0.0, %v1789
      %1791 = vmatmul.f32.gmra.mxu0 %v1677
      %v1792 = vpop.f32.mrf.mxu0
      %v1793 = vadd.f32 0.0, %v1792
      %1794 = vmatmul.f32.gmra.mxu0 %v1680
      %v1795 = vpop.f32.mrf.mxu0
      %v1796 = vadd.f32 0.0, %v1795
      %1797 = vmatmul.f32.gmra.mxu0 %v1683
      %v1798 = vpop.f32.mrf.mxu0
      %v1799 = vadd.f32 0.0, %v1798
      %1800 = vmatmul.f32.gmra.mxu0 %v1686
      %v1801 = vpop.f32.mrf.mxu0
      %v1802 = vadd.f32 0.0, %v1801
      %1803 = vmatmul.f32.gmra.mxu0 %v1689
      %v1804 = vpop.f32.mrf.mxu0
      %v1805 = vadd.f32 0.0, %v1804
      %1806 = vmatmul.f32.gmra.mxu0 %v1692
      %v1807 = vpop.f32.mrf.mxu0
      %v1808 = vadd.f32 0.0, %v1807
      %1809 = vmatmul.f32.gmra.mxu0 %v1695
      %v1810 = vpop.f32.mrf.mxu0
      %v1811 = vadd.f32 0.0, %v1810
      %1812 = vmatmul.f32.gmra.mxu0 %v1698
      %v1813 = vpop.f32.mrf.mxu0
      %v1814 = vadd.f32 0.0, %v1813
      %1815 = vmatmul.f32.gmra.mxu0 %v1701
      %v1816 = vpop.f32.mrf.mxu0
      %v1817 = vadd.f32 0.0, %v1816
      %1818 = vmatmul.f32.gmra.mxu0 %v1704
      %v1819 = vpop.f32.mrf.mxu0
      %v1820 = vadd.f32 0.0, %v1819
      %1821 = vmatmul.f32.gmra.mxu0 %v1707
      %v1822 = vpop.f32.mrf.mxu0
      %v1823 = vadd.f32 0.0, %v1822
      %1824 = vmatmul.f32.gmra.mxu0 %v1710
      %v1825 = vpop.f32.mrf.mxu0
      %v1826 = vadd.f32 0.0, %v1825
      %1827 = vmatmul.f32.gmra.mxu0 %v1713
      %v1828 = vpop.f32.mrf.mxu0
      %v1829 = vadd.f32 0.0, %v1828
      %1830 = vmatmul.f32.gmra.mxu0 %v1716
      %v1831 = vpop.f32.mrf.mxu0
      %v1832 = vadd.f32 0.0, %v1831
      %1833 = vmatmul.f32.gmra.mxu0 %v1719
      %v1834 = vpop.f32.mrf.mxu0
      %v1835 = vadd.f32 0.0, %v1834
      %1836 = vmatmul.f32.gmra.mxu0 %v1722
      %v1837 = vpop.f32.mrf.mxu0
      %v1838 = vadd.f32 0.0, %v1837
      %1839 = vmatmul.f32.gmra.mxu0 %v1725
      %v1840 = vpop.f32.mrf.mxu0
      %v1841 = vadd.f32 0.0, %v1840
      %1842 = vmatmul.f32.gmra.mxu0 %v1728
      %v1843 = vpop.f32.mrf.mxu0
      %v1844 = vadd.f32 0.0, %v1843
      %1845 = vmatmul.f32.gmra.mxu0 %v1731
      %v1846 = vpop.f32.mrf.mxu0
      %v1847 = vadd.f32 0.0, %v1846
      %1848 = vmatmul.f32.gmra.mxu0 %v1734
      %v1849 = vpop.f32.mrf.mxu0
      %v1850 = vadd.f32 0.0, %v1849
      %1851 = vmatmul.f32.gmra.mxu0 %v1737
      %v1852 = vpop.f32.mrf.mxu0
      %v1853 = vadd.f32 0.0, %v1852
      %1854 = vdwg.mxu0
      %v1855 = vadd.f32 %v1577, %v1760
      %v1856 = vadd.f32 %v1578, %v1763
      %v1857 = vadd.f32 %v1579, %v1766
      %v1858 = vadd.f32 %v1580, %v1769
      %v1859 = vadd.f32 %v1581, %v1772
      %v1860 = vadd.f32 %v1582, %v1775
      %v1861 = vadd.f32 %v1583, %v1778
      %v1862 = vadd.f32 %v1584, %v1781
      %v1863 = vadd.f32 %v1585, %v1784
      %v1864 = vadd.f32 %v1586, %v1787
      %v1865 = vadd.f32 %v1587, %v1790
      %v1866 = vadd.f32 %v1588, %v1793
      %v1867 = vadd.f32 %v1589, %v1796
      %v1868 = vadd.f32 %v1590, %v1799
      %v1869 = vadd.f32 %v1591, %v1802
      %v1870 = vadd.f32 %v1592, %v1805
      %v1871 = vadd.f32 %v1593, %v1808
      %v1872 = vadd.f32 %v1594, %v1811
      %v1873 = vadd.f32 %v1595, %v1814
      %v1874 = vadd.f32 %v1596, %v1817
      %v1875 = vadd.f32 %v1597, %v1820
      %v1876 = vadd.f32 %v1598, %v1823
      %v1877 = vadd.f32 %v1599, %v1826
      %v1878 = vadd.f32 %v1600, %v1829
      %v1879 = vadd.f32 %v1601, %v1832
      %v1880 = vadd.f32 %v1602, %v1835
      %v1881 = vadd.f32 %v1603, %v1838
      %v1882 = vadd.f32 %v1604, %v1841
      %v1883 = vadd.f32 %v1605, %v1844
      %v1884 = vadd.f32 %v1606, %v1847
      %v1885 = vadd.f32 %v1607, %v1850
      %v1886 = vadd.f32 %v1608, %v1853
      %v1887 = vld [vmem:[%s528 + $0x2] sm:$0xff]
      %v1888 = vld [vmem:[%s528 + $0xa] sm:$0xff]
      %v1889 = vld [vmem:[%s528 + $0x1a] sm:$0xff]
      %v1890 = vld [vmem:[%s528 + $0x22] sm:$0xff]
      %v1891 = vld [vmem:[%s528 + $0x32] sm:$0xff]
      %v1892 = vld [vmem:[%s528 + $0x3a] sm:$0xff]
      %v1893 = vld [vmem:[%s528 + $0x4a] sm:$0xff]
      %v1894 = vld [vmem:[%s528 + $0x52] sm:$0xff]
      %v1895 = vld [vmem:[%s528 + $0x62] sm:$0xff]
      %v1896 = vld [vmem:[%s528 + $0x6a] sm:$0xff]
      %v1897 = vld [vmem:[%s528 + $0x7a] sm:$0xff]
      %v1898 = vld [vmem:[%s528 + $0x82] sm:$0xff]
      %v1899 = vld [vmem:[%s528 + $0x92] sm:$0xff]
      %v1900 = vld [vmem:[%s528 + $0x9a] sm:$0xff]
      %v1901 = vld [vmem:[%s528 + $0xaa] sm:$0xff]
      %v1902 = vld [vmem:[%s528 + $0xb2] sm:$0xff]
      %v1903 = vld [vmem:[%s528 + $0xc2] sm:$0xff]
      %v1904 = vld [vmem:[%s528 + $0xca] sm:$0xff]
      %v1905 = vld [vmem:[%s528 + $0xda] sm:$0xff]
      %v1906 = vld [vmem:[%s528 + $0xe2] sm:$0xff]
      %v1907 = vld [vmem:[%s528 + $0xf2] sm:$0xff]
      %v1908 = vld [vmem:[%s528 + $0xfa] sm:$0xff]
      %v1909 = vld [vmem:[%s528 + $0x10a] sm:$0xff]
      %v1910 = vld [vmem:[%s528 + $0x112] sm:$0xff]
      %v1911 = vld [vmem:[%s528 + $0x122] sm:$0xff]
      %v1912 = vld [vmem:[%s528 + $0x12a] sm:$0xff]
      %v1913 = vld [vmem:[%s528 + $0x13a] sm:$0xff]
      %v1914 = vld [vmem:[%s528 + $0x142] sm:$0xff]
      %v1915 = vld [vmem:[%s528 + $0x152] sm:$0xff]
      %v1916 = vld [vmem:[%s528 + $0x15a] sm:$0xff]
      %v1917 = vld [vmem:[%s528 + $0x16a] sm:$0xff]
      %v1918 = vld [vmem:[%s528 + $0x172] sm:$0xff]
      %s1919 = scalar_lea.vmem %s4, 20
      %v1920 = vld [vmem:[%s1919] sm:$0xf]
      %v1922 = vsel %vm472, %v1887, 0
      %v1925 = vsel %vm472, %v1888, 0
      %v1928 = vsel %vm472, %v1889, 0
      %v1931 = vsel %vm472, %v1890, 0
      %v1934 = vsel %vm472, %v1891, 0
      %v1937 = vsel %vm472, %v1892, 0
      %v1940 = vsel %vm472, %v1893, 0
      %v1943 = vsel %vm472, %v1894, 0
      %v1946 = vsel %vm472, %v1895, 0
      %v1949 = vsel %vm472, %v1896, 0
      %v1952 = vsel %vm472, %v1897, 0
      %v1955 = vsel %vm472, %v1898, 0
      %v1958 = vsel %vm472, %v1899, 0
      %v1961 = vsel %vm472, %v1900, 0
      %v1964 = vsel %vm472, %v1901, 0
      %v1967 = vsel %vm472, %v1902, 0
      %v1970 = vsel %vm472, %v1903, 0
      %v1973 = vsel %vm472, %v1904, 0
      %v1976 = vsel %vm472, %v1905, 0
      %v1979 = vsel %vm472, %v1906, 0
      %v1982 = vsel %vm472, %v1907, 0
      %v1985 = vsel %vm472, %v1908, 0
      %v1988 = vsel %vm472, %v1909, 0
      %v1991 = vsel %vm472, %v1910, 0
      %v1994 = vsel %vm472, %v1911, 0
      %v1997 = vsel %vm472, %v1912, 0
      %v2000 = vsel %vm472, %v1913, 0
      %v2003 = vsel %vm472, %v1914, 0
      %v2006 = vsel %vm472, %v1915, 0
      %v2009 = vsel %vm472, %v1916, 0
      %v2012 = vsel %vm472, %v1917, 0
      %v2015 = vsel %vm472, %v1918, 0
      %v2018 = vsel %vm724, %v1920, 0
      %2020 = vmatpush.msra.mxu0 0.0
      %2021 = vmatpush.msra.mxu0 0.0
      %2022 = vmatpush.msra.mxu0 0.0
      %2023 = vmatpush.msra.mxu0 0.0
      %2024 = vmatpush.msra.mxu0 0.0
      %2025 = vmatpush.msra.mxu0 0.0
      %2026 = vmatpush.msra.mxu0 0.0
      %2027 = vmatpush.msra.mxu0 0.0
      %2028 = vmatpush.msra.mxu0 0.0
      %2029 = vmatpush.msra.mxu0 0.0
      %2030 = vmatpush.msra.mxu0 0.0
      %2031 = vmatpush.msra.mxu0 0.0
      %2032 = vmatpush.msra.mxu0 0.0
      %2033 = vmatpush.msra.mxu0 0.0
      %2034 = vmatpush.msra.mxu0 0.0
      %2035 = vmatpush.msra.mxu0 %v2018
      %2036 = vmatmul.f32.gmra.mxu0 %v1922
      %v2037 = vpop.f32.mrf.mxu0
      %v2038 = vadd.f32 0.0, %v2037
      %2039 = vmatmul.f32.gmra.mxu0 %v1925
      %v2040 = vpop.f32.mrf.mxu0
      %v2041 = vadd.f32 0.0, %v2040
      %2042 = vmatmul.f32.gmra.mxu0 %v1928
      %v2043 = vpop.f32.mrf.mxu0
      %v2044 = vadd.f32 0.0, %v2043
      %2045 = vmatmul.f32.gmra.mxu0 %v1931
      %v2046 = vpop.f32.mrf.mxu0
      %v2047 = vadd.f32 0.0, %v2046
      %2048 = vmatmul.f32.gmra.mxu0 %v1934
      %v2049 = vpop.f32.mrf.mxu0
      %v2050 = vadd.f32 0.0, %v2049
      %2051 = vmatmul.f32.gmra.mxu0 %v1937
      %v2052 = vpop.f32.mrf.mxu0
      %v2053 = vadd.f32 0.0, %v2052
      %2054 = vmatmul.f32.gmra.mxu0 %v1940
      %v2055 = vpop.f32.mrf.mxu0
      %v2056 = vadd.f32 0.0, %v2055
      %2057 = vmatmul.f32.gmra.mxu0 %v1943
      %v2058 = vpop.f32.mrf.mxu0
      %v2059 = vadd.f32 0.0, %v2058
      %2060 = vmatmul.f32.gmra.mxu0 %v1946
      %v2061 = vpop.f32.mrf.mxu0
      %v2062 = vadd.f32 0.0, %v2061
      %2063 = vmatmul.f32.gmra.mxu0 %v1949
      %v2064 = vpop.f32.mrf.mxu0
      %v2065 = vadd.f32 0.0, %v2064
      %2066 = vmatmul.f32.gmra.mxu0 %v1952
      %v2067 = vpop.f32.mrf.mxu0
      %v2068 = vadd.f32 0.0, %v2067
      %2069 = vmatmul.f32.gmra.mxu0 %v1955
      %v2070 = vpop.f32.mrf.mxu0
      %v2071 = vadd.f32 0.0, %v2070
      %2072 = vmatmul.f32.gmra.mxu0 %v1958
      %v2073 = vpop.f32.mrf.mxu0
      %v2074 = vadd.f32 0.0, %v2073
      %2075 = vmatmul.f32.gmra.mxu0 %v1961
      %v2076 = vpop.f32.mrf.mxu0
      %v2077 = vadd.f32 0.0, %v2076
      %2078 = vmatmul.f32.gmra.mxu0 %v1964
      %v2079 = vpop.f32.mrf.mxu0
      %v2080 = vadd.f32 0.0, %v2079
      %2081 = vmatmul.f32.gmra.mxu0 %v1967
      %v2082 = vpop.f32.mrf.mxu0
      %v2083 = vadd.f32 0.0, %v2082
      %2084 = vmatmul.f32.gmra.mxu0 %v1970
      %v2085 = vpop.f32.mrf.mxu0
      %v2086 = vadd.f32 0.0, %v2085
      %2087 = vmatmul.f32.gmra.mxu0 %v1973
      %v2088 = vpop.f32.mrf.mxu0
      %v2089 = vadd.f32 0.0, %v2088
      %2090 = vmatmul.f32.gmra.mxu0 %v1976
      %v2091 = vpop.f32.mrf.mxu0
      %v2092 = vadd.f32 0.0, %v2091
      %2093 = vmatmul.f32.gmra.mxu0 %v1979
      %v2094 = vpop.f32.mrf.mxu0
      %v2095 = vadd.f32 0.0, %v2094
      %2096 = vmatmul.f32.gmra.mxu0 %v1982
      %v2097 = vpop.f32.mrf.mxu0
      %v2098 = vadd.f32 0.0, %v2097
      %2099 = vmatmul.f32.gmra.mxu0 %v1985
      %v2100 = vpop.f32.mrf.mxu0
      %v2101 = vadd.f32 0.0, %v2100
      %2102 = vmatmul.f32.gmra.mxu0 %v1988
      %v2103 = vpop.f32.mrf.mxu0
      %v2104 = vadd.f32 0.0, %v2103
      %2105 = vmatmul.f32.gmra.mxu0 %v1991
      %v2106 = vpop.f32.mrf.mxu0
      %v2107 = vadd.f32 0.0, %v2106
      %2108 = vmatmul.f32.gmra.mxu0 %v1994
      %v2109 = vpop.f32.mrf.mxu0
      %v2110 = vadd.f32 0.0, %v2109
      %2111 = vmatmul.f32.gmra.mxu0 %v1997
      %v2112 = vpop.f32.mrf.mxu0
      %v2113 = vadd.f32 0.0, %v2112
      %2114 = vmatmul.f32.gmra.mxu0 %v2000
      %v2115 = vpop.f32.mrf.mxu0
      %v2116 = vadd.f32 0.0, %v2115
      %2117 = vmatmul.f32.gmra.mxu0 %v2003
      %v2118 = vpop.f32.mrf.mxu0
      %v2119 = vadd.f32 0.0, %v2118
      %2120 = vmatmul.f32.gmra.mxu0 %v2006
      %v2121 = vpop.f32.mrf.mxu0
      %v2122 = vadd.f32 0.0, %v2121
      %2123 = vmatmul.f32.gmra.mxu0 %v2009
      %v2124 = vpop.f32.mrf.mxu0
      %v2125 = vadd.f32 0.0, %v2124
      %2126 = vmatmul.f32.gmra.mxu0 %v2012
      %v2127 = vpop.f32.mrf.mxu0
      %v2128 = vadd.f32 0.0, %v2127
      %2129 = vmatmul.f32.gmra.mxu0 %v2015
      %v2130 = vpop.f32.mrf.mxu0
      %v2131 = vadd.f32 0.0, %v2130
      %2132 = vdwg.mxu0
      %v2133 = vadd.f32 %v1855, %v2038
      %v2134 = vadd.f32 %v1856, %v2041
      %v2135 = vadd.f32 %v1857, %v2044
      %v2136 = vadd.f32 %v1858, %v2047
      %v2137 = vadd.f32 %v1859, %v2050
      %v2138 = vadd.f32 %v1860, %v2053
      %v2139 = vadd.f32 %v1861, %v2056
      %v2140 = vadd.f32 %v1862, %v2059
      %v2141 = vadd.f32 %v1863, %v2062
      %v2142 = vadd.f32 %v1864, %v2065
      %v2143 = vadd.f32 %v1865, %v2068
      %v2144 = vadd.f32 %v1866, %v2071
      %v2145 = vadd.f32 %v1867, %v2074
      %v2146 = vadd.f32 %v1868, %v2077
      %v2147 = vadd.f32 %v1869, %v2080
      %v2148 = vadd.f32 %v1870, %v2083
      %v2149 = vadd.f32 %v1871, %v2086
      %v2150 = vadd.f32 %v1872, %v2089
      %v2151 = vadd.f32 %v1873, %v2092
      %v2152 = vadd.f32 %v1874, %v2095
      %v2153 = vadd.f32 %v1875, %v2098
      %v2154 = vadd.f32 %v1876, %v2101
      %v2155 = vadd.f32 %v1877, %v2104
      %v2156 = vadd.f32 %v1878, %v2107
      %v2157 = vadd.f32 %v1879, %v2110
      %v2158 = vadd.f32 %v1880, %v2113
      %v2159 = vadd.f32 %v1881, %v2116
      %v2160 = vadd.f32 %v1882, %v2119
      %v2161 = vadd.f32 %v1883, %v2122
      %v2162 = vadd.f32 %v1884, %v2125
      %v2163 = vadd.f32 %v1885, %v2128
      %v2164 = vadd.f32 %v1886, %v2131
      %s2165 = scalar_lea.vmem [#allocation2], 48
      %v2166 = vld [vmem:[%s2165] sm:$0xff]
      %v2167 = vld [vmem:[%s2165 + $0x8] sm:$0xff]
      %v2168 = vld [vmem:[%s2165 + $0x18] sm:$0xff]
      %v2169 = vld [vmem:[%s2165 + $0x20] sm:$0xff]
      %v2170 = vld [vmem:[%s2165 + $0x30] sm:$0xff]
      %v2171 = vld [vmem:[%s2165 + $0x38] sm:$0xff]
      %v2172 = vld [vmem:[%s2165 + $0x48] sm:$0xff]
      %v2173 = vld [vmem:[%s2165 + $0x50] sm:$0xff]
      %v2174 = vld [vmem:[%s2165 + $0x60] sm:$0xff]
      %v2175 = vld [vmem:[%s2165 + $0x68] sm:$0xff]
      %v2176 = vld [vmem:[%s2165 + $0x78] sm:$0xff]
      %v2177 = vld [vmem:[%s2165 + $0x80] sm:$0xff]
      %v2178 = vld [vmem:[%s2165 + $0x90] sm:$0xff]
      %v2179 = vld [vmem:[%s2165 + $0x98] sm:$0xff]
      %v2180 = vld [vmem:[%s2165 + $0xa8] sm:$0xff]
      %v2181 = vld [vmem:[%s2165 + $0xb0] sm:$0xff]
      %v2182 = vld [vmem:[%s2165 + $0xc0] sm:$0xff]
      %v2183 = vld [vmem:[%s2165 + $0xc8] sm:$0xff]
      %v2184 = vld [vmem:[%s2165 + $0xd8] sm:$0xff]
      %v2185 = vld [vmem:[%s2165 + $0xe0] sm:$0xff]
      %v2186 = vld [vmem:[%s2165 + $0xf0] sm:$0xff]
      %v2187 = vld [vmem:[%s2165 + $0xf8] sm:$0xff]
      %v2188 = vld [vmem:[%s2165 + $0x108] sm:$0xff]
      %v2189 = vld [vmem:[%s2165 + $0x110] sm:$0xff]
      %v2190 = vld [vmem:[%s2165 + $0x120] sm:$0xff]
      %v2191 = vld [vmem:[%s2165 + $0x128] sm:$0xff]
      %v2192 = vld [vmem:[%s2165 + $0x138] sm:$0xff]
      %v2193 = vld [vmem:[%s2165 + $0x140] sm:$0xff]
      %v2194 = vld [vmem:[%s2165 + $0x150] sm:$0xff]
      %v2195 = vld [vmem:[%s2165 + $0x158] sm:$0xff]
      %v2196 = vld [vmem:[%s2165 + $0x168] sm:$0xff]
      %v2197 = vld [vmem:[%s2165 + $0x170] sm:$0xff]
      %s2198 = scalar_lea.vmem %s4, 24
      %v2199 = vld [vmem:[%s2198] sm:$0xf]
      %v2201 = vsel %vm472, %v2166, 0
      %v2204 = vsel %vm472, %v2167, 0
      %v2207 = vsel %vm472, %v2168, 0
      %v2210 = vsel %vm472, %v2169, 0
      %v2213 = vsel %vm472, %v2170, 0
      %v2216 = vsel %vm472, %v2171, 0
      %v2219 = vsel %vm472, %v2172, 0
      %v2222 = vsel %vm472, %v2173, 0
      %v2225 = vsel %vm472, %v2174, 0
      %v2228 = vsel %vm472, %v2175, 0
      %v2231 = vsel %vm472, %v2176, 0
      %v2234 = vsel %vm472, %v2177, 0
      %v2237 = vsel %vm472, %v2178, 0
      %v2240 = vsel %vm472, %v2179, 0
      %v2243 = vsel %vm472, %v2180, 0
      %v2246 = vsel %vm472, %v2181, 0
      %v2249 = vsel %vm472, %v2182, 0
      %v2252 = vsel %vm472, %v2183, 0
      %v2255 = vsel %vm472, %v2184, 0
      %v2258 = vsel %vm472, %v2185, 0
      %v2261 = vsel %vm472, %v2186, 0
      %v2264 = vsel %vm472, %v2187, 0
      %v2267 = vsel %vm472, %v2188, 0
      %v2270 = vsel %vm472, %v2189, 0
      %v2273 = vsel %vm472, %v2190, 0
      %v2276 = vsel %vm472, %v2191, 0
      %v2279 = vsel %vm472, %v2192, 0
      %v2282 = vsel %vm472, %v2193, 0
      %v2285 = vsel %vm472, %v2194, 0
      %v2288 = vsel %vm472, %v2195, 0
      %v2291 = vsel %vm472, %v2196, 0
      %v2294 = vsel %vm472, %v2197, 0
      %v2297 = vsel %vm724, %v2199, 0
      %2299 = vmatpush.msra.mxu0 0.0
      %2300 = vmatpush.msra.mxu0 0.0
      %2301 = vmatpush.msra.mxu0 0.0
      %2302 = vmatpush.msra.mxu0 0.0
      %2303 = vmatpush.msra.mxu0 0.0
      %2304 = vmatpush.msra.mxu0 0.0
      %2305 = vmatpush.msra.mxu0 0.0
      %2306 = vmatpush.msra.mxu0 0.0
      %2307 = vmatpush.msra.mxu0 0.0
      %2308 = vmatpush.msra.mxu0 0.0
      %2309 = vmatpush.msra.mxu0 0.0
      %2310 = vmatpush.msra.mxu0 0.0
      %2311 = vmatpush.msra.mxu0 0.0
      %2312 = vmatpush.msra.mxu0 0.0
      %2313 = vmatpush.msra.mxu0 0.0
      %2314 = vmatpush.msra.mxu0 %v2297
      %2315 = vmatmul.f32.gmra.mxu0 %v2201
      %v2316 = vpop.f32.mrf.mxu0
      %v2317 = vadd.f32 0.0, %v2316
      %2318 = vmatmul.f32.gmra.mxu0 %v2204
      %v2319 = vpop.f32.mrf.mxu0
      %v2320 = vadd.f32 0.0, %v2319
      %2321 = vmatmul.f32.gmra.mxu0 %v2207
      %v2322 = vpop.f32.mrf.mxu0
      %v2323 = vadd.f32 0.0, %v2322
      %2324 = vmatmul.f32.gmra.mxu0 %v2210
      %v2325 = vpop.f32.mrf.mxu0
      %v2326 = vadd.f32 0.0, %v2325
      %2327 = vmatmul.f32.gmra.mxu0 %v2213
      %v2328 = vpop.f32.mrf.mxu0
      %v2329 = vadd.f32 0.0, %v2328
      %2330 = vmatmul.f32.gmra.mxu0 %v2216
      %v2331 = vpop.f32.mrf.mxu0
      %v2332 = vadd.f32 0.0, %v2331
      %2333 = vmatmul.f32.gmra.mxu0 %v2219
      %v2334 = vpop.f32.mrf.mxu0
      %v2335 = vadd.f32 0.0, %v2334
      %2336 = vmatmul.f32.gmra.mxu0 %v2222
      %v2337 = vpop.f32.mrf.mxu0
      %v2338 = vadd.f32 0.0, %v2337
      %2339 = vmatmul.f32.gmra.mxu0 %v2225
      %v2340 = vpop.f32.mrf.mxu0
      %v2341 = vadd.f32 0.0, %v2340
      %2342 = vmatmul.f32.gmra.mxu0 %v2228
      %v2343 = vpop.f32.mrf.mxu0
      %v2344 = vadd.f32 0.0, %v2343
      %2345 = vmatmul.f32.gmra.mxu0 %v2231
      %v2346 = vpop.f32.mrf.mxu0
      %v2347 = vadd.f32 0.0, %v2346
      %2348 = vmatmul.f32.gmra.mxu0 %v2234
      %v2349 = vpop.f32.mrf.mxu0
      %v2350 = vadd.f32 0.0, %v2349
      %2351 = vmatmul.f32.gmra.mxu0 %v2237
      %v2352 = vpop.f32.mrf.mxu0
      %v2353 = vadd.f32 0.0, %v2352
      %2354 = vmatmul.f32.gmra.mxu0 %v2240
      %v2355 = vpop.f32.mrf.mxu0
      %v2356 = vadd.f32 0.0, %v2355
      %2357 = vmatmul.f32.gmra.mxu0 %v2243
      %v2358 = vpop.f32.mrf.mxu0
      %v2359 = vadd.f32 0.0, %v2358
      %2360 = vmatmul.f32.gmra.mxu0 %v2246
      %v2361 = vpop.f32.mrf.mxu0
      %v2362 = vadd.f32 0.0, %v2361
      %2363 = vmatmul.f32.gmra.mxu0 %v2249
      %v2364 = vpop.f32.mrf.mxu0
      %v2365 = vadd.f32 0.0, %v2364
      %2366 = vmatmul.f32.gmra.mxu0 %v2252
      %v2367 = vpop.f32.mrf.mxu0
      %v2368 = vadd.f32 0.0, %v2367
      %2369 = vmatmul.f32.gmra.mxu0 %v2255
      %v2370 = vpop.f32.mrf.mxu0
      %v2371 = vadd.f32 0.0, %v2370
      %2372 = vmatmul.f32.gmra.mxu0 %v2258
      %v2373 = vpop.f32.mrf.mxu0
      %v2374 = vadd.f32 0.0, %v2373
      %2375 = vmatmul.f32.gmra.mxu0 %v2261
      %v2376 = vpop.f32.mrf.mxu0
      %v2377 = vadd.f32 0.0, %v2376
      %2378 = vmatmul.f32.gmra.mxu0 %v2264
      %v2379 = vpop.f32.mrf.mxu0
      %v2380 = vadd.f32 0.0, %v2379
      %2381 = vmatmul.f32.gmra.mxu0 %v2267
      %v2382 = vpop.f32.mrf.mxu0
      %v2383 = vadd.f32 0.0, %v2382
      %2384 = vmatmul.f32.gmra.mxu0 %v2270
      %v2385 = vpop.f32.mrf.mxu0
      %v2386 = vadd.f32 0.0, %v2385
      %2387 = vmatmul.f32.gmra.mxu0 %v2273
      %v2388 = vpop.f32.mrf.mxu0
      %v2389 = vadd.f32 0.0, %v2388
      %2390 = vmatmul.f32.gmra.mxu0 %v2276
      %v2391 = vpop.f32.mrf.mxu0
      %v2392 = vadd.f32 0.0, %v2391
      %2393 = vmatmul.f32.gmra.mxu0 %v2279
      %v2394 = vpop.f32.mrf.mxu0
      %v2395 = vadd.f32 0.0, %v2394
      %2396 = vmatmul.f32.gmra.mxu0 %v2282
      %v2397 = vpop.f32.mrf.mxu0
      %v2398 = vadd.f32 0.0, %v2397
      %2399 = vmatmul.f32.gmra.mxu0 %v2285
      %v2400 = vpop.f32.mrf.mxu0
      %v2401 = vadd.f32 0.0, %v2400
      %2402 = vmatmul.f32.gmra.mxu0 %v2288
      %v2403 = vpop.f32.mrf.mxu0
      %v2404 = vadd.f32 0.0, %v2403
      %2405 = vmatmul.f32.gmra.mxu0 %v2291
      %v2406 = vpop.f32.mrf.mxu0
      %v2407 = vadd.f32 0.0, %v2406
      %2408 = vmatmul.f32.gmra.mxu0 %v2294
      %v2409 = vpop.f32.mrf.mxu0
      %v2410 = vadd.f32 0.0, %v2409
      %2411 = vdwg.mxu0
      %v2412 = vadd.f32 %v2133, %v2317
      %v2413 = vadd.f32 %v2134, %v2320
      %v2414 = vadd.f32 %v2135, %v2323
      %v2415 = vadd.f32 %v2136, %v2326
      %v2416 = vadd.f32 %v2137, %v2329
      %v2417 = vadd.f32 %v2138, %v2332
      %v2418 = vadd.f32 %v2139, %v2335
      %v2419 = vadd.f32 %v2140, %v2338
      %v2420 = vadd.f32 %v2141, %v2341
      %v2421 = vadd.f32 %v2142, %v2344
      %v2422 = vadd.f32 %v2143, %v2347
      %v2423 = vadd.f32 %v2144, %v2350
      %v2424 = vadd.f32 %v2145, %v2353
      %v2425 = vadd.f32 %v2146, %v2356
      %v2426 = vadd.f32 %v2147, %v2359
      %v2427 = vadd.f32 %v2148, %v2362
      %v2428 = vadd.f32 %v2149, %v2365
      %v2429 = vadd.f32 %v2150, %v2368
      %v2430 = vadd.f32 %v2151, %v2371
      %v2431 = vadd.f32 %v2152, %v2374
      %v2432 = vadd.f32 %v2153, %v2377
      %v2433 = vadd.f32 %v2154, %v2380
      %v2434 = vadd.f32 %v2155, %v2383
      %v2435 = vadd.f32 %v2156, %v2386
      %v2436 = vadd.f32 %v2157, %v2389
      %v2437 = vadd.f32 %v2158, %v2392
      %v2438 = vadd.f32 %v2159, %v2395
      %v2439 = vadd.f32 %v2160, %v2398
      %v2440 = vadd.f32 %v2161, %v2401
      %v2441 = vadd.f32 %v2162, %v2404
      %v2442 = vadd.f32 %v2163, %v2407
      %v2443 = vadd.f32 %v2164, %v2410
      %v2444 = vld [vmem:[%s2165 + $0x1] sm:$0xff]
      %v2445 = vld [vmem:[%s2165 + $0x9] sm:$0xff]
      %v2446 = vld [vmem:[%s2165 + $0x19] sm:$0xff]
      %v2447 = vld [vmem:[%s2165 + $0x21] sm:$0xff]
      %v2448 = vld [vmem:[%s2165 + $0x31] sm:$0xff]
      %v2449 = vld [vmem:[%s2165 + $0x39] sm:$0xff]
      %v2450 = vld [vmem:[%s2165 + $0x49] sm:$0xff]
      %v2451 = vld [vmem:[%s2165 + $0x51] sm:$0xff]
      %v2452 = vld [vmem:[%s2165 + $0x61] sm:$0xff]
      %v2453 = vld [vmem:[%s2165 + $0x69] sm:$0xff]
      %v2454 = vld [vmem:[%s2165 + $0x79] sm:$0xff]
      %v2455 = vld [vmem:[%s2165 + $0x81] sm:$0xff]
      %v2456 = vld [vmem:[%s2165 + $0x91] sm:$0xff]
      %v2457 = vld [vmem:[%s2165 + $0x99] sm:$0xff]
      %v2458 = vld [vmem:[%s2165 + $0xa9] sm:$0xff]
      %v2459 = vld [vmem:[%s2165 + $0xb1] sm:$0xff]
      %v2460 = vld [vmem:[%s2165 + $0xc1] sm:$0xff]
      %v2461 = vld [vmem:[%s2165 + $0xc9] sm:$0xff]
      %v2462 = vld [vmem:[%s2165 + $0xd9] sm:$0xff]
      %v2463 = vld [vmem:[%s2165 + $0xe1] sm:$0xff]
      %v2464 = vld [vmem:[%s2165 + $0xf1] sm:$0xff]
      %v2465 = vld [vmem:[%s2165 + $0xf9] sm:$0xff]
      %v2466 = vld [vmem:[%s2165 + $0x109] sm:$0xff]
      %v2467 = vld [vmem:[%s2165 + $0x111] sm:$0xff]
      %v2468 = vld [vmem:[%s2165 + $0x121] sm:$0xff]
      %v2469 = vld [vmem:[%s2165 + $0x129] sm:$0xff]
      %v2470 = vld [vmem:[%s2165 + $0x139] sm:$0xff]
      %v2471 = vld [vmem:[%s2165 + $0x141] sm:$0xff]
      %v2472 = vld [vmem:[%s2165 + $0x151] sm:$0xff]
      %v2473 = vld [vmem:[%s2165 + $0x159] sm:$0xff]
      %v2474 = vld [vmem:[%s2165 + $0x169] sm:$0xff]
      %v2475 = vld [vmem:[%s2165 + $0x171] sm:$0xff]
      %s2476 = scalar_lea.vmem %s4, 28
      %v2477 = vld [vmem:[%s2476] sm:$0xf]
      %v2479 = vsel %vm472, %v2444, 0
      %v2482 = vsel %vm472, %v2445, 0
      %v2485 = vsel %vm472, %v2446, 0
      %v2488 = vsel %vm472, %v2447, 0
      %v2491 = vsel %vm472, %v2448, 0
      %v2494 = vsel %vm472, %v2449, 0
      %v2497 = vsel %vm472, %v2450, 0
      %v2500 = vsel %vm472, %v2451, 0
      %v2503 = vsel %vm472, %v2452, 0
      %v2506 = vsel %vm472, %v2453, 0
      %v2509 = vsel %vm472, %v2454, 0
      %v2512 = vsel %vm472, %v2455, 0
      %v2515 = vsel %vm472, %v2456, 0
      %v2518 = vsel %vm472, %v2457, 0
      %v2521 = vsel %vm472, %v2458, 0
      %v2524 = vsel %vm472, %v2459, 0
      %v2527 = vsel %vm472, %v2460, 0
      %v2530 = vsel %vm472, %v2461, 0
      %v2533 = vsel %vm472, %v2462, 0
      %v2536 = vsel %vm472, %v2463, 0
      %v2539 = vsel %vm472, %v2464, 0
      %v2542 = vsel %vm472, %v2465, 0
      %v2545 = vsel %vm472, %v2466, 0
      %v2548 = vsel %vm472, %v2467, 0
      %v2551 = vsel %vm472, %v2468, 0
      %v2554 = vsel %vm472, %v2469, 0
      %v2557 = vsel %vm472, %v2470, 0
      %v2560 = vsel %vm472, %v2471, 0
      %v2563 = vsel %vm472, %v2472, 0
      %v2566 = vsel %vm472, %v2473, 0
      %v2569 = vsel %vm472, %v2474, 0
      %v2572 = vsel %vm472, %v2475, 0
      %v2575 = vsel %vm724, %v2477, 0
      %2577 = vmatpush.msra.mxu0 0.0
      %2578 = vmatpush.msra.mxu0 0.0
      %2579 = vmatpush.msra.mxu0 0.0
      %2580 = vmatpush.msra.mxu0 0.0
      %2581 = vmatpush.msra.mxu0 0.0
      %2582 = vmatpush.msra.mxu0 0.0
      %2583 = vmatpush.msra.mxu0 0.0
      %2584 = vmatpush.msra.mxu0 0.0
      %2585 = vmatpush.msra.mxu0 0.0
      %2586 = vmatpush.msra.mxu0 0.0
      %2587 = vmatpush.msra.mxu0 0.0
      %2588 = vmatpush.msra.mxu0 0.0
      %2589 = vmatpush.msra.mxu0 0.0
      %2590 = vmatpush.msra.mxu0 0.0
      %2591 = vmatpush.msra.mxu0 0.0
      %2592 = vmatpush.msra.mxu0 %v2575
      %2593 = vmatmul.f32.gmra.mxu0 %v2479
      %v2594 = vpop.f32.mrf.mxu0
      %v2595 = vadd.f32 0.0, %v2594
      %2596 = vmatmul.f32.gmra.mxu0 %v2482
      %v2597 = vpop.f32.mrf.mxu0
      %v2598 = vadd.f32 0.0, %v2597
      %2599 = vmatmul.f32.gmra.mxu0 %v2485
      %v2600 = vpop.f32.mrf.mxu0
      %v2601 = vadd.f32 0.0, %v2600
      %2602 = vmatmul.f32.gmra.mxu0 %v2488
      %v2603 = vpop.f32.mrf.mxu0
      %v2604 = vadd.f32 0.0, %v2603
      %2605 = vmatmul.f32.gmra.mxu0 %v2491
      %v2606 = vpop.f32.mrf.mxu0
      %v2607 = vadd.f32 0.0, %v2606
      %2608 = vmatmul.f32.gmra.mxu0 %v2494
      %v2609 = vpop.f32.mrf.mxu0
      %v2610 = vadd.f32 0.0, %v2609
      %2611 = vmatmul.f32.gmra.mxu0 %v2497
      %v2612 = vpop.f32.mrf.mxu0
      %v2613 = vadd.f32 0.0, %v2612
      %2614 = vmatmul.f32.gmra.mxu0 %v2500
      %v2615 = vpop.f32.mrf.mxu0
      %v2616 = vadd.f32 0.0, %v2615
      %2617 = vmatmul.f32.gmra.mxu0 %v2503
      %v2618 = vpop.f32.mrf.mxu0
      %v2619 = vadd.f32 0.0, %v2618
      %2620 = vmatmul.f32.gmra.mxu0 %v2506
      %v2621 = vpop.f32.mrf.mxu0
      %v2622 = vadd.f32 0.0, %v2621
      %2623 = vmatmul.f32.gmra.mxu0 %v2509
      %v2624 = vpop.f32.mrf.mxu0
      %v2625 = vadd.f32 0.0, %v2624
      %2626 = vmatmul.f32.gmra.mxu0 %v2512
      %v2627 = vpop.f32.mrf.mxu0
      %v2628 = vadd.f32 0.0, %v2627
      %2629 = vmatmul.f32.gmra.mxu0 %v2515
      %v2630 = vpop.f32.mrf.mxu0
      %v2631 = vadd.f32 0.0, %v2630
      %2632 = vmatmul.f32.gmra.mxu0 %v2518
      %v2633 = vpop.f32.mrf.mxu0
      %v2634 = vadd.f32 0.0, %v2633
      %2635 = vmatmul.f32.gmra.mxu0 %v2521
      %v2636 = vpop.f32.mrf.mxu0
      %v2637 = vadd.f32 0.0, %v2636
      %2638 = vmatmul.f32.gmra.mxu0 %v2524
      %v2639 = vpop.f32.mrf.mxu0
      %v2640 = vadd.f32 0.0, %v2639
      %2641 = vmatmul.f32.gmra.mxu0 %v2527
      %v2642 = vpop.f32.mrf.mxu0
      %v2643 = vadd.f32 0.0, %v2642
      %2644 = vmatmul.f32.gmra.mxu0 %v2530
      %v2645 = vpop.f32.mrf.mxu0
      %v2646 = vadd.f32 0.0, %v2645
      %2647 = vmatmul.f32.gmra.mxu0 %v2533
      %v2648 = vpop.f32.mrf.mxu0
      %v2649 = vadd.f32 0.0, %v2648
      %2650 = vmatmul.f32.gmra.mxu0 %v2536
      %v2651 = vpop.f32.mrf.mxu0
      %v2652 = vadd.f32 0.0, %v2651
      %2653 = vmatmul.f32.gmra.mxu0 %v2539
      %v2654 = vpop.f32.mrf.mxu0
      %v2655 = vadd.f32 0.0, %v2654
      %2656 = vmatmul.f32.gmra.mxu0 %v2542
      %v2657 = vpop.f32.mrf.mxu0
      %v2658 = vadd.f32 0.0, %v2657
      %2659 = vmatmul.f32.gmra.mxu0 %v2545
      %v2660 = vpop.f32.mrf.mxu0
      %v2661 = vadd.f32 0.0, %v2660
      %2662 = vmatmul.f32.gmra.mxu0 %v2548
      %v2663 = vpop.f32.mrf.mxu0
      %v2664 = vadd.f32 0.0, %v2663
      %2665 = vmatmul.f32.gmra.mxu0 %v2551
      %v2666 = vpop.f32.mrf.mxu0
      %v2667 = vadd.f32 0.0, %v2666
      %2668 = vmatmul.f32.gmra.mxu0 %v2554
      %v2669 = vpop.f32.mrf.mxu0
      %v2670 = vadd.f32 0.0, %v2669
      %2671 = vmatmul.f32.gmra.mxu0 %v2557
      %v2672 = vpop.f32.mrf.mxu0
      %v2673 = vadd.f32 0.0, %v2672
      %2674 = vmatmul.f32.gmra.mxu0 %v2560
      %v2675 = vpop.f32.mrf.mxu0
      %v2676 = vadd.f32 0.0, %v2675
      %2677 = vmatmul.f32.gmra.mxu0 %v2563
      %v2678 = vpop.f32.mrf.mxu0
      %v2679 = vadd.f32 0.0, %v2678
      %2680 = vmatmul.f32.gmra.mxu0 %v2566
      %v2681 = vpop.f32.mrf.mxu0
      %v2682 = vadd.f32 0.0, %v2681
      %2683 = vmatmul.f32.gmra.mxu0 %v2569
      %v2684 = vpop.f32.mrf.mxu0
      %v2685 = vadd.f32 0.0, %v2684
      %2686 = vmatmul.f32.gmra.mxu0 %v2572
      %v2687 = vpop.f32.mrf.mxu0
      %v2688 = vadd.f32 0.0, %v2687
      %2689 = vdwg.mxu0
      %v2690 = vadd.f32 %v2412, %v2595
      %v2691 = vadd.f32 %v2413, %v2598
      %v2692 = vadd.f32 %v2414, %v2601
      %v2693 = vadd.f32 %v2415, %v2604
      %v2694 = vadd.f32 %v2416, %v2607
      %v2695 = vadd.f32 %v2417, %v2610
      %v2696 = vadd.f32 %v2418, %v2613
      %v2697 = vadd.f32 %v2419, %v2616
      %v2698 = vadd.f32 %v2420, %v2619
      %v2699 = vadd.f32 %v2421, %v2622
      %v2700 = vadd.f32 %v2422, %v2625
      %v2701 = vadd.f32 %v2423, %v2628
      %v2702 = vadd.f32 %v2424, %v2631
      %v2703 = vadd.f32 %v2425, %v2634
      %v2704 = vadd.f32 %v2426, %v2637
      %v2705 = vadd.f32 %v2427, %v2640
      %v2706 = vadd.f32 %v2428, %v2643
      %v2707 = vadd.f32 %v2429, %v2646
      %v2708 = vadd.f32 %v2430, %v2649
      %v2709 = vadd.f32 %v2431, %v2652
      %v2710 = vadd.f32 %v2432, %v2655
      %v2711 = vadd.f32 %v2433, %v2658
      %v2712 = vadd.f32 %v2434, %v2661
      %v2713 = vadd.f32 %v2435, %v2664
      %v2714 = vadd.f32 %v2436, %v2667
      %v2715 = vadd.f32 %v2437, %v2670
      %v2716 = vadd.f32 %v2438, %v2673
      %v2717 = vadd.f32 %v2439, %v2676
      %v2718 = vadd.f32 %v2440, %v2679
      %v2719 = vadd.f32 %v2441, %v2682
      %v2720 = vadd.f32 %v2442, %v2685
      %v2721 = vadd.f32 %v2443, %v2688
      %v2722 = vld [vmem:[%s2165 + $0x2] sm:$0xff]
      %v2723 = vld [vmem:[%s2165 + $0xa] sm:$0xff]
      %v2724 = vld [vmem:[%s2165 + $0x1a] sm:$0xff]
      %v2725 = vld [vmem:[%s2165 + $0x22] sm:$0xff]
      %v2726 = vld [vmem:[%s2165 + $0x32] sm:$0xff]
      %v2727 = vld [vmem:[%s2165 + $0x3a] sm:$0xff]
      %v2728 = vld [vmem:[%s2165 + $0x4a] sm:$0xff]
      %v2729 = vld [vmem:[%s2165 + $0x52] sm:$0xff]
      %v2730 = vld [vmem:[%s2165 + $0x62] sm:$0xff]
      %v2731 = vld [vmem:[%s2165 + $0x6a] sm:$0xff]
      %v2732 = vld [vmem:[%s2165 + $0x7a] sm:$0xff]
      %v2733 = vld [vmem:[%s2165 + $0x82] sm:$0xff]
      %v2734 = vld [vmem:[%s2165 + $0x92] sm:$0xff]
      %v2735 = vld [vmem:[%s2165 + $0x9a] sm:$0xff]
      %v2736 = vld [vmem:[%s2165 + $0xaa] sm:$0xff]
      %v2737 = vld [vmem:[%s2165 + $0xb2] sm:$0xff]
      %v2738 = vld [vmem:[%s2165 + $0xc2] sm:$0xff]
      %v2739 = vld [vmem:[%s2165 + $0xca] sm:$0xff]
      %v2740 = vld [vmem:[%s2165 + $0xda] sm:$0xff]
      %v2741 = vld [vmem:[%s2165 + $0xe2] sm:$0xff]
      %v2742 = vld [vmem:[%s2165 + $0xf2] sm:$0xff]
      %v2743 = vld [vmem:[%s2165 + $0xfa] sm:$0xff]
      %v2744 = vld [vmem:[%s2165 + $0x10a] sm:$0xff]
      %v2745 = vld [vmem:[%s2165 + $0x112] sm:$0xff]
      %v2746 = vld [vmem:[%s2165 + $0x122] sm:$0xff]
      %v2747 = vld [vmem:[%s2165 + $0x12a] sm:$0xff]
      %v2748 = vld [vmem:[%s2165 + $0x13a] sm:$0xff]
      %v2749 = vld [vmem:[%s2165 + $0x142] sm:$0xff]
      %v2750 = vld [vmem:[%s2165 + $0x152] sm:$0xff]
      %v2751 = vld [vmem:[%s2165 + $0x15a] sm:$0xff]
      %v2752 = vld [vmem:[%s2165 + $0x16a] sm:$0xff]
      %v2753 = vld [vmem:[%s2165 + $0x172] sm:$0xff]
      %s2754 = scalar_lea.vmem %s4, 32
      %v2755 = vld [vmem:[%s2754] sm:$0xf]
      %v2757 = vsel %vm472, %v2722, 0
      %v2760 = vsel %vm472, %v2723, 0
      %v2763 = vsel %vm472, %v2724, 0
      %v2766 = vsel %vm472, %v2725, 0
      %v2769 = vsel %vm472, %v2726, 0
      %v2772 = vsel %vm472, %v2727, 0
      %v2775 = vsel %vm472, %v2728, 0
      %v2778 = vsel %vm472, %v2729, 0
      %v2781 = vsel %vm472, %v2730, 0
      %v2784 = vsel %vm472, %v2731, 0
      %v2787 = vsel %vm472, %v2732, 0
      %v2790 = vsel %vm472, %v2733, 0
      %v2793 = vsel %vm472, %v2734, 0
      %v2796 = vsel %vm472, %v2735, 0
      %v2799 = vsel %vm472, %v2736, 0
      %v2802 = vsel %vm472, %v2737, 0
      %v2805 = vsel %vm472, %v2738, 0
      %v2808 = vsel %vm472, %v2739, 0
      %v2811 = vsel %vm472, %v2740, 0
      %v2814 = vsel %vm472, %v2741, 0
      %v2817 = vsel %vm472, %v2742, 0
      %v2820 = vsel %vm472, %v2743, 0
      %v2823 = vsel %vm472, %v2744, 0
      %v2826 = vsel %vm472, %v2745, 0
      %v2829 = vsel %vm472, %v2746, 0
      %v2832 = vsel %vm472, %v2747, 0
      %v2835 = vsel %vm472, %v2748, 0
      %v2838 = vsel %vm472, %v2749, 0
      %v2841 = vsel %vm472, %v2750, 0
      %v2844 = vsel %vm472, %v2751, 0
      %v2847 = vsel %vm472, %v2752, 0
      %v2850 = vsel %vm472, %v2753, 0
      %v2853 = vsel %vm724, %v2755, 0
      %2855 = vmatpush.msra.mxu0 0.0
      %2856 = vmatpush.msra.mxu0 0.0
      %2857 = vmatpush.msra.mxu0 0.0
      %2858 = vmatpush.msra.mxu0 0.0
      %2859 = vmatpush.msra.mxu0 0.0
      %2860 = vmatpush.msra.mxu0 0.0
      %2861 = vmatpush.msra.mxu0 0.0
      %2862 = vmatpush.msra.mxu0 0.0
      %2863 = vmatpush.msra.mxu0 0.0
      %2864 = vmatpush.msra.mxu0 0.0
      %2865 = vmatpush.msra.mxu0 0.0
      %2866 = vmatpush.msra.mxu0 0.0
      %2867 = vmatpush.msra.mxu0 0.0
      %2868 = vmatpush.msra.mxu0 0.0
      %2869 = vmatpush.msra.mxu0 0.0
      %2870 = vmatpush.msra.mxu0 %v2853
      %2871 = vmatmul.f32.gmra.mxu0 %v2757
      %v2872 = vpop.f32.mrf.mxu0
      %v2873 = vadd.f32 0.0, %v2872
      %2874 = vmatmul.f32.gmra.mxu0 %v2760
      %v2875 = vpop.f32.mrf.mxu0
      %v2876 = vadd.f32 0.0, %v2875
      %2877 = vmatmul.f32.gmra.mxu0 %v2763
      %v2878 = vpop.f32.mrf.mxu0
      %v2879 = vadd.f32 0.0, %v2878
      %2880 = vmatmul.f32.gmra.mxu0 %v2766
      %v2881 = vpop.f32.mrf.mxu0
      %v2882 = vadd.f32 0.0, %v2881
      %2883 = vmatmul.f32.gmra.mxu0 %v2769
      %v2884 = vpop.f32.mrf.mxu0
      %v2885 = vadd.f32 0.0, %v2884
      %2886 = vmatmul.f32.gmra.mxu0 %v2772
      %v2887 = vpop.f32.mrf.mxu0
      %v2888 = vadd.f32 0.0, %v2887
      %2889 = vmatmul.f32.gmra.mxu0 %v2775
      %v2890 = vpop.f32.mrf.mxu0
      %v2891 = vadd.f32 0.0, %v2890
      %2892 = vmatmul.f32.gmra.mxu0 %v2778
      %v2893 = vpop.f32.mrf.mxu0
      %v2894 = vadd.f32 0.0, %v2893
      %2895 = vmatmul.f32.gmra.mxu0 %v2781
      %v2896 = vpop.f32.mrf.mxu0
      %v2897 = vadd.f32 0.0, %v2896
      %2898 = vmatmul.f32.gmra.mxu0 %v2784
      %v2899 = vpop.f32.mrf.mxu0
      %v2900 = vadd.f32 0.0, %v2899
      %2901 = vmatmul.f32.gmra.mxu0 %v2787
      %v2902 = vpop.f32.mrf.mxu0
      %v2903 = vadd.f32 0.0, %v2902
      %2904 = vmatmul.f32.gmra.mxu0 %v2790
      %v2905 = vpop.f32.mrf.mxu0
      %v2906 = vadd.f32 0.0, %v2905
      %2907 = vmatmul.f32.gmra.mxu0 %v2793
      %v2908 = vpop.f32.mrf.mxu0
      %v2909 = vadd.f32 0.0, %v2908
      %2910 = vmatmul.f32.gmra.mxu0 %v2796
      %v2911 = vpop.f32.mrf.mxu0
      %v2912 = vadd.f32 0.0, %v2911
      %2913 = vmatmul.f32.gmra.mxu0 %v2799
      %v2914 = vpop.f32.mrf.mxu0
      %v2915 = vadd.f32 0.0, %v2914
      %2916 = vmatmul.f32.gmra.mxu0 %v2802
      %v2917 = vpop.f32.mrf.mxu0
      %v2918 = vadd.f32 0.0, %v2917
      %2919 = vmatmul.f32.gmra.mxu0 %v2805
      %v2920 = vpop.f32.mrf.mxu0
      %v2921 = vadd.f32 0.0, %v2920
      %2922 = vmatmul.f32.gmra.mxu0 %v2808
      %v2923 = vpop.f32.mrf.mxu0
      %v2924 = vadd.f32 0.0, %v2923
      %2925 = vmatmul.f32.gmra.mxu0 %v2811
      %v2926 = vpop.f32.mrf.mxu0
      %v2927 = vadd.f32 0.0, %v2926
      %2928 = vmatmul.f32.gmra.mxu0 %v2814
      %v2929 = vpop.f32.mrf.mxu0
      %v2930 = vadd.f32 0.0, %v2929
      %2931 = vmatmul.f32.gmra.mxu0 %v2817
      %v2932 = vpop.f32.mrf.mxu0
      %v2933 = vadd.f32 0.0, %v2932
      %2934 = vmatmul.f32.gmra.mxu0 %v2820
      %v2935 = vpop.f32.mrf.mxu0
      %v2936 = vadd.f32 0.0, %v2935
      %2937 = vmatmul.f32.gmra.mxu0 %v2823
      %v2938 = vpop.f32.mrf.mxu0
      %v2939 = vadd.f32 0.0, %v2938
      %2940 = vmatmul.f32.gmra.mxu0 %v2826
      %v2941 = vpop.f32.mrf.mxu0
      %v2942 = vadd.f32 0.0, %v2941
      %2943 = vmatmul.f32.gmra.mxu0 %v2829
      %v2944 = vpop.f32.mrf.mxu0
      %v2945 = vadd.f32 0.0, %v2944
      %2946 = vmatmul.f32.gmra.mxu0 %v2832
      %v2947 = vpop.f32.mrf.mxu0
      %v2948 = vadd.f32 0.0, %v2947
      %2949 = vmatmul.f32.gmra.mxu0 %v2835
      %v2950 = vpop.f32.mrf.mxu0
      %v2951 = vadd.f32 0.0, %v2950
      %2952 = vmatmul.f32.gmra.mxu0 %v2838
      %v2953 = vpop.f32.mrf.mxu0
      %v2954 = vadd.f32 0.0, %v2953
      %2955 = vmatmul.f32.gmra.mxu0 %v2841
      %v2956 = vpop.f32.mrf.mxu0
      %v2957 = vadd.f32 0.0, %v2956
      %2958 = vmatmul.f32.gmra.mxu0 %v2844
      %v2959 = vpop.f32.mrf.mxu0
      %v2960 = vadd.f32 0.0, %v2959
      %2961 = vmatmul.f32.gmra.mxu0 %v2847
      %v2962 = vpop.f32.mrf.mxu0
      %v2963 = vadd.f32 0.0, %v2962
      %2964 = vmatmul.f32.gmra.mxu0 %v2850
      %v2965 = vpop.f32.mrf.mxu0
      %v2966 = vadd.f32 0.0, %v2965
      %2967 = vdwg.mxu0
      %v2968 = vadd.f32 %v2690, %v2873
      %v2969 = vadd.f32 %v2691, %v2876
      %v2970 = vadd.f32 %v2692, %v2879
      %v2971 = vadd.f32 %v2693, %v2882
      %v2972 = vadd.f32 %v2694, %v2885
      %v2973 = vadd.f32 %v2695, %v2888
      %v2974 = vadd.f32 %v2696, %v2891
      %v2975 = vadd.f32 %v2697, %v2894
      %v2976 = vadd.f32 %v2698, %v2897
      %v2977 = vadd.f32 %v2699, %v2900
      %v2978 = vadd.f32 %v2700, %v2903
      %v2979 = vadd.f32 %v2701, %v2906
      %v2980 = vadd.f32 %v2702, %v2909
      %v2981 = vadd.f32 %v2703, %v2912
      %v2982 = vadd.f32 %v2704, %v2915
      %v2983 = vadd.f32 %v2705, %v2918
      %v2984 = vadd.f32 %v2706, %v2921
      %v2985 = vadd.f32 %v2707, %v2924
      %v2986 = vadd.f32 %v2708, %v2927
      %v2987 = vadd.f32 %v2709, %v2930
      %v2988 = vadd.f32 %v2710, %v2933
      %v2989 = vadd.f32 %v2711, %v2936
      %v2990 = vadd.f32 %v2712, %v2939
      %v2991 = vadd.f32 %v2713, %v2942
      %v2992 = vadd.f32 %v2714, %v2945
      %v2993 = vadd.f32 %v2715, %v2948
      %v2994 = vadd.f32 %v2716, %v2951
      %v2995 = vadd.f32 %v2717, %v2954
      %v2996 = vadd.f32 %v2718, %v2957
      %v2997 = vadd.f32 %v2719, %v2960
      %v2998 = vadd.f32 %v2720, %v2963
      %v2999 = vadd.f32 %v2721, %v2966
      %v3000 = vld [vmem:[%s5] sm:$0x1]
      %v3002 = vperm.slane %v3000, 0
      %v3004 = vadd.f32 %v2968, %v3002
      %v3005 = vadd.f32 %v2969, %v3002
      %v3006 = vadd.f32 %v2970, %v3002
      %v3007 = vadd.f32 %v2971, %v3002
      %v3008 = vadd.f32 %v2972, %v3002
      %v3009 = vadd.f32 %v2973, %v3002
      %v3010 = vadd.f32 %v2974, %v3002
      %v3011 = vadd.f32 %v2975, %v3002
      %v3012 = vadd.f32 %v2976, %v3002
      %v3013 = vadd.f32 %v2977, %v3002
      %v3014 = vadd.f32 %v2978, %v3002
      %v3015 = vadd.f32 %v2979, %v3002
      %v3016 = vadd.f32 %v2980, %v3002
      %v3017 = vadd.f32 %v2981, %v3002
      %v3018 = vadd.f32 %v2982, %v3002
      %v3019 = vadd.f32 %v2983, %v3002
      %v3020 = vadd.f32 %v2984, %v3002
      %v3021 = vadd.f32 %v2985, %v3002
      %v3022 = vadd.f32 %v2986, %v3002
      %v3023 = vadd.f32 %v2987, %v3002
      %v3024 = vadd.f32 %v2988, %v3002
      %v3025 = vadd.f32 %v2989, %v3002
      %v3026 = vadd.f32 %v2990, %v3002
      %v3027 = vadd.f32 %v2991, %v3002
      %v3028 = vadd.f32 %v2992, %v3002
      %v3029 = vadd.f32 %v2993, %v3002
      %v3030 = vadd.f32 %v2994, %v3002
      %v3031 = vadd.f32 %v2995, %v3002
      %v3032 = vadd.f32 %v2996, %v3002
      %v3033 = vadd.f32 %v2997, %v3002
      %v3034 = vadd.f32 %v2998, %v3002
      %v3035 = vadd.f32 %v2999, %v3002
      %v3036 = vld [vmem:[%s266] sm:$0xff]
      %v3037 = vld [vmem:[%s266 + $0x8] sm:$0xff]
      %v3038 = vld [vmem:[%s266 + $0x10] sm:$0xff]
      %v3039 = vld [vmem:[%s266 + $0x18] sm:$0xff]
      %v3040 = vld [vmem:[%s266 + $0x20] sm:$0xff]
      %v3041 = vld [vmem:[%s266 + $0x28] sm:$0xff]
      %v3042 = vld [vmem:[%s266 + $0x30] sm:$0xff]
      %v3043 = vld [vmem:[%s266 + $0x38] sm:$0xff]
      %v3044 = vld [vmem:[%s266 + $0x40] sm:$0xff]
      %v3045 = vld [vmem:[%s266 + $0x48] sm:$0xff]
      %v3046 = vld [vmem:[%s266 + $0x50] sm:$0xff]
      %v3047 = vld [vmem:[%s266 + $0x58] sm:$0xff]
      %v3048 = vld [vmem:[%s266 + $0x60] sm:$0xff]
      %v3049 = vld [vmem:[%s266 + $0x68] sm:$0xff]
      %v3050 = vld [vmem:[%s266 + $0x70] sm:$0xff]
      %v3051 = vld [vmem:[%s266 + $0x78] sm:$0xff]
      %v3052 = vld [vmem:[%s266 + $0x80] sm:$0xff]
      %v3053 = vld [vmem:[%s266 + $0x88] sm:$0xff]
      %v3054 = vld [vmem:[%s266 + $0x90] sm:$0xff]
      %v3055 = vld [vmem:[%s266 + $0x98] sm:$0xff]
      %v3056 = vld [vmem:[%s266 + $0xa0] sm:$0xff]
      %v3057 = vld [vmem:[%s266 + $0xa8] sm:$0xff]
      %v3058 = vld [vmem:[%s266 + $0xb0] sm:$0xff]
      %v3059 = vld [vmem:[%s266 + $0xb8] sm:$0xff]
      %v3060 = vld [vmem:[%s266 + $0xc0] sm:$0xff]
      %v3061 = vld [vmem:[%s266 + $0xc8] sm:$0xff]
      %v3062 = vld [vmem:[%s266 + $0xd0] sm:$0xff]
      %v3063 = vld [vmem:[%s266 + $0xd8] sm:$0xff]
      %v3064 = vld [vmem:[%s266 + $0xe0] sm:$0xff]
      %v3065 = vld [vmem:[%s266 + $0xe8] sm:$0xff]
      %v3066 = vld [vmem:[%s266 + $0xf0] sm:$0xff]
      %v3067 = vld [vmem:[%s266 + $0xf8] sm:$0xff]
      %v3068 = vadd.f32 %v3004, %v3036
      %v3069 = vadd.f32 %v3005, %v3037
      %v3070 = vadd.f32 %v3006, %v3038
      %v3071 = vadd.f32 %v3007, %v3039
      %v3072 = vadd.f32 %v3008, %v3040
      %v3073 = vadd.f32 %v3009, %v3041
      %v3074 = vadd.f32 %v3010, %v3042
      %v3075 = vadd.f32 %v3011, %v3043
      %v3076 = vadd.f32 %v3012, %v3044
      %v3077 = vadd.f32 %v3013, %v3045
      %v3078 = vadd.f32 %v3014, %v3046
      %v3079 = vadd.f32 %v3015, %v3047
      %v3080 = vadd.f32 %v3016, %v3048
      %v3081 = vadd.f32 %v3017, %v3049
      %v3082 = vadd.f32 %v3018, %v3050
      %v3083 = vadd.f32 %v3019, %v3051
      %v3084 = vadd.f32 %v3020, %v3052
      %v3085 = vadd.f32 %v3021, %v3053
      %v3086 = vadd.f32 %v3022, %v3054
      %v3087 = vadd.f32 %v3023, %v3055
      %v3088 = vadd.f32 %v3024, %v3056
      %v3089 = vadd.f32 %v3025, %v3057
      %v3090 = vadd.f32 %v3026, %v3058
      %v3091 = vadd.f32 %v3027, %v3059
      %v3092 = vadd.f32 %v3028, %v3060
      %v3093 = vadd.f32 %v3029, %v3061
      %v3094 = vadd.f32 %v3030, %v3062
      %v3095 = vadd.f32 %v3031, %v3063
      %v3096 = vadd.f32 %v3032, %v3064
      %v3097 = vadd.f32 %v3033, %v3065
      %v3098 = vadd.f32 %v3034, %v3066
      %v3099 = vadd.f32 %v3035, %v3067
      %3100 = vst.msk [vmem:[%s271] sm:$0xff] %vm472, %v3068
      %3101 = vst.msk [vmem:[%s271 + $0x8] sm:$0xff] %vm472, %v3069
      %3102 = vst.msk [vmem:[%s271 + $0x10] sm:$0xff] %vm472, %v3070
      %3103 = vst.msk [vmem:[%s271 + $0x18] sm:$0xff] %vm472, %v3071
      %3104 = vst.msk [vmem:[%s271 + $0x20] sm:$0xff] %vm472, %v3072
      %3105 = vst.msk [vmem:[%s271 + $0x28] sm:$0xff] %vm472, %v3073
      %3106 = vst.msk [vmem:[%s271 + $0x30] sm:$0xff] %vm472, %v3074
      %3107 = vst.msk [vmem:[%s271 + $0x38] sm:$0xff] %vm472, %v3075
      %3108 = vst.msk [vmem:[%s271 + $0x40] sm:$0xff] %vm472, %v3076
      %3109 = vst.msk [vmem:[%s271 + $0x48] sm:$0xff] %vm472, %v3077
      %3110 = vst.msk [vmem:[%s271 + $0x50] sm:$0xff] %vm472, %v3078
      %3111 = vst.msk [vmem:[%s271 + $0x58] sm:$0xff] %vm472, %v3079
      %3112 = vst.msk [vmem:[%s271 + $0x60] sm:$0xff] %vm472, %v3080
      %3113 = vst.msk [vmem:[%s271 + $0x68] sm:$0xff] %vm472, %v3081
      %3114 = vst.msk [vmem:[%s271 + $0x70] sm:$0xff] %vm472, %v3082
      %3115 = vst.msk [vmem:[%s271 + $0x78] sm:$0xff] %vm472, %v3083
      %3116 = vst.msk [vmem:[%s271 + $0x80] sm:$0xff] %vm472, %v3084
      %3117 = vst.msk [vmem:[%s271 + $0x88] sm:$0xff] %vm472, %v3085
      %3118 = vst.msk [vmem:[%s271 + $0x90] sm:$0xff] %vm472, %v3086
      %3119 = vst.msk [vmem:[%s271 + $0x98] sm:$0xff] %vm472, %v3087
      %3120 = vst.msk [vmem:[%s271 + $0xa0] sm:$0xff] %vm472, %v3088
      %3121 = vst.msk [vmem:[%s271 + $0xa8] sm:$0xff] %vm472, %v3089
      %3122 = vst.msk [vmem:[%s271 + $0xb0] sm:$0xff] %vm472, %v3090
      %3123 = vst.msk [vmem:[%s271 + $0xb8] sm:$0xff] %vm472, %v3091
      %3124 = vst.msk [vmem:[%s271 + $0xc0] sm:$0xff] %vm472, %v3092
      %3125 = vst.msk [vmem:[%s271 + $0xc8] sm:$0xff] %vm472, %v3093
      %3126 = vst.msk [vmem:[%s271 + $0xd0] sm:$0xff] %vm472, %v3094
      %3127 = vst.msk [vmem:[%s271 + $0xd8] sm:$0xff] %vm472, %v3095
      %3128 = vst.msk [vmem:[%s271 + $0xe0] sm:$0xff] %vm472, %v3096
      %3129 = vst.msk [vmem:[%s271 + $0xe8] sm:$0xff] %vm472, %v3097
      %3130 = vst.msk [vmem:[%s271 + $0xf0] sm:$0xff] %vm472, %v3098
      %3131 = vst.msk [vmem:[%s271 + $0xf8] sm:$0xff] %vm472, %v3099
      %p3132 = scmp.lt.s32.totalorder %s17, 1
      %s3133 = scalar_select %p3132, %s17, 1
      %s3134 = smul.addr %s3133, 32
      %s3135 = smul.addr %s3134, 8
      %s3136 = scalar_lea.vmem %s6, %s3135
      // Predicated region
      $region45: #{_decoder_block_forward.5} parent=43 // pred_check
        %p3137 = pneg %p171
      $region46: #{_decoder_block_forward.5} parent=43 // pred_check_branch
        %3139 = sbr.rel (%p3137) target = $region48
      $region47: #{_decoder_block_forward.5} parent=43 // pred_region
        _
      $region48: #{_decoder_block_forward.5} parent=43 // pred_fallthru
        _
    $region44: #{_decoder_block_forward.5} parent=5 // pred_fallthru
      _
    %p3140 = scmp.le.s32.totalorder 2, %s12
    // Predicated region
    $region49: #{_decoder_block_forward.5} parent=5 // pred_check
      %p3141 = pneg %p3140
    $region50: #{_decoder_block_forward.5} parent=5 // pred_check_branch
      %3143 = sbr.rel (%p3141) target = $region52
    $region51: #{_decoder_block_forward.5} parent=5 // pred_region
      %s3144 = ssub.s32 %s12, 2
      // Predicated region
      $region53: #{_decoder_block_forward.5} parent=51 // pred_check
        %p3145 = pneg %p177
      $region54: #{_decoder_block_forward.5} parent=51 // pred_check_branch
        %3147 = sbr.rel (%p3145) target = $region56
      $region55: #{_decoder_block_forward.5} parent=51 // pred_region
        %p3148 = scmp.lt.s32.totalorder %s18, 1
        %s3149 = scalar_select %p3148, %s18, 1
        %s3150 = smul.addr %s3149, 32
        %s3151 = smul.addr %s3150, 8
        %s3152 = scalar_lea.vmem %s6, %s3151
      $region56: #{_decoder_block_forward.5} parent=51 // pred_fallthru
        _
    $region52: #{_decoder_block_forward.5} parent=5 // pred_fallthru
      _
  $region6: #{_decoder_block_forward.5} parent=0 // loop_footer
    %s16 = sadd.s32 1, %s12
  $region7: #{_decoder_block_forward.5} parent=0 // loop_footer_branch
    %11 = sbr.rel target = $region3
  $region8: #{_decoder_block_forward.5} parent=0 // loop_exit
    _

// kernel: _decoder_block_forward.4
$region0: #{_decoder_block_forward.4}
  #allocation0 [shape = 'u32[]', space=smem, size = 0x4, offset = 0x4, fixed_abs, tag = 'smem constant byte address 0x4 - core index']
  #allocation1 [shape = 'u32[72,128]{1,0:T(1,128)}', space=vmem, size = 0x9000, scoped, tag = 'internal scratch']
  #allocation2 [shape = 'f32[18,18,12]{2,1,0:T(8,128)}', space=vmem, size = 0x36000, scoped, tag = 'scratch operand']
  %s0 = inlined_call_operand.vmem [shape: f32[2,16,16,8], index: 0, kind: input, shape index: {}]
  %s1 = inlined_call_operand.vmem [shape: f32[2,16,16,4], index: 1, kind: input, shape index: {}]
  %s2 = inlined_call_operand.vmem [shape: f32[1,8], index: 2, kind: input, shape index: {}]
  %s3 = inlined_call_operand.vmem [shape: f32[1,8], index: 3, kind: input, shape index: {}]
  %s4 = inlined_call_operand.vmem [shape: f32[1,4], index: 4, kind: input, shape index: {}]
  %s5 = inlined_call_operand.vmem [shape: f32[1,4], index: 5, kind: input, shape index: {}]
  %s6 = inlined_call_operand.vmem [shape: f32[3,3,12,4], index: 6, kind: input, shape index: {}]
  %s7 = inlined_call_operand.vmem [shape: f32[1,4], index: 7, kind: input, shape index: {}]
  %s8 = inlined_call_operand.vmem [shape: f32[8,4], index: 8, kind: input, shape index: {}]
  %s9 = inlined_call_operand.vmem [shape: f32[4,4], index: 9, kind: input, shape index: {}]
  %s10 = inlined_call_operand.vmem [shape: f32[1,4], index: 10, kind: input, shape index: {}]
  %s11 = inlined_call_operand.vmem [shape: f32[2,16,16,4], index: 11, kind: output, shape index: {0}]
  %s12 = inlined_call_operand.vmem [shape: f32[2,16,16,4], index: 12, kind: output, shape index: {1}]
  %s13 = inlined_call_operand.vmem [shape: f32[2,2,4], index: 13, kind: output, shape index: {2}]
  %14 = xla_tuple %s11, %s12, %s13
  %s15 = sld [smem:[#allocation0]]
  $region93: #{_decoder_block_forward.4} parent=0
    _
  %s17 = ssub.s32 1, %s15
  %s18 = scalar_select 0, %s17, %s15
  loop: start=0, step=1, limit=4
  $region2: #{_decoder_block_forward.4} parent=0 // loop_pre_header
    _
  $region3: #{_decoder_block_forward.4} parent=0 // loop_header
    %s20 = sphi 0, %s24
    %p21 = scmp.ge.s32.totalorder %s20, 4
    %s30 = sphi 0, %s32
    %s33 = sphi 0, %s30
    %s34 = sphi 0, %s33
    %s50 = sphi 0, %s34
    %s56 = sphi 0, %s58
    %s59 = sphi 0, %s56
    %s60 = sphi 0, %s59
    %s76 = sphi 0, %s60
    %s80 = sphi 0, %s80
    %s82 = sphi 0, %s80
    %s83 = sphi 0, %s82
    %s97 = sphi 0, %s83
    %s101 = sphi 0, %s101
    %s103 = sphi 0, %s101
    %s104 = sphi 0, %s103
    %s118 = sphi 0, %s104
    %s122 = sphi 0, %s122
    %s124 = sphi 0, %s122
    %s125 = sphi 0, %s124
    %s139 = sphi 0, %s125
    %s143 = sphi 0, %s143
    %s145 = sphi 0, %s143
    %s146 = sphi 0, %s145
    %s160 = sphi 0, %s146
    %s164 = sphi 0, %s164
    %s166 = sphi 0, %s164
    %s167 = sphi 0, %s166
    %s181 = sphi 0, %s167
    %s185 = sphi 0, %s185
    %s187 = sphi 0, %s185
    %s188 = sphi 0, %s187
    %s202 = sphi 0, %s188
    %s206 = sphi 0, %s206
    %s208 = sphi 0, %s206
    %s209 = sphi 0, %s208
    %s223 = sphi 0, %s209
    %s227 = sphi 0, %s227
    %s229 = sphi 0, %s227
    %s230 = sphi 0, %s229
    %s244 = sphi 0, %s230
    %s248 = sphi 0, %s248
    %s250 = sphi 0, %s248
    %s251 = sphi 0, %s250
    %s265 = sphi 0, %s251
    %s271 = sphi 0, %s273
    %s274 = sphi 0, %s271
    %s275 = sphi 0, %s274
    %s291 = sphi 0, %s275
    %s297 = sphi 0, %s299
    %s300 = sphi 0, %s297
    %s301 = sphi 0, %s300
    %s317 = sphi 0, %s301
    %s323 = sphi 0, %s325
    %s326 = sphi 0, %s323
    %s327 = sphi 0, %s326
    %s343 = sphi 0, %s327
  $region4: #{_decoder_block_forward.4} parent=0 // loop_header_branch
    %23 = sbr.rel (%p21) target = $region8
  $region5: #{_decoder_block_forward.4} parent=0 // loop_body
    %s25 = ssub.s32 %s20, 1
    %s26 = ssub.s32 %s20, 2
    %s27 = sadd.s32 %s20, 1
    %s28 = ssub.s32 %s20, %s27
    %p29 = scmp.eq.s32.totalorder %s28, 0
    %s31 = sadd.s32 %s30, 1
    %s32 = scalar_select %p29, %s30, %s31
    %p35 = pneg %p29
    %p36 = scmp.eq.s32.totalorder %s20, 1
    %p37 = por %p35, %p36
    %p38 = scmp.ne.s32.totalorder %s30, %s33
    %p39 = scmp.eq.s32.totalorder %s20, 0
    %p40 = por %p38, %p39
    %p41 = scmp.ne.s32.totalorder %s30, %s33
    %p42 = scmp.eq.s32.totalorder %s25, 1
    %p43 = por %p41, %p42
    %p44 = scmp.ne.s32.totalorder %s33, %s34
    %p45 = scmp.eq.s32.totalorder %s25, 0
    %p46 = por %p44, %p45
    %p47 = scmp.ne.s32.totalorder %s33, %s34
    %p48 = scmp.eq.s32.totalorder %s26, 1
    %p49 = por %p47, %p48
    %p51 = scmp.ne.s32.totalorder %s34, %s50
    %p52 = scmp.eq.s32.totalorder %s26, 0
    %p53 = por %p51, %p52
    %s54 = ssub.s32 %s20, %s27
    %p55 = scmp.eq.s32.totalorder %s54, 0
    %s57 = sadd.s32 %s56, 1
    %s58 = scalar_select %p55, %s56, %s57
    %p61 = pneg %p55
    %p62 = scmp.eq.s32.totalorder %s20, 1
    %p63 = por %p61, %p62
    %p64 = scmp.ne.s32.totalorder %s56, %s59
    %p65 = scmp.eq.s32.totalorder %s20, 0
    %p66 = por %p64, %p65
    %p67 = scmp.ne.s32.totalorder %s56, %s59
    %p68 = scmp.eq.s32.totalorder %s25, 1
    %p69 = por %p67, %p68
    %p70 = scmp.ne.s32.totalorder %s59, %s60
    %p71 = scmp.eq.s32.totalorder %s25, 0
    %p72 = por %p70, %p71
    %p73 = scmp.ne.s32.totalorder %s59, %s60
    %p74 = scmp.eq.s32.totalorder %s26, 1
    %p75 = por %p73, %p74
    %p77 = scmp.ne.s32.totalorder %s60, %s76
    %p78 = scmp.eq.s32.totalorder %s26, 0
    %p79 = por %p77, %p78
    %s81 = sadd.s32 %s80, 1
    %p84 = scmp.eq.s32.totalorder %s20, 1
    %p85 = scmp.ne.s32.totalorder %s80, %s82
    %p86 = scmp.eq.s32.totalorder %s20, 0
    %p87 = por %p85, %p86
    %p88 = scmp.ne.s32.totalorder %s80, %s82
    %p89 = scmp.eq.s32.totalorder %s25, 1
    %p90 = por %p88, %p89
    %p91 = scmp.ne.s32.totalorder %s82, %s83
    %p92 = scmp.eq.s32.totalorder %s25, 0
    %p93 = por %p91, %p92
    %p94 = scmp.ne.s32.totalorder %s82, %s83
    %p95 = scmp.eq.s32.totalorder %s26, 1
    %p96 = por %p94, %p95
    %p98 = scmp.ne.s32.totalorder %s83, %s97
    %p99 = scmp.eq.s32.totalorder %s26, 0
    %p100 = por %p98, %p99
    %s102 = sadd.s32 %s101, 1
    %p105 = scmp.eq.s32.totalorder %s20, 1
    %p106 = scmp.ne.s32.totalorder %s101, %s103
    %p107 = scmp.eq.s32.totalorder %s20, 0
    %p108 = por %p106, %p107
    %p109 = scmp.ne.s32.totalorder %s101, %s103
    %p110 = scmp.eq.s32.totalorder %s25, 1
    %p111 = por %p109, %p110
    %p112 = scmp.ne.s32.totalorder %s103, %s104
    %p113 = scmp.eq.s32.totalorder %s25, 0
    %p114 = por %p112, %p113
    %p115 = scmp.ne.s32.totalorder %s103, %s104
    %p116 = scmp.eq.s32.totalorder %s26, 1
    %p117 = por %p115, %p116
    %p119 = scmp.ne.s32.totalorder %s104, %s118
    %p120 = scmp.eq.s32.totalorder %s26, 0
    %p121 = por %p119, %p120
    %s123 = sadd.s32 %s122, 1
    %p126 = scmp.eq.s32.totalorder %s20, 1
    %p127 = scmp.ne.s32.totalorder %s122, %s124
    %p128 = scmp.eq.s32.totalorder %s20, 0
    %p129 = por %p127, %p128
    %p130 = scmp.ne.s32.totalorder %s122, %s124
    %p131 = scmp.eq.s32.totalorder %s25, 1
    %p132 = por %p130, %p131
    %p133 = scmp.ne.s32.totalorder %s124, %s125
    %p134 = scmp.eq.s32.totalorder %s25, 0
    %p135 = por %p133, %p134
    %p136 = scmp.ne.s32.totalorder %s124, %s125
    %p137 = scmp.eq.s32.totalorder %s26, 1
    %p138 = por %p136, %p137
    %p140 = scmp.ne.s32.totalorder %s125, %s139
    %p141 = scmp.eq.s32.totalorder %s26, 0
    %p142 = por %p140, %p141
    %s144 = sadd.s32 %s143, 1
    %p147 = scmp.eq.s32.totalorder %s20, 1
    %p148 = scmp.ne.s32.totalorder %s143, %s145
    %p149 = scmp.eq.s32.totalorder %s20, 0
    %p150 = por %p148, %p149
    %p151 = scmp.ne.s32.totalorder %s143, %s145
    %p152 = scmp.eq.s32.totalorder %s25, 1
    %p153 = por %p151, %p152
    %p154 = scmp.ne.s32.totalorder %s145, %s146
    %p155 = scmp.eq.s32.totalorder %s25, 0
    %p156 = por %p154, %p155
    %p157 = scmp.ne.s32.totalorder %s145, %s146
    %p158 = scmp.eq.s32.totalorder %s26, 1
    %p159 = por %p157, %p158
    %p161 = scmp.ne.s32.totalorder %s146, %s160
    %p162 = scmp.eq.s32.totalorder %s26, 0
    %p163 = por %p161, %p162
    %s165 = sadd.s32 %s164, 1
    %p168 = scmp.eq.s32.totalorder %s20, 1
    %p169 = scmp.ne.s32.totalorder %s164, %s166
    %p170 = scmp.eq.s32.totalorder %s20, 0
    %p171 = por %p169, %p170
    %p172 = scmp.ne.s32.totalorder %s164, %s166
    %p173 = scmp.eq.s32.totalorder %s25, 1
    %p174 = por %p172, %p173
    %p175 = scmp.ne.s32.totalorder %s166, %s167
    %p176 = scmp.eq.s32.totalorder %s25, 0
    %p177 = por %p175, %p176
    %p178 = scmp.ne.s32.totalorder %s166, %s167
    %p179 = scmp.eq.s32.totalorder %s26, 1
    %p180 = por %p178, %p179
    %p182 = scmp.ne.s32.totalorder %s167, %s181
    %p183 = scmp.eq.s32.totalorder %s26, 0
    %p184 = por %p182, %p183
    %s186 = sadd.s32 %s185, 1
    %p189 = scmp.eq.s32.totalorder %s20, 1
    %p190 = scmp.ne.s32.totalorder %s185, %s187
    %p191 = scmp.eq.s32.totalorder %s20, 0
    %p192 = por %p190, %p191
    %p193 = scmp.ne.s32.totalorder %s185, %s187
    %p194 = scmp.eq.s32.totalorder %s25, 1
    %p195 = por %p193, %p194
    %p196 = scmp.ne.s32.totalorder %s187, %s188
    %p197 = scmp.eq.s32.totalorder %s25, 0
    %p198 = por %p196, %p197
    %p199 = scmp.ne.s32.totalorder %s187, %s188
    %p200 = scmp.eq.s32.totalorder %s26, 1
    %p201 = por %p199, %p200
    %p203 = scmp.ne.s32.totalorder %s188, %s202
    %p204 = scmp.eq.s32.totalorder %s26, 0
    %p205 = por %p203, %p204
    %s207 = sadd.s32 %s206, 1
    %p210 = scmp.eq.s32.totalorder %s20, 1
    %p211 = scmp.ne.s32.totalorder %s206, %s208
    %p212 = scmp.eq.s32.totalorder %s20, 0
    %p213 = por %p211, %p212
    %p214 = scmp.ne.s32.totalorder %s206, %s208
    %p215 = scmp.eq.s32.totalorder %s25, 1
    %p216 = por %p214, %p215
    %p217 = scmp.ne.s32.totalorder %s208, %s209
    %p218 = scmp.eq.s32.totalorder %s25, 0
    %p219 = por %p217, %p218
    %p220 = scmp.ne.s32.totalorder %s208, %s209
    %p221 = scmp.eq.s32.totalorder %s26, 1
    %p222 = por %p220, %p221
    %p224 = scmp.ne.s32.totalorder %s209, %s223
    %p225 = scmp.eq.s32.totalorder %s26, 0
    %p226 = por %p224, %p225
    %s228 = sadd.s32 %s227, 1
    %p231 = scmp.eq.s32.totalorder %s20, 1
    %p232 = scmp.ne.s32.totalorder %s227, %s229
    %p233 = scmp.eq.s32.totalorder %s20, 0
    %p234 = por %p232, %p233
    %p235 = scmp.ne.s32.totalorder %s227, %s229
    %p236 = scmp.eq.s32.totalorder %s25, 1
    %p237 = por %p235, %p236
    %p238 = scmp.ne.s32.totalorder %s229, %s230
    %p239 = scmp.eq.s32.totalorder %s25, 0
    %p240 = por %p238, %p239
    %p241 = scmp.ne.s32.totalorder %s229, %s230
    %p242 = scmp.eq.s32.totalorder %s26, 1
    %p243 = por %p241, %p242
    %p245 = scmp.ne.s32.totalorder %s230, %s244
    %p246 = scmp.eq.s32.totalorder %s26, 0
    %p247 = por %p245, %p246
    %s249 = sadd.s32 %s248, 1
    %p252 = scmp.eq.s32.totalorder %s20, 1
    %p253 = scmp.ne.s32.totalorder %s248, %s250
    %p254 = scmp.eq.s32.totalorder %s20, 0
    %p255 = por %p253, %p254
    %p256 = scmp.ne.s32.totalorder %s248, %s250
    %p257 = scmp.eq.s32.totalorder %s25, 1
    %p258 = por %p256, %p257
    %p259 = scmp.ne.s32.totalorder %s250, %s251
    %p260 = scmp.eq.s32.totalorder %s25, 0
    %p261 = por %p259, %p260
    %p262 = scmp.ne.s32.totalorder %s250, %s251
    %p263 = scmp.eq.s32.totalorder %s26, 1
    %p264 = por %p262, %p263
    %p266 = scmp.ne.s32.totalorder %s251, %s265
    %p267 = scmp.eq.s32.totalorder %s26, 0
    %p268 = por %p266, %p267
    %s269 = ssub.s32 %s20, %s27
    %p270 = scmp.eq.s32.totalorder %s269, 0
    %s272 = sadd.s32 %s271, 1
    %s273 = scalar_select %p270, %s271, %s272
    %p276 = pneg %p270
    %p277 = scmp.eq.s32.totalorder %s20, 1
    %p278 = por %p276, %p277
    %p279 = scmp.ne.s32.totalorder %s271, %s274
    %p280 = scmp.eq.s32.totalorder %s20, 0
    %p281 = por %p279, %p280
    %p282 = scmp.ne.s32.totalorder %s271, %s274
    %p283 = scmp.eq.s32.totalorder %s25, 1
    %p284 = por %p282, %p283
    %p285 = scmp.ne.s32.totalorder %s274, %s275
    %p286 = scmp.eq.s32.totalorder %s25, 0
    %p287 = por %p285, %p286
    %p288 = scmp.ne.s32.totalorder %s274, %s275
    %p289 = scmp.eq.s32.totalorder %s26, 1
    %p290 = por %p288, %p289
    %p292 = scmp.ne.s32.totalorder %s275, %s291
    %p293 = scmp.eq.s32.totalorder %s26, 0
    %p294 = por %p292, %p293
    %s295 = ssub.s32 %s20, %s27
    %p296 = scmp.eq.s32.totalorder %s295, 0
    %s298 = sadd.s32 %s297, 1
    %s299 = scalar_select %p296, %s297, %s298
    %p302 = pneg %p296
    %p303 = scmp.eq.s32.totalorder %s20, 1
    %p304 = por %p302, %p303
    %p305 = scmp.ne.s32.totalorder %s297, %s300
    %p306 = scmp.eq.s32.totalorder %s20, 0
    %p307 = por %p305, %p306
    %p308 = scmp.ne.s32.totalorder %s297, %s300
    %p309 = scmp.eq.s32.totalorder %s25, 1
    %p310 = por %p308, %p309
    %p311 = scmp.ne.s32.totalorder %s300, %s301
    %p312 = scmp.eq.s32.totalorder %s25, 0
    %p313 = por %p311, %p312
    %p314 = scmp.ne.s32.totalorder %s300, %s301
    %p315 = scmp.eq.s32.totalorder %s26, 1
    %p316 = por %p314, %p315
    %p318 = scmp.ne.s32.totalorder %s301, %s317
    %p319 = scmp.eq.s32.totalorder %s26, 0
    %p320 = por %p318, %p319
    %s321 = ssub.s32 %s20, %s27
    %p322 = scmp.eq.s32.totalorder %s321, 0
    %s324 = sadd.s32 %s323, 1
    %s325 = scalar_select %p322, %s323, %s324
    %p328 = pneg %p322
    %p329 = scmp.eq.s32.totalorder %s20, 1
    %p330 = por %p328, %p329
    %p331 = scmp.ne.s32.totalorder %s323, %s326
    %p332 = scmp.eq.s32.totalorder %s20, 0
    %p333 = por %p331, %p332
    %p334 = scmp.ne.s32.totalorder %s323, %s326
    %p335 = scmp.eq.s32.totalorder %s25, 1
    %p336 = por %p334, %p335
    %p337 = scmp.ne.s32.totalorder %s326, %s327
    %p338 = scmp.eq.s32.totalorder %s25, 0
    %p339 = por %p337, %p338
    %p340 = scmp.ne.s32.totalorder %s326, %s327
    %p341 = scmp.eq.s32.totalorder %s26, 1
    %p342 = por %p340, %p341
    %p344 = scmp.ne.s32.totalorder %s327, %s343
    %p345 = scmp.eq.s32.totalorder %s26, 0
    %p346 = por %p344, %p345
    %p347 = scmp.le.s32.totalorder 1, %s20
    %p348 = scmp.lt.s32.totalorder %s20, 3
    %p349 = pnand %p347, %p348
    %p350 = pneg %p349
    // Predicated region
    $region9: #{_decoder_block_forward.4} parent=5 // pred_check
      _
    $region10: #{_decoder_block_forward.4} parent=5 // pred_check_branch
      %352 = sbr.rel (%p349) target = $region12
    $region11: #{_decoder_block_forward.4} parent=5 // pred_region
      %s353 = ssub.s32 %s20, 1
      // Predicated region
      $region13: #{_decoder_block_forward.4} parent=11 // pred_check
        %p354 = pneg %p93
      $region14: #{_decoder_block_forward.4} parent=11 // pred_check_branch
        %356 = sbr.rel (%p354) target = $region16
      $region15: #{_decoder_block_forward.4} parent=11 // pred_region
        _
      $region16: #{_decoder_block_forward.4} parent=11 // pred_fallthru
        _
      // Predicated region
      $region17: #{_decoder_block_forward.4} parent=11 // pred_check
        %p357 = pneg %p114
      $region18: #{_decoder_block_forward.4} parent=11 // pred_check_branch
        %359 = sbr.rel (%p357) target = $region20
      $region19: #{_decoder_block_forward.4} parent=11 // pred_region
        _
      $region20: #{_decoder_block_forward.4} parent=11 // pred_fallthru
        _
      // Predicated region
      $region21: #{_decoder_block_forward.4} parent=11 // pred_check
        %p360 = pneg %p135
      $region22: #{_decoder_block_forward.4} parent=11 // pred_check_branch
        %362 = sbr.rel (%p360) target = $region24
      $region23: #{_decoder_block_forward.4} parent=11 // pred_region
        _
      $region24: #{_decoder_block_forward.4} parent=11 // pred_fallthru
        _
      // Predicated region
      $region25: #{_decoder_block_forward.4} parent=11 // pred_check
        %p363 = pneg %p156
      $region26: #{_decoder_block_forward.4} parent=11 // pred_check_branch
        %365 = sbr.rel (%p363) target = $region28
      $region27: #{_decoder_block_forward.4} parent=11 // pred_region
        _
      $region28: #{_decoder_block_forward.4} parent=11 // pred_fallthru
        _
      // Predicated region
      $region29: #{_decoder_block_forward.4} parent=11 // pred_check
        %p366 = pneg %p177
      $region30: #{_decoder_block_forward.4} parent=11 // pred_check_branch
        %368 = sbr.rel (%p366) target = $region32
      $region31: #{_decoder_block_forward.4} parent=11 // pred_region
        _
      $region32: #{_decoder_block_forward.4} parent=11 // pred_fallthru
        _
      // Predicated region
      $region33: #{_decoder_block_forward.4} parent=11 // pred_check
        %p369 = pneg %p198
      $region34: #{_decoder_block_forward.4} parent=11 // pred_check_branch
        %371 = sbr.rel (%p369) target = $region36
      $region35: #{_decoder_block_forward.4} parent=11 // pred_region
        _
      $region36: #{_decoder_block_forward.4} parent=11 // pred_fallthru
        _
      // Predicated region
      $region37: #{_decoder_block_forward.4} parent=11 // pred_check
        %p372 = pneg %p219
      $region38: #{_decoder_block_forward.4} parent=11 // pred_check_branch
        %374 = sbr.rel (%p372) target = $region40
      $region39: #{_decoder_block_forward.4} parent=11 // pred_region
        _
      $region40: #{_decoder_block_forward.4} parent=11 // pred_fallthru
        _
      // Predicated region
      $region41: #{_decoder_block_forward.4} parent=11 // pred_check
        %p375 = pneg %p240
      $region42: #{_decoder_block_forward.4} parent=11 // pred_check_branch
        %377 = sbr.rel (%p375) target = $region44
      $region43: #{_decoder_block_forward.4} parent=11 // pred_region
        _
      $region44: #{_decoder_block_forward.4} parent=11 // pred_fallthru
        _
      // Predicated region
      $region45: #{_decoder_block_forward.4} parent=11 // pred_check
        %p378 = pneg %p261
      $region46: #{_decoder_block_forward.4} parent=11 // pred_check_branch
        %380 = sbr.rel (%p378) target = $region48
      $region47: #{_decoder_block_forward.4} parent=11 // pred_region
        _
      $region48: #{_decoder_block_forward.4} parent=11 // pred_fallthru
        _
    $region12: #{_decoder_block_forward.4} parent=5 // pred_fallthru
      _
    %p381 = scmp.lt.s32.totalorder %s20, 2
    // Predicated region
    $region49: #{_decoder_block_forward.4} parent=5 // pred_check
      %p382 = pneg %p381
    $region50: #{_decoder_block_forward.4} parent=5 // pred_check_branch
      %384 = sbr.rel (%p382) target = $region52
    $region51: #{_decoder_block_forward.4} parent=5 // pred_region
      // Predicated region
      $region53: #{_decoder_block_forward.4} parent=51 // pred_check
        %p385 = pneg %p40
      $region54: #{_decoder_block_forward.4} parent=51 // pred_check_branch
        %387 = sbr.rel (%p385) target = $region56
      $region55: #{_decoder_block_forward.4} parent=51 // pred_region
        %p388 = scmp.lt.s32.totalorder %s20, 1
        %s389 = scalar_select %p388, %s20, 1
        %s390 = smul.addr %s389, 32
        %s391 = smul.addr %s390, 8
        %s392 = scalar_lea.vmem %s0, %s391
      $region56: #{_decoder_block_forward.4} parent=51 // pred_fallthru
        _
      // Predicated region
      $region57: #{_decoder_block_forward.4} parent=51 // pred_check
        %p393 = pneg %p66
      $region58: #{_decoder_block_forward.4} parent=51 // pred_check_branch
        %395 = sbr.rel (%p393) target = $region60
      $region59: #{_decoder_block_forward.4} parent=51 // pred_region
        %p396 = scmp.lt.s32.totalorder %s20, 1
        %s397 = scalar_select %p396, %s20, 1
        %s398 = smul.addr %s397, 32
        %s399 = smul.addr %s398, 8
        %s400 = scalar_lea.vmem %s1, %s399
      $region60: #{_decoder_block_forward.4} parent=51 // pred_fallthru
        _
    $region52: #{_decoder_block_forward.4} parent=5 // pred_fallthru
      _
    %p401 = scmp.le.s32.totalorder 1, %s20
    %p402 = scmp.lt.s32.totalorder %s20, 3
    %p403 = pnand %p401, %p402
    %p404 = pneg %p403
    // Predicated region
    $region61: #{_decoder_block_forward.4} parent=5 // pred_check
      _
    $region62: #{_decoder_block_forward.4} parent=5 // pred_check_branch
      %406 = sbr.rel (%p403) target = $region64
    $region63: #{_decoder_block_forward.4} parent=5 // pred_region
      %s407 = ssub.s32 %s20, 1
      %p408 = scmp.lt.s32.totalorder %s25, 1
      %s409 = scalar_select %p408, %s25, 1
      %s410 = smul.addr %s409, 32
      %s411 = smul.addr %s410, 8
      %s412 = scalar_lea.vmem %s0, %s411
      %p413 = pneg %p46
      %p414 = pneg %p43
      %p415 = scmp.lt.s32.totalorder %s25, 1
      %s416 = scalar_select %p415, %s25, 1
      %s417 = smul.addr %s416, 32
      %s418 = smul.addr %s417, 8
      %s419 = scalar_lea.vmem %s1, %s418
      %p420 = pneg %p72
      %p421 = pneg %p69
      %p422 = pneg %p93
      %p423 = pneg %p90
      %p424 = pneg %p114
      %p425 = pneg %p111
      %p426 = pneg %p135
      %p427 = pneg %p132
      %p428 = pneg %p156
      %p429 = pneg %p153
      %p430 = pneg %p177
      %p431 = pneg %p174
      %p432 = pneg %p198
      %p433 = pneg %p195
      %p434 = pneg %p219
      %p435 = pneg %p216
      %p436 = pneg %p240
      %p437 = pneg %p237
      %p438 = pneg %p261
      %p439 = pneg %p258
      %p440 = pneg %p287
      %p441 = pneg %p284
      %p442 = scmp.lt.s32.totalorder %s25, 1
      %s443 = scalar_select %p442, %s25, 1
      %s444 = smul.addr %s443, 32
      %s445 = smul.addr %s444, 8
      %s446 = scalar_lea.vmem %s11, %s445
      %p447 = pneg %p313
      %p448 = pneg %p310
      %p449 = scmp.lt.s32.totalorder %s25, 1
      %s450 = scalar_select %p449, %s25, 1
      %s451 = smul.addr %s450, 32
      %s452 = smul.addr %s451, 8
      %s453 = scalar_lea.vmem %s12, %s452
      %p454 = pneg %p339
      %p455 = pneg %p336
      %p456 = scmp.lt.s32.totalorder %s25, 1
      %s457 = scalar_select %p456, %s25, 1
      %s458 = smul.addr %s457, 2
      %s459 = scalar_lea.vmem %s13, %s458
      %p460 = scmp.lt.s32.totalorder %s25, 1
      %s461 = scalar_select %p460, %s25, 1
      %s462 = smul.addr %s461, 32
      %s463 = smul.addr %s462, 8
      %s464 = scalar_lea.vmem %s0, %s463
      %p465 = scmp.lt.s32.totalorder %s25, 1
      %s466 = scalar_select %p465, %s25, 1
      %s467 = smul.addr %s466, 32
      %s468 = smul.addr %s467, 8
      %s469 = scalar_lea.vmem %s1, %s468
      %p470 = scmp.lt.s32.totalorder %s25, 1
      %s471 = scalar_select %p470, %s25, 1
      %s472 = smul.addr %s471, 32
      %s473 = smul.addr %s472, 8
      %s474 = scalar_lea.vmem %s11, %s473
      %p475 = scmp.lt.s32.totalorder %s25, 1
      %s476 = scalar_select %p475, %s25, 1
      %s477 = smul.addr %s476, 32
      %s478 = smul.addr %s477, 8
      %s479 = scalar_lea.vmem %s12, %s478
      %p480 = scmp.lt.s32.totalorder %s25, 1
      %s481 = scalar_select %p480, %s25, 1
      %s482 = smul.addr %s481, 2
      %s483 = scalar_lea.vmem %s13, %s482
      %v484 = vld [vmem:[%s464] sm:$0xff]
      %v485 = vld [vmem:[%s464 + $0x8] sm:$0xff]
      %v486 = vld [vmem:[%s464 + $0x10] sm:$0xff]
      %v487 = vld [vmem:[%s464 + $0x18] sm:$0xff]
      %v488 = vld [vmem:[%s464 + $0x20] sm:$0xff]
      %v489 = vld [vmem:[%s464 + $0x28] sm:$0xff]
      %v490 = vld [vmem:[%s464 + $0x30] sm:$0xff]
      %v491 = vld [vmem:[%s464 + $0x38] sm:$0xff]
      %v492 = vld [vmem:[%s464 + $0x40] sm:$0xff]
      %v493 = vld [vmem:[%s464 + $0x48] sm:$0xff]
      %v494 = vld [vmem:[%s464 + $0x50] sm:$0xff]
      %v495 = vld [vmem:[%s464 + $0x58] sm:$0xff]
      %v496 = vld [vmem:[%s464 + $0x60] sm:$0xff]
      %v497 = vld [vmem:[%s464 + $0x68] sm:$0xff]
      %v498 = vld [vmem:[%s464 + $0x70] sm:$0xff]
      %v499 = vld [vmem:[%s464 + $0x78] sm:$0xff]
      %v500 = vld [vmem:[%s464 + $0x80] sm:$0xff]
      %v501 = vld [vmem:[%s464 + $0x88] sm:$0xff]
      %v502 = vld [vmem:[%s464 + $0x90] sm:$0xff]
      %v503 = vld [vmem:[%s464 + $0x98] sm:$0xff]
      %v504 = vld [vmem:[%s464 + $0xa0] sm:$0xff]
      %v505 = vld [vmem:[%s464 + $0xa8] sm:$0xff]
      %v506 = vld [vmem:[%s464 + $0xb0] sm:$0xff]
      %v507 = vld [vmem:[%s464 + $0xb8] sm:$0xff]
      %v508 = vld [vmem:[%s464 + $0xc0] sm:$0xff]
      %v509 = vld [vmem:[%s464 + $0xc8] sm:$0xff]
      %v510 = vld [vmem:[%s464 + $0xd0] sm:$0xff]
      %v511 = vld [vmem:[%s464 + $0xd8] sm:$0xff]
      %v512 = vld [vmem:[%s464 + $0xe0] sm:$0xff]
      %v513 = vld [vmem:[%s464 + $0xe8] sm:$0xff]
      %v514 = vld [vmem:[%s464 + $0xf0] sm:$0xff]
      %v515 = vld [vmem:[%s464 + $0xf8] sm:$0xff]
      %v516 = vld [vmem:[%s469] sm:$0xff]
      %v517 = vld [vmem:[%s469 + $0x8] sm:$0xff]
      %v518 = vld [vmem:[%s469 + $0x10] sm:$0xff]
      %v519 = vld [vmem:[%s469 + $0x18] sm:$0xff]
      %v520 = vld [vmem:[%s469 + $0x20] sm:$0xff]
      %v521 = vld [vmem:[%s469 + $0x28] sm:$0xff]
      %v522 = vld [vmem:[%s469 + $0x30] sm:$0xff]
      %v523 = vld [vmem:[%s469 + $0x38] sm:$0xff]
      %v524 = vld [vmem:[%s469 + $0x40] sm:$0xff]
      %v525 = vld [vmem:[%s469 + $0x48] sm:$0xff]
      %v526 = vld [vmem:[%s469 + $0x50] sm:$0xff]
      %v527 = vld [vmem:[%s469 + $0x58] sm:$0xff]
      %v528 = vld [vmem:[%s469 + $0x60] sm:$0xff]
      %v529 = vld [vmem:[%s469 + $0x68] sm:$0xff]
      %v530 = vld [vmem:[%s469 + $0x70] sm:$0xff]
      %v531 = vld [vmem:[%s469 + $0x78] sm:$0xff]
      %v532 = vld [vmem:[%s469 + $0x80] sm:$0xff]
      %v533 = vld [vmem:[%s469 + $0x88] sm:$0xff]
      %v534 = vld [vmem:[%s469 + $0x90] sm:$0xff]
      %v535 = vld [vmem:[%s469 + $0x98] sm:$0xff]
      %v536 = vld [vmem:[%s469 + $0xa0] sm:$0xff]
      %v537 = vld [vmem:[%s469 + $0xa8] sm:$0xff]
      %v538 = vld [vmem:[%s469 + $0xb0] sm:$0xff]
      %v539 = vld [vmem:[%s469 + $0xb8] sm:$0xff]
      %v540 = vld [vmem:[%s469 + $0xc0] sm:$0xff]
      %v541 = vld [vmem:[%s469 + $0xc8] sm:$0xff]
      %v542 = vld [vmem:[%s469 + $0xd0] sm:$0xff]
      %v543 = vld [vmem:[%s469 + $0xd8] sm:$0xff]
      %v544 = vld [vmem:[%s469 + $0xe0] sm:$0xff]
      %v545 = vld [vmem:[%s469 + $0xe8] sm:$0xff]
      %v546 = vld [vmem:[%s469 + $0xf0] sm:$0xff]
      %v547 = vld [vmem:[%s469 + $0xf8] sm:$0xff]
      %v548 = vld [vmem:[%s8] sm:$0xff]
      %v549 = vld [vmem:[%s9] sm:$0xf]
      %vm550 = vcmask 31744
      %v552 = vsel %vm550, %v516, 0
      %v555 = vsel %vm550, %v517, 0
      %v558 = vsel %vm550, %v518, 0
      %v561 = vsel %vm550, %v519, 0
      %v564 = vsel %vm550, %v520, 0
      %v567 = vsel %vm550, %v521, 0
      %v570 = vsel %vm550, %v522, 0
      %v573 = vsel %vm550, %v523, 0
      %v576 = vsel %vm550, %v524, 0
      %v579 = vsel %vm550, %v525, 0
      %v582 = vsel %vm550, %v526, 0
      %v585 = vsel %vm550, %v527, 0
      %v588 = vsel %vm550, %v528, 0
      %v591 = vsel %vm550, %v529, 0
      %v594 = vsel %vm550, %v530, 0
      %v597 = vsel %vm550, %v531, 0
      %v600 = vsel %vm550, %v532, 0
      %v603 = vsel %vm550, %v533, 0
      %v606 = vsel %vm550, %v534, 0
      %v609 = vsel %vm550, %v535, 0
      %v612 = vsel %vm550, %v536, 0
      %v615 = vsel %vm550, %v537, 0
      %v618 = vsel %vm550, %v538, 0
      %v621 = vsel %vm550, %v539, 0
      %v624 = vsel %vm550, %v540, 0
      %v627 = vsel %vm550, %v541, 0
      %v630 = vsel %vm550, %v542, 0
      %v633 = vsel %vm550, %v543, 0
      %v636 = vsel %vm550, %v544, 0
      %v639 = vsel %vm550, %v545, 0
      %v642 = vsel %vm550, %v546, 0
      %v645 = vsel %vm550, %v547, 0
      %vm647 = vcmask 1043456
      %v649 = vsel %vm647, %v549, 0
      %651 = vmatpush.msra.mxu0 0.0
      %652 = vmatpush.msra.mxu0 0.0
      %653 = vmatpush.msra.mxu0 0.0
      %654 = vmatpush.msra.mxu0 0.0
      %655 = vmatpush.msra.mxu0 0.0
      %656 = vmatpush.msra.mxu0 0.0
      %657 = vmatpush.msra.mxu0 0.0
      %658 = vmatpush.msra.mxu0 0.0
      %659 = vmatpush.msra.mxu0 0.0
      %660 = vmatpush.msra.mxu0 0.0
      %661 = vmatpush.msra.mxu0 0.0
      %662 = vmatpush.msra.mxu0 0.0
      %663 = vmatpush.msra.mxu0 0.0
      %664 = vmatpush.msra.mxu0 0.0
      %665 = vmatpush.msra.mxu0 0.0
      %666 = vmatpush.msra.mxu0 %v649
      %667 = vmatmul.f32.gmra.mxu0 %v552
      %v668 = vpop.f32.mrf.mxu0
      %v669 = vadd.f32 0.0, %v668
      %670 = vmatmul.f32.gmra.mxu0 %v555
      %v671 = vpop.f32.mrf.mxu0
      %v672 = vadd.f32 0.0, %v671
      %673 = vmatmul.f32.gmra.mxu0 %v558
      %v674 = vpop.f32.mrf.mxu0
      %v675 = vadd.f32 0.0, %v674
      %676 = vmatmul.f32.gmra.mxu0 %v561
      %v677 = vpop.f32.mrf.mxu0
      %v678 = vadd.f32 0.0, %v677
      %679 = vmatmul.f32.gmra.mxu0 %v564
      %v680 = vpop.f32.mrf.mxu0
      %v681 = vadd.f32 0.0, %v680
      %682 = vmatmul.f32.gmra.mxu0 %v567
      %v683 = vpop.f32.mrf.mxu0
      %v684 = vadd.f32 0.0, %v683
      %685 = vmatmul.f32.gmra.mxu0 %v570
      %v686 = vpop.f32.mrf.mxu0
      %v687 = vadd.f32 0.0, %v686
      %688 = vmatmul.f32.gmra.mxu0 %v573
      %v689 = vpop.f32.mrf.mxu0
      %v690 = vadd.f32 0.0, %v689
      %691 = vmatmul.f32.gmra.mxu0 %v576
      %v692 = vpop.f32.mrf.mxu0
      %v693 = vadd.f32 0.0, %v692
      %694 = vmatmul.f32.gmra.mxu0 %v579
      %v695 = vpop.f32.mrf.mxu0
      %v696 = vadd.f32 0.0, %v695
      %697 = vmatmul.f32.gmra.mxu0 %v582
      %v698 = vpop.f32.mrf.mxu0
      %v699 = vadd.f32 0.0, %v698
      %700 = vmatmul.f32.gmra.mxu0 %v585
      %v701 = vpop.f32.mrf.mxu0
      %v702 = vadd.f32 0.0, %v701
      %703 = vmatmul.f32.gmra.mxu0 %v588
      %v704 = vpop.f32.mrf.mxu0
      %v705 = vadd.f32 0.0, %v704
      %706 = vmatmul.f32.gmra.mxu0 %v591
      %v707 = vpop.f32.mrf.mxu0
      %v708 = vadd.f32 0.0, %v707
      %709 = vmatmul.f32.gmra.mxu0 %v594
      %v710 = vpop.f32.mrf.mxu0
      %v711 = vadd.f32 0.0, %v710
      %712 = vmatmul.f32.gmra.mxu0 %v597
      %v713 = vpop.f32.mrf.mxu0
      %v714 = vadd.f32 0.0, %v713
      %715 = vmatmul.f32.gmra.mxu0 %v600
      %v716 = vpop.f32.mrf.mxu0
      %v717 = vadd.f32 0.0, %v716
      %718 = vmatmul.f32.gmra.mxu0 %v603
      %v719 = vpop.f32.mrf.mxu0
      %v720 = vadd.f32 0.0, %v719
      %721 = vmatmul.f32.gmra.mxu0 %v606
      %v722 = vpop.f32.mrf.mxu0
      %v723 = vadd.f32 0.0, %v722
      %724 = vmatmul.f32.gmra.mxu0 %v609
      %v725 = vpop.f32.mrf.mxu0
      %v726 = vadd.f32 0.0, %v725
      %727 = vmatmul.f32.gmra.mxu0 %v612
      %v728 = vpop.f32.mrf.mxu0
      %v729 = vadd.f32 0.0, %v728
      %730 = vmatmul.f32.gmra.mxu0 %v615
      %v731 = vpop.f32.mrf.mxu0
      %v732 = vadd.f32 0.0, %v731
      %733 = vmatmul.f32.gmra.mxu0 %v618
      %v734 = vpop.f32.mrf.mxu0
      %v735 = vadd.f32 0.0, %v734
      %736 = vmatmul.f32.gmra.mxu0 %v621
      %v737 = vpop.f32.mrf.mxu0
      %v738 = vadd.f32 0.0, %v737
      %739 = vmatmul.f32.gmra.mxu0 %v624
      %v740 = vpop.f32.mrf.mxu0
      %v741 = vadd.f32 0.0, %v740
      %742 = vmatmul.f32.gmra.mxu0 %v627
      %v743 = vpop.f32.mrf.mxu0
      %v744 = vadd.f32 0.0, %v743
      %745 = vmatmul.f32.gmra.mxu0 %v630
      %v746 = vpop.f32.mrf.mxu0
      %v747 = vadd.f32 0.0, %v746
      %748 = vmatmul.f32.gmra.mxu0 %v633
      %v749 = vpop.f32.mrf.mxu0
      %v750 = vadd.f32 0.0, %v749
      %751 = vmatmul.f32.gmra.mxu0 %v636
      %v752 = vpop.f32.mrf.mxu0
      %v753 = vadd.f32 0.0, %v752
      %754 = vmatmul.f32.gmra.mxu0 %v639
      %v755 = vpop.f32.mrf.mxu0
      %v756 = vadd.f32 0.0, %v755
      %757 = vmatmul.f32.gmra.mxu0 %v642
      %v758 = vpop.f32.mrf.mxu0
      %v759 = vadd.f32 0.0, %v758
      %760 = vmatmul.f32.gmra.mxu0 %v645
      %v761 = vpop.f32.mrf.mxu0
      %v762 = vadd.f32 0.0, %v761
      %763 = vdwg.mxu0
      %vm764 = vcmask 64512
      %v766 = vsel %vm764, %v484, 0
      %v769 = vsel %vm764, %v485, 0
      %v772 = vsel %vm764, %v486, 0
      %v775 = vsel %vm764, %v487, 0
      %v778 = vsel %vm764, %v488, 0
      %v781 = vsel %vm764, %v489, 0
      %v784 = vsel %vm764, %v490, 0
      %v787 = vsel %vm764, %v491, 0
      %v790 = vsel %vm764, %v492, 0
      %v793 = vsel %vm764, %v493, 0
      %v796 = vsel %vm764, %v494, 0
      %v799 = vsel %vm764, %v495, 0
      %v802 = vsel %vm764, %v496, 0
      %v805 = vsel %vm764, %v497, 0
      %v808 = vsel %vm764, %v498, 0
      %v811 = vsel %vm764, %v499, 0
      %v814 = vsel %vm764, %v500, 0
      %v817 = vsel %vm764, %v501, 0
      %v820 = vsel %vm764, %v502, 0
      %v823 = vsel %vm764, %v503, 0
      %v826 = vsel %vm764, %v504, 0
      %v829 = vsel %vm764, %v505, 0
      %v832 = vsel %vm764, %v506, 0
      %v835 = vsel %vm764, %v507, 0
      %v838 = vsel %vm764, %v508, 0
      %v841 = vsel %vm764, %v509, 0
      %v844 = vsel %vm764, %v510, 0
      %v847 = vsel %vm764, %v511, 0
      %v850 = vsel %vm764, %v512, 0
      %v853 = vsel %vm764, %v513, 0
      %v856 = vsel %vm764, %v514, 0
      %v859 = vsel %vm764, %v515, 0
      %861 = vmatpush.msra.mxu0 0.0
      %862 = vmatpush.msra.mxu0 0.0
      %863 = vmatpush.msra.mxu0 0.0
      %864 = vmatpush.msra.mxu0 0.0
      %865 = vmatpush.msra.mxu0 0.0
      %866 = vmatpush.msra.mxu0 0.0
      %867 = vmatpush.msra.mxu0 0.0
      %868 = vmatpush.msra.mxu0 0.0
      %869 = vmatpush.msra.mxu0 0.0
      %870 = vmatpush.msra.mxu0 0.0
      %871 = vmatpush.msra.mxu0 0.0
      %872 = vmatpush.msra.mxu0 0.0
      %873 = vmatpush.msra.mxu0 0.0
      %874 = vmatpush.msra.mxu0 0.0
      %875 = vmatpush.msra.mxu0 0.0
      %876 = vmatpush.msra.mxu0 %v548
      %877 = vmatmul.f32.gmra.mxu0 %v766
      %v878 = vpop.f32.mrf.mxu0
      %v879 = vadd.f32 %v669, %v878
      %880 = vmatmul.f32.gmra.mxu0 %v769
      %v881 = vpop.f32.mrf.mxu0
      %v882 = vadd.f32 %v672, %v881
      %883 = vmatmul.f32.gmra.mxu0 %v772
      %v884 = vpop.f32.mrf.mxu0
      %v885 = vadd.f32 %v675, %v884
      %886 = vmatmul.f32.gmra.mxu0 %v775
      %v887 = vpop.f32.mrf.mxu0
      %v888 = vadd.f32 %v678, %v887
      %889 = vmatmul.f32.gmra.mxu0 %v778
      %v890 = vpop.f32.mrf.mxu0
      %v891 = vadd.f32 %v681, %v890
      %892 = vmatmul.f32.gmra.mxu0 %v781
      %v893 = vpop.f32.mrf.mxu0
      %v894 = vadd.f32 %v684, %v893
      %895 = vmatmul.f32.gmra.mxu0 %v784
      %v896 = vpop.f32.mrf.mxu0
      %v897 = vadd.f32 %v687, %v896
      %898 = vmatmul.f32.gmra.mxu0 %v787
      %v899 = vpop.f32.mrf.mxu0
      %v900 = vadd.f32 %v690, %v899
      %901 = vmatmul.f32.gmra.mxu0 %v790
      %v902 = vpop.f32.mrf.mxu0
      %v903 = vadd.f32 %v693, %v902
      %904 = vmatmul.f32.gmra.mxu0 %v793
      %v905 = vpop.f32.mrf.mxu0
      %v906 = vadd.f32 %v696, %v905
      %907 = vmatmul.f32.gmra.mxu0 %v796
      %v908 = vpop.f32.mrf.mxu0
      %v909 = vadd.f32 %v699, %v908
      %910 = vmatmul.f32.gmra.mxu0 %v799
      %v911 = vpop.f32.mrf.mxu0
      %v912 = vadd.f32 %v702, %v911
      %913 = vmatmul.f32.gmra.mxu0 %v802
      %v914 = vpop.f32.mrf.mxu0
      %v915 = vadd.f32 %v705, %v914
      %916 = vmatmul.f32.gmra.mxu0 %v805
      %v917 = vpop.f32.mrf.mxu0
      %v918 = vadd.f32 %v708, %v917
      %919 = vmatmul.f32.gmra.mxu0 %v808
      %v920 = vpop.f32.mrf.mxu0
      %v921 = vadd.f32 %v711, %v920
      %922 = vmatmul.f32.gmra.mxu0 %v811
      %v923 = vpop.f32.mrf.mxu0
      %v924 = vadd.f32 %v714, %v923
      %925 = vmatmul.f32.gmra.mxu0 %v814
      %v926 = vpop.f32.mrf.mxu0
      %v927 = vadd.f32 %v717, %v926
      %928 = vmatmul.f32.gmra.mxu0 %v817
      %v929 = vpop.f32.mrf.mxu0
      %v930 = vadd.f32 %v720, %v929
      %931 = vmatmul.f32.gmra.mxu0 %v820
      %v932 = vpop.f32.mrf.mxu0
      %v933 = vadd.f32 %v723, %v932
      %934 = vmatmul.f32.gmra.mxu0 %v823
      %v935 = vpop.f32.mrf.mxu0
      %v936 = vadd.f32 %v726, %v935
      %937 = vmatmul.f32.gmra.mxu0 %v826
      %v938 = vpop.f32.mrf.mxu0
      %v939 = vadd.f32 %v729, %v938
      %940 = vmatmul.f32.gmra.mxu0 %v829
      %v941 = vpop.f32.mrf.mxu0
      %v942 = vadd.f32 %v732, %v941
      %943 = vmatmul.f32.gmra.mxu0 %v832
      %v944 = vpop.f32.mrf.mxu0
      %v945 = vadd.f32 %v735, %v944
      %946 = vmatmul.f32.gmra.mxu0 %v835
      %v947 = vpop.f32.mrf.mxu0
      %v948 = vadd.f32 %v738, %v947
      %949 = vmatmul.f32.gmra.mxu0 %v838
      %v950 = vpop.f32.mrf.mxu0
      %v951 = vadd.f32 %v741, %v950
      %952 = vmatmul.f32.gmra.mxu0 %v841
      %v953 = vpop.f32.mrf.mxu0
      %v954 = vadd.f32 %v744, %v953
      %955 = vmatmul.f32.gmra.mxu0 %v844
      %v956 = vpop.f32.mrf.mxu0
      %v957 = vadd.f32 %v747, %v956
      %958 = vmatmul.f32.gmra.mxu0 %v847
      %v959 = vpop.f32.mrf.mxu0
      %v960 = vadd.f32 %v750, %v959
      %961 = vmatmul.f32.gmra.mxu0 %v850
      %v962 = vpop.f32.mrf.mxu0
      %v963 = vadd.f32 %v753, %v962
      %964 = vmatmul.f32.gmra.mxu0 %v853
      %v965 = vpop.f32.mrf.mxu0
      %v966 = vadd.f32 %v756, %v965
      %967 = vmatmul.f32.gmra.mxu0 %v856
      %v968 = vpop.f32.mrf.mxu0
      %v969 = vadd.f32 %v759, %v968
      %970 = vmatmul.f32.gmra.mxu0 %v859
      %v971 = vpop.f32.mrf.mxu0
      %v972 = vadd.f32 %v762, %v971
      %973 = vdwg.mxu0
      %v974 = vld [vmem:[%s10] sm:$0x1]
      %v976 = vperm.slane %v974, 0
      %v978 = vadd.f32 %v879, %v976
      %v979 = vadd.f32 %v882, %v976
      %v980 = vadd.f32 %v885, %v976
      %v981 = vadd.f32 %v888, %v976
      %v982 = vadd.f32 %v891, %v976
      %v983 = vadd.f32 %v894, %v976
      %v984 = vadd.f32 %v897, %v976
      %v985 = vadd.f32 %v900, %v976
      %v986 = vadd.f32 %v903, %v976
      %v987 = vadd.f32 %v906, %v976
      %v988 = vadd.f32 %v909, %v976
      %v989 = vadd.f32 %v912, %v976
      %v990 = vadd.f32 %v915, %v976
      %v991 = vadd.f32 %v918, %v976
      %v992 = vadd.f32 %v921, %v976
      %v993 = vadd.f32 %v924, %v976
      %v994 = vadd.f32 %v927, %v976
      %v995 = vadd.f32 %v930, %v976
      %v996 = vadd.f32 %v933, %v976
      %v997 = vadd.f32 %v936, %v976
      %v998 = vadd.f32 %v939, %v976
      %v999 = vadd.f32 %v942, %v976
      %v1000 = vadd.f32 %v945, %v976
      %v1001 = vadd.f32 %v948, %v976
      %v1002 = vadd.f32 %v951, %v976
      %v1003 = vadd.f32 %v954, %v976
      %v1004 = vadd.f32 %v957, %v976
      %v1005 = vadd.f32 %v960, %v976
      %v1006 = vadd.f32 %v963, %v976
      %v1007 = vadd.f32 %v966, %v976
      %v1008 = vadd.f32 %v969, %v976
      %v1009 = vadd.f32 %v972, %v976
      %1010 = vst.msk [vmem:[%s479] sm:$0xff] %vm550, %v978
      %1011 = vst.msk [vmem:[%s479 + $0x8] sm:$0xff] %vm550, %v979
      %1012 = vst.msk [vmem:[%s479 + $0x10] sm:$0xff] %vm550, %v980
      %1013 = vst.msk [vmem:[%s479 + $0x18] sm:$0xff] %vm550, %v981
      %1014 = vst.msk [vmem:[%s479 + $0x20] sm:$0xff] %vm550, %v982
      %1015 = vst.msk [vmem:[%s479 + $0x28] sm:$0xff] %vm550, %v983
      %1016 = vst.msk [vmem:[%s479 + $0x30] sm:$0xff] %vm550, %v984
      %1017 = vst.msk [vmem:[%s479 + $0x38] sm:$0xff] %vm550, %v985
      %1018 = vst.msk [vmem:[%s479 + $0x40] sm:$0xff] %vm550, %v986
      %1019 = vst.msk [vmem:[%s479 + $0x48] sm:$0xff] %vm550, %v987
      %1020 = vst.msk [vmem:[%s479 + $0x50] sm:$0xff] %vm550, %v988
      %1021 = vst.msk [vmem:[%s479 + $0x58] sm:$0xff] %vm550, %v989
      %1022 = vst.msk [vmem:[%s479 + $0x60] sm:$0xff] %vm550, %v990
      %1023 = vst.msk [vmem:[%s479 + $0x68] sm:$0xff] %vm550, %v991
      %1024 = vst.msk [vmem:[%s479 + $0x70] sm:$0xff] %vm550, %v992
      %1025 = vst.msk [vmem:[%s479 + $0x78] sm:$0xff] %vm550, %v993
      %1026 = vst.msk [vmem:[%s479 + $0x80] sm:$0xff] %vm550, %v994
      %1027 = vst.msk [vmem:[%s479 + $0x88] sm:$0xff] %vm550, %v995
      %1028 = vst.msk [vmem:[%s479 + $0x90] sm:$0xff] %vm550, %v996
      %1029 = vst.msk [vmem:[%s479 + $0x98] sm:$0xff] %vm550, %v997
      %1030 = vst.msk [vmem:[%s479 + $0xa0] sm:$0xff] %vm550, %v998
      %1031 = vst.msk [vmem:[%s479 + $0xa8] sm:$0xff] %vm550, %v999
      %1032 = vst.msk [vmem:[%s479 + $0xb0] sm:$0xff] %vm550, %v1000
      %1033 = vst.msk [vmem:[%s479 + $0xb8] sm:$0xff] %vm550, %v1001
      %1034 = vst.msk [vmem:[%s479 + $0xc0] sm:$0xff] %vm550, %v1002
      %1035 = vst.msk [vmem:[%s479 + $0xc8] sm:$0xff] %vm550, %v1003
      %1036 = vst.msk [vmem:[%s479 + $0xd0] sm:$0xff] %vm550, %v1004
      %1037 = vst.msk [vmem:[%s479 + $0xd8] sm:$0xff] %vm550, %v1005
      %1038 = vst.msk [vmem:[%s479 + $0xe0] sm:$0xff] %vm550, %v1006
      %1039 = vst.msk [vmem:[%s479 + $0xe8] sm:$0xff] %vm550, %v1007
      %1040 = vst.msk [vmem:[%s479 + $0xf0] sm:$0xff] %vm550, %v1008
      %1041 = vst.msk [vmem:[%s479 + $0xf8] sm:$0xff] %vm550, %v1009
      %vm1042 = vcmask 97280
      %1043 = vst.msk [vmem:[#allocation2] sm:$0xff] %vm1042, 0.0
      %1044 = vst.msk [vmem:[#allocation2 + $0x8] sm:$0xff] %vm1042, 0.0
      %vm1045 = vcmask 91136
      %1046 = vst.msk [vmem:[#allocation2 + $0x10] sm:$0x3] %vm1045, 0.0
      %1047 = vst.msk [vmem:[#allocation2 + $0x18] sm:$0xff] %vm1042, 0.0
      %1048 = vst.msk [vmem:[#allocation2 + $0x20] sm:$0xff] %vm1042, 0.0
      %1049 = vst.msk [vmem:[#allocation2 + $0x28] sm:$0x3] %vm1045, 0.0
      %1050 = vst.msk [vmem:[#allocation2 + $0x30] sm:$0xff] %vm1042, 0.0
      %1051 = vst.msk [vmem:[#allocation2 + $0x38] sm:$0xff] %vm1042, 0.0
      %1052 = vst.msk [vmem:[#allocation2 + $0x40] sm:$0x3] %vm1045, 0.0
      %1053 = vst.msk [vmem:[#allocation2 + $0x48] sm:$0xff] %vm1042, 0.0
      %1054 = vst.msk [vmem:[#allocation2 + $0x50] sm:$0xff] %vm1042, 0.0
      %1055 = vst.msk [vmem:[#allocation2 + $0x58] sm:$0x3] %vm1045, 0.0
      %1056 = vst.msk [vmem:[#allocation2 + $0x60] sm:$0xff] %vm1042, 0.0
      %1057 = vst.msk [vmem:[#allocation2 + $0x68] sm:$0xff] %vm1042, 0.0
      %1058 = vst.msk [vmem:[#allocation2 + $0x70] sm:$0x3] %vm1045, 0.0
      %1059 = vst.msk [vmem:[#allocation2 + $0x78] sm:$0xff] %vm1042, 0.0
      %1060 = vst.msk [vmem:[#allocation2 + $0x80] sm:$0xff] %vm1042, 0.0
      %1061 = vst.msk [vmem:[#allocation2 + $0x88] sm:$0x3] %vm1045, 0.0
      %1062 = vst.msk [vmem:[#allocation2 + $0x90] sm:$0xff] %vm1042, 0.0
      %1063 = vst.msk [vmem:[#allocation2 + $0x98] sm:$0xff] %vm1042, 0.0
      %1064 = vst.msk [vmem:[#allocation2 + $0xa0] sm:$0x3] %vm1045, 0.0
      %1065 = vst.msk [vmem:[#allocation2 + $0xa8] sm:$0xff] %vm1042, 0.0
      %1066 = vst.msk [vmem:[#allocation2 + $0xb0] sm:$0xff] %vm1042, 0.0
      %1067 = vst.msk [vmem:[#allocation2 + $0xb8] sm:$0x3] %vm1045, 0.0
      %1068 = vst.msk [vmem:[#allocation2 + $0xc0] sm:$0xff] %vm1042, 0.0
      %1069 = vst.msk [vmem:[#allocation2 + $0xc8] sm:$0xff] %vm1042, 0.0
      %1070 = vst.msk [vmem:[#allocation2 + $0xd0] sm:$0x3] %vm1045, 0.0
      %1071 = vst.msk [vmem:[#allocation2 + $0xd8] sm:$0xff] %vm1042, 0.0
      %1072 = vst.msk [vmem:[#allocation2 + $0xe0] sm:$0xff] %vm1042, 0.0
      %1073 = vst.msk [vmem:[#allocation2 + $0xe8] sm:$0x3] %vm1045, 0.0
      %1074 = vst.msk [vmem:[#allocation2 + $0xf0] sm:$0xff] %vm1042, 0.0
      %1075 = vst.msk [vmem:[#allocation2 + $0xf8] sm:$0xff] %vm1042, 0.0
      %1076 = vst.msk [vmem:[#allocation2 + $0x100] sm:$0x3] %vm1045, 0.0
      %1077 = vst.msk [vmem:[#allocation2 + $0x108] sm:$0xff] %vm1042, 0.0
      %1078 = vst.msk [vmem:[#allocation2 + $0x110] sm:$0xff] %vm1042, 0.0
      %1079 = vst.msk [vmem:[#allocation2 + $0x118] sm:$0x3] %vm1045, 0.0
      %1080 = vst.msk [vmem:[#allocation2 + $0x120] sm:$0xff] %vm1042, 0.0
      %1081 = vst.msk [vmem:[#allocation2 + $0x128] sm:$0xff] %vm1042, 0.0
      %1082 = vst.msk [vmem:[#allocation2 + $0x130] sm:$0x3] %vm1045, 0.0
      %1083 = vst.msk [vmem:[#allocation2 + $0x138] sm:$0xff] %vm1042, 0.0
      %1084 = vst.msk [vmem:[#allocation2 + $0x140] sm:$0xff] %vm1042, 0.0
      %1085 = vst.msk [vmem:[#allocation2 + $0x148] sm:$0x3] %vm1045, 0.0
      %1086 = vst.msk [vmem:[#allocation2 + $0x150] sm:$0xff] %vm1042, 0.0
      %1087 = vst.msk [vmem:[#allocation2 + $0x158] sm:$0xff] %vm1042, 0.0
      %1088 = vst.msk [vmem:[#allocation2 + $0x160] sm:$0x3] %vm1045, 0.0
      %1089 = vst.msk [vmem:[#allocation2 + $0x168] sm:$0xff] %vm1042, 0.0
      %1090 = vst.msk [vmem:[#allocation2 + $0x170] sm:$0xff] %vm1042, 0.0
      %1091 = vst.msk [vmem:[#allocation2 + $0x178] sm:$0x3] %vm1045, 0.0
      %1092 = vst.msk [vmem:[#allocation2 + $0x180] sm:$0xff] %vm1042, 0.0
      %1093 = vst.msk [vmem:[#allocation2 + $0x188] sm:$0xff] %vm1042, 0.0
      %1094 = vst.msk [vmem:[#allocation2 + $0x190] sm:$0x3] %vm1045, 0.0
      %1095 = vst.msk [vmem:[#allocation2 + $0x198] sm:$0xff] %vm1042, 0.0
      %1096 = vst.msk [vmem:[#allocation2 + $0x1a0] sm:$0xff] %vm1042, 0.0
      %1097 = vst.msk [vmem:[#allocation2 + $0x1a8] sm:$0x3] %vm1045, 0.0
      %v1098 = vld [vmem:[%s2] sm:$0x1]
      %v1100 = vperm.slane %v1098, 0
      %v1102 = vmul.f32 %v484, %v1100
      %v1103 = vmul.f32 %v485, %v1100
      %v1104 = vmul.f32 %v486, %v1100
      %v1105 = vmul.f32 %v487, %v1100
      %v1106 = vmul.f32 %v488, %v1100
      %v1107 = vmul.f32 %v489, %v1100
      %v1108 = vmul.f32 %v490, %v1100
      %v1109 = vmul.f32 %v491, %v1100
      %v1110 = vmul.f32 %v492, %v1100
      %v1111 = vmul.f32 %v493, %v1100
      %v1112 = vmul.f32 %v494, %v1100
      %v1113 = vmul.f32 %v495, %v1100
      %v1114 = vmul.f32 %v496, %v1100
      %v1115 = vmul.f32 %v497, %v1100
      %v1116 = vmul.f32 %v498, %v1100
      %v1117 = vmul.f32 %v499, %v1100
      %v1118 = vmul.f32 %v500, %v1100
      %v1119 = vmul.f32 %v501, %v1100
      %v1120 = vmul.f32 %v502, %v1100
      %v1121 = vmul.f32 %v503, %v1100
      %v1122 = vmul.f32 %v504, %v1100
      %v1123 = vmul.f32 %v505, %v1100
      %v1124 = vmul.f32 %v506, %v1100
      %v1125 = vmul.f32 %v507, %v1100
      %v1126 = vmul.f32 %v508, %v1100
      %v1127 = vmul.f32 %v509, %v1100
      %v1128 = vmul.f32 %v510, %v1100
      %v1129 = vmul.f32 %v511, %v1100
      %v1130 = vmul.f32 %v512, %v1100
      %v1131 = vmul.f32 %v513, %v1100
      %v1132 = vmul.f32 %v514, %v1100
      %v1133 = vmul.f32 %v515, %v1100
      %v1134 = vld [vmem:[%s3] sm:$0x1]
      %v1136 = vperm.slane %v1134, 0
      %v1138 = vadd.f32 %v1102, %v1136
      %v1139 = vadd.f32 %v1103, %v1136
      %v1140 = vadd.f32 %v1104, %v1136
      %v1141 = vadd.f32 %v1105, %v1136
      %v1142 = vadd.f32 %v1106, %v1136
      %v1143 = vadd.f32 %v1107, %v1136
      %v1144 = vadd.f32 %v1108, %v1136
      %v1145 = vadd.f32 %v1109, %v1136
      %v1146 = vadd.f32 %v1110, %v1136
      %v1147 = vadd.f32 %v1111, %v1136
      %v1148 = vadd.f32 %v1112, %v1136
      %v1149 = vadd.f32 %v1113, %v1136
      %v1150 = vadd.f32 %v1114, %v1136
      %v1151 = vadd.f32 %v1115, %v1136
      %v1152 = vadd.f32 %v1116, %v1136
      %v1153 = vadd.f32 %v1117, %v1136
      %v1154 = vadd.f32 %v1118, %v1136
      %v1155 = vadd.f32 %v1119, %v1136
      %v1156 = vadd.f32 %v1120, %v1136
      %v1157 = vadd.f32 %v1121, %v1136
      %v1158 = vadd.f32 %v1122, %v1136
      %v1159 = vadd.f32 %v1123, %v1136
      %v1160 = vadd.f32 %v1124, %v1136
      %v1161 = vadd.f32 %v1125, %v1136
      %v1162 = vadd.f32 %v1126, %v1136
      %v1163 = vadd.f32 %v1127, %v1136
      %v1164 = vadd.f32 %v1128, %v1136
      %v1165 = vadd.f32 %v1129, %v1136
      %v1166 = vadd.f32 %v1130, %v1136
      %v1167 = vadd.f32 %v1131, %v1136
      %v1168 = vadd.f32 %v1132, %v1136
      %v1169 = vadd.f32 %v1133, %v1136
      %vm1170 = vcmp.ge.f32.partialorder %v1138, 0.0
      %vm1171 = vcmp.ge.f32.partialorder %v1139, 0.0
      %vm1172 = vcmp.ge.f32.partialorder %v1140, 0.0
      %vm1173 = vcmp.ge.f32.partialorder %v1141, 0.0
      %vm1174 = vcmp.ge.f32.partialorder %v1142, 0.0
      %vm1175 = vcmp.ge.f32.partialorder %v1143, 0.0
      %vm1176 = vcmp.ge.f32.partialorder %v1144, 0.0
      %vm1177 = vcmp.ge.f32.partialorder %v1145, 0.0
      %vm1178 = vcmp.ge.f32.partialorder %v1146, 0.0
      %vm1179 = vcmp.ge.f32.partialorder %v1147, 0.0
      %vm1180 = vcmp.ge.f32.partialorder %v1148, 0.0
      %vm1181 = vcmp.ge.f32.partialorder %v1149, 0.0
      %vm1182 = vcmp.ge.f32.partialorder %v1150, 0.0
      %vm1183 = vcmp.ge.f32.partialorder %v1151, 0.0
      %vm1184 = vcmp.ge.f32.partialorder %v1152, 0.0
      %vm1185 = vcmp.ge.f32.partialorder %v1153, 0.0
      %vm1186 = vcmp.ge.f32.partialorder %v1154, 0.0
      %vm1187 = vcmp.ge.f32.partialorder %v1155, 0.0
      %vm1188 = vcmp.ge.f32.partialorder %v1156, 0.0
      %vm1189 = vcmp.ge.f32.partialorder %v1157, 0.0
      %vm1190 = vcmp.ge.f32.partialorder %v1158, 0.0
      %vm1191 = vcmp.ge.f32.partialorder %v1159, 0.0
      %vm1192 = vcmp.ge.f32.partialorder %v1160, 0.0
      %vm1193 = vcmp.ge.f32.partialorder %v1161, 0.0
      %vm1194 = vcmp.ge.f32.partialorder %v1162, 0.0
      %vm1195 = vcmp.ge.f32.partialorder %v1163, 0.0
      %vm1196 = vcmp.ge.f32.partialorder %v1164, 0.0
      %vm1197 = vcmp.ge.f32.partialorder %v1165, 0.0
      %vm1198 = vcmp.ge.f32.partialorder %v1166, 0.0
      %vm1199 = vcmp.ge.f32.partialorder %v1167, 0.0
      %vm1200 = vcmp.ge.f32.partialorder %v1168, 0.0
      %vm1201 = vcmp.ge.f32.partialorder %v1169, 0.0
      %v1202 = vmul.f32 %v1138, 0.1
      %v1203 = vmul.f32 %v1139, 0.1
      %v1204 = vmul.f32 %v1140, 0.1
      %v1205 = vmul.f32 %v1141, 0.1
      %v1206 = vmul.f32 %v1142, 0.1
      %v1207 = vmul.f32 %v1143, 0.1
      %v1208 = vmul.f32 %v1144, 0.1
      %v1209 = vmul.f32 %v1145, 0.1
      %v1210 = vmul.f32 %v1146, 0.1
      %v1211 = vmul.f32 %v1147, 0.1
      %v1212 = vmul.f32 %v1148, 0.1
      %v1213 = vmul.f32 %v1149, 0.1
      %v1214 = vmul.f32 %v1150, 0.1
      %v1215 = vmul.f32 %v1151, 0.1
      %v1216 = vmul.f32 %v1152, 0.1
      %v1217 = vmul.f32 %v1153, 0.1
      %v1218 = vmul.f32 %v1154, 0.1
      %v1219 = vmul.f32 %v1155, 0.1
      %v1220 = vmul.f32 %v1156, 0.1
      %v1221 = vmul.f32 %v1157, 0.1
      %v1222 = vmul.f32 %v1158, 0.1
      %v1223 = vmul.f32 %v1159, 0.1
      %v1224 = vmul.f32 %v1160, 0.1
      %v1225 = vmul.f32 %v1161, 0.1
      %v1226 = vmul.f32 %v1162, 0.1
      %v1227 = vmul.f32 %v1163, 0.1
      %v1228 = vmul.f32 %v1164, 0.1
      %v1229 = vmul.f32 %v1165, 0.1
      %v1230 = vmul.f32 %v1166, 0.1
      %v1231 = vmul.f32 %v1167, 0.1
      %v1232 = vmul.f32 %v1168, 0.1
      %v1233 = vmul.f32 %v1169, 0.1
      %v1234 = vsel %vm1170, %v1138, %v1202
      %v1235 = vsel %vm1171, %v1139, %v1203
      %v1236 = vsel %vm1172, %v1140, %v1204
      %v1237 = vsel %vm1173, %v1141, %v1205
      %v1238 = vsel %vm1174, %v1142, %v1206
      %v1239 = vsel %vm1175, %v1143, %v1207
      %v1240 = vsel %vm1176, %v1144, %v1208
      %v1241 = vsel %vm1177, %v1145, %v1209
      %v1242 = vsel %vm1178, %v1146, %v1210
      %v1243 = vsel %vm1179, %v1147, %v1211
      %v1244 = vsel %vm1180, %v1148, %v1212
      %v1245 = vsel %vm1181, %v1149, %v1213
      %v1246 = vsel %vm1182, %v1150, %v1214
      %v1247 = vsel %vm1183, %v1151, %v1215
      %v1248 = vsel %vm1184, %v1152, %v1216
      %v1249 = vsel %vm1185, %v1153, %v1217
      %v1250 = vsel %vm1186, %v1154, %v1218
      %v1251 = vsel %vm1187, %v1155, %v1219
      %v1252 = vsel %vm1188, %v1156, %v1220
      %v1253 = vsel %vm1189, %v1157, %v1221
      %v1254 = vsel %vm1190, %v1158, %v1222
      %v1255 = vsel %vm1191, %v1159, %v1223
      %v1256 = vsel %vm1192, %v1160, %v1224
      %v1257 = vsel %vm1193, %v1161, %v1225
      %v1258 = vsel %vm1194, %v1162, %v1226
      %v1259 = vsel %vm1195, %v1163, %v1227
      %v1260 = vsel %vm1196, %v1164, %v1228
      %v1261 = vsel %vm1197, %v1165, %v1229
      %v1262 = vsel %vm1198, %v1166, %v1230
      %v1263 = vsel %vm1199, %v1167, %v1231
      %v1264 = vsel %vm1200, %v1168, %v1232
      %v1265 = vsel %vm1201, %v1169, %v1233
      %v1266 = vld [vmem:[%s4] sm:$0x1]
      %v1268 = vperm.slane %v1266, 0
      %v1270 = vmul.f32 %v516, %v1268
      %v1271 = vmul.f32 %v517, %v1268
      %v1272 = vmul.f32 %v518, %v1268
      %v1273 = vmul.f32 %v519, %v1268
      %v1274 = vmul.f32 %v520, %v1268
      %v1275 = vmul.f32 %v521, %v1268
      %v1276 = vmul.f32 %v522, %v1268
      %v1277 = vmul.f32 %v523, %v1268
      %v1278 = vmul.f32 %v524, %v1268
      %v1279 = vmul.f32 %v525, %v1268
      %v1280 = vmul.f32 %v526, %v1268
      %v1281 = vmul.f32 %v527, %v1268
      %v1282 = vmul.f32 %v528, %v1268
      %v1283 = vmul.f32 %v529, %v1268
      %v1284 = vmul.f32 %v530, %v1268
      %v1285 = vmul.f32 %v531, %v1268
      %v1286 = vmul.f32 %v532, %v1268
      %v1287 = vmul.f32 %v533, %v1268
      %v1288 = vmul.f32 %v534, %v1268
      %v1289 = vmul.f32 %v535, %v1268
      %v1290 = vmul.f32 %v536, %v1268
      %v1291 = vmul.f32 %v537, %v1268
      %v1292 = vmul.f32 %v538, %v1268
      %v1293 = vmul.f32 %v539, %v1268
      %v1294 = vmul.f32 %v540, %v1268
      %v1295 = vmul.f32 %v541, %v1268
      %v1296 = vmul.f32 %v542, %v1268
      %v1297 = vmul.f32 %v543, %v1268
      %v1298 = vmul.f32 %v544, %v1268
      %v1299 = vmul.f32 %v545, %v1268
      %v1300 = vmul.f32 %v546, %v1268
      %v1301 = vmul.f32 %v547, %v1268
      %v1302 = vld [vmem:[%s5] sm:$0x1]
      %v1304 = vperm.slane %v1302, 0
      %v1306 = vadd.f32 %v1270, %v1304
      %v1307 = vadd.f32 %v1271, %v1304
      %v1308 = vadd.f32 %v1272, %v1304
      %v1309 = vadd.f32 %v1273, %v1304
      %v1310 = vadd.f32 %v1274, %v1304
      %v1311 = vadd.f32 %v1275, %v1304
      %v1312 = vadd.f32 %v1276, %v1304
      %v1313 = vadd.f32 %v1277, %v1304
      %v1314 = vadd.f32 %v1278, %v1304
      %v1315 = vadd.f32 %v1279, %v1304
      %v1316 = vadd.f32 %v1280, %v1304
      %v1317 = vadd.f32 %v1281, %v1304
      %v1318 = vadd.f32 %v1282, %v1304
      %v1319 = vadd.f32 %v1283, %v1304
      %v1320 = vadd.f32 %v1284, %v1304
      %v1321 = vadd.f32 %v1285, %v1304
      %v1322 = vadd.f32 %v1286, %v1304
      %v1323 = vadd.f32 %v1287, %v1304
      %v1324 = vadd.f32 %v1288, %v1304
      %v1325 = vadd.f32 %v1289, %v1304
      %v1326 = vadd.f32 %v1290, %v1304
      %v1327 = vadd.f32 %v1291, %v1304
      %v1328 = vadd.f32 %v1292, %v1304
      %v1329 = vadd.f32 %v1293, %v1304
      %v1330 = vadd.f32 %v1294, %v1304
      %v1331 = vadd.f32 %v1295, %v1304
      %v1332 = vadd.f32 %v1296, %v1304
      %v1333 = vadd.f32 %v1297, %v1304
      %v1334 = vadd.f32 %v1298, %v1304
      %v1335 = vadd.f32 %v1299, %v1304
      %v1336 = vadd.f32 %v1300, %v1304
      %v1337 = vadd.f32 %v1301, %v1304
      %vm1338 = vcmp.ge.f32.partialorder %v1306, 0.0
      %vm1339 = vcmp.ge.f32.partialorder %v1307, 0.0
      %vm1340 = vcmp.ge.f32.partialorder %v1308, 0.0
      %vm1341 = vcmp.ge.f32.partialorder %v1309, 0.0
      %vm1342 = vcmp.ge.f32.partialorder %v1310, 0.0
      %vm1343 = vcmp.ge.f32.partialorder %v1311, 0.0
      %vm1344 = vcmp.ge.f32.partialorder %v1312, 0.0
      %vm1345 = vcmp.ge.f32.partialorder %v1313, 0.0
      %vm1346 = vcmp.ge.f32.partialorder %v1314, 0.0
      %vm1347 = vcmp.ge.f32.partialorder %v1315, 0.0
      %vm1348 = vcmp.ge.f32.partialorder %v1316, 0.0
      %vm1349 = vcmp.ge.f32.partialorder %v1317, 0.0
      %vm1350 = vcmp.ge.f32.partialorder %v1318, 0.0
      %vm1351 = vcmp.ge.f32.partialorder %v1319, 0.0
      %vm1352 = vcmp.ge.f32.partialorder %v1320, 0.0
      %vm1353 = vcmp.ge.f32.partialorder %v1321, 0.0
      %vm1354 = vcmp.ge.f32.partialorder %v1322, 0.0
      %vm1355 = vcmp.ge.f32.partialorder %v1323, 0.0
      %vm1356 = vcmp.ge.f32.partialorder %v1324, 0.0
      %vm1357 = vcmp.ge.f32.partialorder %v1325, 0.0
      %vm1358 = vcmp.ge.f32.partialorder %v1326, 0.0
      %vm1359 = vcmp.ge.f32.partialorder %v1327, 0.0
      %vm1360 = vcmp.ge.f32.partialorder %v1328, 0.0
      %vm1361 = vcmp.ge.f32.partialorder %v1329, 0.0
      %vm1362 = vcmp.ge.f32.partialorder %v1330, 0.0
      %vm1363 = vcmp.ge.f32.partialorder %v1331, 0.0
      %vm1364 = vcmp.ge.f32.partialorder %v1332, 0.0
      %vm1365 = vcmp.ge.f32.partialorder %v1333, 0.0
      %vm1366 = vcmp.ge.f32.partialorder %v1334, 0.0
      %vm1367 = vcmp.ge.f32.partialorder %v1335, 0.0
      %vm1368 = vcmp.ge.f32.partialorder %v1336, 0.0
      %vm1369 = vcmp.ge.f32.partialorder %v1337, 0.0
      %v1370 = vmul.f32 %v1306, 0.1
      %v1371 = vmul.f32 %v1307, 0.1
      %v1372 = vmul.f32 %v1308, 0.1
      %v1373 = vmul.f32 %v1309, 0.1
      %v1374 = vmul.f32 %v1310, 0.1
      %v1375 = vmul.f32 %v1311, 0.1
      %v1376 = vmul.f32 %v1312, 0.1
      %v1377 = vmul.f32 %v1313, 0.1
      %v1378 = vmul.f32 %v1314, 0.1
      %v1379 = vmul.f32 %v1315, 0.1
      %v1380 = vmul.f32 %v1316, 0.1
      %v1381 = vmul.f32 %v1317, 0.1
      %v1382 = vmul.f32 %v1318, 0.1
      %v1383 = vmul.f32 %v1319, 0.1
      %v1384 = vmul.f32 %v1320, 0.1
      %v1385 = vmul.f32 %v1321, 0.1
      %v1386 = vmul.f32 %v1322, 0.1
      %v1387 = vmul.f32 %v1323, 0.1
      %v1388 = vmul.f32 %v1324, 0.1
      %v1389 = vmul.f32 %v1325, 0.1
      %v1390 = vmul.f32 %v1326, 0.1
      %v1391 = vmul.f32 %v1327, 0.1
      %v1392 = vmul.f32 %v1328, 0.1
      %v1393 = vmul.f32 %v1329, 0.1
      %v1394 = vmul.f32 %v1330, 0.1
      %v1395 = vmul.f32 %v1331, 0.1
      %v1396 = vmul.f32 %v1332, 0.1
      %v1397 = vmul.f32 %v1333, 0.1
      %v1398 = vmul.f32 %v1334, 0.1
      %v1399 = vmul.f32 %v1335, 0.1
      %v1400 = vmul.f32 %v1336, 0.1
      %v1401 = vmul.f32 %v1337, 0.1
      %v1402 = vsel %vm1338, %v1306, %v1370
      %v1403 = vsel %vm1339, %v1307, %v1371
      %v1404 = vsel %vm1340, %v1308, %v1372
      %v1405 = vsel %vm1341, %v1309, %v1373
      %v1406 = vsel %vm1342, %v1310, %v1374
      %v1407 = vsel %vm1343, %v1311, %v1375
      %v1408 = vsel %vm1344, %v1312, %v1376
      %v1409 = vsel %vm1345, %v1313, %v1377
      %v1410 = vsel %vm1346, %v1314, %v1378
      %v1411 = vsel %vm1347, %v1315, %v1379
      %v1412 = vsel %vm1348, %v1316, %v1380
      %v1413 = vsel %vm1349, %v1317, %v1381
      %v1414 = vsel %vm1350, %v1318, %v1382
      %v1415 = vsel %vm1351, %v1319, %v1383
      %v1416 = vsel %vm1352, %v1320, %v1384
      %v1417 = vsel %vm1353, %v1321, %v1385
      %v1418 = vsel %vm1354, %v1322, %v1386
      %v1419 = vsel %vm1355, %v1323, %v1387
      %v1420 = vsel %vm1356, %v1324, %v1388
      %v1421 = vsel %vm1357, %v1325, %v1389
      %v1422 = vsel %vm1358, %v1326, %v1390
      %v1423 = vsel %vm1359, %v1327, %v1391
      %v1424 = vsel %vm1360, %v1328, %v1392
      %v1425 = vsel %vm1361, %v1329, %v1393
      %v1426 = vsel %vm1362, %v1330, %v1394
      %v1427 = vsel %vm1363, %v1331, %v1395
      %v1428 = vsel %vm1364, %v1332, %v1396
      %v1429 = vsel %vm1365, %v1333, %v1397
      %v1430 = vsel %vm1366, %v1334, %v1398
      %v1431 = vsel %vm1367, %v1335, %v1399
      %v1432 = vsel %vm1368, %v1336, %v1400
      %v1433 = vsel %vm1369, %v1337, %v1401
      %s1434 = scalar_lea.vmem [#allocation2], 24
      %1435 = vst.msk [vmem:[%s1434 + $0x1] sm:$0xff] %vm764, %v1234
      %1436 = vst.msk [vmem:[%s1434 + $0x9] sm:$0xff] %vm764, %v1235
      %1437 = vst.msk [vmem:[%s1434 + $0x19] sm:$0xff] %vm764, %v1236
      %1438 = vst.msk [vmem:[%s1434 + $0x21] sm:$0xff] %vm764, %v1237
      %1439 = vst.msk [vmem:[%s1434 + $0x31] sm:$0xff] %vm764, %v1238
      %1440 = vst.msk [vmem:[%s1434 + $0x39] sm:$0xff] %vm764, %v1239
      %1441 = vst.msk [vmem:[%s1434 + $0x49] sm:$0xff] %vm764, %v1240
      %1442 = vst.msk [vmem:[%s1434 + $0x51] sm:$0xff] %vm764, %v1241
      %1443 = vst.msk [vmem:[%s1434 + $0x61] sm:$0xff] %vm764, %v1242
      %1444 = vst.msk [vmem:[%s1434 + $0x69] sm:$0xff] %vm764, %v1243
      %1445 = vst.msk [vmem:[%s1434 + $0x79] sm:$0xff] %vm764, %v1244
      %1446 = vst.msk [vmem:[%s1434 + $0x81] sm:$0xff] %vm764, %v1245
      %1447 = vst.msk [vmem:[%s1434 + $0x91] sm:$0xff] %vm764, %v1246
      %1448 = vst.msk [vmem:[%s1434 + $0x99] sm:$0xff] %vm764, %v1247
      %1449 = vst.msk [vmem:[%s1434 + $0xa9] sm:$0xff] %vm764, %v1248
      %1450 = vst.msk [vmem:[%s1434 + $0xb1] sm:$0xff] %vm764, %v1249
      %1451 = vst.msk [vmem:[%s1434 + $0xc1] sm:$0xff] %vm764, %v1250
      %1452 = vst.msk [vmem:[%s1434 + $0xc9] sm:$0xff] %vm764, %v1251
      %1453 = vst.msk [vmem:[%s1434 + $0xd9] sm:$0xff] %vm764, %v1252
      %1454 = vst.msk [vmem:[%s1434 + $0xe1] sm:$0xff] %vm764, %v1253
      %1455 = vst.msk [vmem:[%s1434 + $0xf1] sm:$0xff] %vm764, %v1254
      %1456 = vst.msk [vmem:[%s1434 + $0xf9] sm:$0xff] %vm764, %v1255
      %1457 = vst.msk [vmem:[%s1434 + $0x109] sm:$0xff] %vm764, %v1256
      %1458 = vst.msk [vmem:[%s1434 + $0x111] sm:$0xff] %vm764, %v1257
      %1459 = vst.msk [vmem:[%s1434 + $0x121] sm:$0xff] %vm764, %v1258
      %1460 = vst.msk [vmem:[%s1434 + $0x129] sm:$0xff] %vm764, %v1259
      %1461 = vst.msk [vmem:[%s1434 + $0x139] sm:$0xff] %vm764, %v1260
      %1462 = vst.msk [vmem:[%s1434 + $0x141] sm:$0xff] %vm764, %v1261
      %1463 = vst.msk [vmem:[%s1434 + $0x151] sm:$0xff] %vm764, %v1262
      %1464 = vst.msk [vmem:[%s1434 + $0x159] sm:$0xff] %vm764, %v1263
      %1465 = vst.msk [vmem:[%s1434 + $0x169] sm:$0xff] %vm764, %v1264
      %1466 = vst.msk [vmem:[%s1434 + $0x171] sm:$0xff] %vm764, %v1265
      %1499 = vrot.lane.b32.xlu0 %v1402, 8
      %v1500 = vpop.permute.xlu0 %1499
      %1501 = vrot.lane.b32.xlu0 %v1403, 8
      %v1502 = vpop.permute.xlu0 %1501
      %1503 = vrot.lane.b32.xlu0 %v1404, 8
      %v1504 = vpop.permute.xlu0 %1503
      %1505 = vrot.lane.b32.xlu0 %v1405, 8
      %v1506 = vpop.permute.xlu0 %1505
      %1507 = vrot.lane.b32.xlu0 %v1406, 8
      %v1508 = vpop.permute.xlu0 %1507
      %1509 = vrot.lane.b32.xlu0 %v1407, 8
      %v1510 = vpop.permute.xlu0 %1509
      %1511 = vrot.lane.b32.xlu0 %v1408, 8
      %v1512 = vpop.permute.xlu0 %1511
      %1513 = vrot.lane.b32.xlu0 %v1409, 8
      %v1514 = vpop.permute.xlu0 %1513
      %1515 = vrot.lane.b32.xlu0 %v1410, 8
      %v1516 = vpop.permute.xlu0 %1515
      %1517 = vrot.lane.b32.xlu0 %v1411, 8
      %v1518 = vpop.permute.xlu0 %1517
      %1519 = vrot.lane.b32.xlu0 %v1412, 8
      %v1520 = vpop.permute.xlu0 %1519
      %1521 = vrot.lane.b32.xlu0 %v1413, 8
      %v1522 = vpop.permute.xlu0 %1521
      %1523 = vrot.lane.b32.xlu0 %v1414, 8
      %v1524 = vpop.permute.xlu0 %1523
      %1525 = vrot.lane.b32.xlu0 %v1415, 8
      %v1526 = vpop.permute.xlu0 %1525
      %1527 = vrot.lane.b32.xlu0 %v1416, 8
      %v1528 = vpop.permute.xlu0 %1527
      %1529 = vrot.lane.b32.xlu0 %v1417, 8
      %v1530 = vpop.permute.xlu0 %1529
      %1531 = vrot.lane.b32.xlu0 %v1418, 8
      %v1532 = vpop.permute.xlu0 %1531
      %1533 = vrot.lane.b32.xlu0 %v1419, 8
      %v1534 = vpop.permute.xlu0 %1533
      %1535 = vrot.lane.b32.xlu0 %v1420, 8
      %v1536 = vpop.permute.xlu0 %1535
      %1537 = vrot.lane.b32.xlu0 %v1421, 8
      %v1538 = vpop.permute.xlu0 %1537
      %1539 = vrot.lane.b32.xlu0 %v1422, 8
      %v1540 = vpop.permute.xlu0 %1539
      %1541 = vrot.lane.b32.xlu0 %v1423, 8
      %v1542 = vpop.permute.xlu0 %1541
      %1543 = vrot.lane.b32.xlu0 %v1424, 8
      %v1544 = vpop.permute.xlu0 %1543
      %1545 = vrot.lane.b32.xlu0 %v1425, 8
      %v1546 = vpop.permute.xlu0 %1545
      %1547 = vrot.lane.b32.xlu0 %v1426, 8
      %v1548 = vpop.permute.xlu0 %1547
      %1549 = vrot.lane.b32.xlu0 %v1427, 8
      %v1550 = vpop.permute.xlu0 %1549
      %1551 = vrot.lane.b32.xlu0 %v1428, 8
      %v1552 = vpop.permute.xlu0 %1551
      %1553 = vrot.lane.b32.xlu0 %v1429, 8
      %v1554 = vpop.permute.xlu0 %1553
      %1555 = vrot.lane.b32.xlu0 %v1430, 8
      %v1556 = vpop.permute.xlu0 %1555
      %1557 = vrot.lane.b32.xlu0 %v1431, 8
      %v1558 = vpop.permute.xlu0 %1557
      %1559 = vrot.lane.b32.xlu0 %v1432, 8
      %v1560 = vpop.permute.xlu0 %1559
      %1561 = vrot.lane.b32.xlu0 %v1433, 8
      %v1562 = vpop.permute.xlu0 %1561
      %vm1595 = vcmask 97344
      %1596 = vst.msk [vmem:[%s1434 + $0x1] sm:$0xff] %vm1595, %v1500
      %1597 = vst.msk [vmem:[%s1434 + $0x9] sm:$0xff] %vm1595, %v1502
      %1598 = vst.msk [vmem:[%s1434 + $0x19] sm:$0xff] %vm1595, %v1504
      %1599 = vst.msk [vmem:[%s1434 + $0x21] sm:$0xff] %vm1595, %v1506
      %1600 = vst.msk [vmem:[%s1434 + $0x31] sm:$0xff] %vm1595, %v1508
      %1601 = vst.msk [vmem:[%s1434 + $0x39] sm:$0xff] %vm1595, %v1510
      %1602 = vst.msk [vmem:[%s1434 + $0x49] sm:$0xff] %vm1595, %v1512
      %1603 = vst.msk [vmem:[%s1434 + $0x51] sm:$0xff] %vm1595, %v1514
      %1604 = vst.msk [vmem:[%s1434 + $0x61] sm:$0xff] %vm1595, %v1516
      %1605 = vst.msk [vmem:[%s1434 + $0x69] sm:$0xff] %vm1595, %v1518
      %1606 = vst.msk [vmem:[%s1434 + $0x79] sm:$0xff] %vm1595, %v1520
      %1607 = vst.msk [vmem:[%s1434 + $0x81] sm:$0xff] %vm1595, %v1522
      %1608 = vst.msk [vmem:[%s1434 + $0x91] sm:$0xff] %vm1595, %v1524
      %1609 = vst.msk [vmem:[%s1434 + $0x99] sm:$0xff] %vm1595, %v1526
      %1610 = vst.msk [vmem:[%s1434 + $0xa9] sm:$0xff] %vm1595, %v1528
      %1611 = vst.msk [vmem:[%s1434 + $0xb1] sm:$0xff] %vm1595, %v1530
      %1612 = vst.msk [vmem:[%s1434 + $0xc1] sm:$0xff] %vm1595, %v1532
      %1613 = vst.msk [vmem:[%s1434 + $0xc9] sm:$0xff] %vm1595, %v1534
      %1614 = vst.msk [vmem:[%s1434 + $0xd9] sm:$0xff] %vm1595, %v1536
      %1615 = vst.msk [vmem:[%s1434 + $0xe1] sm:$0xff] %vm1595, %v1538
      %1616 = vst.msk [vmem:[%s1434 + $0xf1] sm:$0xff] %vm1595, %v1540
      %1617 = vst.msk [vmem:[%s1434 + $0xf9] sm:$0xff] %vm1595, %v1542
      %1618 = vst.msk [vmem:[%s1434 + $0x109] sm:$0xff] %vm1595, %v1544
      %1619 = vst.msk [vmem:[%s1434 + $0x111] sm:$0xff] %vm1595, %v1546
      %1620 = vst.msk [vmem:[%s1434 + $0x121] sm:$0xff] %vm1595, %v1548
      %1621 = vst.msk [vmem:[%s1434 + $0x129] sm:$0xff] %vm1595, %v1550
      %1622 = vst.msk [vmem:[%s1434 + $0x139] sm:$0xff] %vm1595, %v1552
      %1623 = vst.msk [vmem:[%s1434 + $0x141] sm:$0xff] %vm1595, %v1554
      %1624 = vst.msk [vmem:[%s1434 + $0x151] sm:$0xff] %vm1595, %v1556
      %1625 = vst.msk [vmem:[%s1434 + $0x159] sm:$0xff] %vm1595, %v1558
      %1626 = vst.msk [vmem:[%s1434 + $0x169] sm:$0xff] %vm1595, %v1560
      %1627 = vst.msk [vmem:[%s1434 + $0x171] sm:$0xff] %vm1595, %v1562
      %v1628 = vld [vmem:[#allocation2] sm:$0xff]
      %v1629 = vld [vmem:[#allocation2 + $0x8] sm:$0xff]
      %v1630 = vld [vmem:[#allocation2 + $0x18] sm:$0xff]
      %v1631 = vld [vmem:[#allocation2 + $0x20] sm:$0xff]
      %v1632 = vld [vmem:[#allocation2 + $0x30] sm:$0xff]
      %v1633 = vld [vmem:[#allocation2 + $0x38] sm:$0xff]
      %v1634 = vld [vmem:[#allocation2 + $0x48] sm:$0xff]
      %v1635 = vld [vmem:[#allocation2 + $0x50] sm:$0xff]
      %v1636 = vld [vmem:[#allocation2 + $0x60] sm:$0xff]
      %v1637 = vld [vmem:[#allocation2 + $0x68] sm:$0xff]
      %v1638 = vld [vmem:[#allocation2 + $0x78] sm:$0xff]
      %v1639 = vld [vmem:[#allocation2 + $0x80] sm:$0xff]
      %v1640 = vld [vmem:[#allocation2 + $0x90] sm:$0xff]
      %v1641 = vld [vmem:[#allocation2 + $0x98] sm:$0xff]
      %v1642 = vld [vmem:[#allocation2 + $0xa8] sm:$0xff]
      %v1643 = vld [vmem:[#allocation2 + $0xb0] sm:$0xff]
      %v1644 = vld [vmem:[#allocation2 + $0xc0] sm:$0xff]
      %v1645 = vld [vmem:[#allocation2 + $0xc8] sm:$0xff]
      %v1646 = vld [vmem:[#allocation2 + $0xd8] sm:$0xff]
      %v1647 = vld [vmem:[#allocation2 + $0xe0] sm:$0xff]
      %v1648 = vld [vmem:[#allocation2 + $0xf0] sm:$0xff]
      %v1649 = vld [vmem:[#allocation2 + $0xf8] sm:$0xff]
      %v1650 = vld [vmem:[#allocation2 + $0x108] sm:$0xff]
      %v1651 = vld [vmem:[#allocation2 + $0x110] sm:$0xff]
      %v1652 = vld [vmem:[#allocation2 + $0x120] sm:$0xff]
      %v1653 = vld [vmem:[#allocation2 + $0x128] sm:$0xff]
      %v1654 = vld [vmem:[#allocation2 + $0x138] sm:$0xff]
      %v1655 = vld [vmem:[#allocation2 + $0x140] sm:$0xff]
      %v1656 = vld [vmem:[#allocation2 + $0x150] sm:$0xff]
      %v1657 = vld [vmem:[#allocation2 + $0x158] sm:$0xff]
      %v1658 = vld [vmem:[#allocation2 + $0x168] sm:$0xff]
      %v1659 = vld [vmem:[#allocation2 + $0x170] sm:$0xff]
      %v1660 = vld [vmem:[%s6] sm:$0xff]
      %v1661 = vld [vmem:[%s6 + $0x8] sm:$0xf]
      %v1662 = vld [vmem:[#allocation2 + $0x1] sm:$0xff]
      %v1663 = vld [vmem:[#allocation2 + $0x9] sm:$0xff]
      %v1664 = vld [vmem:[#allocation2 + $0x19] sm:$0xff]
      %v1665 = vld [vmem:[#allocation2 + $0x21] sm:$0xff]
      %v1666 = vld [vmem:[#allocation2 + $0x31] sm:$0xff]
      %v1667 = vld [vmem:[#allocation2 + $0x39] sm:$0xff]
      %v1668 = vld [vmem:[#allocation2 + $0x49] sm:$0xff]
      %v1669 = vld [vmem:[#allocation2 + $0x51] sm:$0xff]
      %v1670 = vld [vmem:[#allocation2 + $0x61] sm:$0xff]
      %v1671 = vld [vmem:[#allocation2 + $0x69] sm:$0xff]
      %v1672 = vld [vmem:[#allocation2 + $0x79] sm:$0xff]
      %v1673 = vld [vmem:[#allocation2 + $0x81] sm:$0xff]
      %v1674 = vld [vmem:[#allocation2 + $0x91] sm:$0xff]
      %v1675 = vld [vmem:[#allocation2 + $0x99] sm:$0xff]
      %v1676 = vld [vmem:[#allocation2 + $0xa9] sm:$0xff]
      %v1677 = vld [vmem:[#allocation2 + $0xb1] sm:$0xff]
      %v1678 = vld [vmem:[#allocation2 + $0xc1] sm:$0xff]
      %v1679 = vld [vmem:[#allocation2 + $0xc9] sm:$0xff]
      %v1680 = vld [vmem:[#allocation2 + $0xd9] sm:$0xff]
      %v1681 = vld [vmem:[#allocation2 + $0xe1] sm:$0xff]
      %v1682 = vld [vmem:[#allocation2 + $0xf1] sm:$0xff]
      %v1683 = vld [vmem:[#allocation2 + $0xf9] sm:$0xff]
      %v1684 = vld [vmem:[#allocation2 + $0x109] sm:$0xff]
      %v1685 = vld [vmem:[#allocation2 + $0x111] sm:$0xff]
      %v1686 = vld [vmem:[#allocation2 + $0x121] sm:$0xff]
      %v1687 = vld [vmem:[#allocation2 + $0x129] sm:$0xff]
      %v1688 = vld [vmem:[#allocation2 + $0x139] sm:$0xff]
      %v1689 = vld [vmem:[#allocation2 + $0x141] sm:$0xff]
      %v1690 = vld [vmem:[#allocation2 + $0x151] sm:$0xff]
      %v1691 = vld [vmem:[#allocation2 + $0x159] sm:$0xff]
      %v1692 = vld [vmem:[#allocation2 + $0x169] sm:$0xff]
      %v1693 = vld [vmem:[#allocation2 + $0x171] sm:$0xff]
      %s1694 = scalar_lea.vmem %s6, 16
      %v1695 = vld [vmem:[%s1694] sm:$0xff]
      %v1696 = vld [vmem:[%s1694 + $0x8] sm:$0xf]
      %v1698 = vsel %vm1042, %v1662, 0
      %v1701 = vsel %vm1042, %v1663, 0
      %v1704 = vsel %vm1042, %v1664, 0
      %v1707 = vsel %vm1042, %v1665, 0
      %v1710 = vsel %vm1042, %v1666, 0
      %v1713 = vsel %vm1042, %v1667, 0
      %v1716 = vsel %vm1042, %v1668, 0
      %v1719 = vsel %vm1042, %v1669, 0
      %v1722 = vsel %vm1042, %v1670, 0
      %v1725 = vsel %vm1042, %v1671, 0
      %v1728 = vsel %vm1042, %v1672, 0
      %v1731 = vsel %vm1042, %v1673, 0
      %v1734 = vsel %vm1042, %v1674, 0
      %v1737 = vsel %vm1042, %v1675, 0
      %v1740 = vsel %vm1042, %v1676, 0
      %v1743 = vsel %vm1042, %v1677, 0
      %v1746 = vsel %vm1042, %v1678, 0
      %v1749 = vsel %vm1042, %v1679, 0
      %v1752 = vsel %vm1042, %v1680, 0
      %v1755 = vsel %vm1042, %v1681, 0
      %v1758 = vsel %vm1042, %v1682, 0
      %v1761 = vsel %vm1042, %v1683, 0
      %v1764 = vsel %vm1042, %v1684, 0
      %v1767 = vsel %vm1042, %v1685, 0
      %v1770 = vsel %vm1042, %v1686, 0
      %v1773 = vsel %vm1042, %v1687, 0
      %v1776 = vsel %vm1042, %v1688, 0
      %v1779 = vsel %vm1042, %v1689, 0
      %v1782 = vsel %vm1042, %v1690, 0
      %v1785 = vsel %vm1042, %v1691, 0
      %v1788 = vsel %vm1042, %v1692, 0
      %v1791 = vsel %vm1042, %v1693, 0
      %v1794 = vsel %vm647, %v1696, 0
      %1796 = vmatpush.msra.mxu0 0.0
      %1797 = vmatpush.msra.mxu0 0.0
      %1798 = vmatpush.msra.mxu0 0.0
      %1799 = vmatpush.msra.mxu0 0.0
      %1800 = vmatpush.msra.mxu0 0.0
      %1801 = vmatpush.msra.mxu0 0.0
      %1802 = vmatpush.msra.mxu0 0.0
      %1803 = vmatpush.msra.mxu0 0.0
      %1804 = vmatpush.msra.mxu0 0.0
      %1805 = vmatpush.msra.mxu0 0.0
      %1806 = vmatpush.msra.mxu0 0.0
      %1807 = vmatpush.msra.mxu0 0.0
      %1808 = vmatpush.msra.mxu0 0.0
      %1809 = vmatpush.msra.mxu0 0.0
      %1810 = vmatpush.msra.mxu0 %v1794
      %1811 = vmatpush.msra.mxu0 %v1695
      %1812 = vmatmul.f32.gmra.mxu0 %v1698
      %v1813 = vpop.f32.mrf.mxu0
      %v1814 = vadd.f32 0.0, %v1813
      %1815 = vmatmul.f32.gmra.mxu0 %v1701
      %v1816 = vpop.f32.mrf.mxu0
      %v1817 = vadd.f32 0.0, %v1816
      %1818 = vmatmul.f32.gmra.mxu0 %v1704
      %v1819 = vpop.f32.mrf.mxu0
      %v1820 = vadd.f32 0.0, %v1819
      %1821 = vmatmul.f32.gmra.mxu0 %v1707
      %v1822 = vpop.f32.mrf.mxu0
      %v1823 = vadd.f32 0.0, %v1822
      %1824 = vmatmul.f32.gmra.mxu0 %v1710
      %v1825 = vpop.f32.mrf.mxu0
      %v1826 = vadd.f32 0.0, %v1825
      %1827 = vmatmul.f32.gmra.mxu0 %v1713
      %v1828 = vpop.f32.mrf.mxu0
      %v1829 = vadd.f32 0.0, %v1828
      %1830 = vmatmul.f32.gmra.mxu0 %v1716
      %v1831 = vpop.f32.mrf.mxu0
      %v1832 = vadd.f32 0.0, %v1831
      %1833 = vmatmul.f32.gmra.mxu0 %v1719
      %v1834 = vpop.f32.mrf.mxu0
      %v1835 = vadd.f32 0.0, %v1834
      %1836 = vmatmul.f32.gmra.mxu0 %v1722
      %v1837 = vpop.f32.mrf.mxu0
      %v1838 = vadd.f32 0.0, %v1837
      %1839 = vmatmul.f32.gmra.mxu0 %v1725
      %v1840 = vpop.f32.mrf.mxu0
      %v1841 = vadd.f32 0.0, %v1840
      %1842 = vmatmul.f32.gmra.mxu0 %v1728
      %v1843 = vpop.f32.mrf.mxu0
      %v1844 = vadd.f32 0.0, %v1843
      %1845 = vmatmul.f32.gmra.mxu0 %v1731
      %v1846 = vpop.f32.mrf.mxu0
      %v1847 = vadd.f32 0.0, %v1846
      %1848 = vmatmul.f32.gmra.mxu0 %v1734
      %v1849 = vpop.f32.mrf.mxu0
      %v1850 = vadd.f32 0.0, %v1849
      %1851 = vmatmul.f32.gmra.mxu0 %v1737
      %v1852 = vpop.f32.mrf.mxu0
      %v1853 = vadd.f32 0.0, %v1852
      %1854 = vmatmul.f32.gmra.mxu0 %v1740
      %v1855 = vpop.f32.mrf.mxu0
      %v1856 = vadd.f32 0.0, %v1855
      %1857 = vmatmul.f32.gmra.mxu0 %v1743
      %v1858 = vpop.f32.mrf.mxu0
      %v1859 = vadd.f32 0.0, %v1858
      %1860 = vmatmul.f32.gmra.mxu0 %v1746
      %v1861 = vpop.f32.mrf.mxu0
      %v1862 = vadd.f32 0.0, %v1861
      %1863 = vmatmul.f32.gmra.mxu0 %v1749
      %v1864 = vpop.f32.mrf.mxu0
      %v1865 = vadd.f32 0.0, %v1864
      %1866 = vmatmul.f32.gmra.mxu0 %v1752
      %v1867 = vpop.f32.mrf.mxu0
      %v1868 = vadd.f32 0.0, %v1867
      %1869 = vmatmul.f32.gmra.mxu0 %v1755
      %v1870 = vpop.f32.mrf.mxu0
      %v1871 = vadd.f32 0.0, %v1870
      %1872 = vmatmul.f32.gmra.mxu0 %v1758
      %v1873 = vpop.f32.mrf.mxu0
      %v1874 = vadd.f32 0.0, %v1873
      %1875 = vmatmul.f32.gmra.mxu0 %v1761
      %v1876 = vpop.f32.mrf.mxu0
      %v1877 = vadd.f32 0.0, %v1876
      %1878 = vmatmul.f32.gmra.mxu0 %v1764
      %v1879 = vpop.f32.mrf.mxu0
      %v1880 = vadd.f32 0.0, %v1879
      %1881 = vmatmul.f32.gmra.mxu0 %v1767
      %v1882 = vpop.f32.mrf.mxu0
      %v1883 = vadd.f32 0.0, %v1882
      %1884 = vmatmul.f32.gmra.mxu0 %v1770
      %v1885 = vpop.f32.mrf.mxu0
      %v1886 = vadd.f32 0.0, %v1885
      %1887 = vmatmul.f32.gmra.mxu0 %v1773
      %v1888 = vpop.f32.mrf.mxu0
      %v1889 = vadd.f32 0.0, %v1888
      %1890 = vmatmul.f32.gmra.mxu0 %v1776
      %v1891 = vpop.f32.mrf.mxu0
      %v1892 = vadd.f32 0.0, %v1891
      %1893 = vmatmul.f32.gmra.mxu0 %v1779
      %v1894 = vpop.f32.mrf.mxu0
      %v1895 = vadd.f32 0.0, %v1894
      %1896 = vmatmul.f32.gmra.mxu0 %v1782
      %v1897 = vpop.f32.mrf.mxu0
      %v1898 = vadd.f32 0.0, %v1897
      %1899 = vmatmul.f32.gmra.mxu0 %v1785
      %v1900 = vpop.f32.mrf.mxu0
      %v1901 = vadd.f32 0.0, %v1900
      %1902 = vmatmul.f32.gmra.mxu0 %v1788
      %v1903 = vpop.f32.mrf.mxu0
      %v1904 = vadd.f32 0.0, %v1903
      %1905 = vmatmul.f32.gmra.mxu0 %v1791
      %v1906 = vpop.f32.mrf.mxu0
      %v1907 = vadd.f32 0.0, %v1906
      %1908 = vdwg.mxu0
      %v1910 = vsel %vm1042, %v1628, 0
      %v1913 = vsel %vm1042, %v1629, 0
      %v1916 = vsel %vm1042, %v1630, 0
      %v1919 = vsel %vm1042, %v1631, 0
      %v1922 = vsel %vm1042, %v1632, 0
      %v1925 = vsel %vm1042, %v1633, 0
      %v1928 = vsel %vm1042, %v1634, 0
      %v1931 = vsel %vm1042, %v1635, 0
      %v1934 = vsel %vm1042, %v1636, 0
      %v1937 = vsel %vm1042, %v1637, 0
      %v1940 = vsel %vm1042, %v1638, 0
      %v1943 = vsel %vm1042, %v1639, 0
      %v1946 = vsel %vm1042, %v1640, 0
      %v1949 = vsel %vm1042, %v1641, 0
      %v1952 = vsel %vm1042, %v1642, 0
      %v1955 = vsel %vm1042, %v1643, 0
      %v1958 = vsel %vm1042, %v1644, 0
      %v1961 = vsel %vm1042, %v1645, 0
      %v1964 = vsel %vm1042, %v1646, 0
      %v1967 = vsel %vm1042, %v1647, 0
      %v1970 = vsel %vm1042, %v1648, 0
      %v1973 = vsel %vm1042, %v1649, 0
      %v1976 = vsel %vm1042, %v1650, 0
      %v1979 = vsel %vm1042, %v1651, 0
      %v1982 = vsel %vm1042, %v1652, 0
      %v1985 = vsel %vm1042, %v1653, 0
      %v1988 = vsel %vm1042, %v1654, 0
      %v1991 = vsel %vm1042, %v1655, 0
      %v1994 = vsel %vm1042, %v1656, 0
      %v1997 = vsel %vm1042, %v1657, 0
      %v2000 = vsel %vm1042, %v1658, 0
      %v2003 = vsel %vm1042, %v1659, 0
      %v2006 = vsel %vm647, %v1661, 0
      %2008 = vmatpush.msra.mxu0 0.0
      %2009 = vmatpush.msra.mxu0 0.0
      %2010 = vmatpush.msra.mxu0 0.0
      %2011 = vmatpush.msra.mxu0 0.0
      %2012 = vmatpush.msra.mxu0 0.0
      %2013 = vmatpush.msra.mxu0 0.0
      %2014 = vmatpush.msra.mxu0 0.0
      %2015 = vmatpush.msra.mxu0 0.0
      %2016 = vmatpush.msra.mxu0 0.0
      %2017 = vmatpush.msra.mxu0 0.0
      %2018 = vmatpush.msra.mxu0 0.0
      %2019 = vmatpush.msra.mxu0 0.0
      %2020 = vmatpush.msra.mxu0 0.0
      %2021 = vmatpush.msra.mxu0 0.0
      %2022 = vmatpush.msra.mxu0 %v2006
      %2023 = vmatpush.msra.mxu0 %v1660
      %2024 = vmatmul.f32.gmra.mxu0 %v1910
      %v2025 = vpop.f32.mrf.mxu0
      %v2026 = vadd.f32 %v1814, %v2025
      %2027 = vmatmul.f32.gmra.mxu0 %v1913
      %v2028 = vpop.f32.mrf.mxu0
      %v2029 = vadd.f32 %v1817, %v2028
      %2030 = vmatmul.f32.gmra.mxu0 %v1916
      %v2031 = vpop.f32.mrf.mxu0
      %v2032 = vadd.f32 %v1820, %v2031
      %2033 = vmatmul.f32.gmra.mxu0 %v1919
      %v2034 = vpop.f32.mrf.mxu0
      %v2035 = vadd.f32 %v1823, %v2034
      %2036 = vmatmul.f32.gmra.mxu0 %v1922
      %v2037 = vpop.f32.mrf.mxu0
      %v2038 = vadd.f32 %v1826, %v2037
      %2039 = vmatmul.f32.gmra.mxu0 %v1925
      %v2040 = vpop.f32.mrf.mxu0
      %v2041 = vadd.f32 %v1829, %v2040
      %2042 = vmatmul.f32.gmra.mxu0 %v1928
      %v2043 = vpop.f32.mrf.mxu0
      %v2044 = vadd.f32 %v1832, %v2043
      %2045 = vmatmul.f32.gmra.mxu0 %v1931
      %v2046 = vpop.f32.mrf.mxu0
      %v2047 = vadd.f32 %v1835, %v2046
      %2048 = vmatmul.f32.gmra.mxu0 %v1934
      %v2049 = vpop.f32.mrf.mxu0
      %v2050 = vadd.f32 %v1838, %v2049
      %2051 = vmatmul.f32.gmra.mxu0 %v1937
      %v2052 = vpop.f32.mrf.mxu0
      %v2053 = vadd.f32 %v1841, %v2052
      %2054 = vmatmul.f32.gmra.mxu0 %v1940
      %v2055 = vpop.f32.mrf.mxu0
      %v2056 = vadd.f32 %v1844, %v2055
      %2057 = vmatmul.f32.gmra.mxu0 %v1943
      %v2058 = vpop.f32.mrf.mxu0
      %v2059 = vadd.f32 %v1847, %v2058
      %2060 = vmatmul.f32.gmra.mxu0 %v1946
      %v2061 = vpop.f32.mrf.mxu0
      %v2062 = vadd.f32 %v1850, %v2061
      %2063 = vmatmul.f32.gmra.mxu0 %v1949
      %v2064 = vpop.f32.mrf.mxu0
      %v2065 = vadd.f32 %v1853, %v2064
      %2066 = vmatmul.f32.gmra.mxu0 %v1952
      %v2067 = vpop.f32.mrf.mxu0
      %v2068 = vadd.f32 %v1856, %v2067
      %2069 = vmatmul.f32.gmra.mxu0 %v1955
      %v2070 = vpop.f32.mrf.mxu0
      %v2071 = vadd.f32 %v1859, %v2070
      %2072 = vmatmul.f32.gmra.mxu0 %v1958
      %v2073 = vpop.f32.mrf.mxu0
      %v2074 = vadd.f32 %v1862, %v2073
      %2075 = vmatmul.f32.gmra.mxu0 %v1961
      %v2076 = vpop.f32.mrf.mxu0
      %v2077 = vadd.f32 %v1865, %v2076
      %2078 = vmatmul.f32.gmra.mxu0 %v1964
      %v2079 = vpop.f32.mrf.mxu0
      %v2080 = vadd.f32 %v1868, %v2079
      %2081 = vmatmul.f32.gmra.mxu0 %v1967
      %v2082 = vpop.f32.mrf.mxu0
      %v2083 = vadd.f32 %v1871, %v2082
      %2084 = vmatmul.f32.gmra.mxu0 %v1970
      %v2085 = vpop.f32.mrf.mxu0
      %v2086 = vadd.f32 %v1874, %v2085
      %2087 = vmatmul.f32.gmra.mxu0 %v1973
      %v2088 = vpop.f32.mrf.mxu0
      %v2089 = vadd.f32 %v1877, %v2088
      %2090 = vmatmul.f32.gmra.mxu0 %v1976
      %v2091 = vpop.f32.mrf.mxu0
      %v2092 = vadd.f32 %v1880, %v2091
      %2093 = vmatmul.f32.gmra.mxu0 %v1979
      %v2094 = vpop.f32.mrf.mxu0
      %v2095 = vadd.f32 %v1883, %v2094
      %2096 = vmatmul.f32.gmra.mxu0 %v1982
      %v2097 = vpop.f32.mrf.mxu0
      %v2098 = vadd.f32 %v1886, %v2097
      %2099 = vmatmul.f32.gmra.mxu0 %v1985
      %v2100 = vpop.f32.mrf.mxu0
      %v2101 = vadd.f32 %v1889, %v2100
      %2102 = vmatmul.f32.gmra.mxu0 %v1988
      %v2103 = vpop.f32.mrf.mxu0
      %v2104 = vadd.f32 %v1892, %v2103
      %2105 = vmatmul.f32.gmra.mxu0 %v1991
      %v2106 = vpop.f32.mrf.mxu0
      %v2107 = vadd.f32 %v1895, %v2106
      %2108 = vmatmul.f32.gmra.mxu0 %v1994
      %v2109 = vpop.f32.mrf.mxu0
      %v2110 = vadd.f32 %v1898, %v2109
      %2111 = vmatmul.f32.gmra.mxu0 %v1997
      %v2112 = vpop.f32.mrf.mxu0
      %v2113 = vadd.f32 %v1901, %v2112
      %2114 = vmatmul.f32.gmra.mxu0 %v2000
      %v2115 = vpop.f32.mrf.mxu0
      %v2116 = vadd.f32 %v1904, %v2115
      %2117 = vmatmul.f32.gmra.mxu0 %v2003
      %v2118 = vpop.f32.mrf.mxu0
      %v2119 = vadd.f32 %v1907, %v2118
      %2120 = vdwg.mxu0
      %v2121 = vld [vmem:[#allocation2 + $0x2] sm:$0xff]
      %v2122 = vld [vmem:[#allocation2 + $0xa] sm:$0xff]
      %v2123 = vld [vmem:[#allocation2 + $0x1a] sm:$0xff]
      %v2124 = vld [vmem:[#allocation2 + $0x22] sm:$0xff]
      %v2125 = vld [vmem:[#allocation2 + $0x32] sm:$0xff]
      %v2126 = vld [vmem:[#allocation2 + $0x3a] sm:$0xff]
      %v2127 = vld [vmem:[#allocation2 + $0x4a] sm:$0xff]
      %v2128 = vld [vmem:[#allocation2 + $0x52] sm:$0xff]
      %v2129 = vld [vmem:[#allocation2 + $0x62] sm:$0xff]
      %v2130 = vld [vmem:[#allocation2 + $0x6a] sm:$0xff]
      %v2131 = vld [vmem:[#allocation2 + $0x7a] sm:$0xff]
      %v2132 = vld [vmem:[#allocation2 + $0x82] sm:$0xff]
      %v2133 = vld [vmem:[#allocation2 + $0x92] sm:$0xff]
      %v2134 = vld [vmem:[#allocation2 + $0x9a] sm:$0xff]
      %v2135 = vld [vmem:[#allocation2 + $0xaa] sm:$0xff]
      %v2136 = vld [vmem:[#allocation2 + $0xb2] sm:$0xff]
      %v2137 = vld [vmem:[#allocation2 + $0xc2] sm:$0xff]
      %v2138 = vld [vmem:[#allocation2 + $0xca] sm:$0xff]
      %v2139 = vld [vmem:[#allocation2 + $0xda] sm:$0xff]
      %v2140 = vld [vmem:[#allocation2 + $0xe2] sm:$0xff]
      %v2141 = vld [vmem:[#allocation2 + $0xf2] sm:$0xff]
      %v2142 = vld [vmem:[#allocation2 + $0xfa] sm:$0xff]
      %v2143 = vld [vmem:[#allocation2 + $0x10a] sm:$0xff]
      %v2144 = vld [vmem:[#allocation2 + $0x112] sm:$0xff]
      %v2145 = vld [vmem:[#allocation2 + $0x122] sm:$0xff]
      %v2146 = vld [vmem:[#allocation2 + $0x12a] sm:$0xff]
      %v2147 = vld [vmem:[#allocation2 + $0x13a] sm:$0xff]
      %v2148 = vld [vmem:[#allocation2 + $0x142] sm:$0xff]
      %v2149 = vld [vmem:[#allocation2 + $0x152] sm:$0xff]
      %v2150 = vld [vmem:[#allocation2 + $0x15a] sm:$0xff]
      %v2151 = vld [vmem:[#allocation2 + $0x16a] sm:$0xff]
      %v2152 = vld [vmem:[#allocation2 + $0x172] sm:$0xff]
      %s2153 = scalar_lea.vmem %s6, 32
      %v2154 = vld [vmem:[%s2153] sm:$0xff]
      %v2155 = vld [vmem:[%s2153 + $0x8] sm:$0xf]
      %v2157 = vsel %vm1042, %v2121, 0
      %v2160 = vsel %vm1042, %v2122, 0
      %v2163 = vsel %vm1042, %v2123, 0
      %v2166 = vsel %vm1042, %v2124, 0
      %v2169 = vsel %vm1042, %v2125, 0
      %v2172 = vsel %vm1042, %v2126, 0
      %v2175 = vsel %vm1042, %v2127, 0
      %v2178 = vsel %vm1042, %v2128, 0
      %v2181 = vsel %vm1042, %v2129, 0
      %v2184 = vsel %vm1042, %v2130, 0
      %v2187 = vsel %vm1042, %v2131, 0
      %v2190 = vsel %vm1042, %v2132, 0
      %v2193 = vsel %vm1042, %v2133, 0
      %v2196 = vsel %vm1042, %v2134, 0
      %v2199 = vsel %vm1042, %v2135, 0
      %v2202 = vsel %vm1042, %v2136, 0
      %v2205 = vsel %vm1042, %v2137, 0
      %v2208 = vsel %vm1042, %v2138, 0
      %v2211 = vsel %vm1042, %v2139, 0
      %v2214 = vsel %vm1042, %v2140, 0
      %v2217 = vsel %vm1042, %v2141, 0
      %v2220 = vsel %vm1042, %v2142, 0
      %v2223 = vsel %vm1042, %v2143, 0
      %v2226 = vsel %vm1042, %v2144, 0
      %v2229 = vsel %vm1042, %v2145, 0
      %v2232 = vsel %vm1042, %v2146, 0
      %v2235 = vsel %vm1042, %v2147, 0
      %v2238 = vsel %vm1042, %v2148, 0
      %v2241 = vsel %vm1042, %v2149, 0
      %v2244 = vsel %vm1042, %v2150, 0
      %v2247 = vsel %vm1042, %v2151, 0
      %v2250 = vsel %vm1042, %v2152, 0
      %v2253 = vsel %vm647, %v2155, 0
      %2255 = vmatpush.msra.mxu0 0.0
      %2256 = vmatpush.msra.mxu0 0.0
      %2257 = vmatpush.msra.mxu0 0.0
      %2258 = vmatpush.msra.mxu0 0.0
      %2259 = vmatpush.msra.mxu0 0.0
      %2260 = vmatpush.msra.mxu0 0.0
      %2261 = vmatpush.msra.mxu0 0.0
      %2262 = vmatpush.msra.mxu0 0.0
      %2263 = vmatpush.msra.mxu0 0.0
      %2264 = vmatpush.msra.mxu0 0.0
      %2265 = vmatpush.msra.mxu0 0.0
      %2266 = vmatpush.msra.mxu0 0.0
      %2267 = vmatpush.msra.mxu0 0.0
      %2268 = vmatpush.msra.mxu0 0.0
      %2269 = vmatpush.msra.mxu0 %v2253
      %2270 = vmatpush.msra.mxu0 %v2154
      %2271 = vmatmul.f32.gmra.mxu0 %v2157
      %v2272 = vpop.f32.mrf.mxu0
      %v2273 = vadd.f32 0.0, %v2272
      %2274 = vmatmul.f32.gmra.mxu0 %v2160
      %v2275 = vpop.f32.mrf.mxu0
      %v2276 = vadd.f32 0.0, %v2275
      %2277 = vmatmul.f32.gmra.mxu0 %v2163
      %v2278 = vpop.f32.mrf.mxu0
      %v2279 = vadd.f32 0.0, %v2278
      %2280 = vmatmul.f32.gmra.mxu0 %v2166
      %v2281 = vpop.f32.mrf.mxu0
      %v2282 = vadd.f32 0.0, %v2281
      %2283 = vmatmul.f32.gmra.mxu0 %v2169
      %v2284 = vpop.f32.mrf.mxu0
      %v2285 = vadd.f32 0.0, %v2284
      %2286 = vmatmul.f32.gmra.mxu0 %v2172
      %v2287 = vpop.f32.mrf.mxu0
      %v2288 = vadd.f32 0.0, %v2287
      %2289 = vmatmul.f32.gmra.mxu0 %v2175
      %v2290 = vpop.f32.mrf.mxu0
      %v2291 = vadd.f32 0.0, %v2290
      %2292 = vmatmul.f32.gmra.mxu0 %v2178
      %v2293 = vpop.f32.mrf.mxu0
      %v2294 = vadd.f32 0.0, %v2293
      %2295 = vmatmul.f32.gmra.mxu0 %v2181
      %v2296 = vpop.f32.mrf.mxu0
      %v2297 = vadd.f32 0.0, %v2296
      %2298 = vmatmul.f32.gmra.mxu0 %v2184
      %v2299 = vpop.f32.mrf.mxu0
      %v2300 = vadd.f32 0.0, %v2299
      %2301 = vmatmul.f32.gmra.mxu0 %v2187
      %v2302 = vpop.f32.mrf.mxu0
      %v2303 = vadd.f32 0.0, %v2302
      %2304 = vmatmul.f32.gmra.mxu0 %v2190
      %v2305 = vpop.f32.mrf.mxu0
      %v2306 = vadd.f32 0.0, %v2305
      %2307 = vmatmul.f32.gmra.mxu0 %v2193
      %v2308 = vpop.f32.mrf.mxu0
      %v2309 = vadd.f32 0.0, %v2308
      %2310 = vmatmul.f32.gmra.mxu0 %v2196
      %v2311 = vpop.f32.mrf.mxu0
      %v2312 = vadd.f32 0.0, %v2311
      %2313 = vmatmul.f32.gmra.mxu0 %v2199
      %v2314 = vpop.f32.mrf.mxu0
      %v2315 = vadd.f32 0.0, %v2314
      %2316 = vmatmul.f32.gmra.mxu0 %v2202
      %v2317 = vpop.f32.mrf.mxu0
      %v2318 = vadd.f32 0.0, %v2317
      %2319 = vmatmul.f32.gmra.mxu0 %v2205
      %v2320 = vpop.f32.mrf.mxu0
      %v2321 = vadd.f32 0.0, %v2320
      %2322 = vmatmul.f32.gmra.mxu0 %v2208
      %v2323 = vpop.f32.mrf.mxu0
      %v2324 = vadd.f32 0.0, %v2323
      %2325 = vmatmul.f32.gmra.mxu0 %v2211
      %v2326 = vpop.f32.mrf.mxu0
      %v2327 = vadd.f32 0.0, %v2326
      %2328 = vmatmul.f32.gmra.mxu0 %v2214
      %v2329 = vpop.f32.mrf.mxu0
      %v2330 = vadd.f32 0.0, %v2329
      %2331 = vmatmul.f32.gmra.mxu0 %v2217
      %v2332 = vpop.f32.mrf.mxu0
      %v2333 = vadd.f32 0.0, %v2332
      %2334 = vmatmul.f32.gmra.mxu0 %v2220
      %v2335 = vpop.f32.mrf.mxu0
      %v2336 = vadd.f32 0.0, %v2335
      %2337 = vmatmul.f32.gmra.mxu0 %v2223
      %v2338 = vpop.f32.mrf.mxu0
      %v2339 = vadd.f32 0.0, %v2338
      %2340 = vmatmul.f32.gmra.mxu0 %v2226
      %v2341 = vpop.f32.mrf.mxu0
      %v2342 = vadd.f32 0.0, %v2341
      %2343 = vmatmul.f32.gmra.mxu0 %v2229
      %v2344 = vpop.f32.mrf.mxu0
      %v2345 = vadd.f32 0.0, %v2344
      %2346 = vmatmul.f32.gmra.mxu0 %v2232
      %v2347 = vpop.f32.mrf.mxu0
      %v2348 = vadd.f32 0.0, %v2347
      %2349 = vmatmul.f32.gmra.mxu0 %v2235
      %v2350 = vpop.f32.mrf.mxu0
      %v2351 = vadd.f32 0.0, %v2350
      %2352 = vmatmul.f32.gmra.mxu0 %v2238
      %v2353 = vpop.f32.mrf.mxu0
      %v2354 = vadd.f32 0.0, %v2353
      %2355 = vmatmul.f32.gmra.mxu0 %v2241
      %v2356 = vpop.f32.mrf.mxu0
      %v2357 = vadd.f32 0.0, %v2356
      %2358 = vmatmul.f32.gmra.mxu0 %v2244
      %v2359 = vpop.f32.mrf.mxu0
      %v2360 = vadd.f32 0.0, %v2359
      %2361 = vmatmul.f32.gmra.mxu0 %v2247
      %v2362 = vpop.f32.mrf.mxu0
      %v2363 = vadd.f32 0.0, %v2362
      %2364 = vmatmul.f32.gmra.mxu0 %v2250
      %v2365 = vpop.f32.mrf.mxu0
      %v2366 = vadd.f32 0.0, %v2365
      %2367 = vdwg.mxu0
      %v2368 = vadd.f32 %v2026, %v2273
      %v2369 = vadd.f32 %v2029, %v2276
      %v2370 = vadd.f32 %v2032, %v2279
      %v2371 = vadd.f32 %v2035, %v2282
      %v2372 = vadd.f32 %v2038, %v2285
      %v2373 = vadd.f32 %v2041, %v2288
      %v2374 = vadd.f32 %v2044, %v2291
      %v2375 = vadd.f32 %v2047, %v2294
      %v2376 = vadd.f32 %v2050, %v2297
      %v2377 = vadd.f32 %v2053, %v2300
      %v2378 = vadd.f32 %v2056, %v2303
      %v2379 = vadd.f32 %v2059, %v2306
      %v2380 = vadd.f32 %v2062, %v2309
      %v2381 = vadd.f32 %v2065, %v2312
      %v2382 = vadd.f32 %v2068, %v2315
      %v2383 = vadd.f32 %v2071, %v2318
      %v2384 = vadd.f32 %v2074, %v2321
      %v2385 = vadd.f32 %v2077, %v2324
      %v2386 = vadd.f32 %v2080, %v2327
      %v2387 = vadd.f32 %v2083, %v2330
      %v2388 = vadd.f32 %v2086, %v2333
      %v2389 = vadd.f32 %v2089, %v2336
      %v2390 = vadd.f32 %v2092, %v2339
      %v2391 = vadd.f32 %v2095, %v2342
      %v2392 = vadd.f32 %v2098, %v2345
      %v2393 = vadd.f32 %v2101, %v2348
      %v2394 = vadd.f32 %v2104, %v2351
      %v2395 = vadd.f32 %v2107, %v2354
      %v2396 = vadd.f32 %v2110, %v2357
      %v2397 = vadd.f32 %v2113, %v2360
      %v2398 = vadd.f32 %v2116, %v2363
      %v2399 = vadd.f32 %v2119, %v2366
      %v2400 = vld [vmem:[%s1434] sm:$0xff]
      %v2401 = vld [vmem:[%s1434 + $0x8] sm:$0xff]
      %v2402 = vld [vmem:[%s1434 + $0x18] sm:$0xff]
      %v2403 = vld [vmem:[%s1434 + $0x20] sm:$0xff]
      %v2404 = vld [vmem:[%s1434 + $0x30] sm:$0xff]
      %v2405 = vld [vmem:[%s1434 + $0x38] sm:$0xff]
      %v2406 = vld [vmem:[%s1434 + $0x48] sm:$0xff]
      %v2407 = vld [vmem:[%s1434 + $0x50] sm:$0xff]
      %v2408 = vld [vmem:[%s1434 + $0x60] sm:$0xff]
      %v2409 = vld [vmem:[%s1434 + $0x68] sm:$0xff]
      %v2410 = vld [vmem:[%s1434 + $0x78] sm:$0xff]
      %v2411 = vld [vmem:[%s1434 + $0x80] sm:$0xff]
      %v2412 = vld [vmem:[%s1434 + $0x90] sm:$0xff]
      %v2413 = vld [vmem:[%s1434 + $0x98] sm:$0xff]
      %v2414 = vld [vmem:[%s1434 + $0xa8] sm:$0xff]
      %v2415 = vld [vmem:[%s1434 + $0xb0] sm:$0xff]
      %v2416 = vld [vmem:[%s1434 + $0xc0] sm:$0xff]
      %v2417 = vld [vmem:[%s1434 + $0xc8] sm:$0xff]
      %v2418 = vld [vmem:[%s1434 + $0xd8] sm:$0xff]
      %v2419 = vld [vmem:[%s1434 + $0xe0] sm:$0xff]
      %v2420 = vld [vmem:[%s1434 + $0xf0] sm:$0xff]
      %v2421 = vld [vmem:[%s1434 + $0xf8] sm:$0xff]
      %v2422 = vld [vmem:[%s1434 + $0x108] sm:$0xff]
      %v2423 = vld [vmem:[%s1434 + $0x110] sm:$0xff]
      %v2424 = vld [vmem:[%s1434 + $0x120] sm:$0xff]
      %v2425 = vld [vmem:[%s1434 + $0x128] sm:$0xff]
      %v2426 = vld [vmem:[%s1434 + $0x138] sm:$0xff]
      %v2427 = vld [vmem:[%s1434 + $0x140] sm:$0xff]
      %v2428 = vld [vmem:[%s1434 + $0x150] sm:$0xff]
      %v2429 = vld [vmem:[%s1434 + $0x158] sm:$0xff]
      %v2430 = vld [vmem:[%s1434 + $0x168] sm:$0xff]
      %v2431 = vld [vmem:[%s1434 + $0x170] sm:$0xff]
      %s2432 = scalar_lea.vmem %s6, 48
      %v2433 = vld [vmem:[%s2432] sm:$0xff]
      %v2434 = vld [vmem:[%s2432 + $0x8] sm:$0xf]
      %v2436 = vsel %vm1042, %v2400, 0
      %v2439 = vsel %vm1042, %v2401, 0
      %v2442 = vsel %vm1042, %v2402, 0
      %v2445 = vsel %vm1042, %v2403, 0
      %v2448 = vsel %vm1042, %v2404, 0
      %v2451 = vsel %vm1042, %v2405, 0
      %v2454 = vsel %vm1042, %v2406, 0
      %v2457 = vsel %vm1042, %v2407, 0
      %v2460 = vsel %vm1042, %v2408, 0
      %v2463 = vsel %vm1042, %v2409, 0
      %v2466 = vsel %vm1042, %v2410, 0
      %v2469 = vsel %vm1042, %v2411, 0
      %v2472 = vsel %vm1042, %v2412, 0
      %v2475 = vsel %vm1042, %v2413, 0
      %v2478 = vsel %vm1042, %v2414, 0
      %v2481 = vsel %vm1042, %v2415, 0
      %v2484 = vsel %vm1042, %v2416, 0
      %v2487 = vsel %vm1042, %v2417, 0
      %v2490 = vsel %vm1042, %v2418, 0
      %v2493 = vsel %vm1042, %v2419, 0
      %v2496 = vsel %vm1042, %v2420, 0
      %v2499 = vsel %vm1042, %v2421, 0
      %v2502 = vsel %vm1042, %v2422, 0
      %v2505 = vsel %vm1042, %v2423, 0
      %v2508 = vsel %vm1042, %v2424, 0
      %v2511 = vsel %vm1042, %v2425, 0
      %v2514 = vsel %vm1042, %v2426, 0
      %v2517 = vsel %vm1042, %v2427, 0
      %v2520 = vsel %vm1042, %v2428, 0
      %v2523 = vsel %vm1042, %v2429, 0
      %v2526 = vsel %vm1042, %v2430, 0
      %v2529 = vsel %vm1042, %v2431, 0
      %v2532 = vsel %vm647, %v2434, 0
      %2534 = vmatpush.msra.mxu0 0.0
      %2535 = vmatpush.msra.mxu0 0.0
      %2536 = vmatpush.msra.mxu0 0.0
      %2537 = vmatpush.msra.mxu0 0.0
      %2538 = vmatpush.msra.mxu0 0.0
      %2539 = vmatpush.msra.mxu0 0.0
      %2540 = vmatpush.msra.mxu0 0.0
      %2541 = vmatpush.msra.mxu0 0.0
      %2542 = vmatpush.msra.mxu0 0.0
      %2543 = vmatpush.msra.mxu0 0.0
      %2544 = vmatpush.msra.mxu0 0.0
      %2545 = vmatpush.msra.mxu0 0.0
      %2546 = vmatpush.msra.mxu0 0.0
      %2547 = vmatpush.msra.mxu0 0.0
      %2548 = vmatpush.msra.mxu0 %v2532
      %2549 = vmatpush.msra.mxu0 %v2433
      %2550 = vmatmul.f32.gmra.mxu0 %v2436
      %v2551 = vpop.f32.mrf.mxu0
      %v2552 = vadd.f32 0.0, %v2551
      %2553 = vmatmul.f32.gmra.mxu0 %v2439
      %v2554 = vpop.f32.mrf.mxu0
      %v2555 = vadd.f32 0.0, %v2554
      %2556 = vmatmul.f32.gmra.mxu0 %v2442
      %v2557 = vpop.f32.mrf.mxu0
      %v2558 = vadd.f32 0.0, %v2557
      %2559 = vmatmul.f32.gmra.mxu0 %v2445
      %v2560 = vpop.f32.mrf.mxu0
      %v2561 = vadd.f32 0.0, %v2560
      %2562 = vmatmul.f32.gmra.mxu0 %v2448
      %v2563 = vpop.f32.mrf.mxu0
      %v2564 = vadd.f32 0.0, %v2563
      %2565 = vmatmul.f32.gmra.mxu0 %v2451
      %v2566 = vpop.f32.mrf.mxu0
      %v2567 = vadd.f32 0.0, %v2566
      %2568 = vmatmul.f32.gmra.mxu0 %v2454
      %v2569 = vpop.f32.mrf.mxu0
      %v2570 = vadd.f32 0.0, %v2569
      %2571 = vmatmul.f32.gmra.mxu0 %v2457
      %v2572 = vpop.f32.mrf.mxu0
      %v2573 = vadd.f32 0.0, %v2572
      %2574 = vmatmul.f32.gmra.mxu0 %v2460
      %v2575 = vpop.f32.mrf.mxu0
      %v2576 = vadd.f32 0.0, %v2575
      %2577 = vmatmul.f32.gmra.mxu0 %v2463
      %v2578 = vpop.f32.mrf.mxu0
      %v2579 = vadd.f32 0.0, %v2578
      %2580 = vmatmul.f32.gmra.mxu0 %v2466
      %v2581 = vpop.f32.mrf.mxu0
      %v2582 = vadd.f32 0.0, %v2581
      %2583 = vmatmul.f32.gmra.mxu0 %v2469
      %v2584 = vpop.f32.mrf.mxu0
      %v2585 = vadd.f32 0.0, %v2584
      %2586 = vmatmul.f32.gmra.mxu0 %v2472
      %v2587 = vpop.f32.mrf.mxu0
      %v2588 = vadd.f32 0.0, %v2587
      %2589 = vmatmul.f32.gmra.mxu0 %v2475
      %v2590 = vpop.f32.mrf.mxu0
      %v2591 = vadd.f32 0.0, %v2590
      %2592 = vmatmul.f32.gmra.mxu0 %v2478
      %v2593 = vpop.f32.mrf.mxu0
      %v2594 = vadd.f32 0.0, %v2593
      %2595 = vmatmul.f32.gmra.mxu0 %v2481
      %v2596 = vpop.f32.mrf.mxu0
      %v2597 = vadd.f32 0.0, %v2596
      %2598 = vmatmul.f32.gmra.mxu0 %v2484
      %v2599 = vpop.f32.mrf.mxu0
      %v2600 = vadd.f32 0.0, %v2599
      %2601 = vmatmul.f32.gmra.mxu0 %v2487
      %v2602 = vpop.f32.mrf.mxu0
      %v2603 = vadd.f32 0.0, %v2602
      %2604 = vmatmul.f32.gmra.mxu0 %v2490
      %v2605 = vpop.f32.mrf.mxu0
      %v2606 = vadd.f32 0.0, %v2605
      %2607 = vmatmul.f32.gmra.mxu0 %v2493
      %v2608 = vpop.f32.mrf.mxu0
      %v2609 = vadd.f32 0.0, %v2608
      %2610 = vmatmul.f32.gmra.mxu0 %v2496
      %v2611 = vpop.f32.mrf.mxu0
      %v2612 = vadd.f32 0.0, %v2611
      %2613 = vmatmul.f32.gmra.mxu0 %v2499
      %v2614 = vpop.f32.mrf.mxu0
      %v2615 = vadd.f32 0.0, %v2614
      %2616 = vmatmul.f32.gmra.mxu0 %v2502
      %v2617 = vpop.f32.mrf.mxu0
      %v2618 = vadd.f32 0.0, %v2617
      %2619 = vmatmul.f32.gmra.mxu0 %v2505
      %v2620 = vpop.f32.mrf.mxu0
      %v2621 = vadd.f32 0.0, %v2620
      %2622 = vmatmul.f32.gmra.mxu0 %v2508
      %v2623 = vpop.f32.mrf.mxu0
      %v2624 = vadd.f32 0.0, %v2623
      %2625 = vmatmul.f32.gmra.mxu0 %v2511
      %v2626 = vpop.f32.mrf.mxu0
      %v2627 = vadd.f32 0.0, %v2626
      %2628 = vmatmul.f32.gmra.mxu0 %v2514
      %v2629 = vpop.f32.mrf.mxu0
      %v2630 = vadd.f32 0.0, %v2629
      %2631 = vmatmul.f32.gmra.mxu0 %v2517
      %v2632 = vpop.f32.mrf.mxu0
      %v2633 = vadd.f32 0.0, %v2632
      %2634 = vmatmul.f32.gmra.mxu0 %v2520
      %v2635 = vpop.f32.mrf.mxu0
      %v2636 = vadd.f32 0.0, %v2635
      %2637 = vmatmul.f32.gmra.mxu0 %v2523
      %v2638 = vpop.f32.mrf.mxu0
      %v2639 = vadd.f32 0.0, %v2638
      %2640 = vmatmul.f32.gmra.mxu0 %v2526
      %v2641 = vpop.f32.mrf.mxu0
      %v2642 = vadd.f32 0.0, %v2641
      %2643 = vmatmul.f32.gmra.mxu0 %v2529
      %v2644 = vpop.f32.mrf.mxu0
      %v2645 = vadd.f32 0.0, %v2644
      %2646 = vdwg.mxu0
      %v2647 = vadd.f32 %v2368, %v2552
      %v2648 = vadd.f32 %v2369, %v2555
      %v2649 = vadd.f32 %v2370, %v2558
      %v2650 = vadd.f32 %v2371, %v2561
      %v2651 = vadd.f32 %v2372, %v2564
      %v2652 = vadd.f32 %v2373, %v2567
      %v2653 = vadd.f32 %v2374, %v2570
      %v2654 = vadd.f32 %v2375, %v2573
      %v2655 = vadd.f32 %v2376, %v2576
      %v2656 = vadd.f32 %v2377, %v2579
      %v2657 = vadd.f32 %v2378, %v2582
      %v2658 = vadd.f32 %v2379, %v2585
      %v2659 = vadd.f32 %v2380, %v2588
      %v2660 = vadd.f32 %v2381, %v2591
      %v2661 = vadd.f32 %v2382, %v2594
      %v2662 = vadd.f32 %v2383, %v2597
      %v2663 = vadd.f32 %v2384, %v2600
      %v2664 = vadd.f32 %v2385, %v2603
      %v2665 = vadd.f32 %v2386, %v2606
      %v2666 = vadd.f32 %v2387, %v2609
      %v2667 = vadd.f32 %v2388, %v2612
      %v2668 = vadd.f32 %v2389, %v2615
      %v2669 = vadd.f32 %v2390, %v2618
      %v2670 = vadd.f32 %v2391, %v2621
      %v2671 = vadd.f32 %v2392, %v2624
      %v2672 = vadd.f32 %v2393, %v2627
      %v2673 = vadd.f32 %v2394, %v2630
      %v2674 = vadd.f32 %v2395, %v2633
      %v2675 = vadd.f32 %v2396, %v2636
      %v2676 = vadd.f32 %v2397, %v2639
      %v2677 = vadd.f32 %v2398, %v2642
      %v2678 = vadd.f32 %v2399, %v2645
      %v2679 = vld [vmem:[%s1434 + $0x1] sm:$0xff]
      %v2680 = vld [vmem:[%s1434 + $0x9] sm:$0xff]
      %v2681 = vld [vmem:[%s1434 + $0x19] sm:$0xff]
      %v2682 = vld [vmem:[%s1434 + $0x21] sm:$0xff]
      %v2683 = vld [vmem:[%s1434 + $0x31] sm:$0xff]
      %v2684 = vld [vmem:[%s1434 + $0x39] sm:$0xff]
      %v2685 = vld [vmem:[%s1434 + $0x49] sm:$0xff]
      %v2686 = vld [vmem:[%s1434 + $0x51] sm:$0xff]
      %v2687 = vld [vmem:[%s1434 + $0x61] sm:$0xff]
      %v2688 = vld [vmem:[%s1434 + $0x69] sm:$0xff]
      %v2689 = vld [vmem:[%s1434 + $0x79] sm:$0xff]
      %v2690 = vld [vmem:[%s1434 + $0x81] sm:$0xff]
      %v2691 = vld [vmem:[%s1434 + $0x91] sm:$0xff]
      %v2692 = vld [vmem:[%s1434 + $0x99] sm:$0xff]
      %v2693 = vld [vmem:[%s1434 + $0xa9] sm:$0xff]
      %v2694 = vld [vmem:[%s1434 + $0xb1] sm:$0xff]
      %v2695 = vld [vmem:[%s1434 + $0xc1] sm:$0xff]
      %v2696 = vld [vmem:[%s1434 + $0xc9] sm:$0xff]
      %v2697 = vld [vmem:[%s1434 + $0xd9] sm:$0xff]
      %v2698 = vld [vmem:[%s1434 + $0xe1] sm:$0xff]
      %v2699 = vld [vmem:[%s1434 + $0xf1] sm:$0xff]
      %v2700 = vld [vmem:[%s1434 + $0xf9] sm:$0xff]
      %v2701 = vld [vmem:[%s1434 + $0x109] sm:$0xff]
      %v2702 = vld [vmem:[%s1434 + $0x111] sm:$0xff]
      %v2703 = vld [vmem:[%s1434 + $0x121] sm:$0xff]
      %v2704 = vld [vmem:[%s1434 + $0x129] sm:$0xff]
      %v2705 = vld [vmem:[%s1434 + $0x139] sm:$0xff]
      %v2706 = vld [vmem:[%s1434 + $0x141] sm:$0xff]
      %v2707 = vld [vmem:[%s1434 + $0x151] sm:$0xff]
      %v2708 = vld [vmem:[%s1434 + $0x159] sm:$0xff]
      %v2709 = vld [vmem:[%s1434 + $0x169] sm:$0xff]
      %v2710 = vld [vmem:[%s1434 + $0x171] sm:$0xff]
      %s2711 = scalar_lea.vmem %s6, 64
      %v2712 = vld [vmem:[%s2711] sm:$0xff]
      %v2713 = vld [vmem:[%s2711 + $0x8] sm:$0xf]
      %v2715 = vsel %vm1042, %v2679, 0
      %v2718 = vsel %vm1042, %v2680, 0
      %v2721 = vsel %vm1042, %v2681, 0
      %v2724 = vsel %vm1042, %v2682, 0
      %v2727 = vsel %vm1042, %v2683, 0
      %v2730 = vsel %vm1042, %v2684, 0
      %v2733 = vsel %vm1042, %v2685, 0
      %v2736 = vsel %vm1042, %v2686, 0
      %v2739 = vsel %vm1042, %v2687, 0
      %v2742 = vsel %vm1042, %v2688, 0
      %v2745 = vsel %vm1042, %v2689, 0
      %v2748 = vsel %vm1042, %v2690, 0
      %v2751 = vsel %vm1042, %v2691, 0
      %v2754 = vsel %vm1042, %v2692, 0
      %v2757 = vsel %vm1042, %v2693, 0
      %v2760 = vsel %vm1042, %v2694, 0
      %v2763 = vsel %vm1042, %v2695, 0
      %v2766 = vsel %vm1042, %v2696, 0
      %v2769 = vsel %vm1042, %v2697, 0
      %v2772 = vsel %vm1042, %v2698, 0
      %v2775 = vsel %vm1042, %v2699, 0
      %v2778 = vsel %vm1042, %v2700, 0
      %v2781 = vsel %vm1042, %v2701, 0
      %v2784 = vsel %vm1042, %v2702, 0
      %v2787 = vsel %vm1042, %v2703, 0
      %v2790 = vsel %vm1042, %v2704, 0
      %v2793 = vsel %vm1042, %v2705, 0
      %v2796 = vsel %vm1042, %v2706, 0
      %v2799 = vsel %vm1042, %v2707, 0
      %v2802 = vsel %vm1042, %v2708, 0
      %v2805 = vsel %vm1042, %v2709, 0
      %v2808 = vsel %vm1042, %v2710, 0
      %v2811 = vsel %vm647, %v2713, 0
      %2813 = vmatpush.msra.mxu0 0.0
      %2814 = vmatpush.msra.mxu0 0.0
      %2815 = vmatpush.msra.mxu0 0.0
      %2816 = vmatpush.msra.mxu0 0.0
      %2817 = vmatpush.msra.mxu0 0.0
      %2818 = vmatpush.msra.mxu0 0.0
      %2819 = vmatpush.msra.mxu0 0.0
      %2820 = vmatpush.msra.mxu0 0.0
      %2821 = vmatpush.msra.mxu0 0.0
      %2822 = vmatpush.msra.mxu0 0.0
      %2823 = vmatpush.msra.mxu0 0.0
      %2824 = vmatpush.msra.mxu0 0.0
      %2825 = vmatpush.msra.mxu0 0.0
      %2826 = vmatpush.msra.mxu0 0.0
      %2827 = vmatpush.msra.mxu0 %v2811
      %2828 = vmatpush.msra.mxu0 %v2712
      %2829 = vmatmul.f32.gmra.mxu0 %v2715
      %v2830 = vpop.f32.mrf.mxu0
      %v2831 = vadd.f32 0.0, %v2830
      %2832 = vmatmul.f32.gmra.mxu0 %v2718
      %v2833 = vpop.f32.mrf.mxu0
      %v2834 = vadd.f32 0.0, %v2833
      %2835 = vmatmul.f32.gmra.mxu0 %v2721
      %v2836 = vpop.f32.mrf.mxu0
      %v2837 = vadd.f32 0.0, %v2836
      %2838 = vmatmul.f32.gmra.mxu0 %v2724
      %v2839 = vpop.f32.mrf.mxu0
      %v2840 = vadd.f32 0.0, %v2839
      %2841 = vmatmul.f32.gmra.mxu0 %v2727
      %v2842 = vpop.f32.mrf.mxu0
      %v2843 = vadd.f32 0.0, %v2842
      %2844 = vmatmul.f32.gmra.mxu0 %v2730
      %v2845 = vpop.f32.mrf.mxu0
      %v2846 = vadd.f32 0.0, %v2845
      %2847 = vmatmul.f32.gmra.mxu0 %v2733
      %v2848 = vpop.f32.mrf.mxu0
      %v2849 = vadd.f32 0.0, %v2848
      %2850 = vmatmul.f32.gmra.mxu0 %v2736
      %v2851 = vpop.f32.mrf.mxu0
      %v2852 = vadd.f32 0.0, %v2851
      %2853 = vmatmul.f32.gmra.mxu0 %v2739
      %v2854 = vpop.f32.mrf.mxu0
      %v2855 = vadd.f32 0.0, %v2854
      %2856 = vmatmul.f32.gmra.mxu0 %v2742
      %v2857 = vpop.f32.mrf.mxu0
      %v2858 = vadd.f32 0.0, %v2857
      %2859 = vmatmul.f32.gmra.mxu0 %v2745
      %v2860 = vpop.f32.mrf.mxu0
      %v2861 = vadd.f32 0.0, %v2860
      %2862 = vmatmul.f32.gmra.mxu0 %v2748
      %v2863 = vpop.f32.mrf.mxu0
      %v2864 = vadd.f32 0.0, %v2863
      %2865 = vmatmul.f32.gmra.mxu0 %v2751
      %v2866 = vpop.f32.mrf.mxu0
      %v2867 = vadd.f32 0.0, %v2866
      %2868 = vmatmul.f32.gmra.mxu0 %v2754
      %v2869 = vpop.f32.mrf.mxu0
      %v2870 = vadd.f32 0.0, %v2869
      %2871 = vmatmul.f32.gmra.mxu0 %v2757
      %v2872 = vpop.f32.mrf.mxu0
      %v2873 = vadd.f32 0.0, %v2872
      %2874 = vmatmul.f32.gmra.mxu0 %v2760
      %v2875 = vpop.f32.mrf.mxu0
      %v2876 = vadd.f32 0.0, %v2875
      %2877 = vmatmul.f32.gmra.mxu0 %v2763
      %v2878 = vpop.f32.mrf.mxu0
      %v2879 = vadd.f32 0.0, %v2878
      %2880 = vmatmul.f32.gmra.mxu0 %v2766
      %v2881 = vpop.f32.mrf.mxu0
      %v2882 = vadd.f32 0.0, %v2881
      %2883 = vmatmul.f32.gmra.mxu0 %v2769
      %v2884 = vpop.f32.mrf.mxu0
      %v2885 = vadd.f32 0.0, %v2884
      %2886 = vmatmul.f32.gmra.mxu0 %v2772
      %v2887 = vpop.f32.mrf.mxu0
      %v2888 = vadd.f32 0.0, %v2887
      %2889 = vmatmul.f32.gmra.mxu0 %v2775
      %v2890 = vpop.f32.mrf.mxu0
      %v2891 = vadd.f32 0.0, %v2890
      %2892 = vmatmul.f32.gmra.mxu0 %v2778
      %v2893 = vpop.f32.mrf.mxu0
      %v2894 = vadd.f32 0.0, %v2893
      %2895 = vmatmul.f32.gmra.mxu0 %v2781
      %v2896 = vpop.f32.mrf.mxu0
      %v2897 = vadd.f32 0.0, %v2896
      %2898 = vmatmul.f32.gmra.mxu0 %v2784
      %v2899 = vpop.f32.mrf.mxu0
      %v2900 = vadd.f32 0.0, %v2899
      %2901 = vmatmul.f32.gmra.mxu0 %v2787
      %v2902 = vpop.f32.mrf.mxu0
      %v2903 = vadd.f32 0.0, %v2902
      %2904 = vmatmul.f32.gmra.mxu0 %v2790
      %v2905 = vpop.f32.mrf.mxu0
      %v2906 = vadd.f32 0.0, %v2905
      %2907 = vmatmul.f32.gmra.mxu0 %v2793
      %v2908 = vpop.f32.mrf.mxu0
      %v2909 = vadd.f32 0.0, %v2908
      %2910 = vmatmul.f32.gmra.mxu0 %v2796
      %v2911 = vpop.f32.mrf.mxu0
      %v2912 = vadd.f32 0.0, %v2911
      %2913 = vmatmul.f32.gmra.mxu0 %v2799
      %v2914 = vpop.f32.mrf.mxu0
      %v2915 = vadd.f32 0.0, %v2914
      %2916 = vmatmul.f32.gmra.mxu0 %v2802
      %v2917 = vpop.f32.mrf.mxu0
      %v2918 = vadd.f32 0.0, %v2917
      %2919 = vmatmul.f32.gmra.mxu0 %v2805
      %v2920 = vpop.f32.mrf.mxu0
      %v2921 = vadd.f32 0.0, %v2920
      %2922 = vmatmul.f32.gmra.mxu0 %v2808
      %v2923 = vpop.f32.mrf.mxu0
      %v2924 = vadd.f32 0.0, %v2923
      %2925 = vdwg.mxu0
      %v2926 = vadd.f32 %v2647, %v2831
      %v2927 = vadd.f32 %v2648, %v2834
      %v2928 = vadd.f32 %v2649, %v2837
      %v2929 = vadd.f32 %v2650, %v2840
      %v2930 = vadd.f32 %v2651, %v2843
      %v2931 = vadd.f32 %v2652, %v2846
      %v2932 = vadd.f32 %v2653, %v2849
      %v2933 = vadd.f32 %v2654, %v2852
      %v2934 = vadd.f32 %v2655, %v2855
      %v2935 = vadd.f32 %v2656, %v2858
      %v2936 = vadd.f32 %v2657, %v2861
      %v2937 = vadd.f32 %v2658, %v2864
      %v2938 = vadd.f32 %v2659, %v2867
      %v2939 = vadd.f32 %v2660, %v2870
      %v2940 = vadd.f32 %v2661, %v2873
      %v2941 = vadd.f32 %v2662, %v2876
      %v2942 = vadd.f32 %v2663, %v2879
      %v2943 = vadd.f32 %v2664, %v2882
      %v2944 = vadd.f32 %v2665, %v2885
      %v2945 = vadd.f32 %v2666, %v2888
      %v2946 = vadd.f32 %v2667, %v2891
      %v2947 = vadd.f32 %v2668, %v2894
      %v2948 = vadd.f32 %v2669, %v2897
      %v2949 = vadd.f32 %v2670, %v2900
      %v2950 = vadd.f32 %v2671, %v2903
      %v2951 = vadd.f32 %v2672, %v2906
      %v2952 = vadd.f32 %v2673, %v2909
      %v2953 = vadd.f32 %v2674, %v2912
      %v2954 = vadd.f32 %v2675, %v2915
      %v2955 = vadd.f32 %v2676, %v2918
      %v2956 = vadd.f32 %v2677, %v2921
      %v2957 = vadd.f32 %v2678, %v2924
      %v2958 = vld [vmem:[%s1434 + $0x2] sm:$0xff]
      %v2959 = vld [vmem:[%s1434 + $0xa] sm:$0xff]
      %v2960 = vld [vmem:[%s1434 + $0x1a] sm:$0xff]
      %v2961 = vld [vmem:[%s1434 + $0x22] sm:$0xff]
      %v2962 = vld [vmem:[%s1434 + $0x32] sm:$0xff]
      %v2963 = vld [vmem:[%s1434 + $0x3a] sm:$0xff]
      %v2964 = vld [vmem:[%s1434 + $0x4a] sm:$0xff]
      %v2965 = vld [vmem:[%s1434 + $0x52] sm:$0xff]
      %v2966 = vld [vmem:[%s1434 + $0x62] sm:$0xff]
      %v2967 = vld [vmem:[%s1434 + $0x6a] sm:$0xff]
      %v2968 = vld [vmem:[%s1434 + $0x7a] sm:$0xff]
      %v2969 = vld [vmem:[%s1434 + $0x82] sm:$0xff]
      %v2970 = vld [vmem:[%s1434 + $0x92] sm:$0xff]
      %v2971 = vld [vmem:[%s1434 + $0x9a] sm:$0xff]
      %v2972 = vld [vmem:[%s1434 + $0xaa] sm:$0xff]
      %v2973 = vld [vmem:[%s1434 + $0xb2] sm:$0xff]
      %v2974 = vld [vmem:[%s1434 + $0xc2] sm:$0xff]
      %v2975 = vld [vmem:[%s1434 + $0xca] sm:$0xff]
      %v2976 = vld [vmem:[%s1434 + $0xda] sm:$0xff]
      %v2977 = vld [vmem:[%s1434 + $0xe2] sm:$0xff]
      %v2978 = vld [vmem:[%s1434 + $0xf2] sm:$0xff]
      %v2979 = vld [vmem:[%s1434 + $0xfa] sm:$0xff]
      %v2980 = vld [vmem:[%s1434 + $0x10a] sm:$0xff]
      %v2981 = vld [vmem:[%s1434 + $0x112] sm:$0xff]
      %v2982 = vld [vmem:[%s1434 + $0x122] sm:$0xff]
      %v2983 = vld [vmem:[%s1434 + $0x12a] sm:$0xff]
      %v2984 = vld [vmem:[%s1434 + $0x13a] sm:$0xff]
      %v2985 = vld [vmem:[%s1434 + $0x142] sm:$0xff]
      %v2986 = vld [vmem:[%s1434 + $0x152] sm:$0xff]
      %v2987 = vld [vmem:[%s1434 + $0x15a] sm:$0xff]
      %v2988 = vld [vmem:[%s1434 + $0x16a] sm:$0xff]
      %v2989 = vld [vmem:[%s1434 + $0x172] sm:$0xff]
      %s2990 = scalar_lea.vmem %s6, 80
      %v2991 = vld [vmem:[%s2990] sm:$0xff]
      %v2992 = vld [vmem:[%s2990 + $0x8] sm:$0xf]
      %v2994 = vsel %vm1042, %v2958, 0
      %v2997 = vsel %vm1042, %v2959, 0
      %v3000 = vsel %vm1042, %v2960, 0
      %v3003 = vsel %vm1042, %v2961, 0
      %v3006 = vsel %vm1042, %v2962, 0
      %v3009 = vsel %vm1042, %v2963, 0
      %v3012 = vsel %vm1042, %v2964, 0
      %v3015 = vsel %vm1042, %v2965, 0
      %v3018 = vsel %vm1042, %v2966, 0
      %v3021 = vsel %vm1042, %v2967, 0
      %v3024 = vsel %vm1042, %v2968, 0
      %v3027 = vsel %vm1042, %v2969, 0
      %v3030 = vsel %vm1042, %v2970, 0
      %v3033 = vsel %vm1042, %v2971, 0
      %v3036 = vsel %vm1042, %v2972, 0
      %v3039 = vsel %vm1042, %v2973, 0
      %v3042 = vsel %vm1042, %v2974, 0
      %v3045 = vsel %vm1042, %v2975, 0
      %v3048 = vsel %vm1042, %v2976, 0
      %v3051 = vsel %vm1042, %v2977, 0
      %v3054 = vsel %vm1042, %v2978, 0
      %v3057 = vsel %vm1042, %v2979, 0
      %v3060 = vsel %vm1042, %v2980, 0
      %v3063 = vsel %vm1042, %v2981, 0
      %v3066 = vsel %vm1042, %v2982, 0
      %v3069 = vsel %vm1042, %v2983, 0
      %v3072 = vsel %vm1042, %v2984, 0
      %v3075 = vsel %vm1042, %v2985, 0
      %v3078 = vsel %vm1042, %v2986, 0
      %v3081 = vsel %vm1042, %v2987, 0
      %v3084 = vsel %vm1042, %v2988, 0
      %v3087 = vsel %vm1042, %v2989, 0
      %v3090 = vsel %vm647, %v2992, 0
      %3092 = vmatpush.msra.mxu0 0.0
      %3093 = vmatpush.msra.mxu0 0.0
      %3094 = vmatpush.msra.mxu0 0.0
      %3095 = vmatpush.msra.mxu0 0.0
      %3096 = vmatpush.msra.mxu0 0.0
      %3097 = vmatpush.msra.mxu0 0.0
      %3098 = vmatpush.msra.mxu0 0.0
      %3099 = vmatpush.msra.mxu0 0.0
      %3100 = vmatpush.msra.mxu0 0.0
      %3101 = vmatpush.msra.mxu0 0.0
      %3102 = vmatpush.msra.mxu0 0.0
      %3103 = vmatpush.msra.mxu0 0.0
      %3104 = vmatpush.msra.mxu0 0.0
      %3105 = vmatpush.msra.mxu0 0.0
      %3106 = vmatpush.msra.mxu0 %v3090
      %3107 = vmatpush.msra.mxu0 %v2991
      %3108 = vmatmul.f32.gmra.mxu0 %v2994
      %v3109 = vpop.f32.mrf.mxu0
      %v3110 = vadd.f32 0.0, %v3109
      %3111 = vmatmul.f32.gmra.mxu0 %v2997
      %v3112 = vpop.f32.mrf.mxu0
      %v3113 = vadd.f32 0.0, %v3112
      %3114 = vmatmul.f32.gmra.mxu0 %v3000
      %v3115 = vpop.f32.mrf.mxu0
      %v3116 = vadd.f32 0.0, %v3115
      %3117 = vmatmul.f32.gmra.mxu0 %v3003
      %v3118 = vpop.f32.mrf.mxu0
      %v3119 = vadd.f32 0.0, %v3118
      %3120 = vmatmul.f32.gmra.mxu0 %v3006
      %v3121 = vpop.f32.mrf.mxu0
      %v3122 = vadd.f32 0.0, %v3121
      %3123 = vmatmul.f32.gmra.mxu0 %v3009
      %v3124 = vpop.f32.mrf.mxu0
      %v3125 = vadd.f32 0.0, %v3124
      %3126 = vmatmul.f32.gmra.mxu0 %v3012
      %v3127 = vpop.f32.mrf.mxu0
      %v3128 = vadd.f32 0.0, %v3127
      %3129 = vmatmul.f32.gmra.mxu0 %v3015
      %v3130 = vpop.f32.mrf.mxu0
      %v3131 = vadd.f32 0.0, %v3130
      %3132 = vmatmul.f32.gmra.mxu0 %v3018
      %v3133 = vpop.f32.mrf.mxu0
      %v3134 = vadd.f32 0.0, %v3133
      %3135 = vmatmul.f32.gmra.mxu0 %v3021
      %v3136 = vpop.f32.mrf.mxu0
      %v3137 = vadd.f32 0.0, %v3136
      %3138 = vmatmul.f32.gmra.mxu0 %v3024
      %v3139 = vpop.f32.mrf.mxu0
      %v3140 = vadd.f32 0.0, %v3139
      %3141 = vmatmul.f32.gmra.mxu0 %v3027
      %v3142 = vpop.f32.mrf.mxu0
      %v3143 = vadd.f32 0.0, %v3142
      %3144 = vmatmul.f32.gmra.mxu0 %v3030
      %v3145 = vpop.f32.mrf.mxu0
      %v3146 = vadd.f32 0.0, %v3145
      %3147 = vmatmul.f32.gmra.mxu0 %v3033
      %v3148 = vpop.f32.mrf.mxu0
      %v3149 = vadd.f32 0.0, %v3148
      %3150 = vmatmul.f32.gmra.mxu0 %v3036
      %v3151 = vpop.f32.mrf.mxu0
      %v3152 = vadd.f32 0.0, %v3151
      %3153 = vmatmul.f32.gmra.mxu0 %v3039
      %v3154 = vpop.f32.mrf.mxu0
      %v3155 = vadd.f32 0.0, %v3154
      %3156 = vmatmul.f32.gmra.mxu0 %v3042
      %v3157 = vpop.f32.mrf.mxu0
      %v3158 = vadd.f32 0.0, %v3157
      %3159 = vmatmul.f32.gmra.mxu0 %v3045
      %v3160 = vpop.f32.mrf.mxu0
      %v3161 = vadd.f32 0.0, %v3160
      %3162 = vmatmul.f32.gmra.mxu0 %v3048
      %v3163 = vpop.f32.mrf.mxu0
      %v3164 = vadd.f32 0.0, %v3163
      %3165 = vmatmul.f32.gmra.mxu0 %v3051
      %v3166 = vpop.f32.mrf.mxu0
      %v3167 = vadd.f32 0.0, %v3166
      %3168 = vmatmul.f32.gmra.mxu0 %v3054
      %v3169 = vpop.f32.mrf.mxu0
      %v3170 = vadd.f32 0.0, %v3169
      %3171 = vmatmul.f32.gmra.mxu0 %v3057
      %v3172 = vpop.f32.mrf.mxu0
      %v3173 = vadd.f32 0.0, %v3172
      %3174 = vmatmul.f32.gmra.mxu0 %v3060
      %v3175 = vpop.f32.mrf.mxu0
      %v3176 = vadd.f32 0.0, %v3175
      %3177 = vmatmul.f32.gmra.mxu0 %v3063
      %v3178 = vpop.f32.mrf.mxu0
      %v3179 = vadd.f32 0.0, %v3178
      %3180 = vmatmul.f32.gmra.mxu0 %v3066
      %v3181 = vpop.f32.mrf.mxu0
      %v3182 = vadd.f32 0.0, %v3181
      %3183 = vmatmul.f32.gmra.mxu0 %v3069
      %v3184 = vpop.f32.mrf.mxu0
      %v3185 = vadd.f32 0.0, %v3184
      %3186 = vmatmul.f32.gmra.mxu0 %v3072
      %v3187 = vpop.f32.mrf.mxu0
      %v3188 = vadd.f32 0.0, %v3187
      %3189 = vmatmul.f32.gmra.mxu0 %v3075
      %v3190 = vpop.f32.mrf.mxu0
      %v3191 = vadd.f32 0.0, %v3190
      %3192 = vmatmul.f32.gmra.mxu0 %v3078
      %v3193 = vpop.f32.mrf.mxu0
      %v3194 = vadd.f32 0.0, %v3193
      %3195 = vmatmul.f32.gmra.mxu0 %v3081
      %v3196 = vpop.f32.mrf.mxu0
      %v3197 = vadd.f32 0.0, %v3196
      %3198 = vmatmul.f32.gmra.mxu0 %v3084
      %v3199 = vpop.f32.mrf.mxu0
      %v3200 = vadd.f32 0.0, %v3199
      %3201 = vmatmul.f32.gmra.mxu0 %v3087
      %v3202 = vpop.f32.mrf.mxu0
      %v3203 = vadd.f32 0.0, %v3202
      %3204 = vdwg.mxu0
      %v3205 = vadd.f32 %v2926, %v3110
      %v3206 = vadd.f32 %v2927, %v3113
      %v3207 = vadd.f32 %v2928, %v3116
      %v3208 = vadd.f32 %v2929, %v3119
      %v3209 = vadd.f32 %v2930, %v3122
      %v3210 = vadd.f32 %v2931, %v3125
      %v3211 = vadd.f32 %v2932, %v3128
      %v3212 = vadd.f32 %v2933, %v3131
      %v3213 = vadd.f32 %v2934, %v3134
      %v3214 = vadd.f32 %v2935, %v3137
      %v3215 = vadd.f32 %v2936, %v3140
      %v3216 = vadd.f32 %v2937, %v3143
      %v3217 = vadd.f32 %v2938, %v3146
      %v3218 = vadd.f32 %v2939, %v3149
      %v3219 = vadd.f32 %v2940, %v3152
      %v3220 = vadd.f32 %v2941, %v3155
      %v3221 = vadd.f32 %v2942, %v3158
      %v3222 = vadd.f32 %v2943, %v3161
      %v3223 = vadd.f32 %v2944, %v3164
      %v3224 = vadd.f32 %v2945, %v3167
      %v3225 = vadd.f32 %v2946, %v3170
      %v3226 = vadd.f32 %v2947, %v3173
      %v3227 = vadd.f32 %v2948, %v3176
      %v3228 = vadd.f32 %v2949, %v3179
      %v3229 = vadd.f32 %v2950, %v3182
      %v3230 = vadd.f32 %v2951, %v3185
      %v3231 = vadd.f32 %v2952, %v3188
      %v3232 = vadd.f32 %v2953, %v3191
      %v3233 = vadd.f32 %v2954, %v3194
      %v3234 = vadd.f32 %v2955, %v3197
      %v3235 = vadd.f32 %v2956, %v3200
      %v3236 = vadd.f32 %v2957, %v3203
      %s3237 = scalar_lea.vmem [#allocation2], 48
      %v3238 = vld [vmem:[%s3237] sm:$0xff]
      %v3239 = vld [vmem:[%s3237 + $0x8] sm:$0xff]
      %v3240 = vld [vmem:[%s3237 + $0x18] sm:$0xff]
      %v3241 = vld [vmem:[%s3237 + $0x20] sm:$0xff]
      %v3242 = vld [vmem:[%s3237 + $0x30] sm:$0xff]
      %v3243 = vld [vmem:[%s3237 + $0x38] sm:$0xff]
      %v3244 = vld [vmem:[%s3237 + $0x48] sm:$0xff]
      %v3245 = vld [vmem:[%s3237 + $0x50] sm:$0xff]
      %v3246 = vld [vmem:[%s3237 + $0x60] sm:$0xff]
      %v3247 = vld [vmem:[%s3237 + $0x68] sm:$0xff]
      %v3248 = vld [vmem:[%s3237 + $0x78] sm:$0xff]
      %v3249 = vld [vmem:[%s3237 + $0x80] sm:$0xff]
      %v3250 = vld [vmem:[%s3237 + $0x90] sm:$0xff]
      %v3251 = vld [vmem:[%s3237 + $0x98] sm:$0xff]
      %v3252 = vld [vmem:[%s3237 + $0xa8] sm:$0xff]
      %v3253 = vld [vmem:[%s3237 + $0xb0] sm:$0xff]
      %v3254 = vld [vmem:[%s3237 + $0xc0] sm:$0xff]
      %v3255 = vld [vmem:[%s3237 + $0xc8] sm:$0xff]
      %v3256 = vld [vmem:[%s3237 + $0xd8] sm:$0xff]
      %v3257 = vld [vmem:[%s3237 + $0xe0] sm:$0xff]
      %v3258 = vld [vmem:[%s3237 + $0xf0] sm:$0xff]
      %v3259 = vld [vmem:[%s3237 + $0xf8] sm:$0xff]
      %v3260 = vld [vmem:[%s3237 + $0x108] sm:$0xff]
      %v3261 = vld [vmem:[%s3237 + $0x110] sm:$0xff]
      %v3262 = vld [vmem:[%s3237 + $0x120] sm:$0xff]
      %v3263 = vld [vmem:[%s3237 + $0x128] sm:$0xff]
      %v3264 = vld [vmem:[%s3237 + $0x138] sm:$0xff]
      %v3265 = vld [vmem:[%s3237 + $0x140] sm:$0xff]
      %v3266 = vld [vmem:[%s3237 + $0x150] sm:$0xff]
      %v3267 = vld [vmem:[%s3237 + $0x158] sm:$0xff]
      %v3268 = vld [vmem:[%s3237 + $0x168] sm:$0xff]
      %v3269 = vld [vmem:[%s3237 + $0x170] sm:$0xff]
      %s3270 = scalar_lea.vmem %s6, 96
      %v3271 = vld [vmem:[%s3270] sm:$0xff]
      %v3272 = vld [vmem:[%s3270 + $0x8] sm:$0xf]
      %v3274 = vsel %vm1042, %v3238, 0
      %v3277 = vsel %vm1042, %v3239, 0
      %v3280 = vsel %vm1042, %v3240, 0
      %v3283 = vsel %vm1042, %v3241, 0
      %v3286 = vsel %vm1042, %v3242, 0
      %v3289 = vsel %vm1042, %v3243, 0
      %v3292 = vsel %vm1042, %v3244, 0
      %v3295 = vsel %vm1042, %v3245, 0
      %v3298 = vsel %vm1042, %v3246, 0
      %v3301 = vsel %vm1042, %v3247, 0
      %v3304 = vsel %vm1042, %v3248, 0
      %v3307 = vsel %vm1042, %v3249, 0
      %v3310 = vsel %vm1042, %v3250, 0
      %v3313 = vsel %vm1042, %v3251, 0
      %v3316 = vsel %vm1042, %v3252, 0
      %v3319 = vsel %vm1042, %v3253, 0
      %v3322 = vsel %vm1042, %v3254, 0
      %v3325 = vsel %vm1042, %v3255, 0
      %v3328 = vsel %vm1042, %v3256, 0
      %v3331 = vsel %vm1042, %v3257, 0
      %v3334 = vsel %vm1042, %v3258, 0
      %v3337 = vsel %vm1042, %v3259, 0
      %v3340 = vsel %vm1042, %v3260, 0
      %v3343 = vsel %vm1042, %v3261, 0
      %v3346 = vsel %vm1042, %v3262, 0
      %v3349 = vsel %vm1042, %v3263, 0
      %v3352 = vsel %vm1042, %v3264, 0
      %v3355 = vsel %vm1042, %v3265, 0
      %v3358 = vsel %vm1042, %v3266, 0
      %v3361 = vsel %vm1042, %v3267, 0
      %v3364 = vsel %vm1042, %v3268, 0
      %v3367 = vsel %vm1042, %v3269, 0
      %v3370 = vsel %vm647, %v3272, 0
      %3372 = vmatpush.msra.mxu0 0.0
      %3373 = vmatpush.msra.mxu0 0.0
      %3374 = vmatpush.msra.mxu0 0.0
      %3375 = vmatpush.msra.mxu0 0.0
      %3376 = vmatpush.msra.mxu0 0.0
      %3377 = vmatpush.msra.mxu0 0.0
      %3378 = vmatpush.msra.mxu0 0.0
      %3379 = vmatpush.msra.mxu0 0.0
      %3380 = vmatpush.msra.mxu0 0.0
      %3381 = vmatpush.msra.mxu0 0.0
      %3382 = vmatpush.msra.mxu0 0.0
      %3383 = vmatpush.msra.mxu0 0.0
      %3384 = vmatpush.msra.mxu0 0.0
      %3385 = vmatpush.msra.mxu0 0.0
      %3386 = vmatpush.msra.mxu0 %v3370
      %3387 = vmatpush.msra.mxu0 %v3271
      %3388 = vmatmul.f32.gmra.mxu0 %v3274
      %v3389 = vpop.f32.mrf.mxu0
      %v3390 = vadd.f32 0.0, %v3389
      %3391 = vmatmul.f32.gmra.mxu0 %v3277
      %v3392 = vpop.f32.mrf.mxu0
      %v3393 = vadd.f32 0.0, %v3392
      %3394 = vmatmul.f32.gmra.mxu0 %v3280
      %v3395 = vpop.f32.mrf.mxu0
      %v3396 = vadd.f32 0.0, %v3395
      %3397 = vmatmul.f32.gmra.mxu0 %v3283
      %v3398 = vpop.f32.mrf.mxu0
      %v3399 = vadd.f32 0.0, %v3398
      %3400 = vmatmul.f32.gmra.mxu0 %v3286
      %v3401 = vpop.f32.mrf.mxu0
      %v3402 = vadd.f32 0.0, %v3401
      %3403 = vmatmul.f32.gmra.mxu0 %v3289
      %v3404 = vpop.f32.mrf.mxu0
      %v3405 = vadd.f32 0.0, %v3404
      %3406 = vmatmul.f32.gmra.mxu0 %v3292
      %v3407 = vpop.f32.mrf.mxu0
      %v3408 = vadd.f32 0.0, %v3407
      %3409 = vmatmul.f32.gmra.mxu0 %v3295
      %v3410 = vpop.f32.mrf.mxu0
      %v3411 = vadd.f32 0.0, %v3410
      %3412 = vmatmul.f32.gmra.mxu0 %v3298
      %v3413 = vpop.f32.mrf.mxu0
      %v3414 = vadd.f32 0.0, %v3413
      %3415 = vmatmul.f32.gmra.mxu0 %v3301
      %v3416 = vpop.f32.mrf.mxu0
      %v3417 = vadd.f32 0.0, %v3416
      %3418 = vmatmul.f32.gmra.mxu0 %v3304
      %v3419 = vpop.f32.mrf.mxu0
      %v3420 = vadd.f32 0.0, %v3419
      %3421 = vmatmul.f32.gmra.mxu0 %v3307
      %v3422 = vpop.f32.mrf.mxu0
      %v3423 = vadd.f32 0.0, %v3422
      %3424 = vmatmul.f32.gmra.mxu0 %v3310
      %v3425 = vpop.f32.mrf.mxu0
      %v3426 = vadd.f32 0.0, %v3425
      %3427 = vmatmul.f32.gmra.mxu0 %v3313
      %v3428 = vpop.f32.mrf.mxu0
      %v3429 = vadd.f32 0.0, %v3428
      %3430 = vmatmul.f32.gmra.mxu0 %v3316
      %v3431 = vpop.f32.mrf.mxu0
      %v3432 = vadd.f32 0.0, %v3431
      %3433 = vmatmul.f32.gmra.mxu0 %v3319
      %v3434 = vpop.f32.mrf.mxu0
      %v3435 = vadd.f32 0.0, %v3434
      %3436 = vmatmul.f32.gmra.mxu0 %v3322
      %v3437 = vpop.f32.mrf.mxu0
      %v3438 = vadd.f32 0.0, %v3437
      %3439 = vmatmul.f32.gmra.mxu0 %v3325
      %v3440 = vpop.f32.mrf.mxu0
      %v3441 = vadd.f32 0.0, %v3440
      %3442 = vmatmul.f32.gmra.mxu0 %v3328
      %v3443 = vpop.f32.mrf.mxu0
      %v3444 = vadd.f32 0.0, %v3443
      %3445 = vmatmul.f32.gmra.mxu0 %v3331
      %v3446 = vpop.f32.mrf.mxu0
      %v3447 = vadd.f32 0.0, %v3446
      %3448 = vmatmul.f32.gmra.mxu0 %v3334
      %v3449 = vpop.f32.mrf.mxu0
      %v3450 = vadd.f32 0.0, %v3449
      %3451 = vmatmul.f32.gmra.mxu0 %v3337
      %v3452 = vpop.f32.mrf.mxu0
      %v3453 = vadd.f32 0.0, %v3452
      %3454 = vmatmul.f32.gmra.mxu0 %v3340
      %v3455 = vpop.f32.mrf.mxu0
      %v3456 = vadd.f32 0.0, %v3455
      %3457 = vmatmul.f32.gmra.mxu0 %v3343
      %v3458 = vpop.f32.mrf.mxu0
      %v3459 = vadd.f32 0.0, %v3458
      %3460 = vmatmul.f32.gmra.mxu0 %v3346
      %v3461 = vpop.f32.mrf.mxu0
      %v3462 = vadd.f32 0.0, %v3461
      %3463 = vmatmul.f32.gmra.mxu0 %v3349
      %v3464 = vpop.f32.mrf.mxu0
      %v3465 = vadd.f32 0.0, %v3464
      %3466 = vmatmul.f32.gmra.mxu0 %v3352
      %v3467 = vpop.f32.mrf.mxu0
      %v3468 = vadd.f32 0.0, %v3467
      %3469 = vmatmul.f32.gmra.mxu0 %v3355
      %v3470 = vpop.f32.mrf.mxu0
      %v3471 = vadd.f32 0.0, %v3470
      %3472 = vmatmul.f32.gmra.mxu0 %v3358
      %v3473 = vpop.f32.mrf.mxu0
      %v3474 = vadd.f32 0.0, %v3473
      %3475 = vmatmul.f32.gmra.mxu0 %v3361
      %v3476 = vpop.f32.mrf.mxu0
      %v3477 = vadd.f32 0.0, %v3476
      %3478 = vmatmul.f32.gmra.mxu0 %v3364
      %v3479 = vpop.f32.mrf.mxu0
      %v3480 = vadd.f32 0.0, %v3479
      %3481 = vmatmul.f32.gmra.mxu0 %v3367
      %v3482 = vpop.f32.mrf.mxu0
      %v3483 = vadd.f32 0.0, %v3482
      %3484 = vdwg.mxu0
      %v3485 = vadd.f32 %v3205, %v3390
      %v3486 = vadd.f32 %v3206, %v3393
      %v3487 = vadd.f32 %v3207, %v3396
      %v3488 = vadd.f32 %v3208, %v3399
      %v3489 = vadd.f32 %v3209, %v3402
      %v3490 = vadd.f32 %v3210, %v3405
      %v3491 = vadd.f32 %v3211, %v3408
      %v3492 = vadd.f32 %v3212, %v3411
      %v3493 = vadd.f32 %v3213, %v3414
      %v3494 = vadd.f32 %v3214, %v3417
      %v3495 = vadd.f32 %v3215, %v3420
      %v3496 = vadd.f32 %v3216, %v3423
      %v3497 = vadd.f32 %v3217, %v3426
      %v3498 = vadd.f32 %v3218, %v3429
      %v3499 = vadd.f32 %v3219, %v3432
      %v3500 = vadd.f32 %v3220, %v3435
      %v3501 = vadd.f32 %v3221, %v3438
      %v3502 = vadd.f32 %v3222, %v3441
      %v3503 = vadd.f32 %v3223, %v3444
      %v3504 = vadd.f32 %v3224, %v3447
      %v3505 = vadd.f32 %v3225, %v3450
      %v3506 = vadd.f32 %v3226, %v3453
      %v3507 = vadd.f32 %v3227, %v3456
      %v3508 = vadd.f32 %v3228, %v3459
      %v3509 = vadd.f32 %v3229, %v3462
      %v3510 = vadd.f32 %v3230, %v3465
      %v3511 = vadd.f32 %v3231, %v3468
      %v3512 = vadd.f32 %v3232, %v3471
      %v3513 = vadd.f32 %v3233, %v3474
      %v3514 = vadd.f32 %v3234, %v3477
      %v3515 = vadd.f32 %v3235, %v3480
      %v3516 = vadd.f32 %v3236, %v3483
      %v3517 = vld [vmem:[%s3237 + $0x1] sm:$0xff]
      %v3518 = vld [vmem:[%s3237 + $0x9] sm:$0xff]
      %v3519 = vld [vmem:[%s3237 + $0x19] sm:$0xff]
      %v3520 = vld [vmem:[%s3237 + $0x21] sm:$0xff]
      %v3521 = vld [vmem:[%s3237 + $0x31] sm:$0xff]
      %v3522 = vld [vmem:[%s3237 + $0x39] sm:$0xff]
      %v3523 = vld [vmem:[%s3237 + $0x49] sm:$0xff]
      %v3524 = vld [vmem:[%s3237 + $0x51] sm:$0xff]
      %v3525 = vld [vmem:[%s3237 + $0x61] sm:$0xff]
      %v3526 = vld [vmem:[%s3237 + $0x69] sm:$0xff]
      %v3527 = vld [vmem:[%s3237 + $0x79] sm:$0xff]
      %v3528 = vld [vmem:[%s3237 + $0x81] sm:$0xff]
      %v3529 = vld [vmem:[%s3237 + $0x91] sm:$0xff]
      %v3530 = vld [vmem:[%s3237 + $0x99] sm:$0xff]
      %v3531 = vld [vmem:[%s3237 + $0xa9] sm:$0xff]
      %v3532 = vld [vmem:[%s3237 + $0xb1] sm:$0xff]
      %v3533 = vld [vmem:[%s3237 + $0xc1] sm:$0xff]
      %v3534 = vld [vmem:[%s3237 + $0xc9] sm:$0xff]
      %v3535 = vld [vmem:[%s3237 + $0xd9] sm:$0xff]
      %v3536 = vld [vmem:[%s3237 + $0xe1] sm:$0xff]
      %v3537 = vld [vmem:[%s3237 + $0xf1] sm:$0xff]
      %v3538 = vld [vmem:[%s3237 + $0xf9] sm:$0xff]
      %v3539 = vld [vmem:[%s3237 + $0x109] sm:$0xff]
      %v3540 = vld [vmem:[%s3237 + $0x111] sm:$0xff]
      %v3541 = vld [vmem:[%s3237 + $0x121] sm:$0xff]
      %v3542 = vld [vmem:[%s3237 + $0x129] sm:$0xff]
      %v3543 = vld [vmem:[%s3237 + $0x139] sm:$0xff]
      %v3544 = vld [vmem:[%s3237 + $0x141] sm:$0xff]
      %v3545 = vld [vmem:[%s3237 + $0x151] sm:$0xff]
      %v3546 = vld [vmem:[%s3237 + $0x159] sm:$0xff]
      %v3547 = vld [vmem:[%s3237 + $0x169] sm:$0xff]
      %v3548 = vld [vmem:[%s3237 + $0x171] sm:$0xff]
      %s3549 = scalar_lea.vmem %s6, 112
      %v3550 = vld [vmem:[%s3549] sm:$0xff]
      %v3551 = vld [vmem:[%s3549 + $0x8] sm:$0xf]
      %v3553 = vsel %vm1042, %v3517, 0
      %v3556 = vsel %vm1042, %v3518, 0
      %v3559 = vsel %vm1042, %v3519, 0
      %v3562 = vsel %vm1042, %v3520, 0
      %v3565 = vsel %vm1042, %v3521, 0
      %v3568 = vsel %vm1042, %v3522, 0
      %v3571 = vsel %vm1042, %v3523, 0
      %v3574 = vsel %vm1042, %v3524, 0
      %v3577 = vsel %vm1042, %v3525, 0
      %v3580 = vsel %vm1042, %v3526, 0
      %v3583 = vsel %vm1042, %v3527, 0
      %v3586 = vsel %vm1042, %v3528, 0
      %v3589 = vsel %vm1042, %v3529, 0
      %v3592 = vsel %vm1042, %v3530, 0
      %v3595 = vsel %vm1042, %v3531, 0
      %v3598 = vsel %vm1042, %v3532, 0
      %v3601 = vsel %vm1042, %v3533, 0
      %v3604 = vsel %vm1042, %v3534, 0
      %v3607 = vsel %vm1042, %v3535, 0
      %v3610 = vsel %vm1042, %v3536, 0
      %v3613 = vsel %vm1042, %v3537, 0
      %v3616 = vsel %vm1042, %v3538, 0
      %v3619 = vsel %vm1042, %v3539, 0
      %v3622 = vsel %vm1042, %v3540, 0
      %v3625 = vsel %vm1042, %v3541, 0
      %v3628 = vsel %vm1042, %v3542, 0
      %v3631 = vsel %vm1042, %v3543, 0
      %v3634 = vsel %vm1042, %v3544, 0
      %v3637 = vsel %vm1042, %v3545, 0
      %v3640 = vsel %vm1042, %v3546, 0
      %v3643 = vsel %vm1042, %v3547, 0
      %v3646 = vsel %vm1042, %v3548, 0
      %v3649 = vsel %vm647, %v3551, 0
      %3651 = vmatpush.msra.mxu0 0.0
      %3652 = vmatpush.msra.mxu0 0.0
      %3653 = vmatpush.msra.mxu0 0.0
      %3654 = vmatpush.msra.mxu0 0.0
      %3655 = vmatpush.msra.mxu0 0.0
      %3656 = vmatpush.msra.mxu0 0.0
      %3657 = vmatpush.msra.mxu0 0.0
      %3658 = vmatpush.msra.mxu0 0.0
      %3659 = vmatpush.msra.mxu0 0.0
      %3660 = vmatpush.msra.mxu0 0.0
      %3661 = vmatpush.msra.mxu0 0.0
      %3662 = vmatpush.msra.mxu0 0.0
      %3663 = vmatpush.msra.mxu0 0.0
      %3664 = vmatpush.msra.mxu0 0.0
      %3665 = vmatpush.msra.mxu0 %v3649
      %3666 = vmatpush.msra.mxu0 %v3550
      %3667 = vmatmul.f32.gmra.mxu0 %v3553
      %v3668 = vpop.f32.mrf.mxu0
      %v3669 = vadd.f32 0.0, %v3668
      %3670 = vmatmul.f32.gmra.mxu0 %v3556
      %v3671 = vpop.f32.mrf.mxu0
      %v3672 = vadd.f32 0.0, %v3671
      %3673 = vmatmul.f32.gmra.mxu0 %v3559
      %v3674 = vpop.f32.mrf.mxu0
      %v3675 = vadd.f32 0.0, %v3674
      %3676 = vmatmul.f32.gmra.mxu0 %v3562
      %v3677 = vpop.f32.mrf.mxu0
      %v3678 = vadd.f32 0.0, %v3677
      %3679 = vmatmul.f32.gmra.mxu0 %v3565
      %v3680 = vpop.f32.mrf.mxu0
      %v3681 = vadd.f32 0.0, %v3680
      %3682 = vmatmul.f32.gmra.mxu0 %v3568
      %v3683 = vpop.f32.mrf.mxu0
      %v3684 = vadd.f32 0.0, %v3683
      %3685 = vmatmul.f32.gmra.mxu0 %v3571
      %v3686 = vpop.f32.mrf.mxu0
      %v3687 = vadd.f32 0.0, %v3686
      %3688 = vmatmul.f32.gmra.mxu0 %v3574
      %v3689 = vpop.f32.mrf.mxu0
      %v3690 = vadd.f32 0.0, %v3689
      %3691 = vmatmul.f32.gmra.mxu0 %v3577
      %v3692 = vpop.f32.mrf.mxu0
      %v3693 = vadd.f32 0.0, %v3692
      %3694 = vmatmul.f32.gmra.mxu0 %v3580
      %v3695 = vpop.f32.mrf.mxu0
      %v3696 = vadd.f32 0.0, %v3695
      %3697 = vmatmul.f32.gmra.mxu0 %v3583
      %v3698 = vpop.f32.mrf.mxu0
      %v3699 = vadd.f32 0.0, %v3698
      %3700 = vmatmul.f32.gmra.mxu0 %v3586
      %v3701 = vpop.f32.mrf.mxu0
      %v3702 = vadd.f32 0.0, %v3701
      %3703 = vmatmul.f32.gmra.mxu0 %v3589
      %v3704 = vpop.f32.mrf.mxu0
      %v3705 = vadd.f32 0.0, %v3704
      %3706 = vmatmul.f32.gmra.mxu0 %v3592
      %v3707 = vpop.f32.mrf.mxu0
      %v3708 = vadd.f32 0.0, %v3707
      %3709 = vmatmul.f32.gmra.mxu0 %v3595
      %v3710 = vpop.f32.mrf.mxu0
      %v3711 = vadd.f32 0.0, %v3710
      %3712 = vmatmul.f32.gmra.mxu0 %v3598
      %v3713 = vpop.f32.mrf.mxu0
      %v3714 = vadd.f32 0.0, %v3713
      %3715 = vmatmul.f32.gmra.mxu0 %v3601
      %v3716 = vpop.f32.mrf.mxu0
      %v3717 = vadd.f32 0.0, %v3716
      %3718 = vmatmul.f32.gmra.mxu0 %v3604
      %v3719 = vpop.f32.mrf.mxu0
      %v3720 = vadd.f32 0.0, %v3719
      %3721 = vmatmul.f32.gmra.mxu0 %v3607
      %v3722 = vpop.f32.mrf.mxu0
      %v3723 = vadd.f32 0.0, %v3722
      %3724 = vmatmul.f32.gmra.mxu0 %v3610
      %v3725 = vpop.f32.mrf.mxu0
      %v3726 = vadd.f32 0.0, %v3725
      %3727 = vmatmul.f32.gmra.mxu0 %v3613
      %v3728 = vpop.f32.mrf.mxu0
      %v3729 = vadd.f32 0.0, %v3728
      %3730 = vmatmul.f32.gmra.mxu0 %v3616
      %v3731 = vpop.f32.mrf.mxu0
      %v3732 = vadd.f32 0.0, %v3731
      %3733 = vmatmul.f32.gmra.mxu0 %v3619
      %v3734 = vpop.f32.mrf.mxu0
      %v3735 = vadd.f32 0.0, %v3734
      %3736 = vmatmul.f32.gmra.mxu0 %v3622
      %v3737 = vpop.f32.mrf.mxu0
      %v3738 = vadd.f32 0.0, %v3737
      %3739 = vmatmul.f32.gmra.mxu0 %v3625
      %v3740 = vpop.f32.mrf.mxu0
      %v3741 = vadd.f32 0.0, %v3740
      %3742 = vmatmul.f32.gmra.mxu0 %v3628
      %v3743 = vpop.f32.mrf.mxu0
      %v3744 = vadd.f32 0.0, %v3743
      %3745 = vmatmul.f32.gmra.mxu0 %v3631
      %v3746 = vpop.f32.mrf.mxu0
      %v3747 = vadd.f32 0.0, %v3746
      %3748 = vmatmul.f32.gmra.mxu0 %v3634
      %v3749 = vpop.f32.mrf.mxu0
      %v3750 = vadd.f32 0.0, %v3749
      %3751 = vmatmul.f32.gmra.mxu0 %v3637
      %v3752 = vpop.f32.mrf.mxu0
      %v3753 = vadd.f32 0.0, %v3752
      %3754 = vmatmul.f32.gmra.mxu0 %v3640
      %v3755 = vpop.f32.mrf.mxu0
      %v3756 = vadd.f32 0.0, %v3755
      %3757 = vmatmul.f32.gmra.mxu0 %v3643
      %v3758 = vpop.f32.mrf.mxu0
      %v3759 = vadd.f32 0.0, %v3758
      %3760 = vmatmul.f32.gmra.mxu0 %v3646
      %v3761 = vpop.f32.mrf.mxu0
      %v3762 = vadd.f32 0.0, %v3761
      %3763 = vdwg.mxu0
      %v3764 = vadd.f32 %v3485, %v3669
      %v3765 = vadd.f32 %v3486, %v3672
      %v3766 = vadd.f32 %v3487, %v3675
      %v3767 = vadd.f32 %v3488, %v3678
      %v3768 = vadd.f32 %v3489, %v3681
      %v3769 = vadd.f32 %v3490, %v3684
      %v3770 = vadd.f32 %v3491, %v3687
      %v3771 = vadd.f32 %v3492, %v3690
      %v3772 = vadd.f32 %v3493, %v3693
      %v3773 = vadd.f32 %v3494, %v3696
      %v3774 = vadd.f32 %v3495, %v3699
      %v3775 = vadd.f32 %v3496, %v3702
      %v3776 = vadd.f32 %v3497, %v3705
      %v3777 = vadd.f32 %v3498, %v3708
      %v3778 = vadd.f32 %v3499, %v3711
      %v3779 = vadd.f32 %v3500, %v3714
      %v3780 = vadd.f32 %v3501, %v3717
      %v3781 = vadd.f32 %v3502, %v3720
      %v3782 = vadd.f32 %v3503, %v3723
      %v3783 = vadd.f32 %v3504, %v3726
      %v3784 = vadd.f32 %v3505, %v3729
      %v3785 = vadd.f32 %v3506, %v3732
      %v3786 = vadd.f32 %v3507, %v3735
      %v3787 = vadd.f32 %v3508, %v3738
      %v3788 = vadd.f32 %v3509, %v3741
      %v3789 = vadd.f32 %v3510, %v3744
      %v3790 = vadd.f32 %v3511, %v3747
      %v3791 = vadd.f32 %v3512, %v3750
      %v3792 = vadd.f32 %v3513, %v3753
      %v3793 = vadd.f32 %v3514, %v3756
      %v3794 = vadd.f32 %v3515, %v3759
      %v3795 = vadd.f32 %v3516, %v3762
      %v3796 = vld [vmem:[%s3237 + $0x2] sm:$0xff]
      %v3797 = vld [vmem:[%s3237 + $0xa] sm:$0xff]
      %v3798 = vld [vmem:[%s3237 + $0x1a] sm:$0xff]
      %v3799 = vld [vmem:[%s3237 + $0x22] sm:$0xff]
      %v3800 = vld [vmem:[%s3237 + $0x32] sm:$0xff]
      %v3801 = vld [vmem:[%s3237 + $0x3a] sm:$0xff]
      %v3802 = vld [vmem:[%s3237 + $0x4a] sm:$0xff]
      %v3803 = vld [vmem:[%s3237 + $0x52] sm:$0xff]
      %v3804 = vld [vmem:[%s3237 + $0x62] sm:$0xff]
      %v3805 = vld [vmem:[%s3237 + $0x6a] sm:$0xff]
      %v3806 = vld [vmem:[%s3237 + $0x7a] sm:$0xff]
      %v3807 = vld [vmem:[%s3237 + $0x82] sm:$0xff]
      %v3808 = vld [vmem:[%s3237 + $0x92] sm:$0xff]
      %v3809 = vld [vmem:[%s3237 + $0x9a] sm:$0xff]
      %v3810 = vld [vmem:[%s3237 + $0xaa] sm:$0xff]
      %v3811 = vld [vmem:[%s3237 + $0xb2] sm:$0xff]
      %v3812 = vld [vmem:[%s3237 + $0xc2] sm:$0xff]
      %v3813 = vld [vmem:[%s3237 + $0xca] sm:$0xff]
      %v3814 = vld [vmem:[%s3237 + $0xda] sm:$0xff]
      %v3815 = vld [vmem:[%s3237 + $0xe2] sm:$0xff]
      %v3816 = vld [vmem:[%s3237 + $0xf2] sm:$0xff]
      %v3817 = vld [vmem:[%s3237 + $0xfa] sm:$0xff]
      %v3818 = vld [vmem:[%s3237 + $0x10a] sm:$0xff]
      %v3819 = vld [vmem:[%s3237 + $0x112] sm:$0xff]
      %v3820 = vld [vmem:[%s3237 + $0x122] sm:$0xff]
      %v3821 = vld [vmem:[%s3237 + $0x12a] sm:$0xff]
      %v3822 = vld [vmem:[%s3237 + $0x13a] sm:$0xff]
      %v3823 = vld [vmem:[%s3237 + $0x142] sm:$0xff]
      %v3824 = vld [vmem:[%s3237 + $0x152] sm:$0xff]
      %v3825 = vld [vmem:[%s3237 + $0x15a] sm:$0xff]
      %v3826 = vld [vmem:[%s3237 + $0x16a] sm:$0xff]
      %v3827 = vld [vmem:[%s3237 + $0x172] sm:$0xff]
      %s3828 = scalar_lea.vmem %s6, 128
      %v3829 = vld [vmem:[%s3828] sm:$0xff]
      %v3830 = vld [vmem:[%s3828 + $0x8] sm:$0xf]
      %v3832 = vsel %vm1042, %v3796, 0
      %v3835 = vsel %vm1042, %v3797, 0
      %v3838 = vsel %vm1042, %v3798, 0
      %v3841 = vsel %vm1042, %v3799, 0
      %v3844 = vsel %vm1042, %v3800, 0
      %v3847 = vsel %vm1042, %v3801, 0
      %v3850 = vsel %vm1042, %v3802, 0
      %v3853 = vsel %vm1042, %v3803, 0
      %v3856 = vsel %vm1042, %v3804, 0
      %v3859 = vsel %vm1042, %v3805, 0
      %v3862 = vsel %vm1042, %v3806, 0
      %v3865 = vsel %vm1042, %v3807, 0
      %v3868 = vsel %vm1042, %v3808, 0
      %v3871 = vsel %vm1042, %v3809, 0
      %v3874 = vsel %vm1042, %v3810, 0
      %v3877 = vsel %vm1042, %v3811, 0
      %v3880 = vsel %vm1042, %v3812, 0
      %v3883 = vsel %vm1042, %v3813, 0
      %v3886 = vsel %vm1042, %v3814, 0
      %v3889 = vsel %vm1042, %v3815, 0
      %v3892 = vsel %vm1042, %v3816, 0
      %v3895 = vsel %vm1042, %v3817, 0
      %v3898 = vsel %vm1042, %v3818, 0
      %v3901 = vsel %vm1042, %v3819, 0
      %v3904 = vsel %vm1042, %v3820, 0
      %v3907 = vsel %vm1042, %v3821, 0
      %v3910 = vsel %vm1042, %v3822, 0
      %v3913 = vsel %vm1042, %v3823, 0
      %v3916 = vsel %vm1042, %v3824, 0
      %v3919 = vsel %vm1042, %v3825, 0
      %v3922 = vsel %vm1042, %v3826, 0
      %v3925 = vsel %vm1042, %v3827, 0
      %v3928 = vsel %vm647, %v3830, 0
      %3930 = vmatpush.msra.mxu0 0.0
      %3931 = vmatpush.msra.mxu0 0.0
      %3932 = vmatpush.msra.mxu0 0.0
      %3933 = vmatpush.msra.mxu0 0.0
      %3934 = vmatpush.msra.mxu0 0.0
      %3935 = vmatpush.msra.mxu0 0.0
      %3936 = vmatpush.msra.mxu0 0.0
      %3937 = vmatpush.msra.mxu0 0.0
      %3938 = vmatpush.msra.mxu0 0.0
      %3939 = vmatpush.msra.mxu0 0.0
      %3940 = vmatpush.msra.mxu0 0.0
      %3941 = vmatpush.msra.mxu0 0.0
      %3942 = vmatpush.msra.mxu0 0.0
      %3943 = vmatpush.msra.mxu0 0.0
      %3944 = vmatpush.msra.mxu0 %v3928
      %3945 = vmatpush.msra.mxu0 %v3829
      %3946 = vmatmul.f32.gmra.mxu0 %v3832
      %v3947 = vpop.f32.mrf.mxu0
      %v3948 = vadd.f32 0.0, %v3947
      %3949 = vmatmul.f32.gmra.mxu0 %v3835
      %v3950 = vpop.f32.mrf.mxu0
      %v3951 = vadd.f32 0.0, %v3950
      %3952 = vmatmul.f32.gmra.mxu0 %v3838
      %v3953 = vpop.f32.mrf.mxu0
      %v3954 = vadd.f32 0.0, %v3953
      %3955 = vmatmul.f32.gmra.mxu0 %v3841
      %v3956 = vpop.f32.mrf.mxu0
      %v3957 = vadd.f32 0.0, %v3956
      %3958 = vmatmul.f32.gmra.mxu0 %v3844
      %v3959 = vpop.f32.mrf.mxu0
      %v3960 = vadd.f32 0.0, %v3959
      %3961 = vmatmul.f32.gmra.mxu0 %v3847
      %v3962 = vpop.f32.mrf.mxu0
      %v3963 = vadd.f32 0.0, %v3962
      %3964 = vmatmul.f32.gmra.mxu0 %v3850
      %v3965 = vpop.f32.mrf.mxu0
      %v3966 = vadd.f32 0.0, %v3965
      %3967 = vmatmul.f32.gmra.mxu0 %v3853
      %v3968 = vpop.f32.mrf.mxu0
      %v3969 = vadd.f32 0.0, %v3968
      %3970 = vmatmul.f32.gmra.mxu0 %v3856
      %v3971 = vpop.f32.mrf.mxu0
      %v3972 = vadd.f32 0.0, %v3971
      %3973 = vmatmul.f32.gmra.mxu0 %v3859
      %v3974 = vpop.f32.mrf.mxu0
      %v3975 = vadd.f32 0.0, %v3974
      %3976 = vmatmul.f32.gmra.mxu0 %v3862
      %v3977 = vpop.f32.mrf.mxu0
      %v3978 = vadd.f32 0.0, %v3977
      %3979 = vmatmul.f32.gmra.mxu0 %v3865
      %v3980 = vpop.f32.mrf.mxu0
      %v3981 = vadd.f32 0.0, %v3980
      %3982 = vmatmul.f32.gmra.mxu0 %v3868
      %v3983 = vpop.f32.mrf.mxu0
      %v3984 = vadd.f32 0.0, %v3983
      %3985 = vmatmul.f32.gmra.mxu0 %v3871
      %v3986 = vpop.f32.mrf.mxu0
      %v3987 = vadd.f32 0.0, %v3986
      %3988 = vmatmul.f32.gmra.mxu0 %v3874
      %v3989 = vpop.f32.mrf.mxu0
      %v3990 = vadd.f32 0.0, %v3989
      %3991 = vmatmul.f32.gmra.mxu0 %v3877
      %v3992 = vpop.f32.mrf.mxu0
      %v3993 = vadd.f32 0.0, %v3992
      %3994 = vmatmul.f32.gmra.mxu0 %v3880
      %v3995 = vpop.f32.mrf.mxu0
      %v3996 = vadd.f32 0.0, %v3995
      %3997 = vmatmul.f32.gmra.mxu0 %v3883
      %v3998 = vpop.f32.mrf.mxu0
      %v3999 = vadd.f32 0.0, %v3998
      %4000 = vmatmul.f32.gmra.mxu0 %v3886
      %v4001 = vpop.f32.mrf.mxu0
      %v4002 = vadd.f32 0.0, %v4001
      %4003 = vmatmul.f32.gmra.mxu0 %v3889
      %v4004 = vpop.f32.mrf.mxu0
      %v4005 = vadd.f32 0.0, %v4004
      %4006 = vmatmul.f32.gmra.mxu0 %v3892
      %v4007 = vpop.f32.mrf.mxu0
      %v4008 = vadd.f32 0.0, %v4007
      %4009 = vmatmul.f32.gmra.mxu0 %v3895
      %v4010 = vpop.f32.mrf.mxu0
      %v4011 = vadd.f32 0.0, %v4010
      %4012 = vmatmul.f32.gmra.mxu0 %v3898
      %v4013 = vpop.f32.mrf.mxu0
      %v4014 = vadd.f32 0.0, %v4013
      %4015 = vmatmul.f32.gmra.mxu0 %v3901
      %v4016 = vpop.f32.mrf.mxu0
      %v4017 = vadd.f32 0.0, %v4016
      %4018 = vmatmul.f32.gmra.mxu0 %v3904
      %v4019 = vpop.f32.mrf.mxu0
      %v4020 = vadd.f32 0.0, %v4019
      %4021 = vmatmul.f32.gmra.mxu0 %v3907
      %v4022 = vpop.f32.mrf.mxu0
      %v4023 = vadd.f32 0.0, %v4022
      %4024 = vmatmul.f32.gmra.mxu0 %v3910
      %v4025 = vpop.f32.mrf.mxu0
      %v4026 = vadd.f32 0.0, %v4025
      %4027 = vmatmul.f32.gmra.mxu0 %v3913
      %v4028 = vpop.f32.mrf.mxu0
      %v4029 = vadd.f32 0.0, %v4028
      %4030 = vmatmul.f32.gmra.mxu0 %v3916
      %v4031 = vpop.f32.mrf.mxu0
      %v4032 = vadd.f32 0.0, %v4031
      %4033 = vmatmul.f32.gmra.mxu0 %v3919
      %v4034 = vpop.f32.mrf.mxu0
      %v4035 = vadd.f32 0.0, %v4034
      %4036 = vmatmul.f32.gmra.mxu0 %v3922
      %v4037 = vpop.f32.mrf.mxu0
      %v4038 = vadd.f32 0.0, %v4037
      %4039 = vmatmul.f32.gmra.mxu0 %v3925
      %v4040 = vpop.f32.mrf.mxu0
      %v4041 = vadd.f32 0.0, %v4040
      %4042 = vdwg.mxu0
      %v4043 = vadd.f32 %v3764, %v3948
      %v4044 = vadd.f32 %v3765, %v3951
      %v4045 = vadd.f32 %v3766, %v3954
      %v4046 = vadd.f32 %v3767, %v3957
      %v4047 = vadd.f32 %v3768, %v3960
      %v4048 = vadd.f32 %v3769, %v3963
      %v4049 = vadd.f32 %v3770, %v3966
      %v4050 = vadd.f32 %v3771, %v3969
      %v4051 = vadd.f32 %v3772, %v3972
      %v4052 = vadd.f32 %v3773, %v3975
      %v4053 = vadd.f32 %v3774, %v3978
      %v4054 = vadd.f32 %v3775, %v3981
      %v4055 = vadd.f32 %v3776, %v3984
      %v4056 = vadd.f32 %v3777, %v3987
      %v4057 = vadd.f32 %v3778, %v3990
      %v4058 = vadd.f32 %v3779, %v3993
      %v4059 = vadd.f32 %v3780, %v3996
      %v4060 = vadd.f32 %v3781, %v3999
      %v4061 = vadd.f32 %v3782, %v4002
      %v4062 = vadd.f32 %v3783, %v4005
      %v4063 = vadd.f32 %v3784, %v4008
      %v4064 = vadd.f32 %v3785, %v4011
      %v4065 = vadd.f32 %v3786, %v4014
      %v4066 = vadd.f32 %v3787, %v4017
      %v4067 = vadd.f32 %v3788, %v4020
      %v4068 = vadd.f32 %v3789, %v4023
      %v4069 = vadd.f32 %v3790, %v4026
      %v4070 = vadd.f32 %v3791, %v4029
      %v4071 = vadd.f32 %v3792, %v4032
      %v4072 = vadd.f32 %v3793, %v4035
      %v4073 = vadd.f32 %v3794, %v4038
      %v4074 = vadd.f32 %v3795, %v4041
      %v4075 = vld [vmem:[%s7] sm:$0x1]
      %v4077 = vperm.slane %v4075, 0
      %v4079 = vadd.f32 %v4043, %v4077
      %v4080 = vadd.f32 %v4044, %v4077
      %v4081 = vadd.f32 %v4045, %v4077
      %v4082 = vadd.f32 %v4046, %v4077
      %v4083 = vadd.f32 %v4047, %v4077
      %v4084 = vadd.f32 %v4048, %v4077
      %v4085 = vadd.f32 %v4049, %v4077
      %v4086 = vadd.f32 %v4050, %v4077
      %v4087 = vadd.f32 %v4051, %v4077
      %v4088 = vadd.f32 %v4052, %v4077
      %v4089 = vadd.f32 %v4053, %v4077
      %v4090 = vadd.f32 %v4054, %v4077
      %v4091 = vadd.f32 %v4055, %v4077
      %v4092 = vadd.f32 %v4056, %v4077
      %v4093 = vadd.f32 %v4057, %v4077
      %v4094 = vadd.f32 %v4058, %v4077
      %v4095 = vadd.f32 %v4059, %v4077
      %v4096 = vadd.f32 %v4060, %v4077
      %v4097 = vadd.f32 %v4061, %v4077
      %v4098 = vadd.f32 %v4062, %v4077
      %v4099 = vadd.f32 %v4063, %v4077
      %v4100 = vadd.f32 %v4064, %v4077
      %v4101 = vadd.f32 %v4065, %v4077
      %v4102 = vadd.f32 %v4066, %v4077
      %v4103 = vadd.f32 %v4067, %v4077
      %v4104 = vadd.f32 %v4068, %v4077
      %v4105 = vadd.f32 %v4069, %v4077
      %v4106 = vadd.f32 %v4070, %v4077
      %v4107 = vadd.f32 %v4071, %v4077
      %v4108 = vadd.f32 %v4072, %v4077
      %v4109 = vadd.f32 %v4073, %v4077
      %v4110 = vadd.f32 %v4074, %v4077
      %4111 = vst.msk [vmem:[%s474] sm:$0xff] %vm550, %v4079
      %4112 = vst.msk [vmem:[%s474 + $0x8] sm:$0xff] %vm550, %v4080
      %4113 = vst.msk [vmem:[%s474 + $0x10] sm:$0xff] %vm550, %v4081
      %4114 = vst.msk [vmem:[%s474 + $0x18] sm:$0xff] %vm550, %v4082
      %4115 = vst.msk [vmem:[%s474 + $0x20] sm:$0xff] %vm550, %v4083
      %4116 = vst.msk [vmem:[%s474 + $0x28] sm:$0xff] %vm550, %v4084
      %4117 = vst.msk [vmem:[%s474 + $0x30] sm:$0xff] %vm550, %v4085
      %4118 = vst.msk [vmem:[%s474 + $0x38] sm:$0xff] %vm550, %v4086
      %4119 = vst.msk [vmem:[%s474 + $0x40] sm:$0xff] %vm550, %v4087
      %4120 = vst.msk [vmem:[%s474 + $0x48] sm:$0xff] %vm550, %v4088
      %4121 = vst.msk [vmem:[%s474 + $0x50] sm:$0xff] %vm550, %v4089
      %4122 = vst.msk [vmem:[%s474 + $0x58] sm:$0xff] %vm550, %v4090
      %4123 = vst.msk [vmem:[%s474 + $0x60] sm:$0xff] %vm550, %v4091
      %4124 = vst.msk [vmem:[%s474 + $0x68] sm:$0xff] %vm550, %v4092
      %4125 = vst.msk [vmem:[%s474 + $0x70] sm:$0xff] %vm550, %v4093
      %4126 = vst.msk [vmem:[%s474 + $0x78] sm:$0xff] %vm550, %v4094
      %4127 = vst.msk [vmem:[%s474 + $0x80] sm:$0xff] %vm550, %v4095
      %4128 = vst.msk [vmem:[%s474 + $0x88] sm:$0xff] %vm550, %v4096
      %4129 = vst.msk [vmem:[%s474 + $0x90] sm:$0xff] %vm550, %v4097
      %4130 = vst.msk [vmem:[%s474 + $0x98] sm:$0xff] %vm550, %v4098
      %4131 = vst.msk [vmem:[%s474 + $0xa0] sm:$0xff] %vm550, %v4099
      %4132 = vst.msk [vmem:[%s474 + $0xa8] sm:$0xff] %vm550, %v4100
      %4133 = vst.msk [vmem:[%s474 + $0xb0] sm:$0xff] %vm550, %v4101
      %4134 = vst.msk [vmem:[%s474 + $0xb8] sm:$0xff] %vm550, %v4102
      %4135 = vst.msk [vmem:[%s474 + $0xc0] sm:$0xff] %vm550, %v4103
      %4136 = vst.msk [vmem:[%s474 + $0xc8] sm:$0xff] %vm550, %v4104
      %4137 = vst.msk [vmem:[%s474 + $0xd0] sm:$0xff] %vm550, %v4105
      %4138 = vst.msk [vmem:[%s474 + $0xd8] sm:$0xff] %vm550, %v4106
      %4139 = vst.msk [vmem:[%s474 + $0xe0] sm:$0xff] %vm550, %v4107
      %4140 = vst.msk [vmem:[%s474 + $0xe8] sm:$0xff] %vm550, %v4108
      %4141 = vst.msk [vmem:[%s474 + $0xf0] sm:$0xff] %vm550, %v4109
      %4142 = vst.msk [vmem:[%s474 + $0xf8] sm:$0xff] %vm550, %v4110
      %v4143 = vsel %vm550, %v4079, 0.0
      %v4144 = vsel %vm550, %v4080, 0.0
      %v4145 = vadd.f32 %v4143, %v4144
      %v4146 = vsel %vm550, %v4081, 0.0
      %v4147 = vadd.f32 %v4145, %v4146
      %v4148 = vsel %vm550, %v4082, 0.0
      %v4149 = vadd.f32 %v4147, %v4148
      %v4150 = vsel %vm550, %v4083, 0.0
      %v4151 = vadd.f32 %v4149, %v4150
      %v4152 = vsel %vm550, %v4084, 0.0
      %v4153 = vadd.f32 %v4151, %v4152
      %v4154 = vsel %vm550, %v4085, 0.0
      %v4155 = vadd.f32 %v4153, %v4154
      %v4156 = vsel %vm550, %v4086, 0.0
      %v4157 = vadd.f32 %v4155, %v4156
      %v4158 = vsel %vm550, %v4087, 0.0
      %v4159 = vadd.f32 %v4157, %v4158
      %v4160 = vsel %vm550, %v4088, 0.0
      %v4161 = vadd.f32 %v4159, %v4160
      %v4162 = vsel %vm550, %v4089, 0.0
      %v4163 = vadd.f32 %v4161, %v4162
      %v4164 = vsel %vm550, %v4090, 0.0
      %v4165 = vadd.f32 %v4163, %v4164
      %v4166 = vsel %vm550, %v4091, 0.0
      %v4167 = vadd.f32 %v4165, %v4166
      %v4168 = vsel %vm550, %v4092, 0.0
      %v4169 = vadd.f32 %v4167, %v4168
      %v4170 = vsel %vm550, %v4093, 0.0
      %v4171 = vadd.f32 %v4169, %v4170
      %v4172 = vsel %vm550, %v4094, 0.0
      %v4173 = vadd.f32 %v4171, %v4172
      %v4174 = vsel %vm550, %v4095, 0.0
      %v4175 = vadd.f32 %v4173, %v4174
      %v4176 = vsel %vm550, %v4096, 0.0
      %v4177 = vadd.f32 %v4175, %v4176
      %v4178 = vsel %vm550, %v4097, 0.0
      %v4179 = vadd.f32 %v4177, %v4178
      %v4180 = vsel %vm550, %v4098, 0.0
      %v4181 = vadd.f32 %v4179, %v4180
      %v4182 = vsel %vm550, %v4099, 0.0
      %v4183 = vadd.f32 %v4181, %v4182
      %v4184 = vsel %vm550, %v4100, 0.0
      %v4185 = vadd.f32 %v4183, %v4184
      %v4186 = vsel %vm550, %v4101, 0.0
      %v4187 = vadd.f32 %v4185, %v4186
      %v4188 = vsel %vm550, %v4102, 0.0
      %v4189 = vadd.f32 %v4187, %v4188
      %v4190 = vsel %vm550, %v4103, 0.0
      %v4191 = vadd.f32 %v4189, %v4190
      %v4192 = vsel %vm550, %v4104, 0.0
      %v4193 = vadd.f32 %v4191, %v4192
      %v4194 = vsel %vm550, %v4105, 0.0
      %v4195 = vadd.f32 %v4193, %v4194
      %v4196 = vsel %vm550, %v4106, 0.0
      %v4197 = vadd.f32 %v4195, %v4196
      %v4198 = vsel %vm550, %v4107, 0.0
      %v4199 = vadd.f32 %v4197, %v4198
      %v4200 = vsel %vm550, %v4108, 0.0
      %v4201 = vadd.f32 %v4199, %v4200
      %v4202 = vsel %vm550, %v4109, 0.0
      %v4203 = vadd.f32 %v4201, %v4202
      %v4204 = vsel %vm550, %v4110, 0.0
      %v4205 = vadd.f32 %v4203, %v4204
      %v4206 = vrot.slane %v4205, 4
      %v4207 = vadd.f32 %v4205, %v4206
      %v4208 = vrot.slane %v4207, 2
      %v4209 = vadd.f32 %v4207, %v4208
      %v4210 = vrot.slane %v4209, 1
      %v4211 = vadd.f32 %v4209, %v4210
      %vm4212 = vcmask 24576
      %4213 = vst.msk [vmem:[%s483] sm:$0x1] %vm4212, %v4211
      %v4214 = vmul.f32 %v4079, %v4079
      %v4215 = vmul.f32 %v4080, %v4080
      %v4216 = vmul.f32 %v4081, %v4081
      %v4217 = vmul.f32 %v4082, %v4082
      %v4218 = vmul.f32 %v4083, %v4083
      %v4219 = vmul.f32 %v4084, %v4084
      %v4220 = vmul.f32 %v4085, %v4085
      %v4221 = vmul.f32 %v4086, %v4086
      %v4222 = vmul.f32 %v4087, %v4087
      %v4223 = vmul.f32 %v4088, %v4088
      %v4224 = vmul.f32 %v4089, %v4089
      %v4225 = vmul.f32 %v4090, %v4090
      %v4226 = vmul.f32 %v4091, %v4091
      %v4227 = vmul.f32 %v4092, %v4092
      %v4228 = vmul.f32 %v4093, %v4093
      %v4229 = vmul.f32 %v4094, %v4094
      %v4230 = vmul.f32 %v4095, %v4095
      %v4231 = vmul.f32 %v4096, %v4096
      %v4232 = vmul.f32 %v4097, %v4097
      %v4233 = vmul.f32 %v4098, %v4098
      %v4234 = vmul.f32 %v4099, %v4099
      %v4235 = vmul.f32 %v4100, %v4100
      %v4236 = vmul.f32 %v4101, %v4101
      %v4237 = vmul.f32 %v4102, %v4102
      %v4238 = vmul.f32 %v4103, %v4103
      %v4239 = vmul.f32 %v4104, %v4104
      %v4240 = vmul.f32 %v4105, %v4105
      %v4241 = vmul.f32 %v4106, %v4106
      %v4242 = vmul.f32 %v4107, %v4107
      %v4243 = vmul.f32 %v4108, %v4108
      %v4244 = vmul.f32 %v4109, %v4109
      %v4245 = vmul.f32 %v4110, %v4110
      %v4246 = vsel %vm550, %v4214, 0.0
      %v4247 = vsel %vm550, %v4215, 0.0
      %v4248 = vadd.f32 %v4246, %v4247
      %v4249 = vsel %vm550, %v4216, 0.0
      %v4250 = vadd.f32 %v4248, %v4249
      %v4251 = vsel %vm550, %v4217, 0.0
      %v4252 = vadd.f32 %v4250, %v4251
      %v4253 = vsel %vm550, %v4218, 0.0
      %v4254 = vadd.f32 %v4252, %v4253
      %v4255 = vsel %vm550, %v4219, 0.0
      %v4256 = vadd.f32 %v4254, %v4255
      %v4257 = vsel %vm550, %v4220, 0.0
      %v4258 = vadd.f32 %v4256, %v4257
      %v4259 = vsel %vm550, %v4221, 0.0
      %v4260 = vadd.f32 %v4258, %v4259
      %v4261 = vsel %vm550, %v4222, 0.0
      %v4262 = vadd.f32 %v4260, %v4261
      %v4263 = vsel %vm550, %v4223, 0.0
      %v4264 = vadd.f32 %v4262, %v4263
      %v4265 = vsel %vm550, %v4224, 0.0
      %v4266 = vadd.f32 %v4264, %v4265
      %v4267 = vsel %vm550, %v4225, 0.0
      %v4268 = vadd.f32 %v4266, %v4267
      %v4269 = vsel %vm550, %v4226, 0.0
      %v4270 = vadd.f32 %v4268, %v4269
      %v4271 = vsel %vm550, %v4227, 0.0
      %v4272 = vadd.f32 %v4270, %v4271
      %v4273 = vsel %vm550, %v4228, 0.0
      %v4274 = vadd.f32 %v4272, %v4273
      %v4275 = vsel %vm550, %v4229, 0.0
      %v4276 = vadd.f32 %v4274, %v4275
      %v4277 = vsel %vm550, %v4230, 0.0
      %v4278 = vadd.f32 %v4276, %v4277
      %v4279 = vsel %vm550, %v4231, 0.0
      %v4280 = vadd.f32 %v4278, %v4279
      %v4281 = vsel %vm550, %v4232, 0.0
      %v4282 = vadd.f32 %v4280, %v4281
      %v4283 = vsel %vm550, %v4233, 0.0
      %v4284 = vadd.f32 %v4282, %v4283
      %v4285 = vsel %vm550, %v4234, 0.0
      %v4286 = vadd.f32 %v4284, %v4285
      %v4287 = vsel %vm550, %v4235, 0.0
      %v4288 = vadd.f32 %v4286, %v4287
      %v4289 = vsel %vm550, %v4236, 0.0
      %v4290 = vadd.f32 %v4288, %v4289
      %v4291 = vsel %vm550, %v4237, 0.0
      %v4292 = vadd.f32 %v4290, %v4291
      %v4293 = vsel %vm550, %v4238, 0.0
      %v4294 = vadd.f32 %v4292, %v4293
      %v4295 = vsel %vm550, %v4239, 0.0
      %v4296 = vadd.f32 %v4294, %v4295
      %v4297 = vsel %vm550, %v4240, 0.0
      %v4298 = vadd.f32 %v4296, %v4297
      %v4299 = vsel %vm550, %v4241, 0.0
      %v4300 = vadd.f32 %v4298, %v4299
      %v4301 = vsel %vm550, %v4242, 0.0
      %v4302 = vadd.f32 %v4300, %v4301
      %v4303 = vsel %vm550, %v4243, 0.0
      %v4304 = vadd.f32 %v4302, %v4303
      %v4305 = vsel %vm550, %v4244, 0.0
      %v4306 = vadd.f32 %v4304, %v4305
      %v4307 = vsel %vm550, %v4245, 0.0
      %v4308 = vadd.f32 %v4306, %v4307
      %v4309 = vrot.slane %v4308, 4
      %v4310 = vadd.f32 %v4308, %v4309
      %v4311 = vrot.slane %v4310, 2
      %v4312 = vadd.f32 %v4310, %v4311
      %v4313 = vrot.slane %v4312, 1
      %v4314 = vadd.f32 %v4312, %v4313
      %4315 = vst.msk [vmem:[%s483 + $0x1] sm:$0x1] %vm4212, %v4314
      %p4316 = scmp.lt.s32.totalorder %s25, 1
      %s4317 = scalar_select %p4316, %s25, 1
      %s4318 = smul.addr %s4317, 32
      %s4319 = smul.addr %s4318, 8
      %s4320 = scalar_lea.vmem %s11, %s4319
      %p4321 = scmp.lt.s32.totalorder %s25, 1
      %s4322 = scalar_select %p4321, %s25, 1
      %s4323 = smul.addr %s4322, 32
      %s4324 = smul.addr %s4323, 8
      %s4325 = scalar_lea.vmem %s12, %s4324
      %p4326 = scmp.lt.s32.totalorder %s25, 1
      %s4327 = scalar_select %p4326, %s25, 1
      %s4328 = smul.addr %s4327, 2
      %s4329 = scalar_lea.vmem %s13, %s4328
      // Predicated region
      $region65: #{_decoder_block_forward.4} parent=63 // pred_check
        %p4330 = pneg %p284
      $region66: #{_decoder_block_forward.4} parent=63 // pred_check_branch
        %4332 = sbr.rel (%p4330) target = $region68
      $region67: #{_decoder_block_forward.4} parent=63 // pred_region
        _
      $region68: #{_decoder_block_forward.4} parent=63 // pred_fallthru
        _
      // Predicated region
      $region69: #{_decoder_block_forward.4} parent=63 // pred_check
        %p4333 = pneg %p310
      $region70: #{_decoder_block_forward.4} parent=63 // pred_check_branch
        %4335 = sbr.rel (%p4333) target = $region72
      $region71: #{_decoder_block_forward.4} parent=63 // pred_region
        _
      $region72: #{_decoder_block_forward.4} parent=63 // pred_fallthru
        _
      // Predicated region
      $region73: #{_decoder_block_forward.4} parent=63 // pred_check
        %p4336 = pneg %p336
      $region74: #{_decoder_block_forward.4} parent=63 // pred_check_branch
        %4338 = sbr.rel (%p4336) target = $region76
      $region75: #{_decoder_block_forward.4} parent=63 // pred_region
        _
      $region76: #{_decoder_block_forward.4} parent=63 // pred_fallthru
        _
    $region64: #{_decoder_block_forward.4} parent=5 // pred_fallthru
      _
    %p4339 = scmp.le.s32.totalorder 2, %s20
    // Predicated region
    $region77: #{_decoder_block_forward.4} parent=5 // pred_check
      %p4340 = pneg %p4339
    $region78: #{_decoder_block_forward.4} parent=5 // pred_check_branch
      %4342 = sbr.rel (%p4340) target = $region80
    $region79: #{_decoder_block_forward.4} parent=5 // pred_region
      %s4343 = ssub.s32 %s20, 2
      // Predicated region
      $region81: #{_decoder_block_forward.4} parent=79 // pred_check
        %p4344 = pneg %p290
      $region82: #{_decoder_block_forward.4} parent=79 // pred_check_branch
        %4346 = sbr.rel (%p4344) target = $region84
      $region83: #{_decoder_block_forward.4} parent=79 // pred_region
        %p4347 = scmp.lt.s32.totalorder %s26, 1
        %s4348 = scalar_select %p4347, %s26, 1
        %s4349 = smul.addr %s4348, 32
        %s4350 = smul.addr %s4349, 8
        %s4351 = scalar_lea.vmem %s11, %s4350
      $region84: #{_decoder_block_forward.4} parent=79 // pred_fallthru
        _
      // Predicated region
      $region85: #{_decoder_block_forward.4} parent=79 // pred_check
        %p4352 = pneg %p316
      $region86: #{_decoder_block_forward.4} parent=79 // pred_check_branch
        %4354 = sbr.rel (%p4352) target = $region88
      $region87: #{_decoder_block_forward.4} parent=79 // pred_region
        %p4355 = scmp.lt.s32.totalorder %s26, 1
        %s4356 = scalar_select %p4355, %s26, 1
        %s4357 = smul.addr %s4356, 32
        %s4358 = smul.addr %s4357, 8
        %s4359 = scalar_lea.vmem %s12, %s4358
      $region88: #{_decoder_block_forward.4} parent=79 // pred_fallthru
        _
      // Predicated region
      $region89: #{_decoder_block_forward.4} parent=79 // pred_check
        %p4360 = pneg %p342
      $region90: #{_decoder_block_forward.4} parent=79 // pred_check_branch
        %4362 = sbr.rel (%p4360) target = $region92
      $region91: #{_decoder_block_forward.4} parent=79 // pred_region
        %p4363 = scmp.lt.s32.totalorder %s26, 1
        %s4364 = scalar_select %p4363, %s26, 1
        %s4365 = smul.addr %s4364, 2
        %s4366 = scalar_lea.vmem %s13, %s4365
      $region92: #{_decoder_block_forward.4} parent=79 // pred_fallthru
        _
    $region80: #{_decoder_block_forward.4} parent=5 // pred_fallthru
      _
  $region6: #{_decoder_block_forward.4} parent=0 // loop_footer
    %s24 = sadd.s32 1, %s20
  $region7: #{_decoder_block_forward.4} parent=0 // loop_footer_branch
    %19 = sbr.rel target = $region3
  $region8: #{_decoder_block_forward.4} parent=0 // loop_exit
    _

</llo_original>
